<compile_context>
chip_gen: v6e
topology: v6e:2x2x1
jax: 0.10.0
libtpu: 0.0.40
codegen_flags: <defaults>
</compile_context>

<pallas_src>
import functools

import jax
import jax.numpy as jnp
from jax import lax
from jax.experimental import pallas as pl
from jax.experimental.pallas import tpu as pltpu

LANE = 128  # TPU lane width: feature / vocab dims padded to multiples of this


def _round_up(x, m):
    return ((x + m - 1) // m) * m


def _pad_rows(x, n_to):
    pad = n_to - x.shape[0]
    if pad <= 0:
        return x
    return jnp.pad(x, [(0, pad)] + [(0, 0)] * (x.ndim - 1))


# --------------------- runtime feature probes (cached) ----------------------

@functools.lru_cache(maxsize=None)
def _buffered_weights_ok():
    """Probe whether pipeline_mode=pl.Buffered(1) works on constant-index specs."""
    try:
        wspec = pl.BlockSpec((1, 8, 128), lambda i: (0, 0, 0),
                             pipeline_mode=pl.Buffered(1))
    except Exception:
        return False

    def k(x_ref, w_ref, o_ref):
        o_ref[...] = x_ref[...] + w_ref[0]

    try:
        f = pl.pallas_call(
            k,
            out_shape=jax.ShapeDtypeStruct((16, 128), jnp.float32),
            grid=(2,),
            in_specs=[pl.BlockSpec((8, 128), lambda i: (i, 0)), wspec],
            out_specs=pl.BlockSpec((8, 128), lambda i: (i, 0)),
            compiler_params=pltpu.CompilerParams(
                dimension_semantics=("parallel",)),
        )
        jax.block_until_ready(
            f(jnp.zeros((16, 128), jnp.float32), jnp.ones((1, 8, 128), jnp.float32)))
        return True
    except Exception:
        return False


@functools.lru_cache(maxsize=None)
def _vmem_limit():
    """Generation-aware scoped-VMEM limit (None -> compiler default)."""
    try:
        cap = int(pltpu.get_tpu_info().vmem_capacity_bytes)
        return max(32 * 1024 * 1024, min(cap // 2, 96 * 1024 * 1024))
    except Exception:
        return None


def _const_spec(shape):
    """BlockSpec for a never-refetched (constant-index) weight/bias slab."""
    idx = lambda *_: (0,) * len(shape)
    if _buffered_weights_ok():
        return pl.BlockSpec(shape, idx, pipeline_mode=pl.Buffered(1))
    return pl.BlockSpec(shape, idx)


# ------------------------------ dense (matmul) ------------------------------

def dense_kernel(x_ref, w_ref, b_ref, o_ref):
    acc = jnp.dot(x_ref[...], w_ref[...],
                  preferred_element_type=jnp.float32) + b_ref[...]
    o_ref[...] = acc.astype(o_ref.dtype)


def dense(x, w_bf16, b_f32, *, tm=128):
    """y = x @ w + b. x is bf16 with rows padded to a multiple of tm; output bf16."""
    n, k = x.shape
    m = w_bf16.shape[1]
    cost = pl.CostEstimate(flops=2 * n * k * m, transcendentals=0,
                           bytes_accessed=2 * n * k + 2 * k * m + 4 * m + 2 * n * m)
    return pl.pallas_call(
        dense_kernel,
        out_shape=jax.ShapeDtypeStruct((n, m), jnp.bfloat16),
        grid=(n // tm,),
        in_specs=[pl.BlockSpec((tm, k), lambda i: (i, 0)),
                  _const_spec((k, m)),
                  _const_spec((1, m))],
        out_specs=pl.BlockSpec((tm, m), lambda i: (i, 0)),
        compiler_params=pltpu.CompilerParams(
            dimension_semantics=("parallel",),
            vmem_limit_bytes=_vmem_limit()),
        cost_estimate=cost,
    )(x, w_bf16, b_f32.reshape(1, m))


# ---------------------- transformer stand-in (attention) --------------------

def attn_kernel(q_ref, k_ref, v_ref, x_ref, wo_ref, o_ref):
    # TODO(synk): `transformer` is an injected module; stand-in is one causal
    # single-head self-attention block with residual (no LayerNorm / FFN).
    q = q_ref[0]                    # (tq, Dp) bf16, Wq already scaled by 1/sqrt(d)
    k = k_ref[0]                    # (T,  Dp) bf16
    v = v_ref[0]                    # (T,  Dp) bf16
    tq = q.shape[0]
    t = k.shape[0]
    # contract on feature axis directly -> no materialized transpose of K
    s = lax.dot_general(q, k, (((1,), (1,)), ((), ())),
                        preferred_element_type=jnp.float32)        # (tq, T)
    qi = pl.program_id(1)
    row = lax.broadcasted_iota(jnp.int32, (tq, t), 0) + qi * tq
    col = lax.broadcasted_iota(jnp.int32, (tq, t), 1)
    s = jnp.where(col <= row, s, jnp.float32(-1e30))               # causal mask
    s = s - jnp.max(s, axis=-1, keepdims=True)
    p = jnp.exp(s)
    p = p * pl.reciprocal(jnp.sum(p, axis=-1, keepdims=True), approx=True)
    a = jnp.dot(p.astype(jnp.bfloat16), v, preferred_element_type=jnp.float32)
    proj = jnp.dot(a.astype(jnp.bfloat16), wo_ref[...],
                   preferred_element_type=jnp.float32)
    o_ref[0] = (x_ref[0].astype(jnp.float32) + proj).astype(o_ref.dtype)


def _pick_tq(t, target=256):
    if t <= target:
        return t
    for cand in range(target, 7, -8):
        if t % cand == 0:
            return cand
    return t


def causal_self_attention(qkv, x_seq, wo, *, tq):
    """qkv: (B, T, 3*Dp) bf16 (fused projection), x_seq: (B, T, Dp) bf16 residual."""
    b, t, dp3 = qkv.shape
    dp = dp3 // 3
    nq = t // tq
    flops = b * (4 * t * t * dp + 2 * t * dp * dp)
    cost = pl.CostEstimate(flops=int(flops), transcendentals=int(b * t * t),
                           bytes_accessed=int(2 * b * t * (3 * dp + 2 * dp) + 2 * dp * dp))
    return pl.pallas_call(
        attn_kernel,
        out_shape=jax.ShapeDtypeStruct((b, t, dp), jnp.bfloat16),
        grid=(b, nq),
        in_specs=[pl.BlockSpec((1, tq, dp), lambda i, qi: (i, qi, 0)),   # Q tile
                  pl.BlockSpec((1, t, dp), lambda i, qi: (i, 0, 1)),     # K (full seq)
                  pl.BlockSpec((1, t, dp), lambda i, qi: (i, 0, 2)),     # V (full seq)
                  pl.BlockSpec((1, tq, dp), lambda i, qi: (i, qi, 0)),   # residual x
                  _const_spec((dp, dp))],                                # Wo
        out_specs=pl.BlockSpec((1, tq, dp), lambda i, qi: (i, qi, 0)),
        compiler_params=pltpu.CompilerParams(
            dimension_semantics=("parallel", "parallel"),
            vmem_limit_bytes=_vmem_limit()),
        cost_estimate=cost,
    )(qkv, qkv, qkv, x_seq, wo)


# ------------- fused per-channel heads + label-smoothed masked CE -----------

def heads_ce_kernel(xe_ref, tgt_ref,
                    w1_ref, b1_ref, w2_ref, b2_ref, w3m_ref, w3oe_ref, b3_ref,
                    logits_ref, stats_ref, *, vocab_sizes, eps, n_valid):
    xe = xe_ref[...]                              # (tm, Kp) bf16  [event_state | embs]
    tgt = tgt_ref[...]                            # (tm, C)  int32
    tm = xe.shape[0]
    vp = b3_ref.shape[-1]
    c_total = len(vocab_sizes)
    neg = jnp.float32(-1e30)

    # hoisted iotas / row-validity mask (JAX does not CSE broadcast/iota)
    col = lax.broadcasted_iota(jnp.int32, (tm, vp), 1)
    row_idx = lax.broadcasted_iota(jnp.int32, (tm, 1), 0) + pl.program_id(0) * tm
    row_mask = (row_idx < n_valid).astype(jnp.float32)            # (tm, 1)
    r8 = lax.broadcasted_iota(jnp.int32, (8, LANE), 0)
    c128 = lax.broadcasted_iota(jnp.int32, (8, LANE), 1)

    mask_sum = jnp.sum(row_mask)                  # same for every channel (mask = ones)
    stats = jnp.zeros((8, LANE), jnp.float32)

    for c, v in enumerate(vocab_sizes):
        # last_mlps[c]: cat([out, emb_0..emb_{c-1}]) is never built — the slab
        # already holds [out | all embs] and W1 rows for channels >= c are zero.
        h = jnp.dot(xe, w1_ref[c], preferred_element_type=jnp.float32) + b1_ref[c]
        h = jnp.where(h > 0, h, jnp.float32(0.01) * h)            # LeakyReLU(0.01)
        mlp = (jnp.dot(h.astype(jnp.bfloat16), w2_ref[c],
                       preferred_element_type=jnp.float32) + b2_ref[c])
        # pre_softmaxes[c]: cat([mlp, out, emb_prefix]) @ W3 split as mlp / [out|emb].
        logit = (jnp.dot(mlp.astype(jnp.bfloat16), w3m_ref[c],
                         preferred_element_type=jnp.float32)
                 + jnp.dot(xe, w3oe_ref[c], preferred_element_type=jnp.float32)
                 + b3_ref[c])                                     # (tm, Vp) f32

        # direct, 128-aligned static-slice store (bf16 slab)
        logits_ref[:, c * vp:(c + 1) * vp] = logit.astype(logits_ref.dtype)

        # label-smoothed masked CE for this channel
        # TODO(synk): external categorical_crossentropy util; smoothing here is
        # eps/V over all classes incl. the target.
        valid = col < v
        lmasked = jnp.where(valid, logit, neg)
        lmax = jnp.max(lmasked, axis=-1, keepdims=True)
        pexp = jnp.exp(lmasked - lmax)
        lse = lmax + jnp.log(jnp.sum(pexp, axis=-1, keepdims=True))
        logp = logit - lse
        tgt_c = tgt[:, c:c + 1]
        picked = jnp.sum(jnp.where(col == tgt_c, logp, 0.0), axis=-1, keepdims=True)
        smooth = jnp.sum(jnp.where(valid, logp, 0.0), axis=-1, keepdims=True)
        nll = -((1.0 - eps) * picked + (eps / v) * smooth)
        loss_sum = jnp.sum(nll * row_mask)
        stats = stats + jnp.where((r8 == 0) & (c128 == c), loss_sum, 0.0)

    stats = stats + jnp.where((r8 == 1) & (c128 < c_total), mask_sum, 0.0)
    stats_ref[0] = stats        # lane-dense (8,128) per-tile partial sums


def fused_heads(xe, tgt, hw, vocab_sizes, eps, *, n_valid, tm=128,
                logits_dtype=jnp.bfloat16):
    npad, kdim = xe.shape
    c = len(vocab_sizes)
    vp = hw['b3'].shape[-1]
    hp = hw['b1'].shape[-1]
    dp = hw['w3m'].shape[1]
    ntiles = npad // tm

    w_names = ('w1', 'b1', 'w2', 'b2', 'w3m', 'w3oe', 'b3')
    w_specs = [_const_spec(hw[name].shape) for name in w_names]

    per_row = 2 * c * (kdim * hp + hp * dp + dp * vp + kdim * vp)
    cost = pl.CostEstimate(
        flops=int(npad * per_row),
        transcendentals=int(npad * c * vp),
        bytes_accessed=int(2 * npad * (kdim + c * vp) + 4 * npad * c
                           + 2 * c * (kdim * hp + hp * dp + dp * vp + kdim * vp)
                           + 4 * c * (hp + dp + vp)))

    return pl.pallas_call(
        functools.partial(heads_ce_kernel, vocab_sizes=tuple(vocab_sizes),
                          eps=eps, n_valid=n_valid),
        out_shape=(jax.ShapeDtypeStruct((npad, c * vp), logits_dtype),
                   jax.ShapeDtypeStruct((ntiles, 8, LANE), jnp.float32)),
        grid=(ntiles,),
        in_specs=[pl.BlockSpec((tm, kdim), lambda i: (i, 0)),
                  pl.BlockSpec((tm, c), lambda i: (i, 0))] + w_specs,
        out_specs=[pl.BlockSpec((tm, c * vp), lambda i: (i, 0)),
                   pl.BlockSpec((1, 8, LANE), lambda i: (i, 0, 0))],
        compiler_params=pltpu.CompilerParams(
            dimension_semantics=("parallel",),
            vmem_limit_bytes=_vmem_limit()),
        cost_estimate=cost,
    )(xe, tgt, *[hw[name] for name in w_names])


# -------------------------------- parameters --------------------------------

def init_params(key, *, num_tokens_per_channel, emb_size, d_model, pos_size, seq_len):
    """Logical parameters with the same shapes as the PyTorch module."""
    c_total = len(num_tokens_per_channel)
    keys = iter(jax.random.split(key, 256))

    def w(shape, scale=0.02):
        return (scale * jax.random.normal(next(keys), shape)).astype(jnp.float32)

    params = {
        'emb': [w((v, emb_size), 0.1) for v in num_tokens_per_channel],
        'pos': w((seq_len, pos_size), 0.1),
        'sos': w((d_model,), 0.1),
        'lt_w': w((emb_size * c_total + pos_size, d_model)),
        'lt_b': jnp.zeros((d_model,), jnp.float32),
        'attn': {'wq': w((d_model, d_model)), 'wk': w((d_model, d_model)),
                 'wv': w((d_model, d_model)), 'wo': w((d_model, d_model))},
    }
    d_last = d_model                                        # transformer.dim_last_layer
    heads = []
    for c, v in enumerate(num_tokens_per_channel):
        din = d_last + c * emb_size
        heads.append({
            'w1': w((din, 4 * d_model)), 'b1': jnp.zeros((4 * d_model,), jnp.float32),
            'w2': w((4 * d_model, d_model)), 'b2': jnp.zeros((d_model,), jnp.float32),
            'w3': w((d_model + din, v)), 'b3': jnp.zeros((v,), jnp.float32),
        })
    params['heads'] = heads
    return params


def prepare_kernel_params(params, *, num_tokens_per_channel, emb_size, d_model):
    """Pad to lane-dense widths, stack concat-weights along K, cast to bf16."""
    c_total = len(num_tokens_per_channel)
    e = emb_size
    ce = c_total * e
    d = d_model
    dp = _round_up(d, LANE)
    hp = _round_up(4 * d, LANE)
    # TODO(synk): per-bucket Vp (group channels by round_up(vocab,128)) when
    # vocab sizes differ widely; single Vp here.
    vp = _round_up(max(num_tokens_per_channel), LANE)
    kdim = _round_up(dp + ce, LANE)              # width of the [out | embs] slab

    def pad2(w, rows, cols):
        return jnp.pad(w, ((0, rows - w.shape[0]), (0, cols - w.shape[1])))

    def place(blocks, rows, cols):
        out = jnp.zeros((rows, cols), jnp.float32)
        for off, a in blocks:
            if a.shape[0] == 0:
                continue
            out = out.at[off:off + a.shape[0], :a.shape[1]].set(a)
        return out

    scale = 1.0 / (d ** 0.5)                     # folded into Wq (no per-score mul)
    kp = {
        'lt_w': pad2(params['lt_w'], params['lt_w'].shape[0], dp).astype(jnp.bfloat16),
        'lt_b': jnp.pad(params['lt_b'], (0, dp - d)).astype(jnp.float32),
        'sos': jnp.pad(params['sos'], (0, dp - d)),
        'wqkv': jnp.concatenate([
            pad2(params['attn']['wq'] * scale, dp, dp),
            pad2(params['attn']['wk'], dp, dp),
            pad2(params['attn']['wv'], dp, dp)], axis=1).astype(jnp.bfloat16),
        'qkv_b': jnp.zeros((3 * dp,), jnp.float32),
        'wo': pad2(params['attn']['wo'], dp, dp).astype(jnp.bfloat16),
    }

    w1s, b1s, w2s, b2s, w3ms, w3oes, b3s = [], [], [], [], [], [], []
    for ci, v in enumerate(num_tokens_per_channel):
        hpar = params['heads'][ci]
        w1 = hpar['w1']                    # (d + ci*E, 4d): [event_state ; emb_prefix]
        w1s.append(place([(0, w1[:d]), (dp, w1[d:])], kdim, hp))
        b1s.append(jnp.pad(hpar['b1'], (0, hp - 4 * d)))
        w2s.append(pad2(hpar['w2'], hp, dp))
        b2s.append(jnp.pad(hpar['b2'], (0, dp - d)))
        w3 = hpar['w3']                    # (2d + ci*E, v): [mlp ; event_state ; emb]
        w3ms.append(pad2(w3[:d], dp, vp))
        w3oes.append(place([(0, w3[d:2 * d]), (dp, w3[2 * d:])], kdim, vp))
        b3s.append(jnp.pad(hpar['b3'], (0, vp - v)))

    kp['heads'] = {
        'w1': jnp.stack(w1s).astype(jnp.bfloat16),      # (C, Kp, Hp)
        'b1': jnp.stack(b1s)[:, None, :],               # (C, 1, Hp) f32
        'w2': jnp.stack(w2s).astype(jnp.bfloat16),      # (C, Hp, Dp)
        'b2': jnp.stack(b2s)[:, None, :],               # (C, 1, Dp) f32
        'w3m': jnp.stack(w3ms).astype(jnp.bfloat16),    # (C, Dp, Vp)
        'w3oe': jnp.stack(w3oes).astype(jnp.bfloat16),  # (C, Kp, Vp)
        'b3': jnp.stack(b3s)[:, None, :],               # (C, 1, Vp) f32
    }
    return kp


# ---------------------------------- forward ----------------------------------

def forward(params, target, *, label_smoothing=0.1):
    """target: (B, T, C) int32 tokens.  Mirrors CausalEventsModelFullCat.forward
    with metadata_dict = {} (no loss_mask, no decoding_start, pe_input_type=None)."""
    b, t, c = target.shape
    e = params['emb'][0].shape[1]
    d = params['sos'].shape[0]
    p_size = params['pos'].shape[1]
    vocab_sizes = tuple(int(tbl.shape[0]) for tbl in params['emb'])
    dp = _round_up(d, LANE)
    vp = _round_up(max(vocab_sizes), LANE)

    kp = prepare_kernel_params(params, num_tokens_per_channel=vocab_sizes,
                               emb_size=e, d_model=d)

    # data_processor.embed: per-channel embedding lookup -> (B, T, C, E)
    target_embedded = jnp.stack(
        [params['emb'][ch][target[:, :, ch]] for ch in range(c)], axis=2)
    emb_flat = target_embedded.reshape(b, t, c * e)

    # TODO(synk): positional_embedding is an injected module; stand-in concats a
    # learned positional table on the feature axis (matches linear_target's fan-in).
    pos = jnp.broadcast_to(params['pos'][None, :t], (b, t, p_size))
    target_seq = jnp.concatenate([emb_flat, pos], axis=-1).astype(jnp.bfloat16)

    n = b * t
    tm = 256 if n >= 256 else 128              # larger row tiles when there is work
    npad = _round_up(n, tm)                    # no trailing rows dropped

    # linear_target (Pallas dense; bf16 MXU operands, bf16 lane-dense output)
    x = dense(_pad_rows(target_seq.reshape(n, -1), npad), kp['lt_w'], kp['lt_b'], tm=tm)
    x = x[:n].reshape(b, t, dp)

    # SOS prepend + drop last (pe_input_type is None branch)
    sos = jnp.broadcast_to(kp['sos'][None, None, :].astype(jnp.bfloat16), (b, 1, dp))
    x_seq = jnp.concatenate([sos, x], axis=1)[:, :-1]

    # fused QKV projection (Wq pre-scaled by 1/sqrt(d)), then query-tiled attention
    qkv = dense(_pad_rows(x_seq.reshape(n, dp), npad), kp['wqkv'], kp['qkv_b'], tm=tm)
    qkv = qkv[:n].reshape(b, t, 3 * dp)
    out = causal_self_attention(qkv, x_seq, kp['wo'], tq=_pick_tq(t))  # (b,t,dp) bf16

    # event_state_to_weights + categorical_crossentropy: one fused Pallas call
    # over the single lane-padded [out | all embeddings] slab.
    ce_w = c * e
    kdim = _round_up(dp + ce_w, LANE)
    parts = [_pad_rows(out.reshape(n, dp), npad),
             _pad_rows(emb_flat.reshape(n, ce_w).astype(jnp.bfloat16), npad)]
    if kdim - dp - ce_w:
        parts.append(jnp.zeros((npad, kdim - dp - ce_w), jnp.bfloat16))
    xe = jnp.concatenate(parts, axis=-1)
    tgt_flat = _pad_rows(target.reshape(n, c).astype(jnp.int32), npad)

    logits_slab, stats = fused_heads(xe, tgt_flat, kp['heads'], vocab_sizes,
                                     label_smoothing, n_valid=n, tm=tm)

    weights_per_category = [
        logits_slab[:n, ch * vp: ch * vp + vocab_sizes[ch]]
        .astype(jnp.float32).reshape(b, t, vocab_sizes[ch])
        for ch in range(c)]

    # masked-mean label-smoothed CE per channel, averaged over channels
    lsum = jnp.sum(stats[:, 0, :c], axis=0)
    msum = jnp.sum(stats[:, 1, :c], axis=0)
    loss = jnp.mean(lsum / (msum + 1e-9))
    return {'loss': loss, 'weights_per_category': weights_per_category}


# ----------------------------------- main ------------------------------------

if __name__ == "__main__":
    B, T, C, E, D, P = 2, 8, 3, 8, 32, 8
    num_tokens_per_channel = [16, 24, 32]

    # warm the runtime feature probes outside of any jit trace
    _buffered_weights_ok()
    _vmem_limit()

    key = jax.random.PRNGKey(0)
    pkey, tkey = jax.random.split(key)
    params = init_params(pkey, num_tokens_per_channel=num_tokens_per_channel,
                         emb_size=E, d_model=D, pos_size=P, seq_len=T)

    tkeys = jax.random.split(tkey, C)
    target = jnp.stack(
        [jax.random.randint(tkeys[ch], (B, T), 0, num_tokens_per_channel[ch])
         for ch in range(C)], axis=-1).astype(jnp.int32)

    fwd = jax.jit(forward)
    result = fwd(params, target)
    jax.block_until_ready(result['loss'])
    for wcat in result['weights_per_category']:
        jax.block_until_ready(wcat)

    assert result['loss'].shape == ()
    assert bool(jnp.isfinite(result['loss']))
    assert [w_.shape for w_ in result['weights_per_category']] == \
           [(B, T, v) for v in num_tokens_per_channel]
    print("KERNEL_OK")
</pallas_src>

<mosaic_0001>
module attributes {stable_mosaic.version = 11 : i64} {
  func.func @k(%arg0: i32, %arg1: memref<8x128xf32, #tpu.memory_space<vmem>>, %arg2: memref<1x8x128xf32, #tpu.memory_space<vmem>>, %arg3: memref<8x128xf32, #tpu.memory_space<vmem>>) attributes {dimension_semantics = [#tpu.dimension_semantics<parallel>], iteration_bounds = array<i64: 2>, scalar_prefetch = 0 : i64, scratch_operands = 0 : i64, tpu.core_type = #tpu.core_type<tc>, window_params = [{transform_indices = @transform_0, window_bounds = array<i64: 8, 128>}, {pipeline_mode = #tpu.pipeline_mode<synchronous>, transform_indices = @transform_1, window_bounds = array<i64: 1, 8, 128>}, {transform_indices = @transform_2, window_bounds = array<i64: 8, 128>}]} {
    %c0 = arith.constant 0 : index
    %c0_0 = arith.constant 0 : index
    %0 = vector.load %arg1[%c0, %c0_0] : memref<8x128xf32, #tpu.memory_space<vmem>>, vector<8x128xf32>
    %c0_1 = arith.constant 0 : index
    %c0_2 = arith.constant 0 : index
    %c0_3 = arith.constant 0 : index
    %1 = vector.load %arg2[%c0_1, %c0_2, %c0_3] : memref<1x8x128xf32, #tpu.memory_space<vmem>>, vector<1x8x128xf32>
    %2 = vector.shape_cast %1 : vector<1x8x128xf32> to vector<8x128xf32>
    %3 = arith.addf %0, %2 : vector<8x128xf32>
    %c0_4 = arith.constant 0 : index
    %c0_5 = arith.constant 0 : index
    %4 = vector.load %arg3[%c0_4, %c0_5] : memref<8x128xf32, #tpu.memory_space<vmem>>, vector<8x128xf32>
    tpu.vector_store %arg3[%c0_4, %c0_5], %3 {strides = array<i32>} : memref<8x128xf32, #tpu.memory_space<vmem>>, vector<8x128xf32>,
    return
  }
  func.func @transform_0(%arg0: i32) -> (i32, i32) {
    %c0_i32 = arith.constant 0 : i32
    %c0_i32_0 = arith.constant 0 : i32
    return %arg0, %c0_i32 : i32, i32
  }
  func.func @transform_1(%arg0: i32) -> (i32, i32, i32) {
    %c0_i32 = arith.constant 0 : i32
    %c0_i32_0 = arith.constant 0 : i32
    %c0_i32_1 = arith.constant 0 : i32
    %c0_i32_2 = arith.constant 0 : i32
    return %c0_i32, %c0_i32_0, %c0_i32_1 : i32, i32, i32
  }
  func.func @transform_2(%arg0: i32) -> (i32, i32) {
    %c0_i32 = arith.constant 0 : i32
    %c0_i32_0 = arith.constant 0 : i32
    return %arg0, %c0_i32 : i32, i32
  }
}

module attributes {stable_mosaic.version = 11 : i64} {
  func.func @dense_kernel(%arg0: i32, %arg1: memref<128x32xbf16, #tpu.memory_space<vmem>>, %arg2: memref<32x128xbf16, #tpu.memory_space<vmem>>, %arg3: memref<1x128xf32, #tpu.memory_space<vmem>>, %arg4: memref<128x128xbf16, #tpu.memory_space<vmem>>) attributes {dimension_semantics = [#tpu.dimension_semantics<parallel>], iteration_bounds = array<i64: 1>, scalar_prefetch = 0 : i64, scratch_operands = 0 : i64, tpu.core_type = #tpu.core_type<tc>, window_params = [{transform_indices = @transform_0, window_bounds = array<i64: 128, 32>}, {pipeline_mode = #tpu.pipeline_mode<synchronous>, transform_indices = @transform_1, window_bounds = array<i64: 32, 128>}, {pipeline_mode = #tpu.pipeline_mode<synchronous>, transform_indices = @transform_2, window_bounds = array<i64: 1, 128>}, {transform_indices = @transform_3, window_bounds = array<i64: 128, 128>}]} {
    %c0 = arith.constant 0 : index
    %c0_0 = arith.constant 0 : index
    %0 = vector.load %arg1[%c0, %c0_0] : memref<128x32xbf16, #tpu.memory_space<vmem>>, vector<128x32xbf16>
    %c0_1 = arith.constant 0 : index
    %c0_2 = arith.constant 0 : index
    %1 = vector.load %arg2[%c0_1, %c0_2] : memref<32x128xbf16, #tpu.memory_space<vmem>>, vector<32x128xbf16>
    %cst = arith.constant dense<0.000000e+00> : vector<128x128xf32>
    %2 = tpu.matmul %0, %1, %cst {dimension_numbers = #tpu.dot_dimension_numbers<[1], [0], [0], [1], [0, 0, 1, 1], [], []>} : vector<128x32xbf16>, vector<32x128xbf16>, vector<128x128xf32> -> vector<128x128xf32>
    %c0_3 = arith.constant 0 : index
    %c0_4 = arith.constant 0 : index
    %3 = vector.load %arg3[%c0_3, %c0_4] : memref<1x128xf32, #tpu.memory_space<vmem>>, vector<1x128xf32>
    %4 = vector.broadcast %3 : vector<1x128xf32> to vector<128x128xf32>
    %5 = arith.addf %2, %4 : vector<128x128xf32>
    %6 = arith.truncf %5 : vector<128x128xf32> to vector<128x128xbf16>
    %c0_5 = arith.constant 0 : index
    %c0_6 = arith.constant 0 : index
    %7 = vector.load %arg4[%c0_5, %c0_6] : memref<128x128xbf16, #tpu.memory_space<vmem>>, vector<128x128xbf16>
    tpu.vector_store %arg4[%c0_5, %c0_6], %6 {strides = array<i32>} : memref<128x128xbf16, #tpu.memory_space<vmem>>, vector<128x128xbf16>,
    return
  }
  func.func @transform_0(%arg0: i32) -> (i32, i32) {
    %c0_i32 = arith.constant 0 : i32
    %c0_i32_0 = arith.constant 0 : i32
    return %arg0, %c0_i32 : i32, i32
  }
  func.func @transform_1(%arg0: i32) -> (i32, i32) {
    %c0_i32 = arith.constant 0 : i32
    %c0_i32_0 = arith.constant 0 : i32
    %c0_i32_1 = arith.constant 0 : i32
    return %c0_i32, %c0_i32_0 : i32, i32
  }
  func.func @transform_2(%arg0: i32) -> (i32, i32) {
    %c0_i32 = arith.constant 0 : i32
    %c0_i32_0 = arith.constant 0 : i32
    %c0_i32_1 = arith.constant 0 : i32
    return %c0_i32, %c0_i32_0 : i32, i32
  }
  func.func @transform_3(%arg0: i32) -> (i32, i32) {
    %c0_i32 = arith.constant 0 : i32
    %c0_i32_0 = arith.constant 0 : i32
    return %arg0, %c0_i32 : i32, i32
  }
}

module attributes {stable_mosaic.version = 11 : i64} {
  func.func @dense_kernel(%arg0: i32, %arg1: memref<128x128xbf16, #tpu.memory_space<vmem>>, %arg2: memref<128x384xbf16, #tpu.memory_space<vmem>>, %arg3: memref<1x384xf32, #tpu.memory_space<vmem>>, %arg4: memref<128x384xbf16, #tpu.memory_space<vmem>>) attributes {dimension_semantics = [#tpu.dimension_semantics<parallel>], iteration_bounds = array<i64: 1>, scalar_prefetch = 0 : i64, scratch_operands = 0 : i64, tpu.core_type = #tpu.core_type<tc>, window_params = [{transform_indices = @transform_0, window_bounds = array<i64: 128, 128>}, {pipeline_mode = #tpu.pipeline_mode<synchronous>, transform_indices = @transform_1, window_bounds = array<i64: 128, 384>}, {pipeline_mode = #tpu.pipeline_mode<synchronous>, transform_indices = @transform_2, window_bounds = array<i64: 1, 384>}, {transform_indices = @transform_3, window_bounds = array<i64: 128, 384>}]} {
    %c0 = arith.constant 0 : index
    %c0_0 = arith.constant 0 : index
    %0 = vector.load %arg1[%c0, %c0_0] : memref<128x128xbf16, #tpu.memory_space<vmem>>, vector<128x128xbf16>
    %c0_1 = arith.constant 0 : index
    %c0_2 = arith.constant 0 : index
    %1 = vector.load %arg2[%c0_1, %c0_2] : memref<128x384xbf16, #tpu.memory_space<vmem>>, vector<128x384xbf16>
    %cst = arith.constant dense<0.000000e+00> : vector<128x384xf32>
    %2 = tpu.matmul %0, %1, %cst {dimension_numbers = #tpu.dot_dimension_numbers<[1], [0], [0], [1], [0, 0, 1, 1], [], []>} : vector<128x128xbf16>, vector<128x384xbf16>, vector<128x384xf32> -> vector<128x384xf32>
    %c0_3 = arith.constant 0 : index
    %c0_4 = arith.constant 0 : index
    %3 = vector.load %arg3[%c0_3, %c0_4] : memref<1x384xf32, #tpu.memory_space<vmem>>, vector<1x384xf32>
    %4 = vector.broadcast %3 : vector<1x384xf32> to vector<128x384xf32>
    %5 = arith.addf %2, %4 : vector<128x384xf32>
    %6 = arith.truncf %5 : vector<128x384xf32> to vector<128x384xbf16>
    %c0_5 = arith.constant 0 : index
    %c0_6 = arith.constant 0 : index
    %7 = vector.load %arg4[%c0_5, %c0_6] : memref<128x384xbf16, #tpu.memory_space<vmem>>, vector<128x384xbf16>
    tpu.vector_store %arg4[%c0_5, %c0_6], %6 {strides = array<i32>} : memref<128x384xbf16, #tpu.memory_space<vmem>>, vector<128x384xbf16>,
    return
  }
  func.func @transform_0(%arg0: i32) -> (i32, i32) {
    %c0_i32 = arith.constant 0 : i32
    %c0_i32_0 = arith.constant 0 : i32
    return %arg0, %c0_i32 : i32, i32
  }
  func.func @transform_1(%arg0: i32) -> (i32, i32) {
    %c0_i32 = arith.constant 0 : i32
    %c0_i32_0 = arith.constant 0 : i32
    %c0_i32_1 = arith.constant 0 : i32
    return %c0_i32, %c0_i32_0 : i32, i32
  }
  func.func @transform_2(%arg0: i32) -> (i32, i32) {
    %c0_i32 = arith.constant 0 : i32
    %c0_i32_0 = arith.constant 0 : i32
    %c0_i32_1 = arith.constant 0 : i32
    return %c0_i32, %c0_i32_0 : i32, i32
  }
  func.func @transform_3(%arg0: i32) -> (i32, i32) {
    %c0_i32 = arith.constant 0 : i32
    %c0_i32_0 = arith.constant 0 : i32
    return %arg0, %c0_i32 : i32, i32
  }
}

module attributes {stable_mosaic.version = 11 : i64} {
  func.func @attn_kernel(%arg0: i32, %arg1: i32, %arg2: memref<1x8x128xbf16, #tpu.memory_space<vmem>>, %arg3: memref<1x8x128xbf16, #tpu.memory_space<vmem>>, %arg4: memref<1x8x128xbf16, #tpu.memory_space<vmem>>, %arg5: memref<1x8x128xbf16, #tpu.memory_space<vmem>>, %arg6: memref<128x128xbf16, #tpu.memory_space<vmem>>, %arg7: memref<1x8x128xbf16, #tpu.memory_space<vmem>>) attributes {dimension_semantics = [#tpu.dimension_semantics<parallel>, #tpu.dimension_semantics<parallel>], iteration_bounds = array<i64: 2, 1>, scalar_prefetch = 0 : i64, scratch_operands = 0 : i64, tpu.core_type = #tpu.core_type<tc>, window_params = [{transform_indices = @transform_0, window_bounds = array<i64: 1, 8, 128>}, {transform_indices = @transform_1, window_bounds = array<i64: 1, 8, 128>}, {transform_indices = @transform_2, window_bounds = array<i64: 1, 8, 128>}, {transform_indices = @transform_3, window_bounds = array<i64: 1, 8, 128>}, {pipeline_mode = #tpu.pipeline_mode<synchronous>, transform_indices = @transform_4, window_bounds = array<i64: 128, 128>}, {transform_indices = @transform_5, window_bounds = array<i64: 1, 8, 128>}]} {
    %c0 = arith.constant 0 : index
    %c0_0 = arith.constant 0 : index
    %c0_1 = arith.constant 0 : index
    %0 = vector.load %arg2[%c0, %c0_0, %c0_1] : memref<1x8x128xbf16, #tpu.memory_space<vmem>>, vector<1x8x128xbf16>
    %1 = vector.shape_cast %0 : vector<1x8x128xbf16> to vector<8x128xbf16>
    %c0_2 = arith.constant 0 : index
    %c0_3 = arith.constant 0 : index
    %c0_4 = arith.constant 0 : index
    %2 = vector.load %arg3[%c0_2, %c0_3, %c0_4] : memref<1x8x128xbf16, #tpu.memory_space<vmem>>, vector<1x8x128xbf16>
    %3 = vector.shape_cast %2 : vector<1x8x128xbf16> to vector<8x128xbf16>
    %c0_5 = arith.constant 0 : index
    %c0_6 = arith.constant 0 : index
    %c0_7 = arith.constant 0 : index
    %4 = vector.load %arg4[%c0_5, %c0_6, %c0_7] : memref<1x8x128xbf16, #tpu.memory_space<vmem>>, vector<1x8x128xbf16>
    %5 = vector.shape_cast %4 : vector<1x8x128xbf16> to vector<8x128xbf16>
    %cst = arith.constant dense<0.000000e+00> : vector<8x8xf32>
    %6 = tpu.matmul %1, %3, %cst {dimension_numbers = #tpu.dot_dimension_numbers<[1], [1], [0], [0], [0, 0, 1, 0], [], []>} : vector<8x128xbf16>, vector<8x128xbf16>, vector<8x8xf32> -> vector<8x8xf32>
    %7 = tpu.iota {dimensions = array<i32: 0>} : vector<8x8xi32>
    %c8_i32 = arith.constant 8 : i32
    %8 = arith.muli %arg1, %c8_i32 : i32
    %9 = vector.broadcast %8 : i32 to vector<8x8xi32>
    %10 = arith.addi %7, %9 : vector<8x8xi32>
    %11 = tpu.iota {dimensions = array<i32: 1>} : vector<8x8xi32>
    %12 = arith.cmpi sle, %11, %10 : vector<8x8xi32>
    %cst_8 = arith.constant -1.000000e+30 : f32
    %13 = vector.broadcast %cst_8 : f32 to vector<8x8xf32>
    %14 = arith.select %12, %6, %13 : vector<8x8xi1>, vector<8x8xf32>
    %cst_9 = arith.constant dense<0xFF800000> : vector<8xf32>
    %15 = vector.multi_reduction <maximumf>, %14, %cst_9 [1] : vector<8x8xf32> to vector<8xf32>
    %16 = vector.shape_cast %15 : vector<8xf32> to vector<8x1xf32>
    %17 = vector.broadcast %16 : vector<8x1xf32> to vector<8x8xf32>
    %18 = arith.subf %14, %17 : vector<8x8xf32>
    %19 = math.exp %18 : vector<8x8xf32>
    %cst_10 = arith.constant dense<0.000000e+00> : vector<8xf32>
    %20 = vector.multi_reduction <add>, %19, %cst_10 [1] : vector<8x8xf32> to vector<8xf32>
    %21 = vector.shape_cast %20 : vector<8xf32> to vector<8x1xf32>
    %22 = tpu.reciprocal %21 {approx = true} : vector<8x1xf32> -> vector<8x1xf32>
    %23 = vector.broadcast %22 : vector<8x1xf32> to vector<8x8xf32>
    %24 = arith.mulf %19, %23 : vector<8x8xf32>
    %25 = arith.truncf %24 : vector<8x8xf32> to vector<8x8xbf16>
    %cst_11 = arith.constant dense<0.000000e+00> : vector<8x128xf32>
    %26 = tpu.matmul %25, %5, %cst_11 {dimension_numbers = #tpu.dot_dimension_numbers<[1], [0], [0], [1], [0, 0, 1, 1], [], []>} : vector<8x8xbf16>, vector<8x128xbf16>, vector<8x128xf32> -> vector<8x128xf32>
    %27 = arith.truncf %26 : vector<8x128xf32> to vector<8x128xbf16>
    %c0_12 = arith.constant 0 : index
    %c0_13 = arith.constant 0 : index
    %28 = vector.load %arg6[%c0_12, %c0_13] : memref<128x128xbf16, #tpu.memory_space<vmem>>, vector<128x128xbf16>
    %cst_14 = arith.constant dense<0.000000e+00> : vector<8x128xf32>
    %29 = tpu.matmul %27, %28, %cst_14 {dimension_numbers = #tpu.dot_dimension_numbers<[1], [0], [0], [1], [0, 0, 1, 1], [], []>} : vector<8x128xbf16>, vector<128x128xbf16>, vector<8x128xf32> -> vector<8x128xf32>
    %c0_15 = arith.constant 0 : index
    %c0_16 = arith.constant 0 : index
    %c0_17 = arith.constant 0 : index
    %30 = vector.load %arg5[%c0_15, %c0_16, %c0_17] : memref<1x8x128xbf16, #tpu.memory_space<vmem>>, vector<1x8x128xbf16>
    %31 = vector.shape_cast %30 : vector<1x8x128xbf16> to vector<8x128xbf16>
    %32 = arith.extf %31 : vector<8x128xbf16> to vector<8x128xf32>
    %33 = arith.addf %32, %29 : vector<8x128xf32>
    %34 = arith.truncf %33 : vector<8x128xf32> to vector<8x128xbf16>
    %c0_18 = arith.constant 0 : index
    %c0_19 = arith.constant 0 : index
    %c0_20 = arith.constant 0 : index
    %35 = vector.load %arg7[%c0_18, %c0_19, %c0_20] : memref<1x8x128xbf16, #tpu.memory_space<vmem>>, vector<1x8x128xbf16>
    %36 = vector.shape_cast %35 : vector<1x8x128xbf16> to vector<8x128xbf16>
    %37 = vector.shape_cast %34 : vector<8x128xbf16> to vector<1x8x128xbf16>
    tpu.vector_store %arg7[%c0_18, %c0_19, %c0_20], %37 {strides = array<i32>} : memref<1x8x128xbf16, #tpu.memory_space<vmem>>, vector<1x8x128xbf16>,
    return
  }
  func.func @transform_0(%arg0: i32, %arg1: i32) -> (i32, i32, i32) {
    %c0_i32 = arith.constant 0 : i32
    %c0_i32_0 = arith.constant 0 : i32
    return %arg0, %arg1, %c0_i32 : i32, i32, i32
  }
  func.func @transform_1(%arg0: i32, %arg1: i32) -> (i32, i32, i32) {
    %c0_i32 = arith.constant 0 : i32
    %c1_i32 = arith.constant 1 : i32
    %c0_i32_0 = arith.constant 0 : i32
    return %arg0, %c0_i32, %c1_i32 : i32, i32, i32
  }
  func.func @transform_2(%arg0: i32, %arg1: i32) -> (i32, i32, i32) {
    %c0_i32 = arith.constant 0 : i32
    %c2_i32 = arith.constant 2 : i32
    %c0_i32_0 = arith.constant 0 : i32
    return %arg0, %c0_i32, %c2_i32 : i32, i32, i32
  }
  func.func @transform_3(%arg0: i32, %arg1: i32) -> (i32, i32, i32) {
    %c0_i32 = arith.constant 0 : i32
    %c0_i32_0 = arith.constant 0 : i32
    return %arg0, %arg1, %c0_i32 : i32, i32, i32
  }
  func.func @transform_4(%arg0: i32, %arg1: i32) -> (i32, i32) {
    %c0_i32 = arith.constant 0 : i32
    %c0_i32_0 = arith.constant 0 : i32
    %c0_i32_1 = arith.constant 0 : i32
    return %c0_i32, %c0_i32_0 : i32, i32
  }
  func.func @transform_5(%arg0: i32, %arg1: i32) -> (i32, i32, i32) {
    %c0_i32 = arith.constant 0 : i32
    %c0_i32_0 = arith.constant 0 : i32
    return %arg0, %arg1, %c0_i32 : i32, i32, i32
  }
}

module attributes {stable_mosaic.version = 11 : i64} {
  func.func @heads_ce_kernel(%arg0: i32, %arg1: memref<128x256xbf16, #tpu.memory_space<vmem>>, %arg2: memref<128x3xi32, #tpu.memory_space<vmem>>, %arg3: memref<3x256x128xbf16, #tpu.memory_space<vmem>>, %arg4: memref<3x1x128xf32, #tpu.memory_space<vmem>>, %arg5: memref<3x128x128xbf16, #tpu.memory_space<vmem>>, %arg6: memref<3x1x128xf32, #tpu.memory_space<vmem>>, %arg7: memref<3x128x128xbf16, #tpu.memory_space<vmem>>, %arg8: memref<3x256x128xbf16, #tpu.memory_space<vmem>>, %arg9: memref<3x1x128xf32, #tpu.memory_space<vmem>>, %arg10: memref<128x384xbf16, #tpu.memory_space<vmem>>, %arg11: memref<1x8x128xf32, #tpu.memory_space<vmem>>) attributes {dimension_semantics = [#tpu.dimension_semantics<parallel>], iteration_bounds = array<i64: 1>, scalar_prefetch = 0 : i64, scratch_operands = 0 : i64, tpu.core_type = #tpu.core_type<tc>, window_params = [{transform_indices = @transform_0, window_bounds = array<i64: 128, 256>}, {transform_indices = @transform_1, window_bounds = array<i64: 128, 3>}, {pipeline_mode = #tpu.pipeline_mode<synchronous>, transform_indices = @transform_2, window_bounds = array<i64: 3, 256, 128>}, {pipeline_mode = #tpu.pipeline_mode<synchronous>, transform_indices = @transform_3, window_bounds = array<i64: 3, 1, 128>}, {pipeline_mode = #tpu.pipeline_mode<synchronous>, transform_indices = @transform_4, window_bounds = array<i64: 3, 128, 128>}, {pipeline_mode = #tpu.pipeline_mode<synchronous>, transform_indices = @transform_5, window_bounds = array<i64: 3, 1, 128>}, {pipeline_mode = #tpu.pipeline_mode<synchronous>, transform_indices = @transform_6, window_bounds = array<i64: 3, 128, 128>}, {pipeline_mode = #tpu.pipeline_mode<synchronous>, transform_indices = @transform_7, window_bounds = array<i64: 3, 256, 128>}, {pipeline_mode = #tpu.pipeline_mode<synchronous>, transform_indices = @transform_8, window_bounds = array<i64: 3, 1, 128>}, {transform_indices = @transform_9, window_bounds = array<i64: 128, 384>}, {transform_indices = @transform_10, window_bounds = array<i64: 1, 8, 128>}]} {
    %c0 = arith.constant 0 : index
    %c0_0 = arith.constant 0 : index
    %0 = vector.load %arg1[%c0, %c0_0] : memref<128x256xbf16, #tpu.memory_space<vmem>>, vector<128x256xbf16>
    %c0_1 = arith.constant 0 : index
    %c0_2 = arith.constant 0 : index
    %1 = vector.load %arg2[%c0_1, %c0_2] : memref<128x3xi32, #tpu.memory_space<vmem>>, vector<128x3xi32>
    %2 = tpu.iota {dimensions = array<i32: 1>} : vector<128x128xi32>
    %3 = tpu.iota {dimensions = array<i32: 0>} : vector<128x1xi32>
    %c128_i32 = arith.constant 128 : i32
    %4 = arith.muli %arg0, %c128_i32 : i32
    %5 = vector.broadcast %4 : i32 to vector<128x1xi32>
    %6 = arith.addi %3, %5 : vector<128x1xi32>
    %c16_i32 = arith.constant 16 : i32
    %7 = vector.broadcast %c16_i32 : i32 to vector<128x1xi32>
    %8 = arith.cmpi slt, %6, %7 : vector<128x1xi32>
    %9 = arith.extui %8 : vector<128x1xi1> to vector<128x1xi32>
    %10 = arith.sitofp %9 : vector<128x1xi32> to vector<128x1xf32>
    %11 = tpu.iota {dimensions = array<i32: 0>} : vector<8x128xi32>
    %12 = tpu.iota {dimensions = array<i32: 1>} : vector<8x128xi32>
    %13 = vector.shape_cast %10 : vector<128x1xf32> to vector<1x128x1xf32>
    %cst = arith.constant dense<0.000000e+00> : vector<1xf32>
    %14 = vector.multi_reduction <add>, %13, %cst [1, 2] : vector<1x128x1xf32> to vector<1xf32>
    %15 = vector.shape_cast %14 : vector<1xf32> to vector<1x1x1xf32>
    %16 = vector.extract %15[0, 0, 0] : f32 from vector<1x1x1xf32>
    %cst_3 = arith.constant 0.000000e+00 : f32
    %17 = vector.broadcast %cst_3 : f32 to vector<8x128xf32>
    %c0_4 = arith.constant 0 : index
    %c0_5 = arith.constant 0 : index
    %c0_6 = arith.constant 0 : index
    %18 = vector.load %arg3[%c0_4, %c0_5, %c0_6] : memref<3x256x128xbf16, #tpu.memory_space<vmem>>, vector<1x256x128xbf16>
    %19 = vector.shape_cast %18 : vector<1x256x128xbf16> to vector<256x128xbf16>
    %cst_7 = arith.constant dense<0.000000e+00> : vector<128x128xf32>
    %20 = tpu.matmul %0, %19, %cst_7 {dimension_numbers = #tpu.dot_dimension_numbers<[1], [0], [0], [1], [0, 0, 1, 1], [], []>} : vector<128x256xbf16>, vector<256x128xbf16>, vector<128x128xf32> -> vector<128x128xf32>
    %c0_8 = arith.constant 0 : index
    %c0_9 = arith.constant 0 : index
    %c0_10 = arith.constant 0 : index
    %21 = vector.load %arg4[%c0_8, %c0_9, %c0_10] : memref<3x1x128xf32, #tpu.memory_space<vmem>>, vector<1x1x128xf32>
    %22 = vector.shape_cast %21 : vector<1x1x128xf32> to vector<1x128xf32>
    %23 = vector.broadcast %22 : vector<1x128xf32> to vector<128x128xf32>
    %24 = arith.addf %20, %23 : vector<128x128xf32>
    %cst_11 = arith.constant 0.000000e+00 : f32
    %25 = vector.broadcast %cst_11 : f32 to vector<128x128xf32>
    %26 = arith.cmpf ogt, %24, %25 : vector<128x128xf32>
    %cst_12 = arith.constant 0.00999999977 : f32
    %27 = vector.broadcast %cst_12 : f32 to vector<128x128xf32>
    %28 = arith.mulf %27, %24 : vector<128x128xf32>
    %29 = arith.select %26, %24, %28 : vector<128x128xi1>, vector<128x128xf32>
    %30 = arith.truncf %29 : vector<128x128xf32> to vector<128x128xbf16>
    %c0_13 = arith.constant 0 : index
    %c0_14 = arith.constant 0 : index
    %c0_15 = arith.constant 0 : index
    %31 = vector.load %arg5[%c0_13, %c0_14, %c0_15] : memref<3x128x128xbf16, #tpu.memory_space<vmem>>, vector<1x128x128xbf16>
    %32 = vector.shape_cast %31 : vector<1x128x128xbf16> to vector<128x128xbf16>
    %cst_16 = arith.constant dense<0.000000e+00> : vector<128x128xf32>
    %33 = tpu.matmul %30, %32, %cst_16 {dimension_numbers = #tpu.dot_dimension_numbers<[1], [0], [0], [1], [0, 0, 1, 1], [], []>} : vector<128x128xbf16>, vector<128x128xbf16>, vector<128x128xf32> -> vector<128x128xf32>
    %c0_17 = arith.constant 0 : index
    %c0_18 = arith.constant 0 : index
    %c0_19 = arith.constant 0 : index
    %34 = vector.load %arg6[%c0_17, %c0_18, %c0_19] : memref<3x1x128xf32, #tpu.memory_space<vmem>>, vector<1x1x128xf32>
    %35 = vector.shape_cast %34 : vector<1x1x128xf32> to vector<1x128xf32>
    %36 = vector.broadcast %35 : vector<1x128xf32> to vector<128x128xf32>
    %37 = arith.addf %33, %36 : vector<128x128xf32>
    %38 = arith.truncf %37 : vector<128x128xf32> to vector<128x128xbf16>
    %c0_20 = arith.constant 0 : index
    %c0_21 = arith.constant 0 : index
    %c0_22 = arith.constant 0 : index
    %39 = vector.load %arg7[%c0_20, %c0_21, %c0_22] : memref<3x128x128xbf16, #tpu.memory_space<vmem>>, vector<1x128x128xbf16>
    %40 = vector.shape_cast %39 : vector<1x128x128xbf16> to vector<128x128xbf16>
    %cst_23 = arith.constant dense<0.000000e+00> : vector<128x128xf32>
    %41 = tpu.matmul %38, %40, %cst_23 {dimension_numbers = #tpu.dot_dimension_numbers<[1], [0], [0], [1], [0, 0, 1, 1], [], []>} : vector<128x128xbf16>, vector<128x128xbf16>, vector<128x128xf32> -> vector<128x128xf32>
    %c0_24 = arith.constant 0 : index
    %c0_25 = arith.constant 0 : index
    %c0_26 = arith.constant 0 : index
    %42 = vector.load %arg8[%c0_24, %c0_25, %c0_26] : memref<3x256x128xbf16, #tpu.memory_space<vmem>>, vector<1x256x128xbf16>
    %43 = vector.shape_cast %42 : vector<1x256x128xbf16> to vector<256x128xbf16>
    %cst_27 = arith.constant dense<0.000000e+00> : vector<128x128xf32>
    %44 = tpu.matmul %0, %43, %cst_27 {dimension_numbers = #tpu.dot_dimension_numbers<[1], [0], [0], [1], [0, 0, 1, 1], [], []>} : vector<128x256xbf16>, vector<256x128xbf16>, vector<128x128xf32> -> vector<128x128xf32>
    %45 = arith.addf %41, %44 : vector<128x128xf32>
    %c0_28 = arith.constant 0 : index
    %c0_29 = arith.constant 0 : index
    %c0_30 = arith.constant 0 : index
    %46 = vector.load %arg9[%c0_28, %c0_29, %c0_30] : memref<3x1x128xf32, #tpu.memory_space<vmem>>, vector<1x1x128xf32>
    %47 = vector.shape_cast %46 : vector<1x1x128xf32> to vector<1x128xf32>
    %48 = vector.broadcast %47 : vector<1x128xf32> to vector<128x128xf32>
    %49 = arith.addf %45, %48 : vector<128x128xf32>
    %50 = arith.truncf %49 : vector<128x128xf32> to vector<128x128xbf16>
    %c0_31 = arith.constant 0 : index
    %c0_32 = arith.constant 0 : index
    %51 = vector.load %arg10[%c0_31, %c0_32] : memref<128x384xbf16, #tpu.memory_space<vmem>>, vector<128x128xbf16>
    tpu.vector_store %arg10[%c0_31, %c0_32], %50 {strides = array<i32>} : memref<128x384xbf16, #tpu.memory_space<vmem>>, vector<128x128xbf16>,
    %c16_i32_33 = arith.constant 16 : i32
    %52 = vector.broadcast %c16_i32_33 : i32 to vector<128x128xi32>
    %53 = arith.cmpi slt, %2, %52 : vector<128x128xi32>
    %cst_34 = arith.constant -1.000000e+30 : f32
    %54 = vector.broadcast %cst_34 : f32 to vector<128x128xf32>
    %55 = arith.select %53, %49, %54 : vector<128x128xi1>, vector<128x128xf32>
    %cst_35 = arith.constant dense<0xFF800000> : vector<128xf32>
    %56 = vector.multi_reduction <maximumf>, %55, %cst_35 [1] : vector<128x128xf32> to vector<128xf32>
    %57 = vector.shape_cast %56 : vector<128xf32> to vector<128x1xf32>
    %58 = vector.broadcast %57 : vector<128x1xf32> to vector<128x128xf32>
    %59 = arith.subf %55, %58 : vector<128x128xf32>
    %60 = math.exp %59 : vector<128x128xf32>
    %cst_36 = arith.constant dense<0.000000e+00> : vector<128xf32>
    %61 = vector.multi_reduction <add>, %60, %cst_36 [1] : vector<128x128xf32> to vector<128xf32>
    %62 = vector.shape_cast %61 : vector<128xf32> to vector<128x1xf32>
    %63 = math.log %62 : vector<128x1xf32>
    %64 = arith.addf %57, %63 : vector<128x1xf32>
    %65 = vector.broadcast %64 : vector<128x1xf32> to vector<128x128xf32>
    %66 = arith.subf %49, %65 : vector<128x128xf32>
    %67 = vector.extract_strided_slice %1 {offsets = [0, 0], sizes = [128, 1], strides = [1, 1]} : vector<128x3xi32> to vector<128x1xi32>
    %68 = vector.broadcast %67 : vector<128x1xi32> to vector<128x128xi32>
    %69 = arith.cmpi eq, %2, %68 : vector<128x128xi32>
    %cst_37 = arith.constant 0.000000e+00 : f32
    %70 = vector.broadcast %cst_37 : f32 to vector<128x128xf32>
    %71 = arith.select %69, %66, %70 : vector<128x128xi1>, vector<128x128xf32>
    %cst_38 = arith.constant dense<0.000000e+00> : vector<128xf32>
    %72 = vector.multi_reduction <add>, %71, %cst_38 [1] : vector<128x128xf32> to vector<128xf32>
    %73 = vector.shape_cast %72 : vector<128xf32> to vector<128x1xf32>
    %cst_39 = arith.constant 0.000000e+00 : f32
    %74 = vector.broadcast %cst_39 : f32 to vector<128x128xf32>
    %75 = arith.select %53, %66, %74 : vector<128x128xi1>, vector<128x128xf32>
    %cst_40 = arith.constant dense<0.000000e+00> : vector<128xf32>
    %76 = vector.multi_reduction <add>, %75, %cst_40 [1] : vector<128x128xf32> to vector<128xf32>
    %77 = vector.shape_cast %76 : vector<128xf32> to vector<128x1xf32>
    %cst_41 = arith.constant 0.899999976 : f32
    %78 = vector.broadcast %cst_41 : f32 to vector<128x1xf32>
    %79 = arith.mulf %78, %73 : vector<128x1xf32>
    %cst_42 = arith.constant 6.250000e-03 : f32
    %80 = vector.broadcast %cst_42 : f32 to vector<128x1xf32>
    %81 = arith.mulf %80, %77 : vector<128x1xf32>
    %82 = arith.addf %79, %81 : vector<128x1xf32>
    %cst_43 = arith.constant 0.000000e+00 : f32
    %83 = vector.broadcast %cst_43 : f32 to vector<128x1xf32>
    %84 = arith.subf %83, %82 : vector<128x1xf32>
    %85 = arith.mulf %84, %10 : vector<128x1xf32>
    %86 = vector.shape_cast %85 : vector<128x1xf32> to vector<1x128x1xf32>
    %cst_44 = arith.constant dense<0.000000e+00> : vector<1xf32>
    %87 = vector.multi_reduction <add>, %86, %cst_44 [1, 2] : vector<1x128x1xf32> to vector<1xf32>
    %88 = vector.shape_cast %87 : vector<1xf32> to vector<1x1x1xf32>
    %89 = vector.extract %88[0, 0, 0] : f32 from vector<1x1x1xf32>
    %c0_i32 = arith.constant 0 : i32
    %90 = vector.broadcast %c0_i32 : i32 to vector<8x128xi32>
    %91 = arith.cmpi eq, %11, %90 : vector<8x128xi32>
    %c0_i32_45 = arith.constant 0 : i32
    %92 = vector.broadcast %c0_i32_45 : i32 to vector<8x128xi32>
    %93 = arith.cmpi eq, %12, %92 : vector<8x128xi32>
    %94 = arith.andi %91, %93 : vector<8x128xi1>
    %cst_46 = arith.constant 0.000000e+00 : f32
    %95 = vector.broadcast %89 : f32 to vector<8x128xf32>
    %96 = vector.broadcast %cst_46 : f32 to vector<8x128xf32>
    %97 = arith.select %94, %95, %96 : vector<8x128xi1>, vector<8x128xf32>
    %98 = arith.addf %17, %97 : vector<8x128xf32>
    %c1 = arith.constant 1 : index
    %c0_47 = arith.constant 0 : index
    %c0_48 = arith.constant 0 : index
    %99 = vector.load %arg3[%c1, %c0_47, %c0_48] : memref<3x256x128xbf16, #tpu.memory_space<vmem>>, vector<1x256x128xbf16>
    %100 = vector.shape_cast %99 : vector<1x256x128xbf16> to vector<256x128xbf16>
    %cst_49 = arith.constant dense<0.000000e+00> : vector<128x128xf32>
    %101 = tpu.matmul %0, %100, %cst_49 {dimension_numbers = #tpu.dot_dimension_numbers<[1], [0], [0], [1], [0, 0, 1, 1], [], []>} : vector<128x256xbf16>, vector<256x128xbf16>, vector<128x128xf32> -> vector<128x128xf32>
    %c1_50 = arith.constant 1 : index
    %c0_51 = arith.constant 0 : index
    %c0_52 = arith.constant 0 : index
    %102 = vector.load %arg4[%c1_50, %c0_51, %c0_52] : memref<3x1x128xf32, #tpu.memory_space<vmem>>, vector<1x1x128xf32>
    %103 = vector.shape_cast %102 : vector<1x1x128xf32> to vector<1x128xf32>
    %104 = vector.broadcast %103 : vector<1x128xf32> to vector<128x128xf32>
    %105 = arith.addf %101, %104 : vector<128x128xf32>
    %cst_53 = arith.constant 0.000000e+00 : f32
    %106 = vector.broadcast %cst_53 : f32 to vector<128x128xf32>
    %107 = arith.cmpf ogt, %105, %106 : vector<128x128xf32>
    %cst_54 = arith.constant 0.00999999977 : f32
    %108 = vector.broadcast %cst_54 : f32 to vector<128x128xf32>
    %109 = arith.mulf %108, %105 : vector<128x128xf32>
    %110 = arith.select %107, %105, %109 : vector<128x128xi1>, vector<128x128xf32>
    %111 = arith.truncf %110 : vector<128x128xf32> to vector<128x128xbf16>
    %c1_55 = arith.constant 1 : index
    %c0_56 = arith.constant 0 : index
    %c0_57 = arith.constant 0 : index
    %112 = vector.load %arg5[%c1_55, %c0_56, %c0_57] : memref<3x128x128xbf16, #tpu.memory_space<vmem>>, vector<1x128x128xbf16>
    %113 = vector.shape_cast %112 : vector<1x128x128xbf16> to vector<128x128xbf16>
    %cst_58 = arith.constant dense<0.000000e+00> : vector<128x128xf32>
    %114 = tpu.matmul %111, %113, %cst_58 {dimension_numbers = #tpu.dot_dimension_numbers<[1], [0], [0], [1], [0, 0, 1, 1], [], []>} : vector<128x128xbf16>, vector<128x128xbf16>, vector<128x128xf32> -> vector<128x128xf32>
    %c1_59 = arith.constant 1 : index
    %c0_60 = arith.constant 0 : index
    %c0_61 = arith.constant 0 : index
    %115 = vector.load %arg6[%c1_59, %c0_60, %c0_61] : memref<3x1x128xf32, #tpu.memory_space<vmem>>, vector<1x1x128xf32>
    %116 = vector.shape_cast %115 : vector<1x1x128xf32> to vector<1x128xf32>
    %117 = vector.broadcast %116 : vector<1x128xf32> to vector<128x128xf32>
    %118 = arith.addf %114, %117 : vector<128x128xf32>
    %119 = arith.truncf %118 : vector<128x128xf32> to vector<128x128xbf16>
    %c1_62 = arith.constant 1 : index
    %c0_63 = arith.constant 0 : index
    %c0_64 = arith.constant 0 : index
    %120 = vector.load %arg7[%c1_62, %c0_63, %c0_64] : memref<3x128x128xbf16, #tpu.memory_space<vmem>>, vector<1x128x128xbf16>
    %121 = vector.shape_cast %120 : vector<1x128x128xbf16> to vector<128x128xbf16>
    %cst_65 = arith.constant dense<0.000000e+00> : vector<128x128xf32>
    %122 = tpu.matmul %119, %121, %cst_65 {dimension_numbers = #tpu.dot_dimension_numbers<[1], [0], [0], [1], [0, 0, 1, 1], [], []>} : vector<128x128xbf16>, vector<128x128xbf16>, vector<128x128xf32> -> vector<128x128xf32>
    %c1_66 = arith.constant 1 : index
    %c0_67 = arith.constant 0 : index
    %c0_68 = arith.constant 0 : index
    %123 = vector.load %arg8[%c1_66, %c0_67, %c0_68] : memref<3x256x128xbf16, #tpu.memory_space<vmem>>, vector<1x256x128xbf16>
    %124 = vector.shape_cast %123 : vector<1x256x128xbf16> to vector<256x128xbf16>
    %cst_69 = arith.constant dense<0.000000e+00> : vector<128x128xf32>
    %125 = tpu.matmul %0, %124, %cst_69 {dimension_numbers = #tpu.dot_dimension_numbers<[1], [0], [0], [1], [0, 0, 1, 1], [], []>} : vector<128x256xbf16>, vector<256x128xbf16>, vector<128x128xf32> -> vector<128x128xf32>
    %126 = arith.addf %122, %125 : vector<128x128xf32>
    %c1_70 = arith.constant 1 : index
    %c0_71 = arith.constant 0 : index
    %c0_72 = arith.constant 0 : index
    %127 = vector.load %arg9[%c1_70, %c0_71, %c0_72] : memref<3x1x128xf32, #tpu.memory_space<vmem>>, vector<1x1x128xf32>
    %128 = vector.shape_cast %127 : vector<1x1x128xf32> to vector<1x128xf32>
    %129 = vector.broadcast %128 : vector<1x128xf32> to vector<128x128xf32>
    %130 = arith.addf %126, %129 : vector<128x128xf32>
    %131 = arith.truncf %130 : vector<128x128xf32> to vector<128x128xbf16>
    %c0_73 = arith.constant 0 : index
    %c128 = arith.constant 128 : index
    %132 = vector.load %arg10[%c0_73, %c128] : memref<128x384xbf16, #tpu.memory_space<vmem>>, vector<128x128xbf16>
    tpu.vector_store %arg10[%c0_73, %c128], %131 {strides = array<i32>} : memref<128x384xbf16, #tpu.memory_space<vmem>>, vector<128x128xbf16>,
    %c24_i32 = arith.constant 24 : i32
    %133 = vector.broadcast %c24_i32 : i32 to vector<128x128xi32>
    %134 = arith.cmpi slt, %2, %133 : vector<128x128xi32>
    %cst_74 = arith.constant -1.000000e+30 : f32
    %135 = vector.broadcast %cst_74 : f32 to vector<128x128xf32>
    %136 = arith.select %134, %130, %135 : vector<128x128xi1>, vector<128x128xf32>
    %cst_75 = arith.constant dense<0xFF800000> : vector<128xf32>
    %137 = vector.multi_reduction <maximumf>, %136, %cst_75 [1] : vector<128x128xf32> to vector<128xf32>
    %138 = vector.shape_cast %137 : vector<128xf32> to vector<128x1xf32>
    %139 = vector.broadcast %138 : vector<128x1xf32> to vector<128x128xf32>
    %140 = arith.subf %136, %139 : vector<128x128xf32>
    %141 = math.exp %140 : vector<128x128xf32>
    %cst_76 = arith.constant dense<0.000000e+00> : vector<128xf32>
    %142 = vector.multi_reduction <add>, %141, %cst_76 [1] : vector<128x128xf32> to vector<128xf32>
    %143 = vector.shape_cast %142 : vector<128xf32> to vector<128x1xf32>
    %144 = math.log %143 : vector<128x1xf32>
    %145 = arith.addf %138, %144 : vector<128x1xf32>
    %146 = vector.broadcast %145 : vector<128x1xf32> to vector<128x128xf32>
    %147 = arith.subf %130, %146 : vector<128x128xf32>
    %148 = vector.extract_strided_slice %1 {offsets = [0, 1], sizes = [128, 1], strides = [1, 1]} : vector<128x3xi32> to vector<128x1xi32>
    %149 = vector.broadcast %148 : vector<128x1xi32> to vector<128x128xi32>
    %150 = arith.cmpi eq, %2, %149 : vector<128x128xi32>
    %cst_77 = arith.constant 0.000000e+00 : f32
    %151 = vector.broadcast %cst_77 : f32 to vector<128x128xf32>
    %152 = arith.select %150, %147, %151 : vector<128x128xi1>, vector<128x128xf32>
    %cst_78 = arith.constant dense<0.000000e+00> : vector<128xf32>
    %153 = vector.multi_reduction <add>, %152, %cst_78 [1] : vector<128x128xf32> to vector<128xf32>
    %154 = vector.shape_cast %153 : vector<128xf32> to vector<128x1xf32>
    %cst_79 = arith.constant 0.000000e+00 : f32
    %155 = vector.broadcast %cst_79 : f32 to vector<128x128xf32>
    %156 = arith.select %134, %147, %155 : vector<128x128xi1>, vector<128x128xf32>
    %cst_80 = arith.constant dense<0.000000e+00> : vector<128xf32>
    %157 = vector.multi_reduction <add>, %156, %cst_80 [1] : vector<128x128xf32> to vector<128xf32>
    %158 = vector.shape_cast %157 : vector<128xf32> to vector<128x1xf32>
    %cst_81 = arith.constant 0.899999976 : f32
    %159 = vector.broadcast %cst_81 : f32 to vector<128x1xf32>
    %160 = arith.mulf %159, %154 : vector<128x1xf32>
    %cst_82 = arith.constant 0.00416666688 : f32
    %161 = vector.broadcast %cst_82 : f32 to vector<128x1xf32>
    %162 = arith.mulf %161, %158 : vector<128x1xf32>
    %163 = arith.addf %160, %162 : vector<128x1xf32>
    %cst_83 = arith.constant 0.000000e+00 : f32
    %164 = vector.broadcast %cst_83 : f32 to vector<128x1xf32>
    %165 = arith.subf %164, %163 : vector<128x1xf32>
    %166 = arith.mulf %165, %10 : vector<128x1xf32>
    %167 = vector.shape_cast %166 : vector<128x1xf32> to vector<1x128x1xf32>
    %cst_84 = arith.constant dense<0.000000e+00> : vector<1xf32>
    %168 = vector.multi_reduction <add>, %167, %cst_84 [1, 2] : vector<1x128x1xf32> to vector<1xf32>
    %169 = vector.shape_cast %168 : vector<1xf32> to vector<1x1x1xf32>
    %170 = vector.extract %169[0, 0, 0] : f32 from vector<1x1x1xf32>
    %c0_i32_85 = arith.constant 0 : i32
    %171 = vector.broadcast %c0_i32_85 : i32 to vector<8x128xi32>
    %172 = arith.cmpi eq, %11, %171 : vector<8x128xi32>
    %c1_i32 = arith.constant 1 : i32
    %173 = vector.broadcast %c1_i32 : i32 to vector<8x128xi32>
    %174 = arith.cmpi eq, %12, %173 : vector<8x128xi32>
    %175 = arith.andi %172, %174 : vector<8x128xi1>
    %cst_86 = arith.constant 0.000000e+00 : f32
    %176 = vector.broadcast %170 : f32 to vector<8x128xf32>
    %177 = vector.broadcast %cst_86 : f32 to vector<8x128xf32>
    %178 = arith.select %175, %176, %177 : vector<8x128xi1>, vector<8x128xf32>
    %179 = arith.addf %98, %178 : vector<8x128xf32>
    %c2 = arith.constant 2 : index
    %c0_87 = arith.constant 0 : index
    %c0_88 = arith.constant 0 : index
    %180 = vector.load %arg3[%c2, %c0_87, %c0_88] : memref<3x256x128xbf16, #tpu.memory_space<vmem>>, vector<1x256x128xbf16>
    %181 = vector.shape_cast %180 : vector<1x256x128xbf16> to vector<256x128xbf16>
    %cst_89 = arith.constant dense<0.000000e+00> : vector<128x128xf32>
    %182 = tpu.matmul %0, %181, %cst_89 {dimension_numbers = #tpu.dot_dimension_numbers<[1], [0], [0], [1], [0, 0, 1, 1], [], []>} : vector<128x256xbf16>, vector<256x128xbf16>, vector<128x128xf32> -> vector<128x128xf32>
    %c2_90 = arith.constant 2 : index
    %c0_91 = arith.constant 0 : index
    %c0_92 = arith.constant 0 : index
    %183 = vector.load %arg4[%c2_90, %c0_91, %c0_92] : memref<3x1x128xf32, #tpu.memory_space<vmem>>, vector<1x1x128xf32>
    %184 = vector.shape_cast %183 : vector<1x1x128xf32> to vector<1x128xf32>
    %185 = vector.broadcast %184 : vector<1x128xf32> to vector<128x128xf32>
    %186 = arith.addf %182, %185 : vector<128x128xf32>
    %cst_93 = arith.constant 0.000000e+00 : f32
    %187 = vector.broadcast %cst_93 : f32 to vector<128x128xf32>
    %188 = arith.cmpf ogt, %186, %187 : vector<128x128xf32>
    %cst_94 = arith.constant 0.00999999977 : f32
    %189 = vector.broadcast %cst_94 : f32 to vector<128x128xf32>
    %190 = arith.mulf %189, %186 : vector<128x128xf32>
    %191 = arith.select %188, %186, %190 : vector<128x128xi1>, vector<128x128xf32>
    %192 = arith.truncf %191 : vector<128x128xf32> to vector<128x128xbf16>
    %c2_95 = arith.constant 2 : index
    %c0_96 = arith.constant 0 : index
    %c0_97 = arith.constant 0 : index
    %193 = vector.load %arg5[%c2_95, %c0_96, %c0_97] : memref<3x128x128xbf16, #tpu.memory_space<vmem>>, vector<1x128x128xbf16>
    %194 = vector.shape_cast %193 : vector<1x128x128xbf16> to vector<128x128xbf16>
    %cst_98 = arith.constant dense<0.000000e+00> : vector<128x128xf32>
    %195 = tpu.matmul %192, %194, %cst_98 {dimension_numbers = #tpu.dot_dimension_numbers<[1], [0], [0], [1], [0, 0, 1, 1], [], []>} : vector<128x128xbf16>, vector<128x128xbf16>, vector<128x128xf32> -> vector<128x128xf32>
    %c2_99 = arith.constant 2 : index
    %c0_100 = arith.constant 0 : index
    %c0_101 = arith.constant 0 : index
    %196 = vector.load %arg6[%c2_99, %c0_100, %c0_101] : memref<3x1x128xf32, #tpu.memory_space<vmem>>, vector<1x1x128xf32>
    %197 = vector.shape_cast %196 : vector<1x1x128xf32> to vector<1x128xf32>
    %198 = vector.broadcast %197 : vector<1x128xf32> to vector<128x128xf32>
    %199 = arith.addf %195, %198 : vector<128x128xf32>
    %200 = arith.truncf %199 : vector<128x128xf32> to vector<128x128xbf16>
    %c2_102 = arith.constant 2 : index
    %c0_103 = arith.constant 0 : index
    %c0_104 = arith.constant 0 : index
    %201 = vector.load %arg7[%c2_102, %c0_103, %c0_104] : memref<3x128x128xbf16, #tpu.memory_space<vmem>>, vector<1x128x128xbf16>
    %202 = vector.shape_cast %201 : vector<1x128x128xbf16> to vector<128x128xbf16>
    %cst_105 = arith.constant dense<0.000000e+00> : vector<128x128xf32>
    %203 = tpu.matmul %200, %202, %cst_105 {dimension_numbers = #tpu.dot_dimension_numbers<[1], [0], [0], [1], [0, 0, 1, 1], [], []>} : vector<128x128xbf16>, vector<128x128xbf16>, vector<128x128xf32> -> vector<128x128xf32>
    %c2_106 = arith.constant 2 : index
    %c0_107 = arith.constant 0 : index
    %c0_108 = arith.constant 0 : index
    %204 = vector.load %arg8[%c2_106, %c0_107, %c0_108] : memref<3x256x128xbf16, #tpu.memory_space<vmem>>, vector<1x256x128xbf16>
    %205 = vector.shape_cast %204 : vector<1x256x128xbf16> to vector<256x128xbf16>
    %cst_109 = arith.constant dense<0.000000e+00> : vector<128x128xf32>
    %206 = tpu.matmul %0, %205, %cst_109 {dimension_numbers = #tpu.dot_dimension_numbers<[1], [0], [0], [1], [0, 0, 1, 1], [], []>} : vector<128x256xbf16>, vector<256x128xbf16>, vector<128x128xf32> -> vector<128x128xf32>
    %207 = arith.addf %203, %206 : vector<128x128xf32>
    %c2_110 = arith.constant 2 : index
    %c0_111 = arith.constant 0 : index
    %c0_112 = arith.constant 0 : index
    %208 = vector.load %arg9[%c2_110, %c0_111, %c0_112] : memref<3x1x128xf32, #tpu.memory_space<vmem>>, vector<1x1x128xf32>
    %209 = vector.shape_cast %208 : vector<1x1x128xf32> to vector<1x128xf32>
    %210 = vector.broadcast %209 : vector<1x128xf32> to vector<128x128xf32>
    %211 = arith.addf %207, %210 : vector<128x128xf32>
    %212 = arith.truncf %211 : vector<128x128xf32> to vector<128x128xbf16>
    %c0_113 = arith.constant 0 : index
    %c256 = arith.constant 256 : index
    %213 = vector.load %arg10[%c0_113, %c256] : memref<128x384xbf16, #tpu.memory_space<vmem>>, vector<128x128xbf16>
    tpu.vector_store %arg10[%c0_113, %c256], %212 {strides = array<i32>} : memref<128x384xbf16, #tpu.memory_space<vmem>>, vector<128x128xbf16>,
    %c32_i32 = arith.constant 32 : i32
    %214 = vector.broadcast %c32_i32 : i32 to vector<128x128xi32>
    %215 = arith.cmpi slt, %2, %214 : vector<128x128xi32>
    %cst_114 = arith.constant -1.000000e+30 : f32
    %216 = vector.broadcast %cst_114 : f32 to vector<128x128xf32>
    %217 = arith.select %215, %211, %216 : vector<128x128xi1>, vector<128x128xf32>
    %cst_115 = arith.constant dense<0xFF800000> : vector<128xf32>
    %218 = vector.multi_reduction <maximumf>, %217, %cst_115 [1] : vector<128x128xf32> to vector<128xf32>
    %219 = vector.shape_cast %218 : vector<128xf32> to vector<128x1xf32>
    %220 = vector.broadcast %219 : vector<128x1xf32> to vector<128x128xf32>
    %221 = arith.subf %217, %220 : vector<128x128xf32>
    %222 = math.exp %221 : vector<128x128xf32>
    %cst_116 = arith.constant dense<0.000000e+00> : vector<128xf32>
    %223 = vector.multi_reduction <add>, %222, %cst_116 [1] : vector<128x128xf32> to vector<128xf32>
    %224 = vector.shape_cast %223 : vector<128xf32> to vector<128x1xf32>
    %225 = math.log %224 : vector<128x1xf32>
    %226 = arith.addf %219, %225 : vector<128x1xf32>
    %227 = vector.broadcast %226 : vector<128x1xf32> to vector<128x128xf32>
    %228 = arith.subf %211, %227 : vector<128x128xf32>
    %229 = vector.extract_strided_slice %1 {offsets = [0, 2], sizes = [128, 1], strides = [1, 1]} : vector<128x3xi32> to vector<128x1xi32>
    %230 = vector.broadcast %229 : vector<128x1xi32> to vector<128x128xi32>
    %231 = arith.cmpi eq, %2, %230 : vector<128x128xi32>
    %cst_117 = arith.constant 0.000000e+00 : f32
    %232 = vector.broadcast %cst_117 : f32 to vector<128x128xf32>
    %233 = arith.select %231, %228, %232 : vector<128x128xi1>, vector<128x128xf32>
    %cst_118 = arith.constant dense<0.000000e+00> : vector<128xf32>
    %234 = vector.multi_reduction <add>, %233, %cst_118 [1] : vector<128x128xf32> to vector<128xf32>
    %235 = vector.shape_cast %234 : vector<128xf32> to vector<128x1xf32>
    %cst_119 = arith.constant 0.000000e+00 : f32
    %236 = vector.broadcast %cst_119 : f32 to vector<128x128xf32>
    %237 = arith.select %215, %228, %236 : vector<128x128xi1>, vector<128x128xf32>
    %cst_120 = arith.constant dense<0.000000e+00> : vector<128xf32>
    %238 = vector.multi_reduction <add>, %237, %cst_120 [1] : vector<128x128xf32> to vector<128xf32>
    %239 = vector.shape_cast %238 : vector<128xf32> to vector<128x1xf32>
    %cst_121 = arith.constant 0.899999976 : f32
    %240 = vector.broadcast %cst_121 : f32 to vector<128x1xf32>
    %241 = arith.mulf %240, %235 : vector<128x1xf32>
    %cst_122 = arith.constant 3.125000e-03 : f32
    %242 = vector.broadcast %cst_122 : f32 to vector<128x1xf32>
    %243 = arith.mulf %242, %239 : vector<128x1xf32>
    %244 = arith.addf %241, %243 : vector<128x1xf32>
    %cst_123 = arith.constant 0.000000e+00 : f32
    %245 = vector.broadcast %cst_123 : f32 to vector<128x1xf32>
    %246 = arith.subf %245, %244 : vector<128x1xf32>
    %247 = arith.mulf %246, %10 : vector<128x1xf32>
    %248 = vector.shape_cast %247 : vector<128x1xf32> to vector<1x128x1xf32>
    %cst_124 = arith.constant dense<0.000000e+00> : vector<1xf32>
    %249 = vector.multi_reduction <add>, %248, %cst_124 [1, 2] : vector<1x128x1xf32> to vector<1xf32>
    %250 = vector.shape_cast %249 : vector<1xf32> to vector<1x1x1xf32>
    %251 = vector.extract %250[0, 0, 0] : f32 from vector<1x1x1xf32>
    %c0_i32_125 = arith.constant 0 : i32
    %252 = vector.broadcast %c0_i32_125 : i32 to vector<8x128xi32>
    %253 = arith.cmpi eq, %11, %252 : vector<8x128xi32>
    %c2_i32 = arith.constant 2 : i32
    %254 = vector.broadcast %c2_i32 : i32 to vector<8x128xi32>
    %255 = arith.cmpi eq, %12, %254 : vector<8x128xi32>
    %256 = arith.andi %253, %255 : vector<8x128xi1>
    %cst_126 = arith.constant 0.000000e+00 : f32
    %257 = vector.broadcast %251 : f32 to vector<8x128xf32>
    %258 = vector.broadcast %cst_126 : f32 to vector<8x128xf32>
    %259 = arith.select %256, %257, %258 : vector<8x128xi1>, vector<8x128xf32>
    %260 = arith.addf %179, %259 : vector<8x128xf32>
    %c1_i32_127 = arith.constant 1 : i32
    %261 = vector.broadcast %c1_i32_127 : i32 to vector<8x128xi32>
    %262 = arith.cmpi eq, %11, %261 : vector<8x128xi32>
    %c3_i32 = arith.constant 3 : i32
    %263 = vector.broadcast %c3_i32 : i32 to vector<8x128xi32>
    %264 = arith.cmpi slt, %12, %263 : vector<8x128xi32>
    %265 = arith.andi %262, %264 : vector<8x128xi1>
    %cst_128 = arith.constant 0.000000e+00 : f32
    %266 = vector.broadcast %16 : f32 to vector<8x128xf32>
    %267 = vector.broadcast %cst_128 : f32 to vector<8x128xf32>
    %268 = arith.select %265, %266, %267 : vector<8x128xi1>, vector<8x128xf32>
    %269 = arith.addf %260, %268 : vector<8x128xf32>
    %c0_129 = arith.constant 0 : index
    %c0_130 = arith.constant 0 : index
    %c0_131 = arith.constant 0 : index
    %270 = vector.load %arg11[%c0_129, %c0_130, %c0_131] : memref<1x8x128xf32, #tpu.memory_space<vmem>>, vector<1x8x128xf32>
    %271 = vector.shape_cast %270 : vector<1x8x128xf32> to vector<8x128xf32>
    %272 = vector.shape_cast %269 : vector<8x128xf32> to vector<1x8x128xf32>
    tpu.vector_store %arg11[%c0_129, %c0_130, %c0_131], %272 {strides = array<i32>} : memref<1x8x128xf32, #tpu.memory_space<vmem>>, vector<1x8x128xf32>,
    return
  }
  func.func @transform_0(%arg0: i32) -> (i32, i32) {
    %c0_i32 = arith.constant 0 : i32
    %c0_i32_0 = arith.constant 0 : i32
    return %arg0, %c0_i32 : i32, i32
  }
  func.func @transform_1(%arg0: i32) -> (i32, i32) {
    %c0_i32 = arith.constant 0 : i32
    %c0_i32_0 = arith.constant 0 : i32
    return %arg0, %c0_i32 : i32, i32
  }
  func.func @transform_2(%arg0: i32) -> (i32, i32, i32) {
    %c0_i32 = arith.constant 0 : i32
    %c0_i32_0 = arith.constant 0 : i32
    %c0_i32_1 = arith.constant 0 : i32
    %c0_i32_2 = arith.constant 0 : i32
    return %c0_i32, %c0_i32_0, %c0_i32_1 : i32, i32, i32
  }
  func.func @transform_3(%arg0: i32) -> (i32, i32, i32) {
    %c0_i32 = arith.constant 0 : i32
    %c0_i32_0 = arith.constant 0 : i32
    %c0_i32_1 = arith.constant 0 : i32
    %c0_i32_2 = arith.constant 0 : i32
    return %c0_i32, %c0_i32_0, %c0_i32_1 : i32, i32, i32
  }
  func.func @transform_4(%arg0: i32) -> (i32, i32, i32) {
    %c0_i32 = arith.constant 0 : i32
    %c0_i32_0 = arith.constant 0 : i32
    %c0_i32_1 = arith.constant 0 : i32
    %c0_i32_2 = arith.constant 0 : i32
    return %c0_i32, %c0_i32_0, %c0_i32_1 : i32, i32, i32
  }
  func.func @transform_5(%arg0: i32) -> (i32, i32, i32) {
    %c0_i32 = arith.constant 0 : i32
    %c0_i32_0 = arith.constant 0 : i32
    %c0_i32_1 = arith.constant 0 : i32
    %c0_i32_2 = arith.constant 0 : i32
    return %c0_i32, %c0_i32_0, %c0_i32_1 : i32, i32, i32
  }
  func.func @transform_6(%arg0: i32) -> (i32, i32, i32) {
    %c0_i32 = arith.constant 0 : i32
    %c0_i32_0 = arith.constant 0 : i32
    %c0_i32_1 = arith.constant 0 : i32
    %c0_i32_2 = arith.constant 0 : i32
    return %c0_i32, %c0_i32_0, %c0_i32_1 : i32, i32, i32
  }
  func.func @transform_7(%arg0: i32) -> (i32, i32, i32) {
    %c0_i32 = arith.constant 0 : i32
    %c0_i32_0 = arith.constant 0 : i32
    %c0_i32_1 = arith.constant 0 : i32
    %c0_i32_2 = arith.constant 0 : i32
    return %c0_i32, %c0_i32_0, %c0_i32_1 : i32, i32, i32
  }
  func.func @transform_8(%arg0: i32) -> (i32, i32, i32) {
    %c0_i32 = arith.constant 0 : i32
    %c0_i32_0 = arith.constant 0 : i32
    %c0_i32_1 = arith.constant 0 : i32
    %c0_i32_2 = arith.constant 0 : i32
    return %c0_i32, %c0_i32_0, %c0_i32_1 : i32, i32, i32
  }
  func.func @transform_9(%arg0: i32) -> (i32, i32) {
    %c0_i32 = arith.constant 0 : i32
    %c0_i32_0 = arith.constant 0 : i32
    return %arg0, %c0_i32 : i32, i32
  }
  func.func @transform_10(%arg0: i32) -> (i32, i32, i32) {
    %c0_i32 = arith.constant 0 : i32
    %c0_i32_0 = arith.constant 0 : i32
    %c0_i32_1 = arith.constant 0 : i32
    return %arg0, %c0_i32, %c0_i32_0 : i32, i32, i32
  }
}

</mosaic_0001>

<llo_original>
// kernel: tpu_custom_call.1
$region0: #{tpu_custom_call.1}
  #allocation0 [shape = 'u32[]', space=smem, size = 0x4, offset = 0x4, fixed_abs, tag = 'smem constant byte address 0x4 - core index']
  #allocation1 [shape = 'u32[144,128]{1,0:T(1,128)}', space=vmem, size = 0x12000, scoped, tag = 'internal scratch']
  %s0 = inlined_call_operand.hbm [shape: f32[16,128], index: 0, kind: input, shape index: {}]
  %s1 = inlined_call_operand.hbm [shape: f32[1,8,128], index: 1, kind: input, shape index: {}]
  %s2 = inlined_call_operand.hbm [shape: f32[16,128], index: 2, kind: output, shape index: {}]
  %s3 = sld [smem:[#allocation0]]
  $region49: #{tpu_custom_call.1} parent=0
    _
  %s5 = ssub.s32 1, %s3
  %s6 = scalar_select 0, %s5, %s3
  $region1: #{tpu_custom_call.1} parent=0
    #allocation2 [shape = 'u8[8192]{0}', space=vmem, size = 0x2000, scoped, tag = 'input window, operand 0']
    #allocation3 [shape = 's32[2]{0}', space=sflag, size = 0x8, scoped, tag = 'scoped memory for tpu_custom_call.1']
    #allocation4 [shape = 's32[2]{0}', space=sflag, size = 0x8, scoped, tag = 'scoped memory for tpu_custom_call.1']
    #allocation5 [shape = 'u8[4096]{0}', space=vmem, size = 0x1000, scoped, tag = 'input window, operand 1, single buffered']
    #allocation6 [shape = 's32[1]{0}', space=sflag, size = 0x4, scoped, tag = 'scoped memory for tpu_custom_call.1']
    #allocation7 [shape = 'u8[8192]{0}', space=vmem, size = 0x2000, scoped, tag = 'output window, operand 0']
    %7 = vsyncpa [#allocation3], 0
    %s8 = scalar_lea.sflag [#allocation3], 1
    %9 = vsyncpa %s8, 0
    %10 = vsyncpa [#allocation6], 0
    %11 = vsyncpa [#allocation4], 0
    %s12 = scalar_lea.sflag [#allocation4], 1
    %13 = vsyncpa %s12, 0
    loop: start=0, step=1, limit=4
    $region2: #{tpu_custom_call.1} parent=1 // loop_pre_header
      _
    $region3: #{tpu_custom_call.1} parent=1 // loop_header
      %s15 = sphi 0, %s19
      %p16 = scmp.ge.s32.totalorder %s15, 4
      %s25 = sphi 0, %s27
      %s28 = sphi 0, %s25
      %s29 = sphi 0, %s28
      %s45 = sphi 0, %s29
      %s49 = sphi 0, %s49
      %s51 = sphi 0, %s49
      %s52 = sphi 0, %s51
      %s66 = sphi 0, %s52
      %s72 = sphi 0, %s74
      %s75 = sphi 0, %s72
      %s76 = sphi 0, %s75
      %s92 = sphi 0, %s76
    $region4: #{tpu_custom_call.1} parent=1 // loop_header_branch
      %18 = sbr.rel (%p16) target = $region8
    $region5: #{tpu_custom_call.1} parent=1 // loop_body
      %s20 = ssub.s32 %s15, 1
      %s21 = ssub.s32 %s15, 2
      %s22 = sadd.s32 %s15, 1
      %s23 = ssub.s32 %s15, %s22
      %p24 = scmp.eq.s32.totalorder %s23, 0
      %s26 = sadd.s32 %s25, 1
      %s27 = scalar_select %p24, %s25, %s26
      %p30 = pneg %p24
      %p31 = scmp.eq.s32.totalorder %s15, 1
      %p32 = por %p30, %p31
      %p33 = scmp.ne.s32.totalorder %s25, %s28
      %p34 = scmp.eq.s32.totalorder %s15, 0
      %p35 = por %p33, %p34
      %p36 = scmp.ne.s32.totalorder %s25, %s28
      %p37 = scmp.eq.s32.totalorder %s20, 1
      %p38 = por %p36, %p37
      %p39 = scmp.ne.s32.totalorder %s28, %s29
      %p40 = scmp.eq.s32.totalorder %s20, 0
      %p41 = por %p39, %p40
      %p42 = scmp.ne.s32.totalorder %s28, %s29
      %p43 = scmp.eq.s32.totalorder %s21, 1
      %p44 = por %p42, %p43
      %p46 = scmp.ne.s32.totalorder %s29, %s45
      %p47 = scmp.eq.s32.totalorder %s21, 0
      %p48 = por %p46, %p47
      %s50 = sadd.s32 %s49, 1
      %p53 = scmp.eq.s32.totalorder %s15, 1
      %p54 = scmp.ne.s32.totalorder %s49, %s51
      %p55 = scmp.eq.s32.totalorder %s15, 0
      %p56 = por %p54, %p55
      %p57 = scmp.ne.s32.totalorder %s49, %s51
      %p58 = scmp.eq.s32.totalorder %s20, 1
      %p59 = por %p57, %p58
      %p60 = scmp.ne.s32.totalorder %s51, %s52
      %p61 = scmp.eq.s32.totalorder %s20, 0
      %p62 = por %p60, %p61
      %p63 = scmp.ne.s32.totalorder %s51, %s52
      %p64 = scmp.eq.s32.totalorder %s21, 1
      %p65 = por %p63, %p64
      %p67 = scmp.ne.s32.totalorder %s52, %s66
      %p68 = scmp.eq.s32.totalorder %s21, 0
      %p69 = por %p67, %p68
      %s70 = ssub.s32 %s15, %s22
      %p71 = scmp.eq.s32.totalorder %s70, 0
      %s73 = sadd.s32 %s72, 1
      %s74 = scalar_select %p71, %s72, %s73
      %p77 = pneg %p71
      %p78 = scmp.eq.s32.totalorder %s15, 1
      %p79 = por %p77, %p78
      %p80 = scmp.ne.s32.totalorder %s72, %s75
      %p81 = scmp.eq.s32.totalorder %s15, 0
      %p82 = por %p80, %p81
      %p83 = scmp.ne.s32.totalorder %s72, %s75
      %p84 = scmp.eq.s32.totalorder %s20, 1
      %p85 = por %p83, %p84
      %p86 = scmp.ne.s32.totalorder %s75, %s76
      %p87 = scmp.eq.s32.totalorder %s20, 0
      %p88 = por %p86, %p87
      %p89 = scmp.ne.s32.totalorder %s75, %s76
      %p90 = scmp.eq.s32.totalorder %s21, 1
      %p91 = por %p89, %p90
      %p93 = scmp.ne.s32.totalorder %s76, %s92
      %p94 = scmp.eq.s32.totalorder %s21, 0
      %p95 = por %p93, %p94
      %p96 = scmp.le.s32.totalorder 1, %s15
      %p97 = scmp.lt.s32.totalorder %s15, 3
      %p98 = pnand %p96, %p97
      %p99 = pneg %p98
      // Predicated region
      $region9: #{tpu_custom_call.1} parent=5 // pred_check
        _
      $region10: #{tpu_custom_call.1} parent=5 // pred_check_branch
        %101 = sbr.rel (%p98) target = $region12
      $region11: #{tpu_custom_call.1} parent=5 // pred_region
        %s102 = ssub.s32 %s15, 1
        // Predicated region
        $region13: #{tpu_custom_call.1} parent=11 // pred_check
          %p103 = pneg %p62
        $region14: #{tpu_custom_call.1} parent=11 // pred_check_branch
          %105 = sbr.rel (%p103) target = $region16
        $region15: #{tpu_custom_call.1} parent=11 // pred_region
          %s107 = ssub.s32 128, 128
          %108 = vsyncadd [#allocation6], %s107
          %s110 = sshll.u32 [#allocation5], 4
          %s111 = int_to_ptr.vmem [resolvable:$true] %s110
          %113 = dma.hbm_to_vmem [thread:$0]  %s1, 128, %s111, [#allocation6]
        $region16: #{tpu_custom_call.1} parent=11 // pred_fallthru
          _
      $region12: #{tpu_custom_call.1} parent=5 // pred_fallthru
        _
      %p114 = scmp.lt.s32.totalorder %s15, 2
      // Predicated region
      $region17: #{tpu_custom_call.1} parent=5 // pred_check
        %p115 = pneg %p114
      $region18: #{tpu_custom_call.1} parent=5 // pred_check_branch
        %117 = sbr.rel (%p115) target = $region20
      $region19: #{tpu_custom_call.1} parent=5 // pred_region
        // Predicated region
        $region21: #{tpu_custom_call.1} parent=19 // pred_check
          %p118 = pneg %p35
        $region22: #{tpu_custom_call.1} parent=19 // pred_check_branch
          %120 = sbr.rel (%p118) target = $region24
        $region23: #{tpu_custom_call.1} parent=19 // pred_region
          %s121 = sand.u32 %s25, 1
          %s122 = scalar_lea.sflag [#allocation3], %s121
          %s123 = sand.u32 %s25, 1
          %s124 = smul.addr %s123, 8
          %s125 = scalar_lea.vmem [#allocation2], %s124
          %s127 = ssub.s32 128, 128
          %128 = vsyncadd %s122, %s127
          %s129 = smul.addr %s15, 128
          %s130 = scalar_lea.hbm %s0, %s129
          %s132 = sshll.u32 %s125, 4
          %s133 = int_to_ptr.vmem [resolvable:$true] %s132
          %135 = dma.hbm_to_vmem [thread:$0]  %s130, 128, %s133, %s122
        $region24: #{tpu_custom_call.1} parent=19 // pred_fallthru
          _
      $region20: #{tpu_custom_call.1} parent=5 // pred_fallthru
        _
      %p136 = scmp.le.s32.totalorder 1, %s15
      %p137 = scmp.lt.s32.totalorder %s15, 3
      %p138 = pnand %p136, %p137
      %p139 = pneg %p138
      // Predicated region
      $region25: #{tpu_custom_call.1} parent=5 // pred_check
        _
      $region26: #{tpu_custom_call.1} parent=5 // pred_check_branch
        %141 = sbr.rel (%p138) target = $region28
      $region27: #{tpu_custom_call.1} parent=5 // pred_region
        %s142 = ssub.s32 %s15, 1
        %s143 = sand.u32 %s28, 1
        %s144 = scalar_lea.sflag [#allocation3], %s143
        %s145 = sand.u32 %s28, 1
        %s146 = smul.addr %s145, 8
        %s147 = scalar_lea.vmem [#allocation2], %s146
        // Predicated region
        $region29: #{tpu_custom_call.1} parent=27 // pred_check
          %p148 = pneg %p41
        $region30: #{tpu_custom_call.1} parent=27 // pred_check_branch
          %150 = sbr.rel (%p148) target = $region32
        $region31: #{tpu_custom_call.1} parent=27 // pred_region
          %151 = dma.done %s144, 128
        $region32: #{tpu_custom_call.1} parent=27 // pred_fallthru
          _
        // Predicated region
        $region33: #{tpu_custom_call.1} parent=27 // pred_check
          %p152 = pneg %p62
        $region34: #{tpu_custom_call.1} parent=27 // pred_check_branch
          %154 = sbr.rel (%p152) target = $region36
        $region35: #{tpu_custom_call.1} parent=27 // pred_region
          %155 = dma.done [#allocation6], 128
        $region36: #{tpu_custom_call.1} parent=27 // pred_fallthru
          _
        %s156 = sand.u32 %s28, 1
        %s157 = scalar_lea.sflag [#allocation3], %s156
        %s158 = sand.u32 %s28, 1
        %s159 = smul.addr %s158, 8
        %s160 = scalar_lea.vmem [#allocation2], %s159
        %p161 = pneg %p41
        %p162 = pneg %p38
        %p163 = pneg %p62
        %p164 = pneg %p59
        %p165 = pneg %p88
        %p166 = pneg %p85
        %s167 = sand.u32 %s75, 1
        %s168 = scalar_lea.sflag [#allocation4], %s167
        %s169 = sand.u32 %s75, 1
        %s170 = smul.addr %s169, 8
        %s171 = scalar_lea.vmem [#allocation7], %s170
        %v172 = vld [vmem:[%s147] sm:$0xff]
        %v173 = vld [vmem:[#allocation5] sm:$0xff]
        %v174 = vadd.f32 %v172, %v173
        %175 = vst [vmem:[%s171] sm:$0xff] %v174
        %s176 = sand.u32 %s75, 1
        %s177 = scalar_lea.sflag [#allocation4], %s176
        %s178 = sand.u32 %s75, 1
        %s179 = smul.addr %s178, 8
        %s180 = scalar_lea.vmem [#allocation7], %s179
        // Predicated region
        $region37: #{tpu_custom_call.1} parent=27 // pred_check
          %p181 = pneg %p85
        $region38: #{tpu_custom_call.1} parent=27 // pred_check_branch
          %183 = sbr.rel (%p181) target = $region40
        $region39: #{tpu_custom_call.1} parent=27 // pred_region
          %s185 = ssub.s32 128, 128
          %186 = vsyncadd %s177, %s185
          %s187 = smul.addr %s20, 128
          %s188 = scalar_lea.hbm %s2, %s187
          %s190 = sshll.u32 %s180, 4
          %s191 = int_to_ptr.vmem [resolvable:$true] %s190
          %193 = dma.vmem_to_hbm [thread:$0]  %s191, 128, %s188, %s177
        $region40: #{tpu_custom_call.1} parent=27 // pred_fallthru
          _
      $region28: #{tpu_custom_call.1} parent=5 // pred_fallthru
        _
      %p194 = scmp.le.s32.totalorder 2, %s15
      // Predicated region
      $region41: #{tpu_custom_call.1} parent=5 // pred_check
        %p195 = pneg %p194
      $region42: #{tpu_custom_call.1} parent=5 // pred_check_branch
        %197 = sbr.rel (%p195) target = $region44
      $region43: #{tpu_custom_call.1} parent=5 // pred_region
        %s198 = ssub.s32 %s15, 2
        // Predicated region
        $region45: #{tpu_custom_call.1} parent=43 // pred_check
          %p199 = pneg %p91
        $region46: #{tpu_custom_call.1} parent=43 // pred_check_branch
          %201 = sbr.rel (%p199) target = $region48
        $region47: #{tpu_custom_call.1} parent=43 // pred_region
          %s202 = sand.u32 %s76, 1
          %s203 = scalar_lea.sflag [#allocation4], %s202
          %s204 = sand.u32 %s76, 1
          %s205 = smul.addr %s204, 8
          %s206 = scalar_lea.vmem [#allocation7], %s205
          %207 = dma.done %s203, 128
        $region48: #{tpu_custom_call.1} parent=43 // pred_fallthru
          _
      $region44: #{tpu_custom_call.1} parent=5 // pred_fallthru
        _
    $region6: #{tpu_custom_call.1} parent=1 // loop_footer
      %s19 = sadd.s32 1, %s15
    $region7: #{tpu_custom_call.1} parent=1 // loop_footer_branch
      %14 = sbr.rel target = $region3
    $region8: #{tpu_custom_call.1} parent=1 // loop_exit
      _
    %208 = vsyncpa [#allocation3], 1
    %s209 = scalar_lea.sflag [#allocation3], 1
    %210 = vsyncpa %s209, 1
    %211 = vsyncpa [#allocation6], 1
    %212 = vsyncpa [#allocation4], 1
    %s213 = scalar_lea.sflag [#allocation4], 1
    %214 = vsyncpa %s213, 1

// kernel: forward.4
$region0: #{forward.4}
  #allocation0 [shape = 'u32[]', space=smem, size = 0x4, offset = 0x4, fixed_abs, tag = 'smem constant byte address 0x4 - core index']
  #allocation1 [shape = 'u32[144,128]{1,0:T(1,128)}', space=vmem, size = 0x12000, scoped, tag = 'internal scratch']
  %s0 = inlined_call_operand.vmem [shape: bf16[128,32], index: 0, kind: input, shape index: {}]
  %s1 = inlined_call_operand.vmem [shape: bf16[32,128], index: 1, kind: input, shape index: {}]
  %s2 = inlined_call_operand.vmem [shape: f32[1,128], index: 2, kind: input, shape index: {}]
  %s3 = inlined_call_operand.vmem [shape: bf16[128,128], index: 3, kind: output, shape index: {}]
  %s4 = sld [smem:[#allocation0]]
  $region22: #{forward.4} parent=0
    _
  %s6 = ssub.s32 1, %s4
  %s7 = scalar_select 0, %s6, %s4
  // Predicated region
  $region2: #{forward.4} parent=0 // pred_check
    _
  $region3: #{forward.4} parent=0 // pred_check_branch
    %9 = sbr.rel (0) target = $region5
  $region4: #{forward.4} parent=0 // pred_region
    _
  $region5: #{forward.4} parent=0 // pred_fallthru
    _
  // Predicated region
  $region6: #{forward.4} parent=0 // pred_check
    _
  $region7: #{forward.4} parent=0 // pred_check_branch
    %11 = sbr.rel (0) target = $region9
  $region8: #{forward.4} parent=0 // pred_region
    _
  $region9: #{forward.4} parent=0 // pred_fallthru
    _
  // Predicated region
  $region10: #{forward.4} parent=0 // pred_check
    _
  $region11: #{forward.4} parent=0 // pred_check_branch
    %13 = sbr.rel (0) target = $region13
  $region12: #{forward.4} parent=0 // pred_region
    _
  $region13: #{forward.4} parent=0 // pred_fallthru
    _
  %v15 = vld [vmem:[%s0] sm:$0xf]
  %v16 = vld [vmem:[%s0 + $0x4] sm:$0xf]
  %v17 = vld [vmem:[%s0 + $0x8] sm:$0xf]
  %v18 = vld [vmem:[%s0 + $0xc] sm:$0xf]
  %v19 = vld [vmem:[%s0 + $0x10] sm:$0xf]
  %v20 = vld [vmem:[%s0 + $0x14] sm:$0xf]
  %v21 = vld [vmem:[%s0 + $0x18] sm:$0xf]
  %v22 = vld [vmem:[%s0 + $0x1c] sm:$0xf]
  %v23 = vld [vmem:[%s0 + $0x20] sm:$0xf]
  %v24 = vld [vmem:[%s0 + $0x24] sm:$0xf]
  %v25 = vld [vmem:[%s0 + $0x28] sm:$0xf]
  %v26 = vld [vmem:[%s0 + $0x2c] sm:$0xf]
  %v27 = vld [vmem:[%s0 + $0x30] sm:$0xf]
  %v28 = vld [vmem:[%s0 + $0x34] sm:$0xf]
  %v29 = vld [vmem:[%s0 + $0x38] sm:$0xf]
  %v30 = vld [vmem:[%s0 + $0x3c] sm:$0xf]
  %v31 = vld [vmem:[%s1] sm:$0xf]
  %v32 = vld [vmem:[%s1 + $0x4] sm:$0xf]
  %v33 = vld [vmem:[%s1 + $0x8] sm:$0xf]
  %v34 = vld [vmem:[%s1 + $0xc] sm:$0xf]
  %v35 = vld [vmem:[%s2] sm:$0x1]
  %v37 = vlaneseq
  %v38 = vshrl.u32 %v37, 7
  %v39 = vsub.s32 0, %v38
  %v40 = vrot.slane %v35, %v39
  %v58 = vunpack.c.l.b16 %v15
  %v59 = vunpack.c.l.b16 %v16
  %v60 = vunpack.c.l.b16 %v17
  %v61 = vunpack.c.l.b16 %v18
  %v62 = vunpack.c.l.b16 %v19
  %v63 = vunpack.c.l.b16 %v20
  %v64 = vunpack.c.l.b16 %v21
  %v65 = vunpack.c.l.b16 %v22
  %v66 = vunpack.c.l.b16 %v23
  %v67 = vunpack.c.l.b16 %v24
  %v68 = vunpack.c.l.b16 %v25
  %v69 = vunpack.c.l.b16 %v26
  %v70 = vunpack.c.l.b16 %v27
  %v71 = vunpack.c.l.b16 %v28
  %v72 = vunpack.c.l.b16 %v29
  %v73 = vunpack.c.l.b16 %v30
  %v74 = vpack.c.b16 %v59, %v58
  %v75 = vpack.c.b16 %v61, %v60
  %v76 = vpack.c.b16 %v63, %v62
  %v77 = vpack.c.b16 %v65, %v64
  %v78 = vpack.c.b16 %v67, %v66
  %v79 = vpack.c.b16 %v69, %v68
  %v80 = vpack.c.b16 %v71, %v70
  %v81 = vpack.c.b16 %v73, %v72
  %v86 = vunpack.c.l.b16 %v31
  %v87 = vunpack.c.l.b16 %v32
  %v88 = vunpack.c.l.b16 %v33
  %v89 = vunpack.c.l.b16 %v34
  %v90 = vpack.c.b16 %v87, %v86
  %v91 = vpack.c.b16 %v89, %v88
  %vm94 = vcmask 261120
  %v96 = vsel %vm94, %v74, 0
  %v99 = vsel %vm94, %v75, 0
  %v102 = vsel %vm94, %v76, 0
  %v105 = vsel %vm94, %v77, 0
  %v108 = vsel %vm94, %v78, 0
  %v111 = vsel %vm94, %v79, 0
  %v114 = vsel %vm94, %v80, 0
  %v117 = vsel %vm94, %v81, 0
  %119 = vmatprep.subr.bf16.mxu0 0
  %120 = vmatpush1.bf16.msra.mxu0 0
  %121 = vmatprep.subr.bf16.mxu0 0
  %122 = vmatpush1.bf16.msra.mxu0 0
  %123 = vmatprep.subr.bf16.mxu0 0
  %124 = vmatpush1.bf16.msra.mxu0 0
  %125 = vmatprep.subr.bf16.mxu0 0
  %126 = vmatpush1.bf16.msra.mxu0 0
  %127 = vmatprep.subr.bf16.mxu0 0
  %128 = vmatpush1.bf16.msra.mxu0 0
  %129 = vmatprep.subr.bf16.mxu0 0
  %130 = vmatpush1.bf16.msra.mxu0 0
  %131 = vmatprep.subr.bf16.mxu0 0
  %132 = vmatpush1.bf16.msra.mxu0 %v91
  %133 = vmatprep.subr.bf16.mxu0 0
  %134 = vmatpush1.bf16.msra.mxu0 %v90
  %135 = vmatprep.subr.bf16.mxu0 0
  %136 = vmatpush2.bf16.msra.mxu0 0
  %137 = vmatprep.subr.bf16.mxu0 0
  %138 = vmatpush2.bf16.msra.mxu0 0
  %139 = vmatprep.subr.bf16.mxu0 0
  %140 = vmatpush2.bf16.msra.mxu0 0
  %141 = vmatprep.subr.bf16.mxu0 0
  %142 = vmatpush2.bf16.msra.mxu0 0
  %143 = vmatprep.subr.bf16.mxu0 0
  %144 = vmatpush2.bf16.msra.mxu0 0
  %145 = vmatprep.subr.bf16.mxu0 0
  %146 = vmatpush2.bf16.msra.mxu0 0
  %147 = vmatprep.subr.bf16.mxu0 0
  %148 = vmatpush2.bf16.msra.mxu0 0
  %149 = vmatprep.subr.bf16.mxu0 0
  %150 = vmatpush2.bf16.msra.mxu0 0
  %151 = vmatprep.mubr.bf16.mxu0 0
  %152 = vmatmul.mubr.bf16.gmra.mxu0 %v96
  %v153 = vpop.f32.mrf.mxu0
  %v154 = vadd.f32 %v40, %v153
  %v155 = vpop.f32.mrf.mxu0
  %v156 = vpop.f32.mrf.mxu0
  %v157 = vadd.f32 %v40, %v156
  %v158 = vpop.f32.mrf.mxu0
  %159 = vmatprep.mubr.bf16.mxu0 0
  %160 = vmatmul.mubr.bf16.gmra.mxu0 %v99
  %v161 = vpop.f32.mrf.mxu0
  %v162 = vadd.f32 %v40, %v161
  %v163 = vpop.f32.mrf.mxu0
  %v164 = vpop.f32.mrf.mxu0
  %v165 = vadd.f32 %v40, %v164
  %v166 = vpop.f32.mrf.mxu0
  %167 = vmatprep.mubr.bf16.mxu0 0
  %168 = vmatmul.mubr.bf16.gmra.mxu0 %v102
  %v169 = vpop.f32.mrf.mxu0
  %v170 = vadd.f32 %v40, %v169
  %v171 = vpop.f32.mrf.mxu0
  %v172 = vpop.f32.mrf.mxu0
  %v173 = vadd.f32 %v40, %v172
  %v174 = vpop.f32.mrf.mxu0
  %175 = vmatprep.mubr.bf16.mxu0 0
  %176 = vmatmul.mubr.bf16.gmra.mxu0 %v105
  %v177 = vpop.f32.mrf.mxu0
  %v178 = vadd.f32 %v40, %v177
  %v179 = vpop.f32.mrf.mxu0
  %v180 = vpop.f32.mrf.mxu0
  %v181 = vadd.f32 %v40, %v180
  %v182 = vpop.f32.mrf.mxu0
  %183 = vmatprep.mubr.bf16.mxu0 0
  %184 = vmatmul.mubr.bf16.gmra.mxu0 %v108
  %v185 = vpop.f32.mrf.mxu0
  %v186 = vadd.f32 %v40, %v185
  %v187 = vpop.f32.mrf.mxu0
  %v188 = vpop.f32.mrf.mxu0
  %v189 = vadd.f32 %v40, %v188
  %v190 = vpop.f32.mrf.mxu0
  %191 = vmatprep.mubr.bf16.mxu0 0
  %192 = vmatmul.mubr.bf16.gmra.mxu0 %v111
  %v193 = vpop.f32.mrf.mxu0
  %v194 = vadd.f32 %v40, %v193
  %v195 = vpop.f32.mrf.mxu0
  %v196 = vpop.f32.mrf.mxu0
  %v197 = vadd.f32 %v40, %v196
  %v198 = vpop.f32.mrf.mxu0
  %199 = vmatprep.mubr.bf16.mxu0 0
  %200 = vmatmul.mubr.bf16.gmra.mxu0 %v114
  %v201 = vpop.f32.mrf.mxu0
  %v202 = vadd.f32 %v40, %v201
  %v203 = vpop.f32.mrf.mxu0
  %v204 = vpop.f32.mrf.mxu0
  %v205 = vadd.f32 %v40, %v204
  %v206 = vpop.f32.mrf.mxu0
  %207 = vmatprep.mubr.bf16.mxu0 0
  %208 = vmatmul.mubr.bf16.gmra.mxu0 %v117
  %v209 = vpop.f32.mrf.mxu0
  %v210 = vadd.f32 %v40, %v209
  %v211 = vpop.f32.mrf.mxu0
  %v212 = vpop.f32.mrf.mxu0
  %v213 = vadd.f32 %v40, %v212
  %v214 = vpop.f32.mrf.mxu0
  %215 = vdwg.mxu0
  %v216 = vpack.c.bf16 %v157, %v154
  %v217 = vpack.c.bf16 %v165, %v162
  %v218 = vpack.c.bf16 %v173, %v170
  %v219 = vpack.c.bf16 %v181, %v178
  %v220 = vpack.c.bf16 %v189, %v186
  %v221 = vpack.c.bf16 %v197, %v194
  %v222 = vpack.c.bf16 %v205, %v202
  %v223 = vpack.c.bf16 %v213, %v210
  %v232 = vunpack.c.l.b16 %v216
  %v233 = vunpack.c.h.b16 %v216
  %v234 = vunpack.c.l.b16 %v217
  %v235 = vunpack.c.h.b16 %v217
  %v236 = vunpack.c.l.b16 %v218
  %v237 = vunpack.c.h.b16 %v218
  %v238 = vunpack.c.l.b16 %v219
  %v239 = vunpack.c.h.b16 %v219
  %v240 = vunpack.c.l.b16 %v220
  %v241 = vunpack.c.h.b16 %v220
  %v242 = vunpack.c.l.b16 %v221
  %v243 = vunpack.c.h.b16 %v221
  %v244 = vunpack.c.l.b16 %v222
  %v245 = vunpack.c.h.b16 %v222
  %v246 = vunpack.c.l.b16 %v223
  %v247 = vunpack.c.h.b16 %v223
  %v248 = vpack.c.b16 %v232, %v232
  %v249 = vpack.c.b16 %v233, %v233
  %v250 = vpack.c.b16 %v234, %v234
  %v251 = vpack.c.b16 %v235, %v235
  %v252 = vpack.c.b16 %v236, %v236
  %v253 = vpack.c.b16 %v237, %v237
  %v254 = vpack.c.b16 %v238, %v238
  %v255 = vpack.c.b16 %v239, %v239
  %v256 = vpack.c.b16 %v240, %v240
  %v257 = vpack.c.b16 %v241, %v241
  %v258 = vpack.c.b16 %v242, %v242
  %v259 = vpack.c.b16 %v243, %v243
  %v260 = vpack.c.b16 %v244, %v244
  %v261 = vpack.c.b16 %v245, %v245
  %v262 = vpack.c.b16 %v246, %v246
  %v263 = vpack.c.b16 %v247, %v247
  %280 = vst [vmem:[%s3] sm:$0xf] %v248
  %281 = vst [vmem:[%s3 + $0x4] sm:$0xf] %v249
  %282 = vst [vmem:[%s3 + $0x8] sm:$0xf] %v250
  %283 = vst [vmem:[%s3 + $0xc] sm:$0xf] %v251
  %284 = vst [vmem:[%s3 + $0x10] sm:$0xf] %v252
  %285 = vst [vmem:[%s3 + $0x14] sm:$0xf] %v253
  %286 = vst [vmem:[%s3 + $0x18] sm:$0xf] %v254
  %287 = vst [vmem:[%s3 + $0x1c] sm:$0xf] %v255
  %288 = vst [vmem:[%s3 + $0x20] sm:$0xf] %v256
  %289 = vst [vmem:[%s3 + $0x24] sm:$0xf] %v257
  %290 = vst [vmem:[%s3 + $0x28] sm:$0xf] %v258
  %291 = vst [vmem:[%s3 + $0x2c] sm:$0xf] %v259
  %292 = vst [vmem:[%s3 + $0x30] sm:$0xf] %v260
  %293 = vst [vmem:[%s3 + $0x34] sm:$0xf] %v261
  %294 = vst [vmem:[%s3 + $0x38] sm:$0xf] %v262
  %295 = vst [vmem:[%s3 + $0x3c] sm:$0xf] %v263
  // Predicated region
  $region14: #{forward.4} parent=0 // pred_check
    _
  $region15: #{forward.4} parent=0 // pred_check_branch
    %297 = sbr.rel (0) target = $region17
  $region16: #{forward.4} parent=0 // pred_region
    _
  $region17: #{forward.4} parent=0 // pred_fallthru
    _
  // Predicated region
  $region18: #{forward.4} parent=0 // pred_check
    _
  $region19: #{forward.4} parent=0 // pred_check_branch
    %299 = sbr.rel (0) target = $region21
  $region20: #{forward.4} parent=0 // pred_region
    _
  $region21: #{forward.4} parent=0 // pred_fallthru
    _

// kernel: forward.5
$region0: #{forward.5}
  #allocation0 [shape = 'u32[]', space=smem, size = 0x4, offset = 0x4, fixed_abs, tag = 'smem constant byte address 0x4 - core index']
  #allocation1 [shape = 'u32[144,128]{1,0:T(1,128)}', space=vmem, size = 0x12000, scoped, tag = 'internal scratch']
  %s0 = inlined_call_operand.vmem [shape: bf16[128,128], index: 0, kind: input, shape index: {}]
  %s1 = inlined_call_operand.vmem [shape: bf16[128,384], index: 1, kind: input, shape index: {}]
  %s2 = inlined_call_operand.vmem [shape: f32[1,384], index: 2, kind: input, shape index: {}]
  %s3 = inlined_call_operand.vmem [shape: bf16[128,384], index: 3, kind: output, shape index: {}]
  %s4 = sld [smem:[#allocation0]]
  $region22: #{forward.5} parent=0
    _
  %s6 = ssub.s32 1, %s4
  %s7 = scalar_select 0, %s6, %s4
  // Predicated region
  $region2: #{forward.5} parent=0 // pred_check
    _
  $region3: #{forward.5} parent=0 // pred_check_branch
    %9 = sbr.rel (0) target = $region5
  $region4: #{forward.5} parent=0 // pred_region
    _
  $region5: #{forward.5} parent=0 // pred_fallthru
    _
  // Predicated region
  $region6: #{forward.5} parent=0 // pred_check
    _
  $region7: #{forward.5} parent=0 // pred_check_branch
    %11 = sbr.rel (0) target = $region9
  $region8: #{forward.5} parent=0 // pred_region
    _
  $region9: #{forward.5} parent=0 // pred_fallthru
    _
  // Predicated region
  $region10: #{forward.5} parent=0 // pred_check
    _
  $region11: #{forward.5} parent=0 // pred_check_branch
    %13 = sbr.rel (0) target = $region13
  $region12: #{forward.5} parent=0 // pred_region
    _
  $region13: #{forward.5} parent=0 // pred_fallthru
    _
  %v15 = vld [vmem:[%s0] sm:$0xf]
  %v16 = vld [vmem:[%s0 + $0x4] sm:$0xf]
  %v17 = vld [vmem:[%s0 + $0x8] sm:$0xf]
  %v18 = vld [vmem:[%s0 + $0xc] sm:$0xf]
  %v19 = vld [vmem:[%s0 + $0x10] sm:$0xf]
  %v20 = vld [vmem:[%s0 + $0x14] sm:$0xf]
  %v21 = vld [vmem:[%s0 + $0x18] sm:$0xf]
  %v22 = vld [vmem:[%s0 + $0x1c] sm:$0xf]
  %v23 = vld [vmem:[%s0 + $0x20] sm:$0xf]
  %v24 = vld [vmem:[%s0 + $0x24] sm:$0xf]
  %v25 = vld [vmem:[%s0 + $0x28] sm:$0xf]
  %v26 = vld [vmem:[%s0 + $0x2c] sm:$0xf]
  %v27 = vld [vmem:[%s0 + $0x30] sm:$0xf]
  %v28 = vld [vmem:[%s0 + $0x34] sm:$0xf]
  %v29 = vld [vmem:[%s0 + $0x38] sm:$0xf]
  %v30 = vld [vmem:[%s0 + $0x3c] sm:$0xf]
  %v31 = vld [vmem:[%s1] sm:$0xff]
  %v32 = vld [vmem:[%s1 + $0x8] sm:$0xf]
  %v33 = vld [vmem:[%s1 + $0xc] sm:$0xff]
  %v34 = vld [vmem:[%s1 + $0x14] sm:$0xf]
  %v35 = vld [vmem:[%s1 + $0x18] sm:$0xff]
  %v36 = vld [vmem:[%s1 + $0x20] sm:$0xf]
  %v37 = vld [vmem:[%s1 + $0x24] sm:$0xff]
  %v38 = vld [vmem:[%s1 + $0x2c] sm:$0xf]
  %v39 = vld [vmem:[%s1 + $0x30] sm:$0xff]
  %v40 = vld [vmem:[%s1 + $0x38] sm:$0xf]
  %v41 = vld [vmem:[%s1 + $0x3c] sm:$0xff]
  %v42 = vld [vmem:[%s1 + $0x44] sm:$0xf]
  %v43 = vld [vmem:[%s1 + $0x48] sm:$0xff]
  %v44 = vld [vmem:[%s1 + $0x50] sm:$0xf]
  %v45 = vld [vmem:[%s1 + $0x54] sm:$0xff]
  %v46 = vld [vmem:[%s1 + $0x5c] sm:$0xf]
  %v47 = vld [vmem:[%s1 + $0x60] sm:$0xff]
  %v48 = vld [vmem:[%s1 + $0x68] sm:$0xf]
  %v49 = vld [vmem:[%s1 + $0x6c] sm:$0xff]
  %v50 = vld [vmem:[%s1 + $0x74] sm:$0xf]
  %v51 = vld [vmem:[%s1 + $0x78] sm:$0xff]
  %v52 = vld [vmem:[%s1 + $0x80] sm:$0xf]
  %v53 = vld [vmem:[%s1 + $0x84] sm:$0xff]
  %v54 = vld [vmem:[%s1 + $0x8c] sm:$0xf]
  %v55 = vld [vmem:[%s1 + $0x90] sm:$0xff]
  %v56 = vld [vmem:[%s1 + $0x98] sm:$0xf]
  %v57 = vld [vmem:[%s1 + $0x9c] sm:$0xff]
  %v58 = vld [vmem:[%s1 + $0xa4] sm:$0xf]
  %v59 = vld [vmem:[%s1 + $0xa8] sm:$0xff]
  %v60 = vld [vmem:[%s1 + $0xb0] sm:$0xf]
  %v61 = vld [vmem:[%s1 + $0xb4] sm:$0xff]
  %v62 = vld [vmem:[%s1 + $0xbc] sm:$0xf]
  %v63 = vld [vmem:[%s2] sm:$0x7]
  %v65 = vlaneseq
  %v66 = vshrl.u32 %v65, 7
  %v67 = vsub.s32 0, %v66
  %v68 = vrot.slane %v63, %v67
  %v69 = vlaneseq
  %v70 = vshrl.u32 %v69, 7
  %v71 = vsub.s32 1, %v70
  %v72 = vrot.slane %v63, %v71
  %v73 = vlaneseq
  %v74 = vshrl.u32 %v73, 7
  %v75 = vsub.s32 2, %v74
  %v76 = vrot.slane %v63, %v75
  %v96 = vunpack.c.l.b16 %v15
  %v97 = vunpack.c.l.b16 %v16
  %v98 = vunpack.c.l.b16 %v17
  %v99 = vunpack.c.l.b16 %v18
  %v100 = vunpack.c.l.b16 %v19
  %v101 = vunpack.c.l.b16 %v20
  %v102 = vunpack.c.l.b16 %v21
  %v103 = vunpack.c.l.b16 %v22
  %v104 = vunpack.c.l.b16 %v23
  %v105 = vunpack.c.l.b16 %v24
  %v106 = vunpack.c.l.b16 %v25
  %v107 = vunpack.c.l.b16 %v26
  %v108 = vunpack.c.l.b16 %v27
  %v109 = vunpack.c.l.b16 %v28
  %v110 = vunpack.c.l.b16 %v29
  %v111 = vunpack.c.l.b16 %v30
  %v112 = vpack.c.b16 %v97, %v96
  %v113 = vpack.c.b16 %v99, %v98
  %v114 = vpack.c.b16 %v101, %v100
  %v115 = vpack.c.b16 %v103, %v102
  %v116 = vpack.c.b16 %v105, %v104
  %v117 = vpack.c.b16 %v107, %v106
  %v118 = vpack.c.b16 %v109, %v108
  %v119 = vpack.c.b16 %v111, %v110
  %v160 = vunpack.c.l.b16 %v31
  %v161 = vunpack.c.h.b16 %v31
  %v162 = vunpack.c.l.b16 %v32
  %v163 = vunpack.c.l.b16 %v33
  %v164 = vunpack.c.h.b16 %v33
  %v165 = vunpack.c.l.b16 %v34
  %v166 = vunpack.c.l.b16 %v35
  %v167 = vunpack.c.h.b16 %v35
  %v168 = vunpack.c.l.b16 %v36
  %v169 = vunpack.c.l.b16 %v37
  %v170 = vunpack.c.h.b16 %v37
  %v171 = vunpack.c.l.b16 %v38
  %v172 = vunpack.c.l.b16 %v39
  %v173 = vunpack.c.h.b16 %v39
  %v174 = vunpack.c.l.b16 %v40
  %v175 = vunpack.c.l.b16 %v41
  %v176 = vunpack.c.h.b16 %v41
  %v177 = vunpack.c.l.b16 %v42
  %v178 = vunpack.c.l.b16 %v43
  %v179 = vunpack.c.h.b16 %v43
  %v180 = vunpack.c.l.b16 %v44
  %v181 = vunpack.c.l.b16 %v45
  %v182 = vunpack.c.h.b16 %v45
  %v183 = vunpack.c.l.b16 %v46
  %v184 = vunpack.c.l.b16 %v47
  %v185 = vunpack.c.h.b16 %v47
  %v186 = vunpack.c.l.b16 %v48
  %v187 = vunpack.c.l.b16 %v49
  %v188 = vunpack.c.h.b16 %v49
  %v189 = vunpack.c.l.b16 %v50
  %v190 = vunpack.c.l.b16 %v51
  %v191 = vunpack.c.h.b16 %v51
  %v192 = vunpack.c.l.b16 %v52
  %v193 = vunpack.c.l.b16 %v53
  %v194 = vunpack.c.h.b16 %v53
  %v195 = vunpack.c.l.b16 %v54
  %v196 = vunpack.c.l.b16 %v55
  %v197 = vunpack.c.h.b16 %v55
  %v198 = vunpack.c.l.b16 %v56
  %v199 = vunpack.c.l.b16 %v57
  %v200 = vunpack.c.h.b16 %v57
  %v201 = vunpack.c.l.b16 %v58
  %v202 = vunpack.c.l.b16 %v59
  %v203 = vunpack.c.h.b16 %v59
  %v204 = vunpack.c.l.b16 %v60
  %v205 = vunpack.c.l.b16 %v61
  %v206 = vunpack.c.h.b16 %v61
  %v207 = vunpack.c.l.b16 %v62
  %v208 = vpack.c.b16 %v163, %v160
  %v209 = vpack.c.b16 %v164, %v161
  %v210 = vpack.c.b16 %v165, %v162
  %v211 = vpack.c.b16 %v169, %v166
  %v212 = vpack.c.b16 %v170, %v167
  %v213 = vpack.c.b16 %v171, %v168
  %v214 = vpack.c.b16 %v175, %v172
  %v215 = vpack.c.b16 %v176, %v173
  %v216 = vpack.c.b16 %v177, %v174
  %v217 = vpack.c.b16 %v181, %v178
  %v218 = vpack.c.b16 %v182, %v179
  %v219 = vpack.c.b16 %v183, %v180
  %v220 = vpack.c.b16 %v187, %v184
  %v221 = vpack.c.b16 %v188, %v185
  %v222 = vpack.c.b16 %v189, %v186
  %v223 = vpack.c.b16 %v193, %v190
  %v224 = vpack.c.b16 %v194, %v191
  %v225 = vpack.c.b16 %v195, %v192
  %v226 = vpack.c.b16 %v199, %v196
  %v227 = vpack.c.b16 %v200, %v197
  %v228 = vpack.c.b16 %v201, %v198
  %v229 = vpack.c.b16 %v205, %v202
  %v230 = vpack.c.b16 %v206, %v203
  %v231 = vpack.c.b16 %v207, %v204
  %256 = vmatprep.subr.bf16.mxu0 %v230
  %257 = vmatpush1.bf16.msra.mxu0 %v229
  %258 = vmatprep.subr.bf16.mxu0 %v227
  %259 = vmatpush1.bf16.msra.mxu0 %v226
  %260 = vmatprep.subr.bf16.mxu0 %v224
  %261 = vmatpush1.bf16.msra.mxu0 %v223
  %262 = vmatprep.subr.bf16.mxu0 %v221
  %263 = vmatpush1.bf16.msra.mxu0 %v220
  %264 = vmatprep.subr.bf16.mxu0 %v218
  %265 = vmatpush1.bf16.msra.mxu0 %v217
  %266 = vmatprep.subr.bf16.mxu0 %v215
  %267 = vmatpush1.bf16.msra.mxu0 %v214
  %268 = vmatprep.subr.bf16.mxu0 %v212
  %269 = vmatpush1.bf16.msra.mxu0 %v211
  %270 = vmatprep.subr.bf16.mxu0 %v209
  %271 = vmatpush1.bf16.msra.mxu0 %v208
  %272 = vmatprep.subr.bf16.mxu0 0
  %273 = vmatpush2.bf16.msra.mxu0 0
  %274 = vmatprep.subr.bf16.mxu0 0
  %275 = vmatpush2.bf16.msra.mxu0 0
  %276 = vmatprep.subr.bf16.mxu0 0
  %277 = vmatpush2.bf16.msra.mxu0 0
  %278 = vmatprep.subr.bf16.mxu0 0
  %279 = vmatpush2.bf16.msra.mxu0 0
  %280 = vmatprep.subr.bf16.mxu0 0
  %281 = vmatpush2.bf16.msra.mxu0 0
  %282 = vmatprep.subr.bf16.mxu0 0
  %283 = vmatpush2.bf16.msra.mxu0 0
  %284 = vmatprep.subr.bf16.mxu0 0
  %285 = vmatpush2.bf16.msra.mxu0 0
  %286 = vmatprep.subr.bf16.mxu0 0
  %287 = vmatpush2.bf16.msra.mxu0 0
  %288 = vmatprep.mubr.bf16.mxu0 0
  %289 = vmatmul.mubr.bf16.gmra.mxu0 %v112
  %v290 = vpop.f32.mrf.mxu0
  %v291 = vadd.f32 %v68, %v290
  %v292 = vpop.f32.mrf.mxu0
  %v293 = vadd.f32 %v72, %v292
  %v294 = vpop.f32.mrf.mxu0
  %v295 = vadd.f32 %v68, %v294
  %v296 = vpop.f32.mrf.mxu0
  %v297 = vadd.f32 %v72, %v296
  %298 = vmatprep.mubr.bf16.mxu0 0
  %299 = vmatmul.mubr.bf16.gmra.mxu0 %v113
  %v300 = vpop.f32.mrf.mxu0
  %v301 = vadd.f32 %v68, %v300
  %v302 = vpop.f32.mrf.mxu0
  %v303 = vadd.f32 %v72, %v302
  %v304 = vpop.f32.mrf.mxu0
  %v305 = vadd.f32 %v68, %v304
  %v306 = vpop.f32.mrf.mxu0
  %v307 = vadd.f32 %v72, %v306
  %308 = vmatprep.mubr.bf16.mxu0 0
  %309 = vmatmul.mubr.bf16.gmra.mxu0 %v114
  %v310 = vpop.f32.mrf.mxu0
  %v311 = vadd.f32 %v68, %v310
  %v312 = vpop.f32.mrf.mxu0
  %v313 = vadd.f32 %v72, %v312
  %v314 = vpop.f32.mrf.mxu0
  %v315 = vadd.f32 %v68, %v314
  %v316 = vpop.f32.mrf.mxu0
  %v317 = vadd.f32 %v72, %v316
  %318 = vmatprep.mubr.bf16.mxu0 0
  %319 = vmatmul.mubr.bf16.gmra.mxu0 %v115
  %v320 = vpop.f32.mrf.mxu0
  %v321 = vadd.f32 %v68, %v320
  %v322 = vpop.f32.mrf.mxu0
  %v323 = vadd.f32 %v72, %v322
  %v324 = vpop.f32.mrf.mxu0
  %v325 = vadd.f32 %v68, %v324
  %v326 = vpop.f32.mrf.mxu0
  %v327 = vadd.f32 %v72, %v326
  %328 = vmatprep.mubr.bf16.mxu0 0
  %329 = vmatmul.mubr.bf16.gmra.mxu0 %v116
  %v330 = vpop.f32.mrf.mxu0
  %v331 = vadd.f32 %v68, %v330
  %v332 = vpop.f32.mrf.mxu0
  %v333 = vadd.f32 %v72, %v332
  %v334 = vpop.f32.mrf.mxu0
  %v335 = vadd.f32 %v68, %v334
  %v336 = vpop.f32.mrf.mxu0
  %v337 = vadd.f32 %v72, %v336
  %338 = vmatprep.mubr.bf16.mxu0 0
  %339 = vmatmul.mubr.bf16.gmra.mxu0 %v117
  %v340 = vpop.f32.mrf.mxu0
  %v341 = vadd.f32 %v68, %v340
  %v342 = vpop.f32.mrf.mxu0
  %v343 = vadd.f32 %v72, %v342
  %v344 = vpop.f32.mrf.mxu0
  %v345 = vadd.f32 %v68, %v344
  %v346 = vpop.f32.mrf.mxu0
  %v347 = vadd.f32 %v72, %v346
  %348 = vmatprep.mubr.bf16.mxu0 0
  %349 = vmatmul.mubr.bf16.gmra.mxu0 %v118
  %v350 = vpop.f32.mrf.mxu0
  %v351 = vadd.f32 %v68, %v350
  %v352 = vpop.f32.mrf.mxu0
  %v353 = vadd.f32 %v72, %v352
  %v354 = vpop.f32.mrf.mxu0
  %v355 = vadd.f32 %v68, %v354
  %v356 = vpop.f32.mrf.mxu0
  %v357 = vadd.f32 %v72, %v356
  %358 = vmatprep.mubr.bf16.mxu0 0
  %359 = vmatmul.mubr.bf16.gmra.mxu0 %v119
  %v360 = vpop.f32.mrf.mxu0
  %v361 = vadd.f32 %v68, %v360
  %v362 = vpop.f32.mrf.mxu0
  %v363 = vadd.f32 %v72, %v362
  %v364 = vpop.f32.mrf.mxu0
  %v365 = vadd.f32 %v68, %v364
  %v366 = vpop.f32.mrf.mxu0
  %v367 = vadd.f32 %v72, %v366
  %368 = vdwg.mxu0
  %369 = vmatprep.subr.bf16.mxu0 0
  %370 = vmatpush1.bf16.msra.mxu0 %v231
  %371 = vmatprep.subr.bf16.mxu0 0
  %372 = vmatpush1.bf16.msra.mxu0 %v228
  %373 = vmatprep.subr.bf16.mxu0 0
  %374 = vmatpush1.bf16.msra.mxu0 %v225
  %375 = vmatprep.subr.bf16.mxu0 0
  %376 = vmatpush1.bf16.msra.mxu0 %v222
  %377 = vmatprep.subr.bf16.mxu0 0
  %378 = vmatpush1.bf16.msra.mxu0 %v219
  %379 = vmatprep.subr.bf16.mxu0 0
  %380 = vmatpush1.bf16.msra.mxu0 %v216
  %381 = vmatprep.subr.bf16.mxu0 0
  %382 = vmatpush1.bf16.msra.mxu0 %v213
  %383 = vmatprep.subr.bf16.mxu0 0
  %384 = vmatpush1.bf16.msra.mxu0 %v210
  %385 = vmatprep.subr.bf16.mxu0 0
  %386 = vmatpush2.bf16.msra.mxu0 0
  %387 = vmatprep.subr.bf16.mxu0 0
  %388 = vmatpush2.bf16.msra.mxu0 0
  %389 = vmatprep.subr.bf16.mxu0 0
  %390 = vmatpush2.bf16.msra.mxu0 0
  %391 = vmatprep.subr.bf16.mxu0 0
  %392 = vmatpush2.bf16.msra.mxu0 0
  %393 = vmatprep.subr.bf16.mxu0 0
  %394 = vmatpush2.bf16.msra.mxu0 0
  %395 = vmatprep.subr.bf16.mxu0 0
  %396 = vmatpush2.bf16.msra.mxu0 0
  %397 = vmatprep.subr.bf16.mxu0 0
  %398 = vmatpush2.bf16.msra.mxu0 0
  %399 = vmatprep.subr.bf16.mxu0 0
  %400 = vmatpush2.bf16.msra.mxu0 0
  %401 = vmatprep.mubr.bf16.mxu0 0
  %402 = vmatmul.mubr.bf16.gmra.mxu0 %v112
  %v403 = vpop.f32.mrf.mxu0
  %v404 = vadd.f32 %v76, %v403
  %v405 = vpop.f32.mrf.mxu0
  %v406 = vpop.f32.mrf.mxu0
  %v407 = vadd.f32 %v76, %v406
  %v408 = vpop.f32.mrf.mxu0
  %409 = vmatprep.mubr.bf16.mxu0 0
  %410 = vmatmul.mubr.bf16.gmra.mxu0 %v113
  %v411 = vpop.f32.mrf.mxu0
  %v412 = vadd.f32 %v76, %v411
  %v413 = vpop.f32.mrf.mxu0
  %v414 = vpop.f32.mrf.mxu0
  %v415 = vadd.f32 %v76, %v414
  %v416 = vpop.f32.mrf.mxu0
  %417 = vmatprep.mubr.bf16.mxu0 0
  %418 = vmatmul.mubr.bf16.gmra.mxu0 %v114
  %v419 = vpop.f32.mrf.mxu0
  %v420 = vadd.f32 %v76, %v419
  %v421 = vpop.f32.mrf.mxu0
  %v422 = vpop.f32.mrf.mxu0
  %v423 = vadd.f32 %v76, %v422
  %v424 = vpop.f32.mrf.mxu0
  %425 = vmatprep.mubr.bf16.mxu0 0
  %426 = vmatmul.mubr.bf16.gmra.mxu0 %v115
  %v427 = vpop.f32.mrf.mxu0
  %v428 = vadd.f32 %v76, %v427
  %v429 = vpop.f32.mrf.mxu0
  %v430 = vpop.f32.mrf.mxu0
  %v431 = vadd.f32 %v76, %v430
  %v432 = vpop.f32.mrf.mxu0
  %433 = vmatprep.mubr.bf16.mxu0 0
  %434 = vmatmul.mubr.bf16.gmra.mxu0 %v116
  %v435 = vpop.f32.mrf.mxu0
  %v436 = vadd.f32 %v76, %v435
  %v437 = vpop.f32.mrf.mxu0
  %v438 = vpop.f32.mrf.mxu0
  %v439 = vadd.f32 %v76, %v438
  %v440 = vpop.f32.mrf.mxu0
  %441 = vmatprep.mubr.bf16.mxu0 0
  %442 = vmatmul.mubr.bf16.gmra.mxu0 %v117
  %v443 = vpop.f32.mrf.mxu0
  %v444 = vadd.f32 %v76, %v443
  %v445 = vpop.f32.mrf.mxu0
  %v446 = vpop.f32.mrf.mxu0
  %v447 = vadd.f32 %v76, %v446
  %v448 = vpop.f32.mrf.mxu0
  %449 = vmatprep.mubr.bf16.mxu0 0
  %450 = vmatmul.mubr.bf16.gmra.mxu0 %v118
  %v451 = vpop.f32.mrf.mxu0
  %v452 = vadd.f32 %v76, %v451
  %v453 = vpop.f32.mrf.mxu0
  %v454 = vpop.f32.mrf.mxu0
  %v455 = vadd.f32 %v76, %v454
  %v456 = vpop.f32.mrf.mxu0
  %457 = vmatprep.mubr.bf16.mxu0 0
  %458 = vmatmul.mubr.bf16.gmra.mxu0 %v119
  %v459 = vpop.f32.mrf.mxu0
  %v460 = vadd.f32 %v76, %v459
  %v461 = vpop.f32.mrf.mxu0
  %v462 = vpop.f32.mrf.mxu0
  %v463 = vadd.f32 %v76, %v462
  %v464 = vpop.f32.mrf.mxu0
  %465 = vdwg.mxu0
  %v466 = vpack.c.bf16 %v295, %v291
  %v467 = vpack.c.bf16 %v297, %v293
  %v468 = vpack.c.bf16 %v407, %v404
  %v469 = vpack.c.bf16 %v305, %v301
  %v470 = vpack.c.bf16 %v307, %v303
  %v471 = vpack.c.bf16 %v415, %v412
  %v472 = vpack.c.bf16 %v315, %v311
  %v473 = vpack.c.bf16 %v317, %v313
  %v474 = vpack.c.bf16 %v423, %v420
  %v475 = vpack.c.bf16 %v325, %v321
  %v476 = vpack.c.bf16 %v327, %v323
  %v477 = vpack.c.bf16 %v431, %v428
  %v478 = vpack.c.bf16 %v335, %v331
  %v479 = vpack.c.bf16 %v337, %v333
  %v480 = vpack.c.bf16 %v439, %v436
  %v481 = vpack.c.bf16 %v345, %v341
  %v482 = vpack.c.bf16 %v347, %v343
  %v483 = vpack.c.bf16 %v447, %v444
  %v484 = vpack.c.bf16 %v355, %v351
  %v485 = vpack.c.bf16 %v357, %v353
  %v486 = vpack.c.bf16 %v455, %v452
  %v487 = vpack.c.bf16 %v365, %v361
  %v488 = vpack.c.bf16 %v367, %v363
  %v489 = vpack.c.bf16 %v463, %v460
  %v514 = vunpack.c.l.b16 %v466
  %v515 = vunpack.c.l.b16 %v467
  %v516 = vunpack.c.l.b16 %v468
  %v517 = vunpack.c.h.b16 %v466
  %v518 = vunpack.c.h.b16 %v467
  %v519 = vunpack.c.h.b16 %v468
  %v520 = vunpack.c.l.b16 %v469
  %v521 = vunpack.c.l.b16 %v470
  %v522 = vunpack.c.l.b16 %v471
  %v523 = vunpack.c.h.b16 %v469
  %v524 = vunpack.c.h.b16 %v470
  %v525 = vunpack.c.h.b16 %v471
  %v526 = vunpack.c.l.b16 %v472
  %v527 = vunpack.c.l.b16 %v473
  %v528 = vunpack.c.l.b16 %v474
  %v529 = vunpack.c.h.b16 %v472
  %v530 = vunpack.c.h.b16 %v473
  %v531 = vunpack.c.h.b16 %v474
  %v532 = vunpack.c.l.b16 %v475
  %v533 = vunpack.c.l.b16 %v476
  %v534 = vunpack.c.l.b16 %v477
  %v535 = vunpack.c.h.b16 %v475
  %v536 = vunpack.c.h.b16 %v476
  %v537 = vunpack.c.h.b16 %v477
  %v538 = vunpack.c.l.b16 %v478
  %v539 = vunpack.c.l.b16 %v479
  %v540 = vunpack.c.l.b16 %v480
  %v541 = vunpack.c.h.b16 %v478
  %v542 = vunpack.c.h.b16 %v479
  %v543 = vunpack.c.h.b16 %v480
  %v544 = vunpack.c.l.b16 %v481
  %v545 = vunpack.c.l.b16 %v482
  %v546 = vunpack.c.l.b16 %v483
  %v547 = vunpack.c.h.b16 %v481
  %v548 = vunpack.c.h.b16 %v482
  %v549 = vunpack.c.h.b16 %v483
  %v550 = vunpack.c.l.b16 %v484
  %v551 = vunpack.c.l.b16 %v485
  %v552 = vunpack.c.l.b16 %v486
  %v553 = vunpack.c.h.b16 %v484
  %v554 = vunpack.c.h.b16 %v485
  %v555 = vunpack.c.h.b16 %v486
  %v556 = vunpack.c.l.b16 %v487
  %v557 = vunpack.c.l.b16 %v488
  %v558 = vunpack.c.l.b16 %v489
  %v559 = vunpack.c.h.b16 %v487
  %v560 = vunpack.c.h.b16 %v488
  %v561 = vunpack.c.h.b16 %v489
  %v562 = vpack.c.b16 %v515, %v514
  %v563 = vpack.c.b16 %v516, %v516
  %v564 = vpack.c.b16 %v518, %v517
  %v565 = vpack.c.b16 %v519, %v519
  %v566 = vpack.c.b16 %v521, %v520
  %v567 = vpack.c.b16 %v522, %v522
  %v568 = vpack.c.b16 %v524, %v523
  %v569 = vpack.c.b16 %v525, %v525
  %v570 = vpack.c.b16 %v527, %v526
  %v571 = vpack.c.b16 %v528, %v528
  %v572 = vpack.c.b16 %v530, %v529
  %v573 = vpack.c.b16 %v531, %v531
  %v574 = vpack.c.b16 %v533, %v532
  %v575 = vpack.c.b16 %v534, %v534
  %v576 = vpack.c.b16 %v536, %v535
  %v577 = vpack.c.b16 %v537, %v537
  %v578 = vpack.c.b16 %v539, %v538
  %v579 = vpack.c.b16 %v540, %v540
  %v580 = vpack.c.b16 %v542, %v541
  %v581 = vpack.c.b16 %v543, %v543
  %v582 = vpack.c.b16 %v545, %v544
  %v583 = vpack.c.b16 %v546, %v546
  %v584 = vpack.c.b16 %v548, %v547
  %v585 = vpack.c.b16 %v549, %v549
  %v586 = vpack.c.b16 %v551, %v550
  %v587 = vpack.c.b16 %v552, %v552
  %v588 = vpack.c.b16 %v554, %v553
  %v589 = vpack.c.b16 %v555, %v555
  %v590 = vpack.c.b16 %v557, %v556
  %v591 = vpack.c.b16 %v558, %v558
  %v592 = vpack.c.b16 %v560, %v559
  %v593 = vpack.c.b16 %v561, %v561
  %626 = vst [vmem:[%s3] sm:$0xff] %v562
  %627 = vst [vmem:[%s3 + $0x8] sm:$0xf] %v563
  %628 = vst [vmem:[%s3 + $0xc] sm:$0xff] %v564
  %629 = vst [vmem:[%s3 + $0x14] sm:$0xf] %v565
  %630 = vst [vmem:[%s3 + $0x18] sm:$0xff] %v566
  %631 = vst [vmem:[%s3 + $0x20] sm:$0xf] %v567
  %632 = vst [vmem:[%s3 + $0x24] sm:$0xff] %v568
  %633 = vst [vmem:[%s3 + $0x2c] sm:$0xf] %v569
  %634 = vst [vmem:[%s3 + $0x30] sm:$0xff] %v570
  %635 = vst [vmem:[%s3 + $0x38] sm:$0xf] %v571
  %636 = vst [vmem:[%s3 + $0x3c] sm:$0xff] %v572
  %637 = vst [vmem:[%s3 + $0x44] sm:$0xf] %v573
  %638 = vst [vmem:[%s3 + $0x48] sm:$0xff] %v574
  %639 = vst [vmem:[%s3 + $0x50] sm:$0xf] %v575
  %640 = vst [vmem:[%s3 + $0x54] sm:$0xff] %v576
  %641 = vst [vmem:[%s3 + $0x5c] sm:$0xf] %v577
  %642 = vst [vmem:[%s3 + $0x60] sm:$0xff] %v578
  %643 = vst [vmem:[%s3 + $0x68] sm:$0xf] %v579
  %644 = vst [vmem:[%s3 + $0x6c] sm:$0xff] %v580
  %645 = vst [vmem:[%s3 + $0x74] sm:$0xf] %v581
  %646 = vst [vmem:[%s3 + $0x78] sm:$0xff] %v582
  %647 = vst [vmem:[%s3 + $0x80] sm:$0xf] %v583
  %648 = vst [vmem:[%s3 + $0x84] sm:$0xff] %v584
  %649 = vst [vmem:[%s3 + $0x8c] sm:$0xf] %v585
  %650 = vst [vmem:[%s3 + $0x90] sm:$0xff] %v586
  %651 = vst [vmem:[%s3 + $0x98] sm:$0xf] %v587
  %652 = vst [vmem:[%s3 + $0x9c] sm:$0xff] %v588
  %653 = vst [vmem:[%s3 + $0xa4] sm:$0xf] %v589
  %654 = vst [vmem:[%s3 + $0xa8] sm:$0xff] %v590
  %655 = vst [vmem:[%s3 + $0xb0] sm:$0xf] %v591
  %656 = vst [vmem:[%s3 + $0xb4] sm:$0xff] %v592
  %657 = vst [vmem:[%s3 + $0xbc] sm:$0xf] %v593
  // Predicated region
  $region14: #{forward.5} parent=0 // pred_check
    _
  $region15: #{forward.5} parent=0 // pred_check_branch
    %659 = sbr.rel (0) target = $region17
  $region16: #{forward.5} parent=0 // pred_region
    _
  $region17: #{forward.5} parent=0 // pred_fallthru
    _
  // Predicated region
  $region18: #{forward.5} parent=0 // pred_check
    _
  $region19: #{forward.5} parent=0 // pred_check_branch
    %661 = sbr.rel (0) target = $region21
  $region20: #{forward.5} parent=0 // pred_region
    _
  $region21: #{forward.5} parent=0 // pred_fallthru
    _

// kernel: forward.6
$region0: #{forward.6}
  #allocation0 [shape = 'u32[]', space=smem, size = 0x4, offset = 0x4, fixed_abs, tag = 'smem constant byte address 0x4 - core index']
  #allocation1 [shape = 'u32[144,128]{1,0:T(1,128)}', space=vmem, size = 0x12000, scoped, tag = 'internal scratch']
  %s0 = inlined_call_operand.vmem [shape: bf16[2,8,384], index: 0, kind: input, shape index: {}, may-alias: {0,1,2}]
  %s1 = inlined_call_operand.vmem [shape: bf16[2,8,384], index: 1, kind: input, shape index: {}, may-alias: {0,1,2}]
  %s2 = inlined_call_operand.vmem [shape: bf16[2,8,384], index: 2, kind: input, shape index: {}, may-alias: {0,1,2}]
  %s3 = inlined_call_operand.vmem [shape: bf16[2,8,128], index: 3, kind: input, shape index: {}]
  %s4 = inlined_call_operand.vmem [shape: bf16[128,128], index: 4, kind: input, shape index: {}]
  %s5 = inlined_call_operand.vmem [shape: bf16[2,8,128], index: 5, kind: output, shape index: {}]
  %s6 = sld [smem:[#allocation0]]
  $region53: #{forward.6} parent=0
    _
  %s8 = ssub.s32 1, %s6
  %s9 = scalar_select 0, %s8, %s6
  loop: start=0, step=1, limit=4
  $region2: #{forward.6} parent=0 // loop_pre_header
    _
  $region3: #{forward.6} parent=0 // loop_header
    %s11 = sphi 0, %s15
    %p12 = scmp.ge.s32.totalorder %s11, 4
    %s18 = sphi 0, %s30
    %s19 = sphi 0, %s26
    %s20 = sphi 0, %s18
    %s21 = sphi 0, %s19
    %s22 = sphi 0, %s20
    %s23 = sphi 0, %s21
    %s35 = sphi 0, %s37
    %s38 = sphi 0, %s35
    %s39 = sphi 0, %s38
    %s55 = sphi 0, %s39
    %s61 = sphi 0, %s63
    %s64 = sphi 0, %s61
    %s65 = sphi 0, %s64
    %s81 = sphi 0, %s65
    %s87 = sphi 0, %s89
    %s90 = sphi 0, %s87
    %s91 = sphi 0, %s90
    %s107 = sphi 0, %s91
    %s115 = sphi 0, %s117
    %s118 = sphi 0, %s115
    %s119 = sphi 0, %s118
    %s135 = sphi 0, %s119
    %s139 = sphi 0, %s139
    %s141 = sphi 0, %s139
    %s142 = sphi 0, %s141
    %s156 = sphi 0, %s142
    %s164 = sphi 0, %s166
    %s167 = sphi 0, %s164
    %s168 = sphi 0, %s167
    %s184 = sphi 0, %s168
  $region4: #{forward.6} parent=0 // loop_header_branch
    %14 = sbr.rel (%p12) target = $region8
  $region5: #{forward.6} parent=0 // loop_body
    %s16 = ssub.s32 %s11, 1
    %s17 = ssub.s32 %s11, 2
    %s24 = sadd.s32 1, %s19
    %p25 = scmp.ge.s32.totalorder %s24, 1
    %s26 = scalar_select %p25, 0, %s24
    %s27 = sadd.s32 1, %s18
    %s28 = scalar_select %p25, %s27, %s18
    %p29 = scmp.ge.s32.totalorder %s28, 2
    %s30 = scalar_select %p29, 0, %s28
    %s31 = ssub.s32 %s18, %s30
    %s32 = ssub.s32 %s19, %s26
    %s33 = sor.u32 %s31, %s32
    %p34 = scmp.eq.s32.totalorder %s33, 0
    %s36 = sadd.s32 %s35, 1
    %s37 = scalar_select %p34, %s35, %s36
    %p40 = pneg %p34
    %p41 = scmp.eq.s32.totalorder %s11, 1
    %p42 = por %p40, %p41
    %p43 = scmp.ne.s32.totalorder %s35, %s38
    %p44 = scmp.eq.s32.totalorder %s11, 0
    %p45 = por %p43, %p44
    %p46 = scmp.ne.s32.totalorder %s35, %s38
    %p47 = scmp.eq.s32.totalorder %s16, 1
    %p48 = por %p46, %p47
    %p49 = scmp.ne.s32.totalorder %s38, %s39
    %p50 = scmp.eq.s32.totalorder %s16, 0
    %p51 = por %p49, %p50
    %p52 = scmp.ne.s32.totalorder %s38, %s39
    %p53 = scmp.eq.s32.totalorder %s17, 1
    %p54 = por %p52, %p53
    %p56 = scmp.ne.s32.totalorder %s39, %s55
    %p57 = scmp.eq.s32.totalorder %s17, 0
    %p58 = por %p56, %p57
    %s59 = ssub.s32 %s18, %s30
    %p60 = scmp.eq.s32.totalorder %s59, 0
    %s62 = sadd.s32 %s61, 1
    %s63 = scalar_select %p60, %s61, %s62
    %p66 = pneg %p60
    %p67 = scmp.eq.s32.totalorder %s11, 1
    %p68 = por %p66, %p67
    %p69 = scmp.ne.s32.totalorder %s61, %s64
    %p70 = scmp.eq.s32.totalorder %s11, 0
    %p71 = por %p69, %p70
    %p72 = scmp.ne.s32.totalorder %s61, %s64
    %p73 = scmp.eq.s32.totalorder %s16, 1
    %p74 = por %p72, %p73
    %p75 = scmp.ne.s32.totalorder %s64, %s65
    %p76 = scmp.eq.s32.totalorder %s16, 0
    %p77 = por %p75, %p76
    %p78 = scmp.ne.s32.totalorder %s64, %s65
    %p79 = scmp.eq.s32.totalorder %s17, 1
    %p80 = por %p78, %p79
    %p82 = scmp.ne.s32.totalorder %s65, %s81
    %p83 = scmp.eq.s32.totalorder %s17, 0
    %p84 = por %p82, %p83
    %s85 = ssub.s32 %s18, %s30
    %p86 = scmp.eq.s32.totalorder %s85, 0
    %s88 = sadd.s32 %s87, 1
    %s89 = scalar_select %p86, %s87, %s88
    %p92 = pneg %p86
    %p93 = scmp.eq.s32.totalorder %s11, 1
    %p94 = por %p92, %p93
    %p95 = scmp.ne.s32.totalorder %s87, %s90
    %p96 = scmp.eq.s32.totalorder %s11, 0
    %p97 = por %p95, %p96
    %p98 = scmp.ne.s32.totalorder %s87, %s90
    %p99 = scmp.eq.s32.totalorder %s16, 1
    %p100 = por %p98, %p99
    %p101 = scmp.ne.s32.totalorder %s90, %s91
    %p102 = scmp.eq.s32.totalorder %s16, 0
    %p103 = por %p101, %p102
    %p104 = scmp.ne.s32.totalorder %s90, %s91
    %p105 = scmp.eq.s32.totalorder %s17, 1
    %p106 = por %p104, %p105
    %p108 = scmp.ne.s32.totalorder %s91, %s107
    %p109 = scmp.eq.s32.totalorder %s17, 0
    %p110 = por %p108, %p109
    %s111 = ssub.s32 %s18, %s30
    %s112 = ssub.s32 %s19, %s26
    %s113 = sor.u32 %s111, %s112
    %p114 = scmp.eq.s32.totalorder %s113, 0
    %s116 = sadd.s32 %s115, 1
    %s117 = scalar_select %p114, %s115, %s116
    %p120 = pneg %p114
    %p121 = scmp.eq.s32.totalorder %s11, 1
    %p122 = por %p120, %p121
    %p123 = scmp.ne.s32.totalorder %s115, %s118
    %p124 = scmp.eq.s32.totalorder %s11, 0
    %p125 = por %p123, %p124
    %p126 = scmp.ne.s32.totalorder %s115, %s118
    %p127 = scmp.eq.s32.totalorder %s16, 1
    %p128 = por %p126, %p127
    %p129 = scmp.ne.s32.totalorder %s118, %s119
    %p130 = scmp.eq.s32.totalorder %s16, 0
    %p131 = por %p129, %p130
    %p132 = scmp.ne.s32.totalorder %s118, %s119
    %p133 = scmp.eq.s32.totalorder %s17, 1
    %p134 = por %p132, %p133
    %p136 = scmp.ne.s32.totalorder %s119, %s135
    %p137 = scmp.eq.s32.totalorder %s17, 0
    %p138 = por %p136, %p137
    %s140 = sadd.s32 %s139, 1
    %p143 = scmp.eq.s32.totalorder %s11, 1
    %p144 = scmp.ne.s32.totalorder %s139, %s141
    %p145 = scmp.eq.s32.totalorder %s11, 0
    %p146 = por %p144, %p145
    %p147 = scmp.ne.s32.totalorder %s139, %s141
    %p148 = scmp.eq.s32.totalorder %s16, 1
    %p149 = por %p147, %p148
    %p150 = scmp.ne.s32.totalorder %s141, %s142
    %p151 = scmp.eq.s32.totalorder %s16, 0
    %p152 = por %p150, %p151
    %p153 = scmp.ne.s32.totalorder %s141, %s142
    %p154 = scmp.eq.s32.totalorder %s17, 1
    %p155 = por %p153, %p154
    %p157 = scmp.ne.s32.totalorder %s142, %s156
    %p158 = scmp.eq.s32.totalorder %s17, 0
    %p159 = por %p157, %p158
    %s160 = ssub.s32 %s18, %s30
    %s161 = ssub.s32 %s19, %s26
    %s162 = sor.u32 %s160, %s161
    %p163 = scmp.eq.s32.totalorder %s162, 0
    %s165 = sadd.s32 %s164, 1
    %s166 = scalar_select %p163, %s164, %s165
    %p169 = pneg %p163
    %p170 = scmp.eq.s32.totalorder %s11, 1
    %p171 = por %p169, %p170
    %p172 = scmp.ne.s32.totalorder %s164, %s167
    %p173 = scmp.eq.s32.totalorder %s11, 0
    %p174 = por %p172, %p173
    %p175 = scmp.ne.s32.totalorder %s164, %s167
    %p176 = scmp.eq.s32.totalorder %s16, 1
    %p177 = por %p175, %p176
    %p178 = scmp.ne.s32.totalorder %s167, %s168
    %p179 = scmp.eq.s32.totalorder %s16, 0
    %p180 = por %p178, %p179
    %p181 = scmp.ne.s32.totalorder %s167, %s168
    %p182 = scmp.eq.s32.totalorder %s17, 1
    %p183 = por %p181, %p182
    %p185 = scmp.ne.s32.totalorder %s168, %s184
    %p186 = scmp.eq.s32.totalorder %s17, 0
    %p187 = por %p185, %p186
    %p188 = scmp.le.s32.totalorder 1, %s11
    %p189 = scmp.lt.s32.totalorder %s11, 3
    %p190 = pnand %p188, %p189
    %p191 = pneg %p190
    // Predicated region
    $region9: #{forward.6} parent=5 // pred_check
      _
    $region10: #{forward.6} parent=5 // pred_check_branch
      %193 = sbr.rel (%p190) target = $region12
    $region11: #{forward.6} parent=5 // pred_region
      %s194 = ssub.s32 %s11, 1
      // Predicated region
      $region13: #{forward.6} parent=11 // pred_check
        %p195 = pneg %p152
      $region14: #{forward.6} parent=11 // pred_check_branch
        %197 = sbr.rel (%p195) target = $region16
      $region15: #{forward.6} parent=11 // pred_region
        _
      $region16: #{forward.6} parent=11 // pred_fallthru
        _
    $region12: #{forward.6} parent=5 // pred_fallthru
      _
    %p198 = scmp.lt.s32.totalorder %s11, 2
    // Predicated region
    $region17: #{forward.6} parent=5 // pred_check
      %p199 = pneg %p198
    $region18: #{forward.6} parent=5 // pred_check_branch
      %201 = sbr.rel (%p199) target = $region20
    $region19: #{forward.6} parent=5 // pred_region
      // Predicated region
      $region21: #{forward.6} parent=19 // pred_check
        %p202 = pneg %p45
      $region22: #{forward.6} parent=19 // pred_check_branch
        %204 = sbr.rel (%p202) target = $region24
      $region23: #{forward.6} parent=19 // pred_region
        %p205 = scmp.lt.s32.totalorder %s18, 1
        %s206 = scalar_select %p205, %s18, 1
        %p207 = scmp.lt.s32.totalorder %s19, 0
        %s208 = scalar_select %p207, %s19, 0
        %s209 = smul.addr %s208, 3
        %s210 = smul.addr %s206, 3
        %s211 = sadd.s32 %s209, %s210
        %s212 = smul.addr %s211, 4
        %s213 = scalar_lea.vmem %s0, %s212
      $region24: #{forward.6} parent=19 // pred_fallthru
        _
      // Predicated region
      $region25: #{forward.6} parent=19 // pred_check
        %p214 = pneg %p71
      $region26: #{forward.6} parent=19 // pred_check_branch
        %216 = sbr.rel (%p214) target = $region28
      $region27: #{forward.6} parent=19 // pred_region
        %p217 = scmp.lt.s32.totalorder %s18, 1
        %s218 = scalar_select %p217, %s18, 1
        %s219 = smul.addr %s218, 3
        %s220 = sadd.s32 1, %s219
        %s221 = smul.addr %s220, 4
        %s222 = scalar_lea.vmem %s1, %s221
      $region28: #{forward.6} parent=19 // pred_fallthru
        _
      // Predicated region
      $region29: #{forward.6} parent=19 // pred_check
        %p223 = pneg %p97
      $region30: #{forward.6} parent=19 // pred_check_branch
        %225 = sbr.rel (%p223) target = $region32
      $region31: #{forward.6} parent=19 // pred_region
        %p226 = scmp.lt.s32.totalorder %s18, 1
        %s227 = scalar_select %p226, %s18, 1
        %s228 = smul.addr %s227, 3
        %s229 = sadd.s32 2, %s228
        %s230 = smul.addr %s229, 4
        %s231 = scalar_lea.vmem %s2, %s230
      $region32: #{forward.6} parent=19 // pred_fallthru
        _
      // Predicated region
      $region33: #{forward.6} parent=19 // pred_check
        %p232 = pneg %p125
      $region34: #{forward.6} parent=19 // pred_check_branch
        %234 = sbr.rel (%p232) target = $region36
      $region35: #{forward.6} parent=19 // pred_region
        %p235 = scmp.lt.s32.totalorder %s18, 1
        %s236 = scalar_select %p235, %s18, 1
        %p237 = scmp.lt.s32.totalorder %s19, 0
        %s238 = scalar_select %p237, %s19, 0
        %s239 = sadd.s32 %s238, %s236
        %s240 = smul.addr %s239, 4
        %s241 = scalar_lea.vmem %s3, %s240
      $region36: #{forward.6} parent=19 // pred_fallthru
        _
    $region20: #{forward.6} parent=5 // pred_fallthru
      _
    %p242 = scmp.le.s32.totalorder 1, %s11
    %p243 = scmp.lt.s32.totalorder %s11, 3
    %p244 = pnand %p242, %p243
    %p245 = pneg %p244
    // Predicated region
    $region37: #{forward.6} parent=5 // pred_check
      _
    $region38: #{forward.6} parent=5 // pred_check_branch
      %247 = sbr.rel (%p244) target = $region40
    $region39: #{forward.6} parent=5 // pred_region
      %s248 = ssub.s32 %s11, 1
      %p249 = scmp.lt.s32.totalorder %s20, 1
      %s250 = scalar_select %p249, %s20, 1
      %p251 = scmp.lt.s32.totalorder %s21, 0
      %s252 = scalar_select %p251, %s21, 0
      %s253 = smul.addr %s252, 3
      %s254 = smul.addr %s250, 3
      %s255 = sadd.s32 %s253, %s254
      %s256 = smul.addr %s255, 4
      %s257 = scalar_lea.vmem %s0, %s256
      %p258 = pneg %p51
      %p259 = pneg %p48
      %p260 = scmp.lt.s32.totalorder %s20, 1
      %s261 = scalar_select %p260, %s20, 1
      %s262 = smul.addr %s261, 3
      %s263 = sadd.s32 1, %s262
      %s264 = smul.addr %s263, 4
      %s265 = scalar_lea.vmem %s1, %s264
      %p266 = pneg %p77
      %p267 = pneg %p74
      %p268 = scmp.lt.s32.totalorder %s20, 1
      %s269 = scalar_select %p268, %s20, 1
      %s270 = smul.addr %s269, 3
      %s271 = sadd.s32 2, %s270
      %s272 = smul.addr %s271, 4
      %s273 = scalar_lea.vmem %s2, %s272
      %p274 = pneg %p103
      %p275 = pneg %p100
      %p276 = scmp.lt.s32.totalorder %s20, 1
      %s277 = scalar_select %p276, %s20, 1
      %p278 = scmp.lt.s32.totalorder %s21, 0
      %s279 = scalar_select %p278, %s21, 0
      %s280 = sadd.s32 %s279, %s277
      %s281 = smul.addr %s280, 4
      %s282 = scalar_lea.vmem %s3, %s281
      %p283 = pneg %p131
      %p284 = pneg %p128
      %p285 = pneg %p152
      %p286 = pneg %p149
      %p287 = pneg %p180
      %p288 = pneg %p177
      %p289 = scmp.lt.s32.totalorder %s20, 1
      %s290 = scalar_select %p289, %s20, 1
      %p291 = scmp.lt.s32.totalorder %s21, 0
      %s292 = scalar_select %p291, %s21, 0
      %s293 = sadd.s32 %s292, %s290
      %s294 = smul.addr %s293, 4
      %s295 = scalar_lea.vmem %s5, %s294
      %p296 = scmp.lt.s32.totalorder %s20, 1
      %s297 = scalar_select %p296, %s20, 1
      %p298 = scmp.lt.s32.totalorder %s21, 0
      %s299 = scalar_select %p298, %s21, 0
      %s300 = smul.addr %s299, 3
      %s301 = smul.addr %s297, 3
      %s302 = sadd.s32 %s300, %s301
      %s303 = smul.addr %s302, 4
      %s304 = scalar_lea.vmem %s0, %s303
      %p305 = scmp.lt.s32.totalorder %s20, 1
      %s306 = scalar_select %p305, %s20, 1
      %s307 = smul.addr %s306, 3
      %s308 = sadd.s32 1, %s307
      %s309 = smul.addr %s308, 4
      %s310 = scalar_lea.vmem %s1, %s309
      %p311 = scmp.lt.s32.totalorder %s20, 1
      %s312 = scalar_select %p311, %s20, 1
      %s313 = smul.addr %s312, 3
      %s314 = sadd.s32 2, %s313
      %s315 = smul.addr %s314, 4
      %s316 = scalar_lea.vmem %s2, %s315
      %p317 = scmp.lt.s32.totalorder %s20, 1
      %s318 = scalar_select %p317, %s20, 1
      %p319 = scmp.lt.s32.totalorder %s21, 0
      %s320 = scalar_select %p319, %s21, 0
      %s321 = sadd.s32 %s320, %s318
      %s322 = smul.addr %s321, 4
      %s323 = scalar_lea.vmem %s3, %s322
      %p324 = scmp.lt.s32.totalorder %s20, 1
      %s325 = scalar_select %p324, %s20, 1
      %p326 = scmp.lt.s32.totalorder %s21, 0
      %s327 = scalar_select %p326, %s21, 0
      %s328 = sadd.s32 %s327, %s325
      %s329 = smul.addr %s328, 4
      %s330 = scalar_lea.vmem %s5, %s329
      %v332 = vld [vmem:[%s304] sm:$0xf]
      %v333 = vld [vmem:[%s310] sm:$0xf]
      %v334 = vld [vmem:[%s316] sm:$0xf]
      %335 = vmatprep.subr.bf16.mxu0 0
      %336 = vmatpush1.bf16.xpose.msra.mxu0 0
      %337 = vmatprep.subr.bf16.mxu0 0
      %338 = vmatpush1.bf16.xpose.msra.mxu0 0
      %339 = vmatprep.subr.bf16.mxu0 0
      %340 = vmatpush1.bf16.xpose.msra.mxu0 0
      %341 = vmatprep.subr.bf16.mxu0 0
      %342 = vmatpush1.bf16.xpose.msra.mxu0 0
      %343 = vmatprep.subr.bf16.mxu0 0
      %344 = vmatpush1.bf16.xpose.msra.mxu0 0
      %345 = vmatprep.subr.bf16.mxu0 0
      %346 = vmatpush1.bf16.xpose.msra.mxu0 0
      %347 = vmatprep.subr.bf16.mxu0 0
      %348 = vmatpush1.bf16.xpose.msra.mxu0 0
      %349 = vmatprep.subr.bf16.mxu0 0
      %350 = vmatpush1.bf16.xpose.msra.mxu0 %v333
      %351 = vmatprep.subr.bf16.mxu0 0
      %352 = vmatpush2.bf16.xpose.msra.mxu0 0
      %353 = vmatprep.subr.bf16.mxu0 0
      %354 = vmatpush2.bf16.xpose.msra.mxu0 0
      %355 = vmatprep.subr.bf16.mxu0 0
      %356 = vmatpush2.bf16.xpose.msra.mxu0 0
      %357 = vmatprep.subr.bf16.mxu0 0
      %358 = vmatpush2.bf16.xpose.msra.mxu0 0
      %359 = vmatprep.subr.bf16.mxu0 0
      %360 = vmatpush2.bf16.xpose.msra.mxu0 0
      %361 = vmatprep.subr.bf16.mxu0 0
      %362 = vmatpush2.bf16.xpose.msra.mxu0 0
      %363 = vmatprep.subr.bf16.mxu0 0
      %364 = vmatpush2.bf16.xpose.msra.mxu0 0
      %365 = vmatprep.subr.bf16.mxu0 0
      %366 = vmatpush2.bf16.xpose.msra.mxu0 0
      %367 = vmatprep.mubr.bf16.mxu0 0
      %368 = vmatmul.mubr.bf16.gmra.mxu0 %v332
      %v369 = vpop.f32.mrf.mxu0
      %v370 = vadd.f32 0.0, %v369
      %v371 = vpop.f32.mrf.mxu0
      %v372 = vpop.f32.mrf.mxu0
      %v373 = vpop.f32.mrf.mxu0
      %374 = vdwg.mxu0
      %v375 = vlaneseq
      %v376 = vshrl.u32 %v375, 7
      %s377 = smul.u32 %s21, 8
      %v378 = vstv %s377
      %v379 = vadd.s32 %v376, %v378
      %v380 = vlaneseq
      %v381 = vand.u32 %v380, 127
      %vm382 = vcmp.le.s32.totalorder %v381, %v379
      %v383 = vsel %vm382, %v370, -1e+30
      %vm384 = vcmask 64512
      %v385 = vsel %vm384, %v383, -inf
      %386 = vmax.xlane.f32.xlu0 %v385
      %v387 = vpop.xlane.xlu0 %386
      %v388 = vsub.f32 %v383, %v387
      %v389 = vmul.f32 %v388, 1.442695
      %v390 = vpow.pop %v389
      %v391 = vsel %vm384, %v390, 0.0
      %392 = vadd.xlane.f32.xlu0 %v391
      %v393 = vpop.xlane.xlu0 %392
      %v394 = vrcp.pop %v393
      %v395 = vmul.f32 %v390, %v394
      %v396 = vpack.c.bf16 %v395, %v395
      %v398 = vsel %vm384, %v396, 0
      %vm400 = vcmask 1043456
      %v402 = vsel %vm400, %v334, 0
      %404 = vmatprep.subr.bf16.mxu0 0
      %405 = vmatpush1.bf16.msra.mxu0 0
      %406 = vmatprep.subr.bf16.mxu0 0
      %407 = vmatpush1.bf16.msra.mxu0 0
      %408 = vmatprep.subr.bf16.mxu0 0
      %409 = vmatpush1.bf16.msra.mxu0 0
      %410 = vmatprep.subr.bf16.mxu0 0
      %411 = vmatpush1.bf16.msra.mxu0 0
      %412 = vmatprep.subr.bf16.mxu0 0
      %413 = vmatpush1.bf16.msra.mxu0 0
      %414 = vmatprep.subr.bf16.mxu0 0
      %415 = vmatpush1.bf16.msra.mxu0 0
      %416 = vmatprep.subr.bf16.mxu0 0
      %417 = vmatpush1.bf16.msra.mxu0 0
      %418 = vmatprep.subr.bf16.mxu0 0
      %419 = vmatpush1.bf16.msra.mxu0 %v402
      %420 = vmatprep.subr.bf16.mxu0 0
      %421 = vmatpush2.bf16.msra.mxu0 0
      %422 = vmatprep.subr.bf16.mxu0 0
      %423 = vmatpush2.bf16.msra.mxu0 0
      %424 = vmatprep.subr.bf16.mxu0 0
      %425 = vmatpush2.bf16.msra.mxu0 0
      %426 = vmatprep.subr.bf16.mxu0 0
      %427 = vmatpush2.bf16.msra.mxu0 0
      %428 = vmatprep.subr.bf16.mxu0 0
      %429 = vmatpush2.bf16.msra.mxu0 0
      %430 = vmatprep.subr.bf16.mxu0 0
      %431 = vmatpush2.bf16.msra.mxu0 0
      %432 = vmatprep.subr.bf16.mxu0 0
      %433 = vmatpush2.bf16.msra.mxu0 0
      %434 = vmatprep.subr.bf16.mxu0 0
      %435 = vmatpush2.bf16.msra.mxu0 0
      %436 = vmatprep.mubr.bf16.mxu0 0
      %437 = vmatmul.mubr.bf16.gmra.mxu0 %v398
      %v438 = vpop.f32.mrf.mxu0
      %v439 = vadd.f32 0.0, %v438
      %v440 = vpop.f32.mrf.mxu0
      %v441 = vpop.f32.mrf.mxu0
      %v442 = vpop.f32.mrf.mxu0
      %443 = vdwg.mxu0
      %v444 = vpack.c.bf16 %v439, %v439
      %v445 = vld [vmem:[%s4] sm:$0xf]
      %v446 = vld [vmem:[%s4 + $0x4] sm:$0xf]
      %v447 = vld [vmem:[%s4 + $0x8] sm:$0xf]
      %v448 = vld [vmem:[%s4 + $0xc] sm:$0xf]
      %v449 = vld [vmem:[%s4 + $0x10] sm:$0xf]
      %v450 = vld [vmem:[%s4 + $0x14] sm:$0xf]
      %v451 = vld [vmem:[%s4 + $0x18] sm:$0xf]
      %v452 = vld [vmem:[%s4 + $0x1c] sm:$0xf]
      %v453 = vld [vmem:[%s4 + $0x20] sm:$0xf]
      %v454 = vld [vmem:[%s4 + $0x24] sm:$0xf]
      %v455 = vld [vmem:[%s4 + $0x28] sm:$0xf]
      %v456 = vld [vmem:[%s4 + $0x2c] sm:$0xf]
      %v457 = vld [vmem:[%s4 + $0x30] sm:$0xf]
      %v458 = vld [vmem:[%s4 + $0x34] sm:$0xf]
      %v459 = vld [vmem:[%s4 + $0x38] sm:$0xf]
      %v460 = vld [vmem:[%s4 + $0x3c] sm:$0xf]
      %v477 = vunpack.c.l.b16 %v445
      %v478 = vunpack.c.l.b16 %v446
      %v479 = vunpack.c.l.b16 %v447
      %v480 = vunpack.c.l.b16 %v448
      %v481 = vunpack.c.l.b16 %v449
      %v482 = vunpack.c.l.b16 %v450
      %v483 = vunpack.c.l.b16 %v451
      %v484 = vunpack.c.l.b16 %v452
      %v485 = vunpack.c.l.b16 %v453
      %v486 = vunpack.c.l.b16 %v454
      %v487 = vunpack.c.l.b16 %v455
      %v488 = vunpack.c.l.b16 %v456
      %v489 = vunpack.c.l.b16 %v457
      %v490 = vunpack.c.l.b16 %v458
      %v491 = vunpack.c.l.b16 %v459
      %v492 = vunpack.c.l.b16 %v460
      %v493 = vpack.c.b16 %v478, %v477
      %v494 = vpack.c.b16 %v480, %v479
      %v495 = vpack.c.b16 %v482, %v481
      %v496 = vpack.c.b16 %v484, %v483
      %v497 = vpack.c.b16 %v486, %v485
      %v498 = vpack.c.b16 %v488, %v487
      %v499 = vpack.c.b16 %v490, %v489
      %v500 = vpack.c.b16 %v492, %v491
      %509 = vmatprep.subr.bf16.mxu0 0
      %510 = vmatpush1.bf16.msra.mxu0 %v500
      %511 = vmatprep.subr.bf16.mxu0 0
      %512 = vmatpush1.bf16.msra.mxu0 %v499
      %513 = vmatprep.subr.bf16.mxu0 0
      %514 = vmatpush1.bf16.msra.mxu0 %v498
      %515 = vmatprep.subr.bf16.mxu0 0
      %516 = vmatpush1.bf16.msra.mxu0 %v497
      %517 = vmatprep.subr.bf16.mxu0 0
      %518 = vmatpush1.bf16.msra.mxu0 %v496
      %519 = vmatprep.subr.bf16.mxu0 0
      %520 = vmatpush1.bf16.msra.mxu0 %v495
      %521 = vmatprep.subr.bf16.mxu0 0
      %522 = vmatpush1.bf16.msra.mxu0 %v494
      %523 = vmatprep.subr.bf16.mxu0 0
      %524 = vmatpush1.bf16.msra.mxu0 %v493
      %525 = vmatprep.subr.bf16.mxu0 0
      %526 = vmatpush2.bf16.msra.mxu0 0
      %527 = vmatprep.subr.bf16.mxu0 0
      %528 = vmatpush2.bf16.msra.mxu0 0
      %529 = vmatprep.subr.bf16.mxu0 0
      %530 = vmatpush2.bf16.msra.mxu0 0
      %531 = vmatprep.subr.bf16.mxu0 0
      %532 = vmatpush2.bf16.msra.mxu0 0
      %533 = vmatprep.subr.bf16.mxu0 0
      %534 = vmatpush2.bf16.msra.mxu0 0
      %535 = vmatprep.subr.bf16.mxu0 0
      %536 = vmatpush2.bf16.msra.mxu0 0
      %537 = vmatprep.subr.bf16.mxu0 0
      %538 = vmatpush2.bf16.msra.mxu0 0
      %539 = vmatprep.subr.bf16.mxu0 0
      %540 = vmatpush2.bf16.msra.mxu0 0
      %541 = vmatprep.mubr.bf16.mxu0 0
      %542 = vmatmul.mubr.bf16.gmra.mxu0 %v444
      %v543 = vpop.f32.mrf.mxu0
      %v544 = vadd.f32 0.0, %v543
      %v545 = vpop.f32.mrf.mxu0
      %v546 = vpop.f32.mrf.mxu0
      %v547 = vpop.f32.mrf.mxu0
      %548 = vdwg.mxu0
      %v549 = vld [vmem:[%s323] sm:$0xf]
      %v550 = vunpack.c.l.bf16 %v549
      %v551 = vadd.f32 %v550, %v544
      %v552 = vpack.c.bf16 %v551, %v551
      %553 = vst [vmem:[%s330] sm:$0xf] %v552
      %p554 = scmp.lt.s32.totalorder %s20, 1
      %s555 = scalar_select %p554, %s20, 1
      %p556 = scmp.lt.s32.totalorder %s21, 0
      %s557 = scalar_select %p556, %s21, 0
      %s558 = sadd.s32 %s557, %s555
      %s559 = smul.addr %s558, 4
      %s560 = scalar_lea.vmem %s5, %s559
      // Predicated region
      $region41: #{forward.6} parent=39 // pred_check
        %p561 = pneg %p177
      $region42: #{forward.6} parent=39 // pred_check_branch
        %563 = sbr.rel (%p561) target = $region44
      $region43: #{forward.6} parent=39 // pred_region
        _
      $region44: #{forward.6} parent=39 // pred_fallthru
        _
    $region40: #{forward.6} parent=5 // pred_fallthru
      _
    %p564 = scmp.le.s32.totalorder 2, %s11
    // Predicated region
    $region45: #{forward.6} parent=5 // pred_check
      %p565 = pneg %p564
    $region46: #{forward.6} parent=5 // pred_check_branch
      %567 = sbr.rel (%p565) target = $region48
    $region47: #{forward.6} parent=5 // pred_region
      %s568 = ssub.s32 %s11, 2
      // Predicated region
      $region49: #{forward.6} parent=47 // pred_check
        %p569 = pneg %p183
      $region50: #{forward.6} parent=47 // pred_check_branch
        %571 = sbr.rel (%p569) target = $region52
      $region51: #{forward.6} parent=47 // pred_region
        %p572 = scmp.lt.s32.totalorder %s22, 1
        %s573 = scalar_select %p572, %s22, 1
        %p574 = scmp.lt.s32.totalorder %s23, 0
        %s575 = scalar_select %p574, %s23, 0
        %s576 = sadd.s32 %s575, %s573
        %s577 = smul.addr %s576, 4
        %s578 = scalar_lea.vmem %s5, %s577
      $region52: #{forward.6} parent=47 // pred_fallthru
        _
    $region48: #{forward.6} parent=5 // pred_fallthru
      _
  $region6: #{forward.6} parent=0 // loop_footer
    %s15 = sadd.s32 1, %s11
  $region7: #{forward.6} parent=0 // loop_footer_branch
    %10 = sbr.rel target = $region3
  $region8: #{forward.6} parent=0 // loop_exit
    _

// kernel: forward.7
$region0: #{forward.7}
  #allocation0 [shape = 'u32[]', space=smem, size = 0x4, offset = 0x4, fixed_abs, tag = 'smem constant byte address 0x4 - core index']
  #allocation1 [shape = 'u32[144,128]{1,0:T(1,128)}', space=vmem, size = 0x12000, scoped, tag = 'internal scratch']
  %s0 = inlined_call_operand.vmem [shape: bf16[128,256], index: 0, kind: input, shape index: {}]
  %s1 = inlined_call_operand.vmem [shape: s32[128,3], index: 1, kind: input, shape index: {}]
  %s2 = inlined_call_operand.vmem [shape: bf16[3,256,128], index: 2, kind: input, shape index: {}]
  %s3 = inlined_call_operand.vmem [shape: f32[3,1,128], index: 3, kind: input, shape index: {}]
  %s4 = inlined_call_operand.vmem [shape: bf16[3,128,128], index: 4, kind: input, shape index: {}]
  %s5 = inlined_call_operand.vmem [shape: f32[3,1,128], index: 5, kind: input, shape index: {}]
  %s6 = inlined_call_operand.vmem [shape: bf16[3,128,128], index: 6, kind: input, shape index: {}]
  %s7 = inlined_call_operand.vmem [shape: bf16[3,256,128], index: 7, kind: input, shape index: {}]
  %s8 = inlined_call_operand.vmem [shape: f32[3,1,128], index: 8, kind: input, shape index: {}]
  %s9 = inlined_call_operand.vmem [shape: bf16[128,384], index: 9, kind: output, shape index: {0}]
  %s10 = inlined_call_operand.vmem [shape: f32[1,8,128], index: 10, kind: output, shape index: {1}]
  %11 = xla_tuple %s9, %s10
  %s12 = sld [smem:[#allocation0]]
  $region54: #{forward.7} parent=0
    _
  %s14 = ssub.s32 1, %s12
  %s15 = scalar_select 0, %s14, %s12
  // Predicated region
  $region2: #{forward.7} parent=0 // pred_check
    _
  $region3: #{forward.7} parent=0 // pred_check_branch
    %17 = sbr.rel (0) target = $region5
  $region4: #{forward.7} parent=0 // pred_region
    _
  $region5: #{forward.7} parent=0 // pred_fallthru
    _
  // Predicated region
  $region6: #{forward.7} parent=0 // pred_check
    _
  $region7: #{forward.7} parent=0 // pred_check_branch
    %19 = sbr.rel (0) target = $region9
  $region8: #{forward.7} parent=0 // pred_region
    _
  $region9: #{forward.7} parent=0 // pred_fallthru
    _
  // Predicated region
  $region10: #{forward.7} parent=0 // pred_check
    _
  $region11: #{forward.7} parent=0 // pred_check_branch
    %21 = sbr.rel (0) target = $region13
  $region12: #{forward.7} parent=0 // pred_region
    _
  $region13: #{forward.7} parent=0 // pred_fallthru
    _
  // Predicated region
  $region14: #{forward.7} parent=0 // pred_check
    _
  $region15: #{forward.7} parent=0 // pred_check_branch
    %23 = sbr.rel (0) target = $region17
  $region16: #{forward.7} parent=0 // pred_region
    _
  $region17: #{forward.7} parent=0 // pred_fallthru
    _
  // Predicated region
  $region18: #{forward.7} parent=0 // pred_check
    _
  $region19: #{forward.7} parent=0 // pred_check_branch
    %25 = sbr.rel (0) target = $region21
  $region20: #{forward.7} parent=0 // pred_region
    _
  $region21: #{forward.7} parent=0 // pred_fallthru
    _
  // Predicated region
  $region22: #{forward.7} parent=0 // pred_check
    _
  $region23: #{forward.7} parent=0 // pred_check_branch
    %27 = sbr.rel (0) target = $region25
  $region24: #{forward.7} parent=0 // pred_region
    _
  $region25: #{forward.7} parent=0 // pred_fallthru
    _
  // Predicated region
  $region26: #{forward.7} parent=0 // pred_check
    _
  $region27: #{forward.7} parent=0 // pred_check_branch
    %29 = sbr.rel (0) target = $region29
  $region28: #{forward.7} parent=0 // pred_region
    _
  $region29: #{forward.7} parent=0 // pred_fallthru
    _
  // Predicated region
  $region30: #{forward.7} parent=0 // pred_check
    _
  $region31: #{forward.7} parent=0 // pred_check_branch
    %31 = sbr.rel (0) target = $region33
  $region32: #{forward.7} parent=0 // pred_region
    _
  $region33: #{forward.7} parent=0 // pred_fallthru
    _
  // Predicated region
  $region34: #{forward.7} parent=0 // pred_check
    _
  $region35: #{forward.7} parent=0 // pred_check_branch
    %33 = sbr.rel (0) target = $region37
  $region36: #{forward.7} parent=0 // pred_region
    _
  $region37: #{forward.7} parent=0 // pred_fallthru
    _
  %v35 = vld [vmem:[%s0] sm:$0xff]
  %v36 = vld [vmem:[%s0 + $0x8] sm:$0xff]
  %v37 = vld [vmem:[%s0 + $0x10] sm:$0xff]
  %v38 = vld [vmem:[%s0 + $0x18] sm:$0xff]
  %v39 = vld [vmem:[%s0 + $0x20] sm:$0xff]
  %v40 = vld [vmem:[%s0 + $0x28] sm:$0xff]
  %v41 = vld [vmem:[%s0 + $0x30] sm:$0xff]
  %v42 = vld [vmem:[%s0 + $0x38] sm:$0xff]
  %v43 = vld [vmem:[%s0 + $0x40] sm:$0xff]
  %v44 = vld [vmem:[%s0 + $0x48] sm:$0xff]
  %v45 = vld [vmem:[%s0 + $0x50] sm:$0xff]
  %v46 = vld [vmem:[%s0 + $0x58] sm:$0xff]
  %v47 = vld [vmem:[%s0 + $0x60] sm:$0xff]
  %v48 = vld [vmem:[%s0 + $0x68] sm:$0xff]
  %v49 = vld [vmem:[%s0 + $0x70] sm:$0xff]
  %v50 = vld [vmem:[%s0 + $0x78] sm:$0xff]
  %v51 = vld [vmem:[%s1] sm:$0xff]
  %v52 = vld [vmem:[%s1 + $0x8] sm:$0xff]
  %v53 = vld [vmem:[%s1 + $0x10] sm:$0xff]
  %v54 = vld [vmem:[%s1 + $0x18] sm:$0xff]
  %v55 = vld [vmem:[%s1 + $0x20] sm:$0xff]
  %v56 = vld [vmem:[%s1 + $0x28] sm:$0xff]
  %v57 = vld [vmem:[%s1 + $0x30] sm:$0xff]
  %v58 = vld [vmem:[%s1 + $0x38] sm:$0xff]
  %v59 = vld [vmem:[%s1 + $0x40] sm:$0xff]
  %v60 = vld [vmem:[%s1 + $0x48] sm:$0xff]
  %v61 = vld [vmem:[%s1 + $0x50] sm:$0xff]
  %v62 = vld [vmem:[%s1 + $0x58] sm:$0xff]
  %v63 = vld [vmem:[%s1 + $0x60] sm:$0xff]
  %v64 = vld [vmem:[%s1 + $0x68] sm:$0xff]
  %v65 = vld [vmem:[%s1 + $0x70] sm:$0xff]
  %v66 = vld [vmem:[%s1 + $0x78] sm:$0xff]
  %v67 = vlaneseq
  %v68 = vand.u32 %v67, 127
  %v69 = vlaneseq
  %v70 = vshrl.u32 %v69, 7
  %v71 = vadd.s32 %v70, 8
  %v72 = vadd.s32 %v70, 16
  %v73 = vadd.s32 %v70, 24
  %v74 = vadd.s32 %v70, 32
  %v75 = vadd.s32 %v70, 40
  %v76 = vadd.s32 %v70, 48
  %v77 = vadd.s32 %v70, 56
  %v78 = vadd.s32 %v70, 64
  %v79 = vadd.s32 %v70, 72
  %v80 = vadd.s32 %v70, 80
  %v81 = vadd.s32 %v70, 88
  %v82 = vadd.s32 %v70, 96
  %v83 = vadd.s32 %v70, 104
  %v84 = vadd.s32 %v70, 112
  %v85 = vadd.s32 %v70, 120
  %s86 = smul.u32 0, 128
  %v87 = vstv %s86
  %v88 = vadd.s32 %v70, %v87
  %v89 = vadd.s32 %v71, %v87
  %v90 = vadd.s32 %v72, %v87
  %v91 = vadd.s32 %v73, %v87
  %v92 = vadd.s32 %v74, %v87
  %v93 = vadd.s32 %v75, %v87
  %v94 = vadd.s32 %v76, %v87
  %v95 = vadd.s32 %v77, %v87
  %v96 = vadd.s32 %v78, %v87
  %v97 = vadd.s32 %v79, %v87
  %v98 = vadd.s32 %v80, %v87
  %v99 = vadd.s32 %v81, %v87
  %v100 = vadd.s32 %v82, %v87
  %v101 = vadd.s32 %v83, %v87
  %v102 = vadd.s32 %v84, %v87
  %v103 = vadd.s32 %v85, %v87
  %vm104 = vcmp.lt.s32.totalorder %v88, 16
  %vm105 = vcmp.lt.s32.totalorder %v89, 16
  %vm106 = vcmp.lt.s32.totalorder %v90, 16
  %vm107 = vcmp.lt.s32.totalorder %v91, 16
  %vm108 = vcmp.lt.s32.totalorder %v92, 16
  %vm109 = vcmp.lt.s32.totalorder %v93, 16
  %vm110 = vcmp.lt.s32.totalorder %v94, 16
  %vm111 = vcmp.lt.s32.totalorder %v95, 16
  %vm112 = vcmp.lt.s32.totalorder %v96, 16
  %vm113 = vcmp.lt.s32.totalorder %v97, 16
  %vm114 = vcmp.lt.s32.totalorder %v98, 16
  %vm115 = vcmp.lt.s32.totalorder %v99, 16
  %vm116 = vcmp.lt.s32.totalorder %v100, 16
  %vm117 = vcmp.lt.s32.totalorder %v101, 16
  %vm118 = vcmp.lt.s32.totalorder %v102, 16
  %vm119 = vcmp.lt.s32.totalorder %v103, 16
  %v120 = vsel %vm104, 1, 0
  %v121 = vsel %vm105, 1, 0
  %v122 = vsel %vm106, 1, 0
  %v123 = vsel %vm107, 1, 0
  %v124 = vsel %vm108, 1, 0
  %v125 = vsel %vm109, 1, 0
  %v126 = vsel %vm110, 1, 0
  %v127 = vsel %vm111, 1, 0
  %v128 = vsel %vm112, 1, 0
  %v129 = vsel %vm113, 1, 0
  %v130 = vsel %vm114, 1, 0
  %v131 = vsel %vm115, 1, 0
  %v132 = vsel %vm116, 1, 0
  %v133 = vsel %vm117, 1, 0
  %v134 = vsel %vm118, 1, 0
  %v135 = vsel %vm119, 1, 0
  %v136 = vcvt.s32.f32 %v120
  %v137 = vcvt.s32.f32 %v121
  %v138 = vcvt.s32.f32 %v122
  %v139 = vcvt.s32.f32 %v123
  %v140 = vcvt.s32.f32 %v124
  %v141 = vcvt.s32.f32 %v125
  %v142 = vcvt.s32.f32 %v126
  %v143 = vcvt.s32.f32 %v127
  %v144 = vcvt.s32.f32 %v128
  %v145 = vcvt.s32.f32 %v129
  %v146 = vcvt.s32.f32 %v130
  %v147 = vcvt.s32.f32 %v131
  %v148 = vcvt.s32.f32 %v132
  %v149 = vcvt.s32.f32 %v133
  %v150 = vcvt.s32.f32 %v134
  %v151 = vcvt.s32.f32 %v135
  %vm152 = vcmask 7168
  %v153 = vsel %vm152, %v136, 0.0
  %v154 = vsel %vm152, %v137, 0.0
  %v155 = vadd.f32 %v153, %v154
  %v156 = vsel %vm152, %v138, 0.0
  %v157 = vadd.f32 %v155, %v156
  %v158 = vsel %vm152, %v139, 0.0
  %v159 = vadd.f32 %v157, %v158
  %v160 = vsel %vm152, %v140, 0.0
  %v161 = vadd.f32 %v159, %v160
  %v162 = vsel %vm152, %v141, 0.0
  %v163 = vadd.f32 %v161, %v162
  %v164 = vsel %vm152, %v142, 0.0
  %v165 = vadd.f32 %v163, %v164
  %v166 = vsel %vm152, %v143, 0.0
  %v167 = vadd.f32 %v165, %v166
  %v168 = vsel %vm152, %v144, 0.0
  %v169 = vadd.f32 %v167, %v168
  %v170 = vsel %vm152, %v145, 0.0
  %v171 = vadd.f32 %v169, %v170
  %v172 = vsel %vm152, %v146, 0.0
  %v173 = vadd.f32 %v171, %v172
  %v174 = vsel %vm152, %v147, 0.0
  %v175 = vadd.f32 %v173, %v174
  %v176 = vsel %vm152, %v148, 0.0
  %v177 = vadd.f32 %v175, %v176
  %v178 = vsel %vm152, %v149, 0.0
  %v179 = vadd.f32 %v177, %v178
  %v180 = vsel %vm152, %v150, 0.0
  %v181 = vadd.f32 %v179, %v180
  %v182 = vsel %vm152, %v151, 0.0
  %v183 = vadd.f32 %v181, %v182
  %184 = vadd.xlane.f32.xlu0 %v183
  %v185 = vpop.xlane.xlu0 %184
  %v186 = vrot.slane %v185, 4
  %v187 = vadd.f32 %v185, %v186
  %v188 = vrot.slane %v187, 2
  %v189 = vadd.f32 %v187, %v188
  %v190 = vrot.slane %v189, 1
  %v191 = vadd.f32 %v189, %v190
  %s192 = vtos %v191
  %v193 = vld [vmem:[%s2] sm:$0xf]
  %v194 = vld [vmem:[%s2 + $0x4] sm:$0xf]
  %v195 = vld [vmem:[%s2 + $0x8] sm:$0xf]
  %v196 = vld [vmem:[%s2 + $0xc] sm:$0xf]
  %v197 = vld [vmem:[%s2 + $0x10] sm:$0xf]
  %v198 = vld [vmem:[%s2 + $0x14] sm:$0xf]
  %v199 = vld [vmem:[%s2 + $0x18] sm:$0xf]
  %v200 = vld [vmem:[%s2 + $0x1c] sm:$0xf]
  %v201 = vld [vmem:[%s2 + $0x20] sm:$0xf]
  %v202 = vld [vmem:[%s2 + $0x24] sm:$0xf]
  %v203 = vld [vmem:[%s2 + $0x28] sm:$0xf]
  %v204 = vld [vmem:[%s2 + $0x2c] sm:$0xf]
  %v205 = vld [vmem:[%s2 + $0x30] sm:$0xf]
  %v206 = vld [vmem:[%s2 + $0x34] sm:$0xf]
  %v207 = vld [vmem:[%s2 + $0x38] sm:$0xf]
  %v208 = vld [vmem:[%s2 + $0x3c] sm:$0xf]
  %v209 = vld [vmem:[%s2 + $0x40] sm:$0xf]
  %v210 = vld [vmem:[%s2 + $0x44] sm:$0xf]
  %v211 = vld [vmem:[%s2 + $0x48] sm:$0xf]
  %v212 = vld [vmem:[%s2 + $0x4c] sm:$0xf]
  %v213 = vld [vmem:[%s2 + $0x50] sm:$0xf]
  %v214 = vld [vmem:[%s2 + $0x54] sm:$0xf]
  %v215 = vld [vmem:[%s2 + $0x58] sm:$0xf]
  %v216 = vld [vmem:[%s2 + $0x5c] sm:$0xf]
  %v217 = vld [vmem:[%s2 + $0x60] sm:$0xf]
  %v218 = vld [vmem:[%s2 + $0x64] sm:$0xf]
  %v219 = vld [vmem:[%s2 + $0x68] sm:$0xf]
  %v220 = vld [vmem:[%s2 + $0x6c] sm:$0xf]
  %v221 = vld [vmem:[%s2 + $0x70] sm:$0xf]
  %v222 = vld [vmem:[%s2 + $0x74] sm:$0xf]
  %v223 = vld [vmem:[%s2 + $0x78] sm:$0xf]
  %v224 = vld [vmem:[%s2 + $0x7c] sm:$0xf]
  %v225 = vld [vmem:[%s3] sm:$0x1]
  %v227 = vlaneseq
  %v228 = vshrl.u32 %v227, 7
  %v229 = vsub.s32 0, %v228
  %v230 = vrot.slane %v225, %v229
  %v248 = vunpack.c.l.b16 %v35
  %v249 = vunpack.c.h.b16 %v35
  %v250 = vunpack.c.l.b16 %v36
  %v251 = vunpack.c.h.b16 %v36
  %v252 = vunpack.c.l.b16 %v37
  %v253 = vunpack.c.h.b16 %v37
  %v254 = vunpack.c.l.b16 %v38
  %v255 = vunpack.c.h.b16 %v38
  %v256 = vunpack.c.l.b16 %v39
  %v257 = vunpack.c.h.b16 %v39
  %v258 = vunpack.c.l.b16 %v40
  %v259 = vunpack.c.h.b16 %v40
  %v260 = vunpack.c.l.b16 %v41
  %v261 = vunpack.c.h.b16 %v41
  %v262 = vunpack.c.l.b16 %v42
  %v263 = vunpack.c.h.b16 %v42
  %v264 = vunpack.c.l.b16 %v43
  %v265 = vunpack.c.h.b16 %v43
  %v266 = vunpack.c.l.b16 %v44
  %v267 = vunpack.c.h.b16 %v44
  %v268 = vunpack.c.l.b16 %v45
  %v269 = vunpack.c.h.b16 %v45
  %v270 = vunpack.c.l.b16 %v46
  %v271 = vunpack.c.h.b16 %v46
  %v272 = vunpack.c.l.b16 %v47
  %v273 = vunpack.c.h.b16 %v47
  %v274 = vunpack.c.l.b16 %v48
  %v275 = vunpack.c.h.b16 %v48
  %v276 = vunpack.c.l.b16 %v49
  %v277 = vunpack.c.h.b16 %v49
  %v278 = vunpack.c.l.b16 %v50
  %v279 = vunpack.c.h.b16 %v50
  %v280 = vpack.c.b16 %v250, %v248
  %v281 = vpack.c.b16 %v251, %v249
  %v282 = vpack.c.b16 %v254, %v252
  %v283 = vpack.c.b16 %v255, %v253
  %v284 = vpack.c.b16 %v258, %v256
  %v285 = vpack.c.b16 %v259, %v257
  %v286 = vpack.c.b16 %v262, %v260
  %v287 = vpack.c.b16 %v263, %v261
  %v288 = vpack.c.b16 %v266, %v264
  %v289 = vpack.c.b16 %v267, %v265
  %v290 = vpack.c.b16 %v270, %v268
  %v291 = vpack.c.b16 %v271, %v269
  %v292 = vpack.c.b16 %v274, %v272
  %v293 = vpack.c.b16 %v275, %v273
  %v294 = vpack.c.b16 %v278, %v276
  %v295 = vpack.c.b16 %v279, %v277
  %v344 = vunpack.c.l.b16 %v193
  %v345 = vunpack.c.l.b16 %v194
  %v346 = vunpack.c.l.b16 %v195
  %v347 = vunpack.c.l.b16 %v196
  %v348 = vunpack.c.l.b16 %v197
  %v349 = vunpack.c.l.b16 %v198
  %v350 = vunpack.c.l.b16 %v199
  %v351 = vunpack.c.l.b16 %v200
  %v352 = vunpack.c.l.b16 %v201
  %v353 = vunpack.c.l.b16 %v202
  %v354 = vunpack.c.l.b16 %v203
  %v355 = vunpack.c.l.b16 %v204
  %v356 = vunpack.c.l.b16 %v205
  %v357 = vunpack.c.l.b16 %v206
  %v358 = vunpack.c.l.b16 %v207
  %v359 = vunpack.c.l.b16 %v208
  %v360 = vunpack.c.l.b16 %v209
  %v361 = vunpack.c.l.b16 %v210
  %v362 = vunpack.c.l.b16 %v211
  %v363 = vunpack.c.l.b16 %v212
  %v364 = vunpack.c.l.b16 %v213
  %v365 = vunpack.c.l.b16 %v214
  %v366 = vunpack.c.l.b16 %v215
  %v367 = vunpack.c.l.b16 %v216
  %v368 = vunpack.c.l.b16 %v217
  %v369 = vunpack.c.l.b16 %v218
  %v370 = vunpack.c.l.b16 %v219
  %v371 = vunpack.c.l.b16 %v220
  %v372 = vunpack.c.l.b16 %v221
  %v373 = vunpack.c.l.b16 %v222
  %v374 = vunpack.c.l.b16 %v223
  %v375 = vunpack.c.l.b16 %v224
  %v376 = vpack.c.b16 %v345, %v344
  %v377 = vpack.c.b16 %v347, %v346
  %v378 = vpack.c.b16 %v349, %v348
  %v379 = vpack.c.b16 %v351, %v350
  %v380 = vpack.c.b16 %v353, %v352
  %v381 = vpack.c.b16 %v355, %v354
  %v382 = vpack.c.b16 %v357, %v356
  %v383 = vpack.c.b16 %v359, %v358
  %v384 = vpack.c.b16 %v361, %v360
  %v385 = vpack.c.b16 %v363, %v362
  %v386 = vpack.c.b16 %v365, %v364
  %v387 = vpack.c.b16 %v367, %v366
  %v388 = vpack.c.b16 %v369, %v368
  %v389 = vpack.c.b16 %v371, %v370
  %v390 = vpack.c.b16 %v373, %v372
  %v391 = vpack.c.b16 %v375, %v374
  %408 = vmatprep.subr.bf16.mxu0 0
  %409 = vmatpush1.bf16.msra.mxu0 %v383
  %410 = vmatprep.subr.bf16.mxu0 0
  %411 = vmatpush1.bf16.msra.mxu0 %v382
  %412 = vmatprep.subr.bf16.mxu0 0
  %413 = vmatpush1.bf16.msra.mxu0 %v381
  %414 = vmatprep.subr.bf16.mxu0 0
  %415 = vmatpush1.bf16.msra.mxu0 %v380
  %416 = vmatprep.subr.bf16.mxu0 0
  %417 = vmatpush1.bf16.msra.mxu0 %v379
  %418 = vmatprep.subr.bf16.mxu0 0
  %419 = vmatpush1.bf16.msra.mxu0 %v378
  %420 = vmatprep.subr.bf16.mxu0 0
  %421 = vmatpush1.bf16.msra.mxu0 %v377
  %422 = vmatprep.subr.bf16.mxu0 0
  %423 = vmatpush1.bf16.msra.mxu0 %v376
  %424 = vmatprep.subr.bf16.mxu0 0
  %425 = vmatpush2.bf16.msra.mxu0 %v391
  %426 = vmatprep.subr.bf16.mxu0 0
  %427 = vmatpush2.bf16.msra.mxu0 %v390
  %428 = vmatprep.subr.bf16.mxu0 0
  %429 = vmatpush2.bf16.msra.mxu0 %v389
  %430 = vmatprep.subr.bf16.mxu0 0
  %431 = vmatpush2.bf16.msra.mxu0 %v388
  %432 = vmatprep.subr.bf16.mxu0 0
  %433 = vmatpush2.bf16.msra.mxu0 %v387
  %434 = vmatprep.subr.bf16.mxu0 0
  %435 = vmatpush2.bf16.msra.mxu0 %v386
  %436 = vmatprep.subr.bf16.mxu0 0
  %437 = vmatpush2.bf16.msra.mxu0 %v385
  %438 = vmatprep.subr.bf16.mxu0 0
  %439 = vmatpush2.bf16.msra.mxu0 %v384
  %440 = vmatprep.mubr.bf16.mxu0 %v281
  %441 = vmatmul.mubr.bf16.gmra.mxu0 %v280
  %v442 = vpop.f32.mrf.mxu0
  %v443 = vadd.f32 %v230, %v442
  %v444 = vpop.f32.mrf.mxu0
  %v445 = vpop.f32.mrf.mxu0
  %v446 = vadd.f32 %v230, %v445
  %v447 = vpop.f32.mrf.mxu0
  %448 = vmatprep.mubr.bf16.mxu0 %v283
  %449 = vmatmul.mubr.bf16.gmra.mxu0 %v282
  %v450 = vpop.f32.mrf.mxu0
  %v451 = vadd.f32 %v230, %v450
  %v452 = vpop.f32.mrf.mxu0
  %v453 = vpop.f32.mrf.mxu0
  %v454 = vadd.f32 %v230, %v453
  %v455 = vpop.f32.mrf.mxu0
  %456 = vmatprep.mubr.bf16.mxu0 %v285
  %457 = vmatmul.mubr.bf16.gmra.mxu0 %v284
  %v458 = vpop.f32.mrf.mxu0
  %v459 = vadd.f32 %v230, %v458
  %v460 = vpop.f32.mrf.mxu0
  %v461 = vpop.f32.mrf.mxu0
  %v462 = vadd.f32 %v230, %v461
  %v463 = vpop.f32.mrf.mxu0
  %464 = vmatprep.mubr.bf16.mxu0 %v287
  %465 = vmatmul.mubr.bf16.gmra.mxu0 %v286
  %v466 = vpop.f32.mrf.mxu0
  %v467 = vadd.f32 %v230, %v466
  %v468 = vpop.f32.mrf.mxu0
  %v469 = vpop.f32.mrf.mxu0
  %v470 = vadd.f32 %v230, %v469
  %v471 = vpop.f32.mrf.mxu0
  %472 = vmatprep.mubr.bf16.mxu0 %v289
  %473 = vmatmul.mubr.bf16.gmra.mxu0 %v288
  %v474 = vpop.f32.mrf.mxu0
  %v475 = vadd.f32 %v230, %v474
  %v476 = vpop.f32.mrf.mxu0
  %v477 = vpop.f32.mrf.mxu0
  %v478 = vadd.f32 %v230, %v477
  %v479 = vpop.f32.mrf.mxu0
  %480 = vmatprep.mubr.bf16.mxu0 %v291
  %481 = vmatmul.mubr.bf16.gmra.mxu0 %v290
  %v482 = vpop.f32.mrf.mxu0
  %v483 = vadd.f32 %v230, %v482
  %v484 = vpop.f32.mrf.mxu0
  %v485 = vpop.f32.mrf.mxu0
  %v486 = vadd.f32 %v230, %v485
  %v487 = vpop.f32.mrf.mxu0
  %488 = vmatprep.mubr.bf16.mxu0 %v293
  %489 = vmatmul.mubr.bf16.gmra.mxu0 %v292
  %v490 = vpop.f32.mrf.mxu0
  %v491 = vadd.f32 %v230, %v490
  %v492 = vpop.f32.mrf.mxu0
  %v493 = vpop.f32.mrf.mxu0
  %v494 = vadd.f32 %v230, %v493
  %v495 = vpop.f32.mrf.mxu0
  %496 = vmatprep.mubr.bf16.mxu0 %v295
  %497 = vmatmul.mubr.bf16.gmra.mxu0 %v294
  %v498 = vpop.f32.mrf.mxu0
  %v499 = vadd.f32 %v230, %v498
  %v500 = vpop.f32.mrf.mxu0
  %v501 = vpop.f32.mrf.mxu0
  %v502 = vadd.f32 %v230, %v501
  %v503 = vpop.f32.mrf.mxu0
  %504 = vdwg.mxu0
  %vm505 = vcmp.gt.f32.partialorder %v443, 0.0
  %vm506 = vcmp.gt.f32.partialorder %v446, 0.0
  %vm507 = vcmp.gt.f32.partialorder %v451, 0.0
  %vm508 = vcmp.gt.f32.partialorder %v454, 0.0
  %vm509 = vcmp.gt.f32.partialorder %v459, 0.0
  %vm510 = vcmp.gt.f32.partialorder %v462, 0.0
  %vm511 = vcmp.gt.f32.partialorder %v467, 0.0
  %vm512 = vcmp.gt.f32.partialorder %v470, 0.0
  %vm513 = vcmp.gt.f32.partialorder %v475, 0.0
  %vm514 = vcmp.gt.f32.partialorder %v478, 0.0
  %vm515 = vcmp.gt.f32.partialorder %v483, 0.0
  %vm516 = vcmp.gt.f32.partialorder %v486, 0.0
  %vm517 = vcmp.gt.f32.partialorder %v491, 0.0
  %vm518 = vcmp.gt.f32.partialorder %v494, 0.0
  %vm519 = vcmp.gt.f32.partialorder %v499, 0.0
  %vm520 = vcmp.gt.f32.partialorder %v502, 0.0
  %v521 = vmul.f32 %v443, 0.01
  %v522 = vmul.f32 %v446, 0.01
  %v523 = vmul.f32 %v451, 0.01
  %v524 = vmul.f32 %v454, 0.01
  %v525 = vmul.f32 %v459, 0.01
  %v526 = vmul.f32 %v462, 0.01
  %v527 = vmul.f32 %v467, 0.01
  %v528 = vmul.f32 %v470, 0.01
  %v529 = vmul.f32 %v475, 0.01
  %v530 = vmul.f32 %v478, 0.01
  %v531 = vmul.f32 %v483, 0.01
  %v532 = vmul.f32 %v486, 0.01
  %v533 = vmul.f32 %v491, 0.01
  %v534 = vmul.f32 %v494, 0.01
  %v535 = vmul.f32 %v499, 0.01
  %v536 = vmul.f32 %v502, 0.01
  %v537 = vsel %vm505, %v443, %v521
  %v538 = vsel %vm506, %v446, %v522
  %v539 = vsel %vm507, %v451, %v523
  %v540 = vsel %vm508, %v454, %v524
  %v541 = vsel %vm509, %v459, %v525
  %v542 = vsel %vm510, %v462, %v526
  %v543 = vsel %vm511, %v467, %v527
  %v544 = vsel %vm512, %v470, %v528
  %v545 = vsel %vm513, %v475, %v529
  %v546 = vsel %vm514, %v478, %v530
  %v547 = vsel %vm515, %v483, %v531
  %v548 = vsel %vm516, %v486, %v532
  %v549 = vsel %vm517, %v491, %v533
  %v550 = vsel %vm518, %v494, %v534
  %v551 = vsel %vm519, %v499, %v535
  %v552 = vsel %vm520, %v502, %v536
  %v553 = vpack.c.bf16 %v538, %v537
  %v554 = vpack.c.bf16 %v540, %v539
  %v555 = vpack.c.bf16 %v542, %v541
  %v556 = vpack.c.bf16 %v544, %v543
  %v557 = vpack.c.bf16 %v546, %v545
  %v558 = vpack.c.bf16 %v548, %v547
  %v559 = vpack.c.bf16 %v550, %v549
  %v560 = vpack.c.bf16 %v552, %v551
  %v561 = vld [vmem:[%s4] sm:$0xf]
  %v562 = vld [vmem:[%s4 + $0x4] sm:$0xf]
  %v563 = vld [vmem:[%s4 + $0x8] sm:$0xf]
  %v564 = vld [vmem:[%s4 + $0xc] sm:$0xf]
  %v565 = vld [vmem:[%s4 + $0x10] sm:$0xf]
  %v566 = vld [vmem:[%s4 + $0x14] sm:$0xf]
  %v567 = vld [vmem:[%s4 + $0x18] sm:$0xf]
  %v568 = vld [vmem:[%s4 + $0x1c] sm:$0xf]
  %v569 = vld [vmem:[%s4 + $0x20] sm:$0xf]
  %v570 = vld [vmem:[%s4 + $0x24] sm:$0xf]
  %v571 = vld [vmem:[%s4 + $0x28] sm:$0xf]
  %v572 = vld [vmem:[%s4 + $0x2c] sm:$0xf]
  %v573 = vld [vmem:[%s4 + $0x30] sm:$0xf]
  %v574 = vld [vmem:[%s4 + $0x34] sm:$0xf]
  %v575 = vld [vmem:[%s4 + $0x38] sm:$0xf]
  %v576 = vld [vmem:[%s4 + $0x3c] sm:$0xf]
  %v577 = vld [vmem:[%s5] sm:$0x1]
  %v579 = vlaneseq
  %v580 = vshrl.u32 %v579, 7
  %v581 = vsub.s32 0, %v580
  %v582 = vrot.slane %v577, %v581
  %v600 = vunpack.c.l.b16 %v561
  %v601 = vunpack.c.l.b16 %v562
  %v602 = vunpack.c.l.b16 %v563
  %v603 = vunpack.c.l.b16 %v564
  %v604 = vunpack.c.l.b16 %v565
  %v605 = vunpack.c.l.b16 %v566
  %v606 = vunpack.c.l.b16 %v567
  %v607 = vunpack.c.l.b16 %v568
  %v608 = vunpack.c.l.b16 %v569
  %v609 = vunpack.c.l.b16 %v570
  %v610 = vunpack.c.l.b16 %v571
  %v611 = vunpack.c.l.b16 %v572
  %v612 = vunpack.c.l.b16 %v573
  %v613 = vunpack.c.l.b16 %v574
  %v614 = vunpack.c.l.b16 %v575
  %v615 = vunpack.c.l.b16 %v576
  %v616 = vpack.c.b16 %v601, %v600
  %v617 = vpack.c.b16 %v603, %v602
  %v618 = vpack.c.b16 %v605, %v604
  %v619 = vpack.c.b16 %v607, %v606
  %v620 = vpack.c.b16 %v609, %v608
  %v621 = vpack.c.b16 %v611, %v610
  %v622 = vpack.c.b16 %v613, %v612
  %v623 = vpack.c.b16 %v615, %v614
  %632 = vmatprep.subr.bf16.mxu0 0
  %633 = vmatpush1.bf16.msra.mxu0 %v623
  %634 = vmatprep.subr.bf16.mxu0 0
  %635 = vmatpush1.bf16.msra.mxu0 %v622
  %636 = vmatprep.subr.bf16.mxu0 0
  %637 = vmatpush1.bf16.msra.mxu0 %v621
  %638 = vmatprep.subr.bf16.mxu0 0
  %639 = vmatpush1.bf16.msra.mxu0 %v620
  %640 = vmatprep.subr.bf16.mxu0 0
  %641 = vmatpush1.bf16.msra.mxu0 %v619
  %642 = vmatprep.subr.bf16.mxu0 0
  %643 = vmatpush1.bf16.msra.mxu0 %v618
  %644 = vmatprep.subr.bf16.mxu0 0
  %645 = vmatpush1.bf16.msra.mxu0 %v617
  %646 = vmatprep.subr.bf16.mxu0 0
  %647 = vmatpush1.bf16.msra.mxu0 %v616
  %648 = vmatprep.subr.bf16.mxu0 0
  %649 = vmatpush2.bf16.msra.mxu0 0
  %650 = vmatprep.subr.bf16.mxu0 0
  %651 = vmatpush2.bf16.msra.mxu0 0
  %652 = vmatprep.subr.bf16.mxu0 0
  %653 = vmatpush2.bf16.msra.mxu0 0
  %654 = vmatprep.subr.bf16.mxu0 0
  %655 = vmatpush2.bf16.msra.mxu0 0
  %656 = vmatprep.subr.bf16.mxu0 0
  %657 = vmatpush2.bf16.msra.mxu0 0
  %658 = vmatprep.subr.bf16.mxu0 0
  %659 = vmatpush2.bf16.msra.mxu0 0
  %660 = vmatprep.subr.bf16.mxu0 0
  %661 = vmatpush2.bf16.msra.mxu0 0
  %662 = vmatprep.subr.bf16.mxu0 0
  %663 = vmatpush2.bf16.msra.mxu0 0
  %664 = vmatprep.mubr.bf16.mxu0 0
  %665 = vmatmul.mubr.bf16.gmra.mxu0 %v553
  %v666 = vpop.f32.mrf.mxu0
  %v667 = vadd.f32 %v582, %v666
  %v668 = vpop.f32.mrf.mxu0
  %v669 = vpop.f32.mrf.mxu0
  %v670 = vadd.f32 %v582, %v669
  %v671 = vpop.f32.mrf.mxu0
  %672 = vmatprep.mubr.bf16.mxu0 0
  %673 = vmatmul.mubr.bf16.gmra.mxu0 %v554
  %v674 = vpop.f32.mrf.mxu0
  %v675 = vadd.f32 %v582, %v674
  %v676 = vpop.f32.mrf.mxu0
  %v677 = vpop.f32.mrf.mxu0
  %v678 = vadd.f32 %v582, %v677
  %v679 = vpop.f32.mrf.mxu0
  %680 = vmatprep.mubr.bf16.mxu0 0
  %681 = vmatmul.mubr.bf16.gmra.mxu0 %v555
  %v682 = vpop.f32.mrf.mxu0
  %v683 = vadd.f32 %v582, %v682
  %v684 = vpop.f32.mrf.mxu0
  %v685 = vpop.f32.mrf.mxu0
  %v686 = vadd.f32 %v582, %v685
  %v687 = vpop.f32.mrf.mxu0
  %688 = vmatprep.mubr.bf16.mxu0 0
  %689 = vmatmul.mubr.bf16.gmra.mxu0 %v556
  %v690 = vpop.f32.mrf.mxu0
  %v691 = vadd.f32 %v582, %v690
  %v692 = vpop.f32.mrf.mxu0
  %v693 = vpop.f32.mrf.mxu0
  %v694 = vadd.f32 %v582, %v693
  %v695 = vpop.f32.mrf.mxu0
  %696 = vmatprep.mubr.bf16.mxu0 0
  %697 = vmatmul.mubr.bf16.gmra.mxu0 %v557
  %v698 = vpop.f32.mrf.mxu0
  %v699 = vadd.f32 %v582, %v698
  %v700 = vpop.f32.mrf.mxu0
  %v701 = vpop.f32.mrf.mxu0
  %v702 = vadd.f32 %v582, %v701
  %v703 = vpop.f32.mrf.mxu0
  %704 = vmatprep.mubr.bf16.mxu0 0
  %705 = vmatmul.mubr.bf16.gmra.mxu0 %v558
  %v706 = vpop.f32.mrf.mxu0
  %v707 = vadd.f32 %v582, %v706
  %v708 = vpop.f32.mrf.mxu0
  %v709 = vpop.f32.mrf.mxu0
  %v710 = vadd.f32 %v582, %v709
  %v711 = vpop.f32.mrf.mxu0
  %712 = vmatprep.mubr.bf16.mxu0 0
  %713 = vmatmul.mubr.bf16.gmra.mxu0 %v559
  %v714 = vpop.f32.mrf.mxu0
  %v715 = vadd.f32 %v582, %v714
  %v716 = vpop.f32.mrf.mxu0
  %v717 = vpop.f32.mrf.mxu0
  %v718 = vadd.f32 %v582, %v717
  %v719 = vpop.f32.mrf.mxu0
  %720 = vmatprep.mubr.bf16.mxu0 0
  %721 = vmatmul.mubr.bf16.gmra.mxu0 %v560
  %v722 = vpop.f32.mrf.mxu0
  %v723 = vadd.f32 %v582, %v722
  %v724 = vpop.f32.mrf.mxu0
  %v725 = vpop.f32.mrf.mxu0
  %v726 = vadd.f32 %v582, %v725
  %v727 = vpop.f32.mrf.mxu0
  %728 = vdwg.mxu0
  %v729 = vpack.c.bf16 %v670, %v667
  %v730 = vpack.c.bf16 %v678, %v675
  %v731 = vpack.c.bf16 %v686, %v683
  %v732 = vpack.c.bf16 %v694, %v691
  %v733 = vpack.c.bf16 %v702, %v699
  %v734 = vpack.c.bf16 %v710, %v707
  %v735 = vpack.c.bf16 %v718, %v715
  %v736 = vpack.c.bf16 %v726, %v723
  %v737 = vld [vmem:[%s6] sm:$0xf]
  %v738 = vld [vmem:[%s6 + $0x4] sm:$0xf]
  %v739 = vld [vmem:[%s6 + $0x8] sm:$0xf]
  %v740 = vld [vmem:[%s6 + $0xc] sm:$0xf]
  %v741 = vld [vmem:[%s6 + $0x10] sm:$0xf]
  %v742 = vld [vmem:[%s6 + $0x14] sm:$0xf]
  %v743 = vld [vmem:[%s6 + $0x18] sm:$0xf]
  %v744 = vld [vmem:[%s6 + $0x1c] sm:$0xf]
  %v745 = vld [vmem:[%s6 + $0x20] sm:$0xf]
  %v746 = vld [vmem:[%s6 + $0x24] sm:$0xf]
  %v747 = vld [vmem:[%s6 + $0x28] sm:$0xf]
  %v748 = vld [vmem:[%s6 + $0x2c] sm:$0xf]
  %v749 = vld [vmem:[%s6 + $0x30] sm:$0xf]
  %v750 = vld [vmem:[%s6 + $0x34] sm:$0xf]
  %v751 = vld [vmem:[%s6 + $0x38] sm:$0xf]
  %v752 = vld [vmem:[%s6 + $0x3c] sm:$0xf]
  %v753 = vld [vmem:[%s7] sm:$0xf]
  %v754 = vld [vmem:[%s7 + $0x4] sm:$0xf]
  %v755 = vld [vmem:[%s7 + $0x8] sm:$0xf]
  %v756 = vld [vmem:[%s7 + $0xc] sm:$0xf]
  %v757 = vld [vmem:[%s7 + $0x10] sm:$0xf]
  %v758 = vld [vmem:[%s7 + $0x14] sm:$0xf]
  %v759 = vld [vmem:[%s7 + $0x18] sm:$0xf]
  %v760 = vld [vmem:[%s7 + $0x1c] sm:$0xf]
  %v761 = vld [vmem:[%s7 + $0x20] sm:$0xf]
  %v762 = vld [vmem:[%s7 + $0x24] sm:$0xf]
  %v763 = vld [vmem:[%s7 + $0x28] sm:$0xf]
  %v764 = vld [vmem:[%s7 + $0x2c] sm:$0xf]
  %v765 = vld [vmem:[%s7 + $0x30] sm:$0xf]
  %v766 = vld [vmem:[%s7 + $0x34] sm:$0xf]
  %v767 = vld [vmem:[%s7 + $0x38] sm:$0xf]
  %v768 = vld [vmem:[%s7 + $0x3c] sm:$0xf]
  %v769 = vld [vmem:[%s7 + $0x40] sm:$0xf]
  %v770 = vld [vmem:[%s7 + $0x44] sm:$0xf]
  %v771 = vld [vmem:[%s7 + $0x48] sm:$0xf]
  %v772 = vld [vmem:[%s7 + $0x4c] sm:$0xf]
  %v773 = vld [vmem:[%s7 + $0x50] sm:$0xf]
  %v774 = vld [vmem:[%s7 + $0x54] sm:$0xf]
  %v775 = vld [vmem:[%s7 + $0x58] sm:$0xf]
  %v776 = vld [vmem:[%s7 + $0x5c] sm:$0xf]
  %v777 = vld [vmem:[%s7 + $0x60] sm:$0xf]
  %v778 = vld [vmem:[%s7 + $0x64] sm:$0xf]
  %v779 = vld [vmem:[%s7 + $0x68] sm:$0xf]
  %v780 = vld [vmem:[%s7 + $0x6c] sm:$0xf]
  %v781 = vld [vmem:[%s7 + $0x70] sm:$0xf]
  %v782 = vld [vmem:[%s7 + $0x74] sm:$0xf]
  %v783 = vld [vmem:[%s7 + $0x78] sm:$0xf]
  %v784 = vld [vmem:[%s7 + $0x7c] sm:$0xf]
  %v817 = vunpack.c.l.b16 %v753
  %v818 = vunpack.c.l.b16 %v754
  %v819 = vunpack.c.l.b16 %v755
  %v820 = vunpack.c.l.b16 %v756
  %v821 = vunpack.c.l.b16 %v757
  %v822 = vunpack.c.l.b16 %v758
  %v823 = vunpack.c.l.b16 %v759
  %v824 = vunpack.c.l.b16 %v760
  %v825 = vunpack.c.l.b16 %v761
  %v826 = vunpack.c.l.b16 %v762
  %v827 = vunpack.c.l.b16 %v763
  %v828 = vunpack.c.l.b16 %v764
  %v829 = vunpack.c.l.b16 %v765
  %v830 = vunpack.c.l.b16 %v766
  %v831 = vunpack.c.l.b16 %v767
  %v832 = vunpack.c.l.b16 %v768
  %v833 = vunpack.c.l.b16 %v769
  %v834 = vunpack.c.l.b16 %v770
  %v835 = vunpack.c.l.b16 %v771
  %v836 = vunpack.c.l.b16 %v772
  %v837 = vunpack.c.l.b16 %v773
  %v838 = vunpack.c.l.b16 %v774
  %v839 = vunpack.c.l.b16 %v775
  %v840 = vunpack.c.l.b16 %v776
  %v841 = vunpack.c.l.b16 %v777
  %v842 = vunpack.c.l.b16 %v778
  %v843 = vunpack.c.l.b16 %v779
  %v844 = vunpack.c.l.b16 %v780
  %v845 = vunpack.c.l.b16 %v781
  %v846 = vunpack.c.l.b16 %v782
  %v847 = vunpack.c.l.b16 %v783
  %v848 = vunpack.c.l.b16 %v784
  %v849 = vpack.c.b16 %v818, %v817
  %v850 = vpack.c.b16 %v820, %v819
  %v851 = vpack.c.b16 %v822, %v821
  %v852 = vpack.c.b16 %v824, %v823
  %v853 = vpack.c.b16 %v826, %v825
  %v854 = vpack.c.b16 %v828, %v827
  %v855 = vpack.c.b16 %v830, %v829
  %v856 = vpack.c.b16 %v832, %v831
  %v857 = vpack.c.b16 %v834, %v833
  %v858 = vpack.c.b16 %v836, %v835
  %v859 = vpack.c.b16 %v838, %v837
  %v860 = vpack.c.b16 %v840, %v839
  %v861 = vpack.c.b16 %v842, %v841
  %v862 = vpack.c.b16 %v844, %v843
  %v863 = vpack.c.b16 %v846, %v845
  %v864 = vpack.c.b16 %v848, %v847
  %881 = vmatprep.subr.bf16.mxu0 0
  %882 = vmatpush1.bf16.msra.mxu0 %v856
  %883 = vmatprep.subr.bf16.mxu0 0
  %884 = vmatpush1.bf16.msra.mxu0 %v855
  %885 = vmatprep.subr.bf16.mxu0 0
  %886 = vmatpush1.bf16.msra.mxu0 %v854
  %887 = vmatprep.subr.bf16.mxu0 0
  %888 = vmatpush1.bf16.msra.mxu0 %v853
  %889 = vmatprep.subr.bf16.mxu0 0
  %890 = vmatpush1.bf16.msra.mxu0 %v852
  %891 = vmatprep.subr.bf16.mxu0 0
  %892 = vmatpush1.bf16.msra.mxu0 %v851
  %893 = vmatprep.subr.bf16.mxu0 0
  %894 = vmatpush1.bf16.msra.mxu0 %v850
  %895 = vmatprep.subr.bf16.mxu0 0
  %896 = vmatpush1.bf16.msra.mxu0 %v849
  %897 = vmatprep.subr.bf16.mxu0 0
  %898 = vmatpush2.bf16.msra.mxu0 %v864
  %899 = vmatprep.subr.bf16.mxu0 0
  %900 = vmatpush2.bf16.msra.mxu0 %v863
  %901 = vmatprep.subr.bf16.mxu0 0
  %902 = vmatpush2.bf16.msra.mxu0 %v862
  %903 = vmatprep.subr.bf16.mxu0 0
  %904 = vmatpush2.bf16.msra.mxu0 %v861
  %905 = vmatprep.subr.bf16.mxu0 0
  %906 = vmatpush2.bf16.msra.mxu0 %v860
  %907 = vmatprep.subr.bf16.mxu0 0
  %908 = vmatpush2.bf16.msra.mxu0 %v859
  %909 = vmatprep.subr.bf16.mxu0 0
  %910 = vmatpush2.bf16.msra.mxu0 %v858
  %911 = vmatprep.subr.bf16.mxu0 0
  %912 = vmatpush2.bf16.msra.mxu0 %v857
  %913 = vmatprep.mubr.bf16.mxu0 %v281
  %914 = vmatmul.mubr.bf16.gmra.mxu0 %v280
  %v915 = vpop.f32.mrf.mxu0
  %v916 = vadd.f32 0.0, %v915
  %v917 = vpop.f32.mrf.mxu0
  %v918 = vpop.f32.mrf.mxu0
  %v919 = vadd.f32 0.0, %v918
  %v920 = vpop.f32.mrf.mxu0
  %921 = vmatprep.mubr.bf16.mxu0 %v283
  %922 = vmatmul.mubr.bf16.gmra.mxu0 %v282
  %v923 = vpop.f32.mrf.mxu0
  %v924 = vadd.f32 0.0, %v923
  %v925 = vpop.f32.mrf.mxu0
  %v926 = vpop.f32.mrf.mxu0
  %v927 = vadd.f32 0.0, %v926
  %v928 = vpop.f32.mrf.mxu0
  %929 = vmatprep.mubr.bf16.mxu0 %v285
  %930 = vmatmul.mubr.bf16.gmra.mxu0 %v284
  %v931 = vpop.f32.mrf.mxu0
  %v932 = vadd.f32 0.0, %v931
  %v933 = vpop.f32.mrf.mxu0
  %v934 = vpop.f32.mrf.mxu0
  %v935 = vadd.f32 0.0, %v934
  %v936 = vpop.f32.mrf.mxu0
  %937 = vmatprep.mubr.bf16.mxu0 %v287
  %938 = vmatmul.mubr.bf16.gmra.mxu0 %v286
  %v939 = vpop.f32.mrf.mxu0
  %v940 = vadd.f32 0.0, %v939
  %v941 = vpop.f32.mrf.mxu0
  %v942 = vpop.f32.mrf.mxu0
  %v943 = vadd.f32 0.0, %v942
  %v944 = vpop.f32.mrf.mxu0
  %945 = vmatprep.mubr.bf16.mxu0 %v289
  %946 = vmatmul.mubr.bf16.gmra.mxu0 %v288
  %v947 = vpop.f32.mrf.mxu0
  %v948 = vadd.f32 0.0, %v947
  %v949 = vpop.f32.mrf.mxu0
  %v950 = vpop.f32.mrf.mxu0
  %v951 = vadd.f32 0.0, %v950
  %v952 = vpop.f32.mrf.mxu0
  %953 = vmatprep.mubr.bf16.mxu0 %v291
  %954 = vmatmul.mubr.bf16.gmra.mxu0 %v290
  %v955 = vpop.f32.mrf.mxu0
  %v956 = vadd.f32 0.0, %v955
  %v957 = vpop.f32.mrf.mxu0
  %v958 = vpop.f32.mrf.mxu0
  %v959 = vadd.f32 0.0, %v958
  %v960 = vpop.f32.mrf.mxu0
  %961 = vmatprep.mubr.bf16.mxu0 %v293
  %962 = vmatmul.mubr.bf16.gmra.mxu0 %v292
  %v963 = vpop.f32.mrf.mxu0
  %v964 = vadd.f32 0.0, %v963
  %v965 = vpop.f32.mrf.mxu0
  %v966 = vpop.f32.mrf.mxu0
  %v967 = vadd.f32 0.0, %v966
  %v968 = vpop.f32.mrf.mxu0
  %969 = vmatprep.mubr.bf16.mxu0 %v295
  %970 = vmatmul.mubr.bf16.gmra.mxu0 %v294
  %v971 = vpop.f32.mrf.mxu0
  %v972 = vadd.f32 0.0, %v971
  %v973 = vpop.f32.mrf.mxu0
  %v974 = vpop.f32.mrf.mxu0
  %v975 = vadd.f32 0.0, %v974
  %v976 = vpop.f32.mrf.mxu0
  %977 = vdwg.mxu0
  %v994 = vunpack.c.l.b16 %v737
  %v995 = vunpack.c.l.b16 %v738
  %v996 = vunpack.c.l.b16 %v739
  %v997 = vunpack.c.l.b16 %v740
  %v998 = vunpack.c.l.b16 %v741
  %v999 = vunpack.c.l.b16 %v742
  %v1000 = vunpack.c.l.b16 %v743
  %v1001 = vunpack.c.l.b16 %v744
  %v1002 = vunpack.c.l.b16 %v745
  %v1003 = vunpack.c.l.b16 %v746
  %v1004 = vunpack.c.l.b16 %v747
  %v1005 = vunpack.c.l.b16 %v748
  %v1006 = vunpack.c.l.b16 %v749
  %v1007 = vunpack.c.l.b16 %v750
  %v1008 = vunpack.c.l.b16 %v751
  %v1009 = vunpack.c.l.b16 %v752
  %v1010 = vpack.c.b16 %v995, %v994
  %v1011 = vpack.c.b16 %v997, %v996
  %v1012 = vpack.c.b16 %v999, %v998
  %v1013 = vpack.c.b16 %v1001, %v1000
  %v1014 = vpack.c.b16 %v1003, %v1002
  %v1015 = vpack.c.b16 %v1005, %v1004
  %v1016 = vpack.c.b16 %v1007, %v1006
  %v1017 = vpack.c.b16 %v1009, %v1008
  %1026 = vmatprep.subr.bf16.mxu0 0
  %1027 = vmatpush1.bf16.msra.mxu0 %v1017
  %1028 = vmatprep.subr.bf16.mxu0 0
  %1029 = vmatpush1.bf16.msra.mxu0 %v1016
  %1030 = vmatprep.subr.bf16.mxu0 0
  %1031 = vmatpush1.bf16.msra.mxu0 %v1015
  %1032 = vmatprep.subr.bf16.mxu0 0
  %1033 = vmatpush1.bf16.msra.mxu0 %v1014
  %1034 = vmatprep.subr.bf16.mxu0 0
  %1035 = vmatpush1.bf16.msra.mxu0 %v1013
  %1036 = vmatprep.subr.bf16.mxu0 0
  %1037 = vmatpush1.bf16.msra.mxu0 %v1012
  %1038 = vmatprep.subr.bf16.mxu0 0
  %1039 = vmatpush1.bf16.msra.mxu0 %v1011
  %1040 = vmatprep.subr.bf16.mxu0 0
  %1041 = vmatpush1.bf16.msra.mxu0 %v1010
  %1042 = vmatprep.subr.bf16.mxu0 0
  %1043 = vmatpush2.bf16.msra.mxu0 0
  %1044 = vmatprep.subr.bf16.mxu0 0
  %1045 = vmatpush2.bf16.msra.mxu0 0
  %1046 = vmatprep.subr.bf16.mxu0 0
  %1047 = vmatpush2.bf16.msra.mxu0 0
  %1048 = vmatprep.subr.bf16.mxu0 0
  %1049 = vmatpush2.bf16.msra.mxu0 0
  %1050 = vmatprep.subr.bf16.mxu0 0
  %1051 = vmatpush2.bf16.msra.mxu0 0
  %1052 = vmatprep.subr.bf16.mxu0 0
  %1053 = vmatpush2.bf16.msra.mxu0 0
  %1054 = vmatprep.subr.bf16.mxu0 0
  %1055 = vmatpush2.bf16.msra.mxu0 0
  %1056 = vmatprep.subr.bf16.mxu0 0
  %1057 = vmatpush2.bf16.msra.mxu0 0
  %1058 = vmatprep.mubr.bf16.mxu0 0
  %1059 = vmatmul.mubr.bf16.gmra.mxu0 %v729
  %v1060 = vpop.f32.mrf.mxu0
  %v1061 = vadd.f32 %v916, %v1060
  %v1062 = vpop.f32.mrf.mxu0
  %v1063 = vpop.f32.mrf.mxu0
  %v1064 = vadd.f32 %v919, %v1063
  %v1065 = vpop.f32.mrf.mxu0
  %1066 = vmatprep.mubr.bf16.mxu0 0
  %1067 = vmatmul.mubr.bf16.gmra.mxu0 %v730
  %v1068 = vpop.f32.mrf.mxu0
  %v1069 = vadd.f32 %v924, %v1068
  %v1070 = vpop.f32.mrf.mxu0
  %v1071 = vpop.f32.mrf.mxu0
  %v1072 = vadd.f32 %v927, %v1071
  %v1073 = vpop.f32.mrf.mxu0
  %1074 = vmatprep.mubr.bf16.mxu0 0
  %1075 = vmatmul.mubr.bf16.gmra.mxu0 %v731
  %v1076 = vpop.f32.mrf.mxu0
  %v1077 = vadd.f32 %v932, %v1076
  %v1078 = vpop.f32.mrf.mxu0
  %v1079 = vpop.f32.mrf.mxu0
  %v1080 = vadd.f32 %v935, %v1079
  %v1081 = vpop.f32.mrf.mxu0
  %1082 = vmatprep.mubr.bf16.mxu0 0
  %1083 = vmatmul.mubr.bf16.gmra.mxu0 %v732
  %v1084 = vpop.f32.mrf.mxu0
  %v1085 = vadd.f32 %v940, %v1084
  %v1086 = vpop.f32.mrf.mxu0
  %v1087 = vpop.f32.mrf.mxu0
  %v1088 = vadd.f32 %v943, %v1087
  %v1089 = vpop.f32.mrf.mxu0
  %1090 = vmatprep.mubr.bf16.mxu0 0
  %1091 = vmatmul.mubr.bf16.gmra.mxu0 %v733
  %v1092 = vpop.f32.mrf.mxu0
  %v1093 = vadd.f32 %v948, %v1092
  %v1094 = vpop.f32.mrf.mxu0
  %v1095 = vpop.f32.mrf.mxu0
  %v1096 = vadd.f32 %v951, %v1095
  %v1097 = vpop.f32.mrf.mxu0
  %1098 = vmatprep.mubr.bf16.mxu0 0
  %1099 = vmatmul.mubr.bf16.gmra.mxu0 %v734
  %v1100 = vpop.f32.mrf.mxu0
  %v1101 = vadd.f32 %v956, %v1100
  %v1102 = vpop.f32.mrf.mxu0
  %v1103 = vpop.f32.mrf.mxu0
  %v1104 = vadd.f32 %v959, %v1103
  %v1105 = vpop.f32.mrf.mxu0
  %1106 = vmatprep.mubr.bf16.mxu0 0
  %1107 = vmatmul.mubr.bf16.gmra.mxu0 %v735
  %v1108 = vpop.f32.mrf.mxu0
  %v1109 = vadd.f32 %v964, %v1108
  %v1110 = vpop.f32.mrf.mxu0
  %v1111 = vpop.f32.mrf.mxu0
  %v1112 = vadd.f32 %v967, %v1111
  %v1113 = vpop.f32.mrf.mxu0
  %1114 = vmatprep.mubr.bf16.mxu0 0
  %1115 = vmatmul.mubr.bf16.gmra.mxu0 %v736
  %v1116 = vpop.f32.mrf.mxu0
  %v1117 = vadd.f32 %v972, %v1116
  %v1118 = vpop.f32.mrf.mxu0
  %v1119 = vpop.f32.mrf.mxu0
  %v1120 = vadd.f32 %v975, %v1119
  %v1121 = vpop.f32.mrf.mxu0
  %1122 = vdwg.mxu0
  %v1123 = vld [vmem:[%s8] sm:$0x1]
  %v1125 = vlaneseq
  %v1126 = vshrl.u32 %v1125, 7
  %v1127 = vsub.s32 0, %v1126
  %v1128 = vrot.slane %v1123, %v1127
  %v1130 = vadd.f32 %v1061, %v1128
  %v1131 = vadd.f32 %v1064, %v1128
  %v1132 = vadd.f32 %v1069, %v1128
  %v1133 = vadd.f32 %v1072, %v1128
  %v1134 = vadd.f32 %v1077, %v1128
  %v1135 = vadd.f32 %v1080, %v1128
  %v1136 = vadd.f32 %v1085, %v1128
  %v1137 = vadd.f32 %v1088, %v1128
  %v1138 = vadd.f32 %v1093, %v1128
  %v1139 = vadd.f32 %v1096, %v1128
  %v1140 = vadd.f32 %v1101, %v1128
  %v1141 = vadd.f32 %v1104, %v1128
  %v1142 = vadd.f32 %v1109, %v1128
  %v1143 = vadd.f32 %v1112, %v1128
  %v1144 = vadd.f32 %v1117, %v1128
  %v1145 = vadd.f32 %v1120, %v1128
  %v1146 = vpack.c.bf16 %v1131, %v1130
  %v1147 = vpack.c.bf16 %v1133, %v1132
  %v1148 = vpack.c.bf16 %v1135, %v1134
  %v1149 = vpack.c.bf16 %v1137, %v1136
  %v1150 = vpack.c.bf16 %v1139, %v1138
  %v1151 = vpack.c.bf16 %v1141, %v1140
  %v1152 = vpack.c.bf16 %v1143, %v1142
  %v1153 = vpack.c.bf16 %v1145, %v1144
  %v1162 = vunpack.c.l.b16 %v1146
  %v1163 = vunpack.c.h.b16 %v1146
  %v1164 = vunpack.c.l.b16 %v1147
  %v1165 = vunpack.c.h.b16 %v1147
  %v1166 = vunpack.c.l.b16 %v1148
  %v1167 = vunpack.c.h.b16 %v1148
  %v1168 = vunpack.c.l.b16 %v1149
  %v1169 = vunpack.c.h.b16 %v1149
  %v1170 = vunpack.c.l.b16 %v1150
  %v1171 = vunpack.c.h.b16 %v1150
  %v1172 = vunpack.c.l.b16 %v1151
  %v1173 = vunpack.c.h.b16 %v1151
  %v1174 = vunpack.c.l.b16 %v1152
  %v1175 = vunpack.c.h.b16 %v1152
  %v1176 = vunpack.c.l.b16 %v1153
  %v1177 = vunpack.c.h.b16 %v1153
  %v1178 = vpack.c.b16 %v1162, %v1162
  %v1179 = vpack.c.b16 %v1163, %v1163
  %v1180 = vpack.c.b16 %v1164, %v1164
  %v1181 = vpack.c.b16 %v1165, %v1165
  %v1182 = vpack.c.b16 %v1166, %v1166
  %v1183 = vpack.c.b16 %v1167, %v1167
  %v1184 = vpack.c.b16 %v1168, %v1168
  %v1185 = vpack.c.b16 %v1169, %v1169
  %v1186 = vpack.c.b16 %v1170, %v1170
  %v1187 = vpack.c.b16 %v1171, %v1171
  %v1188 = vpack.c.b16 %v1172, %v1172
  %v1189 = vpack.c.b16 %v1173, %v1173
  %v1190 = vpack.c.b16 %v1174, %v1174
  %v1191 = vpack.c.b16 %v1175, %v1175
  %v1192 = vpack.c.b16 %v1176, %v1176
  %v1193 = vpack.c.b16 %v1177, %v1177
  %1210 = vst [vmem:[%s9] sm:$0xf] %v1178
  %1211 = vst [vmem:[%s9 + $0xc] sm:$0xf] %v1179
  %1212 = vst [vmem:[%s9 + $0x18] sm:$0xf] %v1180
  %1213 = vst [vmem:[%s9 + $0x24] sm:$0xf] %v1181
  %1214 = vst [vmem:[%s9 + $0x30] sm:$0xf] %v1182
  %1215 = vst [vmem:[%s9 + $0x3c] sm:$0xf] %v1183
  %1216 = vst [vmem:[%s9 + $0x48] sm:$0xf] %v1184
  %1217 = vst [vmem:[%s9 + $0x54] sm:$0xf] %v1185
  %1218 = vst [vmem:[%s9 + $0x60] sm:$0xf] %v1186
  %1219 = vst [vmem:[%s9 + $0x6c] sm:$0xf] %v1187
  %1220 = vst [vmem:[%s9 + $0x78] sm:$0xf] %v1188
  %1221 = vst [vmem:[%s9 + $0x84] sm:$0xf] %v1189
  %1222 = vst [vmem:[%s9 + $0x90] sm:$0xf] %v1190
  %1223 = vst [vmem:[%s9 + $0x9c] sm:$0xf] %v1191
  %1224 = vst [vmem:[%s9 + $0xa8] sm:$0xf] %v1192
  %1225 = vst [vmem:[%s9 + $0xb4] sm:$0xf] %v1193
  %vm1226 = vcmp.lt.s32.totalorder %v68, 16
  %v1227 = vsel %vm1226, %v1130, -1e+30
  %v1228 = vsel %vm1226, %v1131, -1e+30
  %v1229 = vsel %vm1226, %v1132, -1e+30
  %v1230 = vsel %vm1226, %v1133, -1e+30
  %v1231 = vsel %vm1226, %v1134, -1e+30
  %v1232 = vsel %vm1226, %v1135, -1e+30
  %v1233 = vsel %vm1226, %v1136, -1e+30
  %v1234 = vsel %vm1226, %v1137, -1e+30
  %v1235 = vsel %vm1226, %v1138, -1e+30
  %v1236 = vsel %vm1226, %v1139, -1e+30
  %v1237 = vsel %vm1226, %v1140, -1e+30
  %v1238 = vsel %vm1226, %v1141, -1e+30
  %v1239 = vsel %vm1226, %v1142, -1e+30
  %v1240 = vsel %vm1226, %v1143, -1e+30
  %v1241 = vsel %vm1226, %v1144, -1e+30
  %v1242 = vsel %vm1226, %v1145, -1e+30
  %1243 = vmax.xlane.f32.xlu0 %v1227
  %v1244 = vpop.xlane.xlu0 %1243
  %1245 = vmax.xlane.f32.xlu0 %v1228
  %v1246 = vpop.xlane.xlu0 %1245
  %1247 = vmax.xlane.f32.xlu0 %v1229
  %v1248 = vpop.xlane.xlu0 %1247
  %1249 = vmax.xlane.f32.xlu0 %v1230
  %v1250 = vpop.xlane.xlu0 %1249
  %1251 = vmax.xlane.f32.xlu0 %v1231
  %v1252 = vpop.xlane.xlu0 %1251
  %1253 = vmax.xlane.f32.xlu0 %v1232
  %v1254 = vpop.xlane.xlu0 %1253
  %1255 = vmax.xlane.f32.xlu0 %v1233
  %v1256 = vpop.xlane.xlu0 %1255
  %1257 = vmax.xlane.f32.xlu0 %v1234
  %v1258 = vpop.xlane.xlu0 %1257
  %1259 = vmax.xlane.f32.xlu0 %v1235
  %v1260 = vpop.xlane.xlu0 %1259
  %1261 = vmax.xlane.f32.xlu0 %v1236
  %v1262 = vpop.xlane.xlu0 %1261
  %1263 = vmax.xlane.f32.xlu0 %v1237
  %v1264 = vpop.xlane.xlu0 %1263
  %1265 = vmax.xlane.f32.xlu0 %v1238
  %v1266 = vpop.xlane.xlu0 %1265
  %1267 = vmax.xlane.f32.xlu0 %v1239
  %v1268 = vpop.xlane.xlu0 %1267
  %1269 = vmax.xlane.f32.xlu0 %v1240
  %v1270 = vpop.xlane.xlu0 %1269
  %1271 = vmax.xlane.f32.xlu0 %v1241
  %v1272 = vpop.xlane.xlu0 %1271
  %1273 = vmax.xlane.f32.xlu0 %v1242
  %v1274 = vpop.xlane.xlu0 %1273
  %v1275 = vsub.f32 %v1227, %v1244
  %v1276 = vsub.f32 %v1228, %v1246
  %v1277 = vsub.f32 %v1229, %v1248
  %v1278 = vsub.f32 %v1230, %v1250
  %v1279 = vsub.f32 %v1231, %v1252
  %v1280 = vsub.f32 %v1232, %v1254
  %v1281 = vsub.f32 %v1233, %v1256
  %v1282 = vsub.f32 %v1234, %v1258
  %v1283 = vsub.f32 %v1235, %v1260
  %v1284 = vsub.f32 %v1236, %v1262
  %v1285 = vsub.f32 %v1237, %v1264
  %v1286 = vsub.f32 %v1238, %v1266
  %v1287 = vsub.f32 %v1239, %v1268
  %v1288 = vsub.f32 %v1240, %v1270
  %v1289 = vsub.f32 %v1241, %v1272
  %v1290 = vsub.f32 %v1242, %v1274
  %v1291 = vmul.f32 %v1275, 1.442695
  %v1292 = vpow.pop %v1291
  %v1293 = vmul.f32 %v1276, 1.442695
  %v1294 = vpow.pop %v1293
  %v1295 = vmul.f32 %v1277, 1.442695
  %v1296 = vpow.pop %v1295
  %v1297 = vmul.f32 %v1278, 1.442695
  %v1298 = vpow.pop %v1297
  %v1299 = vmul.f32 %v1279, 1.442695
  %v1300 = vpow.pop %v1299
  %v1301 = vmul.f32 %v1280, 1.442695
  %v1302 = vpow.pop %v1301
  %v1303 = vmul.f32 %v1281, 1.442695
  %v1304 = vpow.pop %v1303
  %v1305 = vmul.f32 %v1282, 1.442695
  %v1306 = vpow.pop %v1305
  %v1307 = vmul.f32 %v1283, 1.442695
  %v1308 = vpow.pop %v1307
  %v1309 = vmul.f32 %v1284, 1.442695
  %v1310 = vpow.pop %v1309
  %v1311 = vmul.f32 %v1285, 1.442695
  %v1312 = vpow.pop %v1311
  %v1313 = vmul.f32 %v1286, 1.442695
  %v1314 = vpow.pop %v1313
  %v1315 = vmul.f32 %v1287, 1.442695
  %v1316 = vpow.pop %v1315
  %v1317 = vmul.f32 %v1288, 1.442695
  %v1318 = vpow.pop %v1317
  %v1319 = vmul.f32 %v1289, 1.442695
  %v1320 = vpow.pop %v1319
  %v1321 = vmul.f32 %v1290, 1.442695
  %v1322 = vpow.pop %v1321
  %1323 = vadd.xlane.f32.xlu0 %v1292
  %v1324 = vpop.xlane.xlu0 %1323
  %1325 = vadd.xlane.f32.xlu0 %v1294
  %v1326 = vpop.xlane.xlu0 %1325
  %1327 = vadd.xlane.f32.xlu0 %v1296
  %v1328 = vpop.xlane.xlu0 %1327
  %1329 = vadd.xlane.f32.xlu0 %v1298
  %v1330 = vpop.xlane.xlu0 %1329
  %1331 = vadd.xlane.f32.xlu0 %v1300
  %v1332 = vpop.xlane.xlu0 %1331
  %1333 = vadd.xlane.f32.xlu0 %v1302
  %v1334 = vpop.xlane.xlu0 %1333
  %1335 = vadd.xlane.f32.xlu0 %v1304
  %v1336 = vpop.xlane.xlu0 %1335
  %1337 = vadd.xlane.f32.xlu0 %v1306
  %v1338 = vpop.xlane.xlu0 %1337
  %1339 = vadd.xlane.f32.xlu0 %v1308
  %v1340 = vpop.xlane.xlu0 %1339
  %1341 = vadd.xlane.f32.xlu0 %v1310
  %v1342 = vpop.xlane.xlu0 %1341
  %1343 = vadd.xlane.f32.xlu0 %v1312
  %v1344 = vpop.xlane.xlu0 %1343
  %1345 = vadd.xlane.f32.xlu0 %v1314
  %v1346 = vpop.xlane.xlu0 %1345
  %1347 = vadd.xlane.f32.xlu0 %v1316
  %v1348 = vpop.xlane.xlu0 %1347
  %1349 = vadd.xlane.f32.xlu0 %v1318
  %v1350 = vpop.xlane.xlu0 %1349
  %1351 = vadd.xlane.f32.xlu0 %v1320
  %v1352 = vpop.xlane.xlu0 %1351
  %1353 = vadd.xlane.f32.xlu0 %v1322
  %v1354 = vpop.xlane.xlu0 %1353
  %v1355 = vlog2.pop %v1324
  %v1356 = vmul.f32 %v1355, 0.6931472
  %v1357 = vlog2.pop %v1326
  %v1358 = vmul.f32 %v1357, 0.6931472
  %v1359 = vlog2.pop %v1328
  %v1360 = vmul.f32 %v1359, 0.6931472
  %v1361 = vlog2.pop %v1330
  %v1362 = vmul.f32 %v1361, 0.6931472
  %v1363 = vlog2.pop %v1332
  %v1364 = vmul.f32 %v1363, 0.6931472
  %v1365 = vlog2.pop %v1334
  %v1366 = vmul.f32 %v1365, 0.6931472
  %v1367 = vlog2.pop %v1336
  %v1368 = vmul.f32 %v1367, 0.6931472
  %v1369 = vlog2.pop %v1338
  %v1370 = vmul.f32 %v1369, 0.6931472
  %v1371 = vlog2.pop %v1340
  %v1372 = vmul.f32 %v1371, 0.6931472
  %v1373 = vlog2.pop %v1342
  %v1374 = vmul.f32 %v1373, 0.6931472
  %v1375 = vlog2.pop %v1344
  %v1376 = vmul.f32 %v1375, 0.6931472
  %v1377 = vlog2.pop %v1346
  %v1378 = vmul.f32 %v1377, 0.6931472
  %v1379 = vlog2.pop %v1348
  %v1380 = vmul.f32 %v1379, 0.6931472
  %v1381 = vlog2.pop %v1350
  %v1382 = vmul.f32 %v1381, 0.6931472
  %v1383 = vlog2.pop %v1352
  %v1384 = vmul.f32 %v1383, 0.6931472
  %v1385 = vlog2.pop %v1354
  %v1386 = vmul.f32 %v1385, 0.6931472
  %v1387 = vadd.f32 %v1244, %v1356
  %v1388 = vadd.f32 %v1246, %v1358
  %v1389 = vadd.f32 %v1248, %v1360
  %v1390 = vadd.f32 %v1250, %v1362
  %v1391 = vadd.f32 %v1252, %v1364
  %v1392 = vadd.f32 %v1254, %v1366
  %v1393 = vadd.f32 %v1256, %v1368
  %v1394 = vadd.f32 %v1258, %v1370
  %v1395 = vadd.f32 %v1260, %v1372
  %v1396 = vadd.f32 %v1262, %v1374
  %v1397 = vadd.f32 %v1264, %v1376
  %v1398 = vadd.f32 %v1266, %v1378
  %v1399 = vadd.f32 %v1268, %v1380
  %v1400 = vadd.f32 %v1270, %v1382
  %v1401 = vadd.f32 %v1272, %v1384
  %v1402 = vadd.f32 %v1274, %v1386
  %v1403 = vsub.f32 %v1130, %v1387
  %v1404 = vsub.f32 %v1131, %v1388
  %v1405 = vsub.f32 %v1132, %v1389
  %v1406 = vsub.f32 %v1133, %v1390
  %v1407 = vsub.f32 %v1134, %v1391
  %v1408 = vsub.f32 %v1135, %v1392
  %v1409 = vsub.f32 %v1136, %v1393
  %v1410 = vsub.f32 %v1137, %v1394
  %v1411 = vsub.f32 %v1138, %v1395
  %v1412 = vsub.f32 %v1139, %v1396
  %v1413 = vsub.f32 %v1140, %v1397
  %v1414 = vsub.f32 %v1141, %v1398
  %v1415 = vsub.f32 %v1142, %v1399
  %v1416 = vsub.f32 %v1143, %v1400
  %v1417 = vsub.f32 %v1144, %v1401
  %v1418 = vsub.f32 %v1145, %v1402
  %1419 = vset.pattern.permute.xlu0 0
  %1420 = vperm.xlu0 %1419, %v51
  %v1421 = vpop.permute.xlu0 %1420
  %1422 = vset.pattern.permute.xlu0 0
  %1423 = vperm.xlu0 %1422, %v52
  %v1424 = vpop.permute.xlu0 %1423
  %1425 = vset.pattern.permute.xlu0 0
  %1426 = vperm.xlu0 %1425, %v53
  %v1427 = vpop.permute.xlu0 %1426
  %1428 = vset.pattern.permute.xlu0 0
  %1429 = vperm.xlu0 %1428, %v54
  %v1430 = vpop.permute.xlu0 %1429
  %1431 = vset.pattern.permute.xlu0 0
  %1432 = vperm.xlu0 %1431, %v55
  %v1433 = vpop.permute.xlu0 %1432
  %1434 = vset.pattern.permute.xlu0 0
  %1435 = vperm.xlu0 %1434, %v56
  %v1436 = vpop.permute.xlu0 %1435
  %1437 = vset.pattern.permute.xlu0 0
  %1438 = vperm.xlu0 %1437, %v57
  %v1439 = vpop.permute.xlu0 %1438
  %1440 = vset.pattern.permute.xlu0 0
  %1441 = vperm.xlu0 %1440, %v58
  %v1442 = vpop.permute.xlu0 %1441
  %1443 = vset.pattern.permute.xlu0 0
  %1444 = vperm.xlu0 %1443, %v59
  %v1445 = vpop.permute.xlu0 %1444
  %1446 = vset.pattern.permute.xlu0 0
  %1447 = vperm.xlu0 %1446, %v60
  %v1448 = vpop.permute.xlu0 %1447
  %1449 = vset.pattern.permute.xlu0 0
  %1450 = vperm.xlu0 %1449, %v61
  %v1451 = vpop.permute.xlu0 %1450
  %1452 = vset.pattern.permute.xlu0 0
  %1453 = vperm.xlu0 %1452, %v62
  %v1454 = vpop.permute.xlu0 %1453
  %1455 = vset.pattern.permute.xlu0 0
  %1456 = vperm.xlu0 %1455, %v63
  %v1457 = vpop.permute.xlu0 %1456
  %1458 = vset.pattern.permute.xlu0 0
  %1459 = vperm.xlu0 %1458, %v64
  %v1460 = vpop.permute.xlu0 %1459
  %1461 = vset.pattern.permute.xlu0 0
  %1462 = vperm.xlu0 %1461, %v65
  %v1463 = vpop.permute.xlu0 %1462
  %1464 = vset.pattern.permute.xlu0 0
  %1465 = vperm.xlu0 %1464, %v66
  %v1466 = vpop.permute.xlu0 %1465
  %vm1467 = vcmp.eq.s32.totalorder %v68, %v1421
  %vm1468 = vcmp.eq.s32.totalorder %v68, %v1424
  %vm1469 = vcmp.eq.s32.totalorder %v68, %v1427
  %vm1470 = vcmp.eq.s32.totalorder %v68, %v1430
  %vm1471 = vcmp.eq.s32.totalorder %v68, %v1433
  %vm1472 = vcmp.eq.s32.totalorder %v68, %v1436
  %vm1473 = vcmp.eq.s32.totalorder %v68, %v1439
  %vm1474 = vcmp.eq.s32.totalorder %v68, %v1442
  %vm1475 = vcmp.eq.s32.totalorder %v68, %v1445
  %vm1476 = vcmp.eq.s32.totalorder %v68, %v1448
  %vm1477 = vcmp.eq.s32.totalorder %v68, %v1451
  %vm1478 = vcmp.eq.s32.totalorder %v68, %v1454
  %vm1479 = vcmp.eq.s32.totalorder %v68, %v1457
  %vm1480 = vcmp.eq.s32.totalorder %v68, %v1460
  %vm1481 = vcmp.eq.s32.totalorder %v68, %v1463
  %vm1482 = vcmp.eq.s32.totalorder %v68, %v1466
  %v1483 = vsel %vm1467, %v1403, 0.0
  %v1484 = vsel %vm1468, %v1404, 0.0
  %v1485 = vsel %vm1469, %v1405, 0.0
  %v1486 = vsel %vm1470, %v1406, 0.0
  %v1487 = vsel %vm1471, %v1407, 0.0
  %v1488 = vsel %vm1472, %v1408, 0.0
  %v1489 = vsel %vm1473, %v1409, 0.0
  %v1490 = vsel %vm1474, %v1410, 0.0
  %v1491 = vsel %vm1475, %v1411, 0.0
  %v1492 = vsel %vm1476, %v1412, 0.0
  %v1493 = vsel %vm1477, %v1413, 0.0
  %v1494 = vsel %vm1478, %v1414, 0.0
  %v1495 = vsel %vm1479, %v1415, 0.0
  %v1496 = vsel %vm1480, %v1416, 0.0
  %v1497 = vsel %vm1481, %v1417, 0.0
  %v1498 = vsel %vm1482, %v1418, 0.0
  %1499 = vadd.xlane.f32.xlu0 %v1483
  %v1500 = vpop.xlane.xlu0 %1499
  %1501 = vadd.xlane.f32.xlu0 %v1484
  %v1502 = vpop.xlane.xlu0 %1501
  %1503 = vadd.xlane.f32.xlu0 %v1485
  %v1504 = vpop.xlane.xlu0 %1503
  %1505 = vadd.xlane.f32.xlu0 %v1486
  %v1506 = vpop.xlane.xlu0 %1505
  %1507 = vadd.xlane.f32.xlu0 %v1487
  %v1508 = vpop.xlane.xlu0 %1507
  %1509 = vadd.xlane.f32.xlu0 %v1488
  %v1510 = vpop.xlane.xlu0 %1509
  %1511 = vadd.xlane.f32.xlu0 %v1489
  %v1512 = vpop.xlane.xlu0 %1511
  %1513 = vadd.xlane.f32.xlu0 %v1490
  %v1514 = vpop.xlane.xlu0 %1513
  %1515 = vadd.xlane.f32.xlu0 %v1491
  %v1516 = vpop.xlane.xlu0 %1515
  %1517 = vadd.xlane.f32.xlu0 %v1492
  %v1518 = vpop.xlane.xlu0 %1517
  %1519 = vadd.xlane.f32.xlu0 %v1493
  %v1520 = vpop.xlane.xlu0 %1519
  %1521 = vadd.xlane.f32.xlu0 %v1494
  %v1522 = vpop.xlane.xlu0 %1521
  %1523 = vadd.xlane.f32.xlu0 %v1495
  %v1524 = vpop.xlane.xlu0 %1523
  %1525 = vadd.xlane.f32.xlu0 %v1496
  %v1526 = vpop.xlane.xlu0 %1525
  %1527 = vadd.xlane.f32.xlu0 %v1497
  %v1528 = vpop.xlane.xlu0 %1527
  %1529 = vadd.xlane.f32.xlu0 %v1498
  %v1530 = vpop.xlane.xlu0 %1529
  %v1531 = vsel %vm1226, %v1403, 0.0
  %v1532 = vsel %vm1226, %v1404, 0.0
  %v1533 = vsel %vm1226, %v1405, 0.0
  %v1534 = vsel %vm1226, %v1406, 0.0
  %v1535 = vsel %vm1226, %v1407, 0.0
  %v1536 = vsel %vm1226, %v1408, 0.0
  %v1537 = vsel %vm1226, %v1409, 0.0
  %v1538 = vsel %vm1226, %v1410, 0.0
  %v1539 = vsel %vm1226, %v1411, 0.0
  %v1540 = vsel %vm1226, %v1412, 0.0
  %v1541 = vsel %vm1226, %v1413, 0.0
  %v1542 = vsel %vm1226, %v1414, 0.0
  %v1543 = vsel %vm1226, %v1415, 0.0
  %v1544 = vsel %vm1226, %v1416, 0.0
  %v1545 = vsel %vm1226, %v1417, 0.0
  %v1546 = vsel %vm1226, %v1418, 0.0
  %1547 = vadd.xlane.f32.xlu0 %v1531
  %v1548 = vpop.xlane.xlu0 %1547
  %1549 = vadd.xlane.f32.xlu0 %v1532
  %v1550 = vpop.xlane.xlu0 %1549
  %1551 = vadd.xlane.f32.xlu0 %v1533
  %v1552 = vpop.xlane.xlu0 %1551
  %1553 = vadd.xlane.f32.xlu0 %v1534
  %v1554 = vpop.xlane.xlu0 %1553
  %1555 = vadd.xlane.f32.xlu0 %v1535
  %v1556 = vpop.xlane.xlu0 %1555
  %1557 = vadd.xlane.f32.xlu0 %v1536
  %v1558 = vpop.xlane.xlu0 %1557
  %1559 = vadd.xlane.f32.xlu0 %v1537
  %v1560 = vpop.xlane.xlu0 %1559
  %1561 = vadd.xlane.f32.xlu0 %v1538
  %v1562 = vpop.xlane.xlu0 %1561
  %1563 = vadd.xlane.f32.xlu0 %v1539
  %v1564 = vpop.xlane.xlu0 %1563
  %1565 = vadd.xlane.f32.xlu0 %v1540
  %v1566 = vpop.xlane.xlu0 %1565
  %1567 = vadd.xlane.f32.xlu0 %v1541
  %v1568 = vpop.xlane.xlu0 %1567
  %1569 = vadd.xlane.f32.xlu0 %v1542
  %v1570 = vpop.xlane.xlu0 %1569
  %1571 = vadd.xlane.f32.xlu0 %v1543
  %v1572 = vpop.xlane.xlu0 %1571
  %1573 = vadd.xlane.f32.xlu0 %v1544
  %v1574 = vpop.xlane.xlu0 %1573
  %1575 = vadd.xlane.f32.xlu0 %v1545
  %v1576 = vpop.xlane.xlu0 %1575
  %1577 = vadd.xlane.f32.xlu0 %v1546
  %v1578 = vpop.xlane.xlu0 %1577
  %v1579 = vmul.f32 %v1500, 0.9
  %v1580 = vmul.f32 %v1502, 0.9
  %v1581 = vmul.f32 %v1504, 0.9
  %v1582 = vmul.f32 %v1506, 0.9
  %v1583 = vmul.f32 %v1508, 0.9
  %v1584 = vmul.f32 %v1510, 0.9
  %v1585 = vmul.f32 %v1512, 0.9
  %v1586 = vmul.f32 %v1514, 0.9
  %v1587 = vmul.f32 %v1516, 0.9
  %v1588 = vmul.f32 %v1518, 0.9
  %v1589 = vmul.f32 %v1520, 0.9
  %v1590 = vmul.f32 %v1522, 0.9
  %v1591 = vmul.f32 %v1524, 0.9
  %v1592 = vmul.f32 %v1526, 0.9
  %v1593 = vmul.f32 %v1528, 0.9
  %v1594 = vmul.f32 %v1530, 0.9
  %v1595 = vmul.f32 %v1548, 0.00625
  %v1596 = vmul.f32 %v1550, 0.00625
  %v1597 = vmul.f32 %v1552, 0.00625
  %v1598 = vmul.f32 %v1554, 0.00625
  %v1599 = vmul.f32 %v1556, 0.00625
  %v1600 = vmul.f32 %v1558, 0.00625
  %v1601 = vmul.f32 %v1560, 0.00625
  %v1602 = vmul.f32 %v1562, 0.00625
  %v1603 = vmul.f32 %v1564, 0.00625
  %v1604 = vmul.f32 %v1566, 0.00625
  %v1605 = vmul.f32 %v1568, 0.00625
  %v1606 = vmul.f32 %v1570, 0.00625
  %v1607 = vmul.f32 %v1572, 0.00625
  %v1608 = vmul.f32 %v1574, 0.00625
  %v1609 = vmul.f32 %v1576, 0.00625
  %v1610 = vmul.f32 %v1578, 0.00625
  %v1611 = vadd.f32 %v1579, %v1595
  %v1612 = vadd.f32 %v1580, %v1596
  %v1613 = vadd.f32 %v1581, %v1597
  %v1614 = vadd.f32 %v1582, %v1598
  %v1615 = vadd.f32 %v1583, %v1599
  %v1616 = vadd.f32 %v1584, %v1600
  %v1617 = vadd.f32 %v1585, %v1601
  %v1618 = vadd.f32 %v1586, %v1602
  %v1619 = vadd.f32 %v1587, %v1603
  %v1620 = vadd.f32 %v1588, %v1604
  %v1621 = vadd.f32 %v1589, %v1605
  %v1622 = vadd.f32 %v1590, %v1606
  %v1623 = vadd.f32 %v1591, %v1607
  %v1624 = vadd.f32 %v1592, %v1608
  %v1625 = vadd.f32 %v1593, %v1609
  %v1626 = vadd.f32 %v1594, %v1610
  %v1627 = vsub.f32 0.0, %v1611
  %v1628 = vsub.f32 0.0, %v1612
  %v1629 = vsub.f32 0.0, %v1613
  %v1630 = vsub.f32 0.0, %v1614
  %v1631 = vsub.f32 0.0, %v1615
  %v1632 = vsub.f32 0.0, %v1616
  %v1633 = vsub.f32 0.0, %v1617
  %v1634 = vsub.f32 0.0, %v1618
  %v1635 = vsub.f32 0.0, %v1619
  %v1636 = vsub.f32 0.0, %v1620
  %v1637 = vsub.f32 0.0, %v1621
  %v1638 = vsub.f32 0.0, %v1622
  %v1639 = vsub.f32 0.0, %v1623
  %v1640 = vsub.f32 0.0, %v1624
  %v1641 = vsub.f32 0.0, %v1625
  %v1642 = vsub.f32 0.0, %v1626
  %v1643 = vmul.f32 %v1627, %v136
  %v1644 = vmul.f32 %v1628, %v137
  %v1645 = vmul.f32 %v1629, %v138
  %v1646 = vmul.f32 %v1630, %v139
  %v1647 = vmul.f32 %v1631, %v140
  %v1648 = vmul.f32 %v1632, %v141
  %v1649 = vmul.f32 %v1633, %v142
  %v1650 = vmul.f32 %v1634, %v143
  %v1651 = vmul.f32 %v1635, %v144
  %v1652 = vmul.f32 %v1636, %v145
  %v1653 = vmul.f32 %v1637, %v146
  %v1654 = vmul.f32 %v1638, %v147
  %v1655 = vmul.f32 %v1639, %v148
  %v1656 = vmul.f32 %v1640, %v149
  %v1657 = vmul.f32 %v1641, %v150
  %v1658 = vmul.f32 %v1642, %v151
  %v1659 = vsel %vm152, %v1643, 0.0
  %v1660 = vsel %vm152, %v1644, 0.0
  %v1661 = vadd.f32 %v1659, %v1660
  %v1662 = vsel %vm152, %v1645, 0.0
  %v1663 = vadd.f32 %v1661, %v1662
  %v1664 = vsel %vm152, %v1646, 0.0
  %v1665 = vadd.f32 %v1663, %v1664
  %v1666 = vsel %vm152, %v1647, 0.0
  %v1667 = vadd.f32 %v1665, %v1666
  %v1668 = vsel %vm152, %v1648, 0.0
  %v1669 = vadd.f32 %v1667, %v1668
  %v1670 = vsel %vm152, %v1649, 0.0
  %v1671 = vadd.f32 %v1669, %v1670
  %v1672 = vsel %vm152, %v1650, 0.0
  %v1673 = vadd.f32 %v1671, %v1672
  %v1674 = vsel %vm152, %v1651, 0.0
  %v1675 = vadd.f32 %v1673, %v1674
  %v1676 = vsel %vm152, %v1652, 0.0
  %v1677 = vadd.f32 %v1675, %v1676
  %v1678 = vsel %vm152, %v1653, 0.0
  %v1679 = vadd.f32 %v1677, %v1678
  %v1680 = vsel %vm152, %v1654, 0.0
  %v1681 = vadd.f32 %v1679, %v1680
  %v1682 = vsel %vm152, %v1655, 0.0
  %v1683 = vadd.f32 %v1681, %v1682
  %v1684 = vsel %vm152, %v1656, 0.0
  %v1685 = vadd.f32 %v1683, %v1684
  %v1686 = vsel %vm152, %v1657, 0.0
  %v1687 = vadd.f32 %v1685, %v1686
  %v1688 = vsel %vm152, %v1658, 0.0
  %v1689 = vadd.f32 %v1687, %v1688
  %1690 = vadd.xlane.f32.xlu0 %v1689
  %v1691 = vpop.xlane.xlu0 %1690
  %v1692 = vrot.slane %v1691, 4
  %v1693 = vadd.f32 %v1691, %v1692
  %v1694 = vrot.slane %v1693, 2
  %v1695 = vadd.f32 %v1693, %v1694
  %v1696 = vrot.slane %v1695, 1
  %v1697 = vadd.f32 %v1695, %v1696
  %s1698 = vtos %v1697
  %vm1699 = vcmp.eq.s32.totalorder %v70, 0
  %vm1700 = vcmp.eq.s32.totalorder %v68, 0
  %vm1701 = vmand %vm1699, %vm1700
  %v1702 = vstv %s1698
  %v1703 = vsel %vm1701, %v1702, 0.0
  %v1704 = vadd.f32 %v1703, 0.0
  %s1705 = scalar_lea.vmem %s2, 128
  %v1706 = vld [vmem:[%s1705] sm:$0xf]
  %v1707 = vld [vmem:[%s1705 + $0x4] sm:$0xf]
  %v1708 = vld [vmem:[%s1705 + $0x8] sm:$0xf]
  %v1709 = vld [vmem:[%s1705 + $0xc] sm:$0xf]
  %v1710 = vld [vmem:[%s1705 + $0x10] sm:$0xf]
  %v1711 = vld [vmem:[%s1705 + $0x14] sm:$0xf]
  %v1712 = vld [vmem:[%s1705 + $0x18] sm:$0xf]
  %v1713 = vld [vmem:[%s1705 + $0x1c] sm:$0xf]
  %v1714 = vld [vmem:[%s1705 + $0x20] sm:$0xf]
  %v1715 = vld [vmem:[%s1705 + $0x24] sm:$0xf]
  %v1716 = vld [vmem:[%s1705 + $0x28] sm:$0xf]
  %v1717 = vld [vmem:[%s1705 + $0x2c] sm:$0xf]
  %v1718 = vld [vmem:[%s1705 + $0x30] sm:$0xf]
  %v1719 = vld [vmem:[%s1705 + $0x34] sm:$0xf]
  %v1720 = vld [vmem:[%s1705 + $0x38] sm:$0xf]
  %v1721 = vld [vmem:[%s1705 + $0x3c] sm:$0xf]
  %v1722 = vld [vmem:[%s1705 + $0x40] sm:$0xf]
  %v1723 = vld [vmem:[%s1705 + $0x44] sm:$0xf]
  %v1724 = vld [vmem:[%s1705 + $0x48] sm:$0xf]
  %v1725 = vld [vmem:[%s1705 + $0x4c] sm:$0xf]
  %v1726 = vld [vmem:[%s1705 + $0x50] sm:$0xf]
  %v1727 = vld [vmem:[%s1705 + $0x54] sm:$0xf]
  %v1728 = vld [vmem:[%s1705 + $0x58] sm:$0xf]
  %v1729 = vld [vmem:[%s1705 + $0x5c] sm:$0xf]
  %v1730 = vld [vmem:[%s1705 + $0x60] sm:$0xf]
  %v1731 = vld [vmem:[%s1705 + $0x64] sm:$0xf]
  %v1732 = vld [vmem:[%s1705 + $0x68] sm:$0xf]
  %v1733 = vld [vmem:[%s1705 + $0x6c] sm:$0xf]
  %v1734 = vld [vmem:[%s1705 + $0x70] sm:$0xf]
  %v1735 = vld [vmem:[%s1705 + $0x74] sm:$0xf]
  %v1736 = vld [vmem:[%s1705 + $0x78] sm:$0xf]
  %v1737 = vld [vmem:[%s1705 + $0x7c] sm:$0xf]
  %s1738 = scalar_lea.vmem %s3, 1
  %v1739 = vld [vmem:[%s1738] sm:$0x1]
  %v1741 = vlaneseq
  %v1742 = vshrl.u32 %v1741, 7
  %v1743 = vsub.s32 0, %v1742
  %v1744 = vrot.slane %v1739, %v1743
  %v1778 = vunpack.c.l.b16 %v1706
  %v1779 = vunpack.c.l.b16 %v1707
  %v1780 = vunpack.c.l.b16 %v1708
  %v1781 = vunpack.c.l.b16 %v1709
  %v1782 = vunpack.c.l.b16 %v1710
  %v1783 = vunpack.c.l.b16 %v1711
  %v1784 = vunpack.c.l.b16 %v1712
  %v1785 = vunpack.c.l.b16 %v1713
  %v1786 = vunpack.c.l.b16 %v1714
  %v1787 = vunpack.c.l.b16 %v1715
  %v1788 = vunpack.c.l.b16 %v1716
  %v1789 = vunpack.c.l.b16 %v1717
  %v1790 = vunpack.c.l.b16 %v1718
  %v1791 = vunpack.c.l.b16 %v1719
  %v1792 = vunpack.c.l.b16 %v1720
  %v1793 = vunpack.c.l.b16 %v1721
  %v1794 = vunpack.c.l.b16 %v1722
  %v1795 = vunpack.c.l.b16 %v1723
  %v1796 = vunpack.c.l.b16 %v1724
  %v1797 = vunpack.c.l.b16 %v1725
  %v1798 = vunpack.c.l.b16 %v1726
  %v1799 = vunpack.c.l.b16 %v1727
  %v1800 = vunpack.c.l.b16 %v1728
  %v1801 = vunpack.c.l.b16 %v1729
  %v1802 = vunpack.c.l.b16 %v1730
  %v1803 = vunpack.c.l.b16 %v1731
  %v1804 = vunpack.c.l.b16 %v1732
  %v1805 = vunpack.c.l.b16 %v1733
  %v1806 = vunpack.c.l.b16 %v1734
  %v1807 = vunpack.c.l.b16 %v1735
  %v1808 = vunpack.c.l.b16 %v1736
  %v1809 = vunpack.c.l.b16 %v1737
  %v1810 = vpack.c.b16 %v1779, %v1778
  %v1811 = vpack.c.b16 %v1781, %v1780
  %v1812 = vpack.c.b16 %v1783, %v1782
  %v1813 = vpack.c.b16 %v1785, %v1784
  %v1814 = vpack.c.b16 %v1787, %v1786
  %v1815 = vpack.c.b16 %v1789, %v1788
  %v1816 = vpack.c.b16 %v1791, %v1790
  %v1817 = vpack.c.b16 %v1793, %v1792
  %v1818 = vpack.c.b16 %v1795, %v1794
  %v1819 = vpack.c.b16 %v1797, %v1796
  %v1820 = vpack.c.b16 %v1799, %v1798
  %v1821 = vpack.c.b16 %v1801, %v1800
  %v1822 = vpack.c.b16 %v1803, %v1802
  %v1823 = vpack.c.b16 %v1805, %v1804
  %v1824 = vpack.c.b16 %v1807, %v1806
  %v1825 = vpack.c.b16 %v1809, %v1808
  %1842 = vmatprep.subr.bf16.mxu0 0
  %1843 = vmatpush1.bf16.msra.mxu0 %v1817
  %1844 = vmatprep.subr.bf16.mxu0 0
  %1845 = vmatpush1.bf16.msra.mxu0 %v1816
  %1846 = vmatprep.subr.bf16.mxu0 0
  %1847 = vmatpush1.bf16.msra.mxu0 %v1815
  %1848 = vmatprep.subr.bf16.mxu0 0
  %1849 = vmatpush1.bf16.msra.mxu0 %v1814
  %1850 = vmatprep.subr.bf16.mxu0 0
  %1851 = vmatpush1.bf16.msra.mxu0 %v1813
  %1852 = vmatprep.subr.bf16.mxu0 0
  %1853 = vmatpush1.bf16.msra.mxu0 %v1812
  %1854 = vmatprep.subr.bf16.mxu0 0
  %1855 = vmatpush1.bf16.msra.mxu0 %v1811
  %1856 = vmatprep.subr.bf16.mxu0 0
  %1857 = vmatpush1.bf16.msra.mxu0 %v1810
  %1858 = vmatprep.subr.bf16.mxu0 0
  %1859 = vmatpush2.bf16.msra.mxu0 %v1825
  %1860 = vmatprep.subr.bf16.mxu0 0
  %1861 = vmatpush2.bf16.msra.mxu0 %v1824
  %1862 = vmatprep.subr.bf16.mxu0 0
  %1863 = vmatpush2.bf16.msra.mxu0 %v1823
  %1864 = vmatprep.subr.bf16.mxu0 0
  %1865 = vmatpush2.bf16.msra.mxu0 %v1822
  %1866 = vmatprep.subr.bf16.mxu0 0
  %1867 = vmatpush2.bf16.msra.mxu0 %v1821
  %1868 = vmatprep.subr.bf16.mxu0 0
  %1869 = vmatpush2.bf16.msra.mxu0 %v1820
  %1870 = vmatprep.subr.bf16.mxu0 0
  %1871 = vmatpush2.bf16.msra.mxu0 %v1819
  %1872 = vmatprep.subr.bf16.mxu0 0
  %1873 = vmatpush2.bf16.msra.mxu0 %v1818
  %1874 = vmatprep.mubr.bf16.mxu0 %v281
  %1875 = vmatmul.mubr.bf16.gmra.mxu0 %v280
  %v1876 = vpop.f32.mrf.mxu0
  %v1877 = vadd.f32 %v1744, %v1876
  %v1878 = vpop.f32.mrf.mxu0
  %v1879 = vpop.f32.mrf.mxu0
  %v1880 = vadd.f32 %v1744, %v1879
  %v1881 = vpop.f32.mrf.mxu0
  %1882 = vmatprep.mubr.bf16.mxu0 %v283
  %1883 = vmatmul.mubr.bf16.gmra.mxu0 %v282
  %v1884 = vpop.f32.mrf.mxu0
  %v1885 = vadd.f32 %v1744, %v1884
  %v1886 = vpop.f32.mrf.mxu0
  %v1887 = vpop.f32.mrf.mxu0
  %v1888 = vadd.f32 %v1744, %v1887
  %v1889 = vpop.f32.mrf.mxu0
  %1890 = vmatprep.mubr.bf16.mxu0 %v285
  %1891 = vmatmul.mubr.bf16.gmra.mxu0 %v284
  %v1892 = vpop.f32.mrf.mxu0
  %v1893 = vadd.f32 %v1744, %v1892
  %v1894 = vpop.f32.mrf.mxu0
  %v1895 = vpop.f32.mrf.mxu0
  %v1896 = vadd.f32 %v1744, %v1895
  %v1897 = vpop.f32.mrf.mxu0
  %1898 = vmatprep.mubr.bf16.mxu0 %v287
  %1899 = vmatmul.mubr.bf16.gmra.mxu0 %v286
  %v1900 = vpop.f32.mrf.mxu0
  %v1901 = vadd.f32 %v1744, %v1900
  %v1902 = vpop.f32.mrf.mxu0
  %v1903 = vpop.f32.mrf.mxu0
  %v1904 = vadd.f32 %v1744, %v1903
  %v1905 = vpop.f32.mrf.mxu0
  %1906 = vmatprep.mubr.bf16.mxu0 %v289
  %1907 = vmatmul.mubr.bf16.gmra.mxu0 %v288
  %v1908 = vpop.f32.mrf.mxu0
  %v1909 = vadd.f32 %v1744, %v1908
  %v1910 = vpop.f32.mrf.mxu0
  %v1911 = vpop.f32.mrf.mxu0
  %v1912 = vadd.f32 %v1744, %v1911
  %v1913 = vpop.f32.mrf.mxu0
  %1914 = vmatprep.mubr.bf16.mxu0 %v291
  %1915 = vmatmul.mubr.bf16.gmra.mxu0 %v290
  %v1916 = vpop.f32.mrf.mxu0
  %v1917 = vadd.f32 %v1744, %v1916
  %v1918 = vpop.f32.mrf.mxu0
  %v1919 = vpop.f32.mrf.mxu0
  %v1920 = vadd.f32 %v1744, %v1919
  %v1921 = vpop.f32.mrf.mxu0
  %1922 = vmatprep.mubr.bf16.mxu0 %v293
  %1923 = vmatmul.mubr.bf16.gmra.mxu0 %v292
  %v1924 = vpop.f32.mrf.mxu0
  %v1925 = vadd.f32 %v1744, %v1924
  %v1926 = vpop.f32.mrf.mxu0
  %v1927 = vpop.f32.mrf.mxu0
  %v1928 = vadd.f32 %v1744, %v1927
  %v1929 = vpop.f32.mrf.mxu0
  %1930 = vmatprep.mubr.bf16.mxu0 %v295
  %1931 = vmatmul.mubr.bf16.gmra.mxu0 %v294
  %v1932 = vpop.f32.mrf.mxu0
  %v1933 = vadd.f32 %v1744, %v1932
  %v1934 = vpop.f32.mrf.mxu0
  %v1935 = vpop.f32.mrf.mxu0
  %v1936 = vadd.f32 %v1744, %v1935
  %v1937 = vpop.f32.mrf.mxu0
  %1938 = vdwg.mxu0
  %vm1939 = vcmp.gt.f32.partialorder %v1877, 0.0
  %vm1940 = vcmp.gt.f32.partialorder %v1880, 0.0
  %vm1941 = vcmp.gt.f32.partialorder %v1885, 0.0
  %vm1942 = vcmp.gt.f32.partialorder %v1888, 0.0
  %vm1943 = vcmp.gt.f32.partialorder %v1893, 0.0
  %vm1944 = vcmp.gt.f32.partialorder %v1896, 0.0
  %vm1945 = vcmp.gt.f32.partialorder %v1901, 0.0
  %vm1946 = vcmp.gt.f32.partialorder %v1904, 0.0
  %vm1947 = vcmp.gt.f32.partialorder %v1909, 0.0
  %vm1948 = vcmp.gt.f32.partialorder %v1912, 0.0
  %vm1949 = vcmp.gt.f32.partialorder %v1917, 0.0
  %vm1950 = vcmp.gt.f32.partialorder %v1920, 0.0
  %vm1951 = vcmp.gt.f32.partialorder %v1925, 0.0
  %vm1952 = vcmp.gt.f32.partialorder %v1928, 0.0
  %vm1953 = vcmp.gt.f32.partialorder %v1933, 0.0
  %vm1954 = vcmp.gt.f32.partialorder %v1936, 0.0
  %v1955 = vmul.f32 %v1877, 0.01
  %v1956 = vmul.f32 %v1880, 0.01
  %v1957 = vmul.f32 %v1885, 0.01
  %v1958 = vmul.f32 %v1888, 0.01
  %v1959 = vmul.f32 %v1893, 0.01
  %v1960 = vmul.f32 %v1896, 0.01
  %v1961 = vmul.f32 %v1901, 0.01
  %v1962 = vmul.f32 %v1904, 0.01
  %v1963 = vmul.f32 %v1909, 0.01
  %v1964 = vmul.f32 %v1912, 0.01
  %v1965 = vmul.f32 %v1917, 0.01
  %v1966 = vmul.f32 %v1920, 0.01
  %v1967 = vmul.f32 %v1925, 0.01
  %v1968 = vmul.f32 %v1928, 0.01
  %v1969 = vmul.f32 %v1933, 0.01
  %v1970 = vmul.f32 %v1936, 0.01
  %v1971 = vsel %vm1939, %v1877, %v1955
  %v1972 = vsel %vm1940, %v1880, %v1956
  %v1973 = vsel %vm1941, %v1885, %v1957
  %v1974 = vsel %vm1942, %v1888, %v1958
  %v1975 = vsel %vm1943, %v1893, %v1959
  %v1976 = vsel %vm1944, %v1896, %v1960
  %v1977 = vsel %vm1945, %v1901, %v1961
  %v1978 = vsel %vm1946, %v1904, %v1962
  %v1979 = vsel %vm1947, %v1909, %v1963
  %v1980 = vsel %vm1948, %v1912, %v1964
  %v1981 = vsel %vm1949, %v1917, %v1965
  %v1982 = vsel %vm1950, %v1920, %v1966
  %v1983 = vsel %vm1951, %v1925, %v1967
  %v1984 = vsel %vm1952, %v1928, %v1968
  %v1985 = vsel %vm1953, %v1933, %v1969
  %v1986 = vsel %vm1954, %v1936, %v1970
  %v1987 = vpack.c.bf16 %v1972, %v1971
  %v1988 = vpack.c.bf16 %v1974, %v1973
  %v1989 = vpack.c.bf16 %v1976, %v1975
  %v1990 = vpack.c.bf16 %v1978, %v1977
  %v1991 = vpack.c.bf16 %v1980, %v1979
  %v1992 = vpack.c.bf16 %v1982, %v1981
  %v1993 = vpack.c.bf16 %v1984, %v1983
  %v1994 = vpack.c.bf16 %v1986, %v1985
  %s1995 = scalar_lea.vmem %s4, 64
  %v1996 = vld [vmem:[%s1995] sm:$0xf]
  %v1997 = vld [vmem:[%s1995 + $0x4] sm:$0xf]
  %v1998 = vld [vmem:[%s1995 + $0x8] sm:$0xf]
  %v1999 = vld [vmem:[%s1995 + $0xc] sm:$0xf]
  %v2000 = vld [vmem:[%s1995 + $0x10] sm:$0xf]
  %v2001 = vld [vmem:[%s1995 + $0x14] sm:$0xf]
  %v2002 = vld [vmem:[%s1995 + $0x18] sm:$0xf]
  %v2003 = vld [vmem:[%s1995 + $0x1c] sm:$0xf]
  %v2004 = vld [vmem:[%s1995 + $0x20] sm:$0xf]
  %v2005 = vld [vmem:[%s1995 + $0x24] sm:$0xf]
  %v2006 = vld [vmem:[%s1995 + $0x28] sm:$0xf]
  %v2007 = vld [vmem:[%s1995 + $0x2c] sm:$0xf]
  %v2008 = vld [vmem:[%s1995 + $0x30] sm:$0xf]
  %v2009 = vld [vmem:[%s1995 + $0x34] sm:$0xf]
  %v2010 = vld [vmem:[%s1995 + $0x38] sm:$0xf]
  %v2011 = vld [vmem:[%s1995 + $0x3c] sm:$0xf]
  %s2012 = scalar_lea.vmem %s5, 1
  %v2013 = vld [vmem:[%s2012] sm:$0x1]
  %v2015 = vlaneseq
  %v2016 = vshrl.u32 %v2015, 7
  %v2017 = vsub.s32 0, %v2016
  %v2018 = vrot.slane %v2013, %v2017
  %v2036 = vunpack.c.l.b16 %v1996
  %v2037 = vunpack.c.l.b16 %v1997
  %v2038 = vunpack.c.l.b16 %v1998
  %v2039 = vunpack.c.l.b16 %v1999
  %v2040 = vunpack.c.l.b16 %v2000
  %v2041 = vunpack.c.l.b16 %v2001
  %v2042 = vunpack.c.l.b16 %v2002
  %v2043 = vunpack.c.l.b16 %v2003
  %v2044 = vunpack.c.l.b16 %v2004
  %v2045 = vunpack.c.l.b16 %v2005
  %v2046 = vunpack.c.l.b16 %v2006
  %v2047 = vunpack.c.l.b16 %v2007
  %v2048 = vunpack.c.l.b16 %v2008
  %v2049 = vunpack.c.l.b16 %v2009
  %v2050 = vunpack.c.l.b16 %v2010
  %v2051 = vunpack.c.l.b16 %v2011
  %v2052 = vpack.c.b16 %v2037, %v2036
  %v2053 = vpack.c.b16 %v2039, %v2038
  %v2054 = vpack.c.b16 %v2041, %v2040
  %v2055 = vpack.c.b16 %v2043, %v2042
  %v2056 = vpack.c.b16 %v2045, %v2044
  %v2057 = vpack.c.b16 %v2047, %v2046
  %v2058 = vpack.c.b16 %v2049, %v2048
  %v2059 = vpack.c.b16 %v2051, %v2050
  %2068 = vmatprep.subr.bf16.mxu0 0
  %2069 = vmatpush1.bf16.msra.mxu0 %v2059
  %2070 = vmatprep.subr.bf16.mxu0 0
  %2071 = vmatpush1.bf16.msra.mxu0 %v2058
  %2072 = vmatprep.subr.bf16.mxu0 0
  %2073 = vmatpush1.bf16.msra.mxu0 %v2057
  %2074 = vmatprep.subr.bf16.mxu0 0
  %2075 = vmatpush1.bf16.msra.mxu0 %v2056
  %2076 = vmatprep.subr.bf16.mxu0 0
  %2077 = vmatpush1.bf16.msra.mxu0 %v2055
  %2078 = vmatprep.subr.bf16.mxu0 0
  %2079 = vmatpush1.bf16.msra.mxu0 %v2054
  %2080 = vmatprep.subr.bf16.mxu0 0
  %2081 = vmatpush1.bf16.msra.mxu0 %v2053
  %2082 = vmatprep.subr.bf16.mxu0 0
  %2083 = vmatpush1.bf16.msra.mxu0 %v2052
  %2084 = vmatprep.subr.bf16.mxu0 0
  %2085 = vmatpush2.bf16.msra.mxu0 0
  %2086 = vmatprep.subr.bf16.mxu0 0
  %2087 = vmatpush2.bf16.msra.mxu0 0
  %2088 = vmatprep.subr.bf16.mxu0 0
  %2089 = vmatpush2.bf16.msra.mxu0 0
  %2090 = vmatprep.subr.bf16.mxu0 0
  %2091 = vmatpush2.bf16.msra.mxu0 0
  %2092 = vmatprep.subr.bf16.mxu0 0
  %2093 = vmatpush2.bf16.msra.mxu0 0
  %2094 = vmatprep.subr.bf16.mxu0 0
  %2095 = vmatpush2.bf16.msra.mxu0 0
  %2096 = vmatprep.subr.bf16.mxu0 0
  %2097 = vmatpush2.bf16.msra.mxu0 0
  %2098 = vmatprep.subr.bf16.mxu0 0
  %2099 = vmatpush2.bf16.msra.mxu0 0
  %2100 = vmatprep.mubr.bf16.mxu0 0
  %2101 = vmatmul.mubr.bf16.gmra.mxu0 %v1987
  %v2102 = vpop.f32.mrf.mxu0
  %v2103 = vadd.f32 %v2018, %v2102
  %v2104 = vpop.f32.mrf.mxu0
  %v2105 = vpop.f32.mrf.mxu0
  %v2106 = vadd.f32 %v2018, %v2105
  %v2107 = vpop.f32.mrf.mxu0
  %2108 = vmatprep.mubr.bf16.mxu0 0
  %2109 = vmatmul.mubr.bf16.gmra.mxu0 %v1988
  %v2110 = vpop.f32.mrf.mxu0
  %v2111 = vadd.f32 %v2018, %v2110
  %v2112 = vpop.f32.mrf.mxu0
  %v2113 = vpop.f32.mrf.mxu0
  %v2114 = vadd.f32 %v2018, %v2113
  %v2115 = vpop.f32.mrf.mxu0
  %2116 = vmatprep.mubr.bf16.mxu0 0
  %2117 = vmatmul.mubr.bf16.gmra.mxu0 %v1989
  %v2118 = vpop.f32.mrf.mxu0
  %v2119 = vadd.f32 %v2018, %v2118
  %v2120 = vpop.f32.mrf.mxu0
  %v2121 = vpop.f32.mrf.mxu0
  %v2122 = vadd.f32 %v2018, %v2121
  %v2123 = vpop.f32.mrf.mxu0
  %2124 = vmatprep.mubr.bf16.mxu0 0
  %2125 = vmatmul.mubr.bf16.gmra.mxu0 %v1990
  %v2126 = vpop.f32.mrf.mxu0
  %v2127 = vadd.f32 %v2018, %v2126
  %v2128 = vpop.f32.mrf.mxu0
  %v2129 = vpop.f32.mrf.mxu0
  %v2130 = vadd.f32 %v2018, %v2129
  %v2131 = vpop.f32.mrf.mxu0
  %2132 = vmatprep.mubr.bf16.mxu0 0
  %2133 = vmatmul.mubr.bf16.gmra.mxu0 %v1991
  %v2134 = vpop.f32.mrf.mxu0
  %v2135 = vadd.f32 %v2018, %v2134
  %v2136 = vpop.f32.mrf.mxu0
  %v2137 = vpop.f32.mrf.mxu0
  %v2138 = vadd.f32 %v2018, %v2137
  %v2139 = vpop.f32.mrf.mxu0
  %2140 = vmatprep.mubr.bf16.mxu0 0
  %2141 = vmatmul.mubr.bf16.gmra.mxu0 %v1992
  %v2142 = vpop.f32.mrf.mxu0
  %v2143 = vadd.f32 %v2018, %v2142
  %v2144 = vpop.f32.mrf.mxu0
  %v2145 = vpop.f32.mrf.mxu0
  %v2146 = vadd.f32 %v2018, %v2145
  %v2147 = vpop.f32.mrf.mxu0
  %2148 = vmatprep.mubr.bf16.mxu0 0
  %2149 = vmatmul.mubr.bf16.gmra.mxu0 %v1993
  %v2150 = vpop.f32.mrf.mxu0
  %v2151 = vadd.f32 %v2018, %v2150
  %v2152 = vpop.f32.mrf.mxu0
  %v2153 = vpop.f32.mrf.mxu0
  %v2154 = vadd.f32 %v2018, %v2153
  %v2155 = vpop.f32.mrf.mxu0
  %2156 = vmatprep.mubr.bf16.mxu0 0
  %2157 = vmatmul.mubr.bf16.gmra.mxu0 %v1994
  %v2158 = vpop.f32.mrf.mxu0
  %v2159 = vadd.f32 %v2018, %v2158
  %v2160 = vpop.f32.mrf.mxu0
  %v2161 = vpop.f32.mrf.mxu0
  %v2162 = vadd.f32 %v2018, %v2161
  %v2163 = vpop.f32.mrf.mxu0
  %2164 = vdwg.mxu0
  %v2165 = vpack.c.bf16 %v2106, %v2103
  %v2166 = vpack.c.bf16 %v2114, %v2111
  %v2167 = vpack.c.bf16 %v2122, %v2119
  %v2168 = vpack.c.bf16 %v2130, %v2127
  %v2169 = vpack.c.bf16 %v2138, %v2135
  %v2170 = vpack.c.bf16 %v2146, %v2143
  %v2171 = vpack.c.bf16 %v2154, %v2151
  %v2172 = vpack.c.bf16 %v2162, %v2159
  %s2173 = scalar_lea.vmem %s6, 64
  %v2174 = vld [vmem:[%s2173] sm:$0xf]
  %v2175 = vld [vmem:[%s2173 + $0x4] sm:$0xf]
  %v2176 = vld [vmem:[%s2173 + $0x8] sm:$0xf]
  %v2177 = vld [vmem:[%s2173 + $0xc] sm:$0xf]
  %v2178 = vld [vmem:[%s2173 + $0x10] sm:$0xf]
  %v2179 = vld [vmem:[%s2173 + $0x14] sm:$0xf]
  %v2180 = vld [vmem:[%s2173 + $0x18] sm:$0xf]
  %v2181 = vld [vmem:[%s2173 + $0x1c] sm:$0xf]
  %v2182 = vld [vmem:[%s2173 + $0x20] sm:$0xf]
  %v2183 = vld [vmem:[%s2173 + $0x24] sm:$0xf]
  %v2184 = vld [vmem:[%s2173 + $0x28] sm:$0xf]
  %v2185 = vld [vmem:[%s2173 + $0x2c] sm:$0xf]
  %v2186 = vld [vmem:[%s2173 + $0x30] sm:$0xf]
  %v2187 = vld [vmem:[%s2173 + $0x34] sm:$0xf]
  %v2188 = vld [vmem:[%s2173 + $0x38] sm:$0xf]
  %v2189 = vld [vmem:[%s2173 + $0x3c] sm:$0xf]
  %s2190 = scalar_lea.vmem %s7, 128
  %v2191 = vld [vmem:[%s2190] sm:$0xf]
  %v2192 = vld [vmem:[%s2190 + $0x4] sm:$0xf]
  %v2193 = vld [vmem:[%s2190 + $0x8] sm:$0xf]
  %v2194 = vld [vmem:[%s2190 + $0xc] sm:$0xf]
  %v2195 = vld [vmem:[%s2190 + $0x10] sm:$0xf]
  %v2196 = vld [vmem:[%s2190 + $0x14] sm:$0xf]
  %v2197 = vld [vmem:[%s2190 + $0x18] sm:$0xf]
  %v2198 = vld [vmem:[%s2190 + $0x1c] sm:$0xf]
  %v2199 = vld [vmem:[%s2190 + $0x20] sm:$0xf]
  %v2200 = vld [vmem:[%s2190 + $0x24] sm:$0xf]
  %v2201 = vld [vmem:[%s2190 + $0x28] sm:$0xf]
  %v2202 = vld [vmem:[%s2190 + $0x2c] sm:$0xf]
  %v2203 = vld [vmem:[%s2190 + $0x30] sm:$0xf]
  %v2204 = vld [vmem:[%s2190 + $0x34] sm:$0xf]
  %v2205 = vld [vmem:[%s2190 + $0x38] sm:$0xf]
  %v2206 = vld [vmem:[%s2190 + $0x3c] sm:$0xf]
  %v2207 = vld [vmem:[%s2190 + $0x40] sm:$0xf]
  %v2208 = vld [vmem:[%s2190 + $0x44] sm:$0xf]
  %v2209 = vld [vmem:[%s2190 + $0x48] sm:$0xf]
  %v2210 = vld [vmem:[%s2190 + $0x4c] sm:$0xf]
  %v2211 = vld [vmem:[%s2190 + $0x50] sm:$0xf]
  %v2212 = vld [vmem:[%s2190 + $0x54] sm:$0xf]
  %v2213 = vld [vmem:[%s2190 + $0x58] sm:$0xf]
  %v2214 = vld [vmem:[%s2190 + $0x5c] sm:$0xf]
  %v2215 = vld [vmem:[%s2190 + $0x60] sm:$0xf]
  %v2216 = vld [vmem:[%s2190 + $0x64] sm:$0xf]
  %v2217 = vld [vmem:[%s2190 + $0x68] sm:$0xf]
  %v2218 = vld [vmem:[%s2190 + $0x6c] sm:$0xf]
  %v2219 = vld [vmem:[%s2190 + $0x70] sm:$0xf]
  %v2220 = vld [vmem:[%s2190 + $0x74] sm:$0xf]
  %v2221 = vld [vmem:[%s2190 + $0x78] sm:$0xf]
  %v2222 = vld [vmem:[%s2190 + $0x7c] sm:$0xf]
  %v2255 = vunpack.c.l.b16 %v2191
  %v2256 = vunpack.c.l.b16 %v2192
  %v2257 = vunpack.c.l.b16 %v2193
  %v2258 = vunpack.c.l.b16 %v2194
  %v2259 = vunpack.c.l.b16 %v2195
  %v2260 = vunpack.c.l.b16 %v2196
  %v2261 = vunpack.c.l.b16 %v2197
  %v2262 = vunpack.c.l.b16 %v2198
  %v2263 = vunpack.c.l.b16 %v2199
  %v2264 = vunpack.c.l.b16 %v2200
  %v2265 = vunpack.c.l.b16 %v2201
  %v2266 = vunpack.c.l.b16 %v2202
  %v2267 = vunpack.c.l.b16 %v2203
  %v2268 = vunpack.c.l.b16 %v2204
  %v2269 = vunpack.c.l.b16 %v2205
  %v2270 = vunpack.c.l.b16 %v2206
  %v2271 = vunpack.c.l.b16 %v2207
  %v2272 = vunpack.c.l.b16 %v2208
  %v2273 = vunpack.c.l.b16 %v2209
  %v2274 = vunpack.c.l.b16 %v2210
  %v2275 = vunpack.c.l.b16 %v2211
  %v2276 = vunpack.c.l.b16 %v2212
  %v2277 = vunpack.c.l.b16 %v2213
  %v2278 = vunpack.c.l.b16 %v2214
  %v2279 = vunpack.c.l.b16 %v2215
  %v2280 = vunpack.c.l.b16 %v2216
  %v2281 = vunpack.c.l.b16 %v2217
  %v2282 = vunpack.c.l.b16 %v2218
  %v2283 = vunpack.c.l.b16 %v2219
  %v2284 = vunpack.c.l.b16 %v2220
  %v2285 = vunpack.c.l.b16 %v2221
  %v2286 = vunpack.c.l.b16 %v2222
  %v2287 = vpack.c.b16 %v2256, %v2255
  %v2288 = vpack.c.b16 %v2258, %v2257
  %v2289 = vpack.c.b16 %v2260, %v2259
  %v2290 = vpack.c.b16 %v2262, %v2261
  %v2291 = vpack.c.b16 %v2264, %v2263
  %v2292 = vpack.c.b16 %v2266, %v2265
  %v2293 = vpack.c.b16 %v2268, %v2267
  %v2294 = vpack.c.b16 %v2270, %v2269
  %v2295 = vpack.c.b16 %v2272, %v2271
  %v2296 = vpack.c.b16 %v2274, %v2273
  %v2297 = vpack.c.b16 %v2276, %v2275
  %v2298 = vpack.c.b16 %v2278, %v2277
  %v2299 = vpack.c.b16 %v2280, %v2279
  %v2300 = vpack.c.b16 %v2282, %v2281
  %v2301 = vpack.c.b16 %v2284, %v2283
  %v2302 = vpack.c.b16 %v2286, %v2285
  %2319 = vmatprep.subr.bf16.mxu0 0
  %2320 = vmatpush1.bf16.msra.mxu0 %v2294
  %2321 = vmatprep.subr.bf16.mxu0 0
  %2322 = vmatpush1.bf16.msra.mxu0 %v2293
  %2323 = vmatprep.subr.bf16.mxu0 0
  %2324 = vmatpush1.bf16.msra.mxu0 %v2292
  %2325 = vmatprep.subr.bf16.mxu0 0
  %2326 = vmatpush1.bf16.msra.mxu0 %v2291
  %2327 = vmatprep.subr.bf16.mxu0 0
  %2328 = vmatpush1.bf16.msra.mxu0 %v2290
  %2329 = vmatprep.subr.bf16.mxu0 0
  %2330 = vmatpush1.bf16.msra.mxu0 %v2289
  %2331 = vmatprep.subr.bf16.mxu0 0
  %2332 = vmatpush1.bf16.msra.mxu0 %v2288
  %2333 = vmatprep.subr.bf16.mxu0 0
  %2334 = vmatpush1.bf16.msra.mxu0 %v2287
  %2335 = vmatprep.subr.bf16.mxu0 0
  %2336 = vmatpush2.bf16.msra.mxu0 %v2302
  %2337 = vmatprep.subr.bf16.mxu0 0
  %2338 = vmatpush2.bf16.msra.mxu0 %v2301
  %2339 = vmatprep.subr.bf16.mxu0 0
  %2340 = vmatpush2.bf16.msra.mxu0 %v2300
  %2341 = vmatprep.subr.bf16.mxu0 0
  %2342 = vmatpush2.bf16.msra.mxu0 %v2299
  %2343 = vmatprep.subr.bf16.mxu0 0
  %2344 = vmatpush2.bf16.msra.mxu0 %v2298
  %2345 = vmatprep.subr.bf16.mxu0 0
  %2346 = vmatpush2.bf16.msra.mxu0 %v2297
  %2347 = vmatprep.subr.bf16.mxu0 0
  %2348 = vmatpush2.bf16.msra.mxu0 %v2296
  %2349 = vmatprep.subr.bf16.mxu0 0
  %2350 = vmatpush2.bf16.msra.mxu0 %v2295
  %2351 = vmatprep.mubr.bf16.mxu0 %v281
  %2352 = vmatmul.mubr.bf16.gmra.mxu0 %v280
  %v2353 = vpop.f32.mrf.mxu0
  %v2354 = vadd.f32 0.0, %v2353
  %v2355 = vpop.f32.mrf.mxu0
  %v2356 = vpop.f32.mrf.mxu0
  %v2357 = vadd.f32 0.0, %v2356
  %v2358 = vpop.f32.mrf.mxu0
  %2359 = vmatprep.mubr.bf16.mxu0 %v283
  %2360 = vmatmul.mubr.bf16.gmra.mxu0 %v282
  %v2361 = vpop.f32.mrf.mxu0
  %v2362 = vadd.f32 0.0, %v2361
  %v2363 = vpop.f32.mrf.mxu0
  %v2364 = vpop.f32.mrf.mxu0
  %v2365 = vadd.f32 0.0, %v2364
  %v2366 = vpop.f32.mrf.mxu0
  %2367 = vmatprep.mubr.bf16.mxu0 %v285
  %2368 = vmatmul.mubr.bf16.gmra.mxu0 %v284
  %v2369 = vpop.f32.mrf.mxu0
  %v2370 = vadd.f32 0.0, %v2369
  %v2371 = vpop.f32.mrf.mxu0
  %v2372 = vpop.f32.mrf.mxu0
  %v2373 = vadd.f32 0.0, %v2372
  %v2374 = vpop.f32.mrf.mxu0
  %2375 = vmatprep.mubr.bf16.mxu0 %v287
  %2376 = vmatmul.mubr.bf16.gmra.mxu0 %v286
  %v2377 = vpop.f32.mrf.mxu0
  %v2378 = vadd.f32 0.0, %v2377
  %v2379 = vpop.f32.mrf.mxu0
  %v2380 = vpop.f32.mrf.mxu0
  %v2381 = vadd.f32 0.0, %v2380
  %v2382 = vpop.f32.mrf.mxu0
  %2383 = vmatprep.mubr.bf16.mxu0 %v289
  %2384 = vmatmul.mubr.bf16.gmra.mxu0 %v288
  %v2385 = vpop.f32.mrf.mxu0
  %v2386 = vadd.f32 0.0, %v2385
  %v2387 = vpop.f32.mrf.mxu0
  %v2388 = vpop.f32.mrf.mxu0
  %v2389 = vadd.f32 0.0, %v2388
  %v2390 = vpop.f32.mrf.mxu0
  %2391 = vmatprep.mubr.bf16.mxu0 %v291
  %2392 = vmatmul.mubr.bf16.gmra.mxu0 %v290
  %v2393 = vpop.f32.mrf.mxu0
  %v2394 = vadd.f32 0.0, %v2393
  %v2395 = vpop.f32.mrf.mxu0
  %v2396 = vpop.f32.mrf.mxu0
  %v2397 = vadd.f32 0.0, %v2396
  %v2398 = vpop.f32.mrf.mxu0
  %2399 = vmatprep.mubr.bf16.mxu0 %v293
  %2400 = vmatmul.mubr.bf16.gmra.mxu0 %v292
  %v2401 = vpop.f32.mrf.mxu0
  %v2402 = vadd.f32 0.0, %v2401
  %v2403 = vpop.f32.mrf.mxu0
  %v2404 = vpop.f32.mrf.mxu0
  %v2405 = vadd.f32 0.0, %v2404
  %v2406 = vpop.f32.mrf.mxu0
  %2407 = vmatprep.mubr.bf16.mxu0 %v295
  %2408 = vmatmul.mubr.bf16.gmra.mxu0 %v294
  %v2409 = vpop.f32.mrf.mxu0
  %v2410 = vadd.f32 0.0, %v2409
  %v2411 = vpop.f32.mrf.mxu0
  %v2412 = vpop.f32.mrf.mxu0
  %v2413 = vadd.f32 0.0, %v2412
  %v2414 = vpop.f32.mrf.mxu0
  %2415 = vdwg.mxu0
  %v2432 = vunpack.c.l.b16 %v2174
  %v2433 = vunpack.c.l.b16 %v2175
  %v2434 = vunpack.c.l.b16 %v2176
  %v2435 = vunpack.c.l.b16 %v2177
  %v2436 = vunpack.c.l.b16 %v2178
  %v2437 = vunpack.c.l.b16 %v2179
  %v2438 = vunpack.c.l.b16 %v2180
  %v2439 = vunpack.c.l.b16 %v2181
  %v2440 = vunpack.c.l.b16 %v2182
  %v2441 = vunpack.c.l.b16 %v2183
  %v2442 = vunpack.c.l.b16 %v2184
  %v2443 = vunpack.c.l.b16 %v2185
  %v2444 = vunpack.c.l.b16 %v2186
  %v2445 = vunpack.c.l.b16 %v2187
  %v2446 = vunpack.c.l.b16 %v2188
  %v2447 = vunpack.c.l.b16 %v2189
  %v2448 = vpack.c.b16 %v2433, %v2432
  %v2449 = vpack.c.b16 %v2435, %v2434
  %v2450 = vpack.c.b16 %v2437, %v2436
  %v2451 = vpack.c.b16 %v2439, %v2438
  %v2452 = vpack.c.b16 %v2441, %v2440
  %v2453 = vpack.c.b16 %v2443, %v2442
  %v2454 = vpack.c.b16 %v2445, %v2444
  %v2455 = vpack.c.b16 %v2447, %v2446
  %2464 = vmatprep.subr.bf16.mxu0 0
  %2465 = vmatpush1.bf16.msra.mxu0 %v2455
  %2466 = vmatprep.subr.bf16.mxu0 0
  %2467 = vmatpush1.bf16.msra.mxu0 %v2454
  %2468 = vmatprep.subr.bf16.mxu0 0
  %2469 = vmatpush1.bf16.msra.mxu0 %v2453
  %2470 = vmatprep.subr.bf16.mxu0 0
  %2471 = vmatpush1.bf16.msra.mxu0 %v2452
  %2472 = vmatprep.subr.bf16.mxu0 0
  %2473 = vmatpush1.bf16.msra.mxu0 %v2451
  %2474 = vmatprep.subr.bf16.mxu0 0
  %2475 = vmatpush1.bf16.msra.mxu0 %v2450
  %2476 = vmatprep.subr.bf16.mxu0 0
  %2477 = vmatpush1.bf16.msra.mxu0 %v2449
  %2478 = vmatprep.subr.bf16.mxu0 0
  %2479 = vmatpush1.bf16.msra.mxu0 %v2448
  %2480 = vmatprep.subr.bf16.mxu0 0
  %2481 = vmatpush2.bf16.msra.mxu0 0
  %2482 = vmatprep.subr.bf16.mxu0 0
  %2483 = vmatpush2.bf16.msra.mxu0 0
  %2484 = vmatprep.subr.bf16.mxu0 0
  %2485 = vmatpush2.bf16.msra.mxu0 0
  %2486 = vmatprep.subr.bf16.mxu0 0
  %2487 = vmatpush2.bf16.msra.mxu0 0
  %2488 = vmatprep.subr.bf16.mxu0 0
  %2489 = vmatpush2.bf16.msra.mxu0 0
  %2490 = vmatprep.subr.bf16.mxu0 0
  %2491 = vmatpush2.bf16.msra.mxu0 0
  %2492 = vmatprep.subr.bf16.mxu0 0
  %2493 = vmatpush2.bf16.msra.mxu0 0
  %2494 = vmatprep.subr.bf16.mxu0 0
  %2495 = vmatpush2.bf16.msra.mxu0 0
  %2496 = vmatprep.mubr.bf16.mxu0 0
  %2497 = vmatmul.mubr.bf16.gmra.mxu0 %v2165
  %v2498 = vpop.f32.mrf.mxu0
  %v2499 = vadd.f32 %v2354, %v2498
  %v2500 = vpop.f32.mrf.mxu0
  %v2501 = vpop.f32.mrf.mxu0
  %v2502 = vadd.f32 %v2357, %v2501
  %v2503 = vpop.f32.mrf.mxu0
  %2504 = vmatprep.mubr.bf16.mxu0 0
  %2505 = vmatmul.mubr.bf16.gmra.mxu0 %v2166
  %v2506 = vpop.f32.mrf.mxu0
  %v2507 = vadd.f32 %v2362, %v2506
  %v2508 = vpop.f32.mrf.mxu0
  %v2509 = vpop.f32.mrf.mxu0
  %v2510 = vadd.f32 %v2365, %v2509
  %v2511 = vpop.f32.mrf.mxu0
  %2512 = vmatprep.mubr.bf16.mxu0 0
  %2513 = vmatmul.mubr.bf16.gmra.mxu0 %v2167
  %v2514 = vpop.f32.mrf.mxu0
  %v2515 = vadd.f32 %v2370, %v2514
  %v2516 = vpop.f32.mrf.mxu0
  %v2517 = vpop.f32.mrf.mxu0
  %v2518 = vadd.f32 %v2373, %v2517
  %v2519 = vpop.f32.mrf.mxu0
  %2520 = vmatprep.mubr.bf16.mxu0 0
  %2521 = vmatmul.mubr.bf16.gmra.mxu0 %v2168
  %v2522 = vpop.f32.mrf.mxu0
  %v2523 = vadd.f32 %v2378, %v2522
  %v2524 = vpop.f32.mrf.mxu0
  %v2525 = vpop.f32.mrf.mxu0
  %v2526 = vadd.f32 %v2381, %v2525
  %v2527 = vpop.f32.mrf.mxu0
  %2528 = vmatprep.mubr.bf16.mxu0 0
  %2529 = vmatmul.mubr.bf16.gmra.mxu0 %v2169
  %v2530 = vpop.f32.mrf.mxu0
  %v2531 = vadd.f32 %v2386, %v2530
  %v2532 = vpop.f32.mrf.mxu0
  %v2533 = vpop.f32.mrf.mxu0
  %v2534 = vadd.f32 %v2389, %v2533
  %v2535 = vpop.f32.mrf.mxu0
  %2536 = vmatprep.mubr.bf16.mxu0 0
  %2537 = vmatmul.mubr.bf16.gmra.mxu0 %v2170
  %v2538 = vpop.f32.mrf.mxu0
  %v2539 = vadd.f32 %v2394, %v2538
  %v2540 = vpop.f32.mrf.mxu0
  %v2541 = vpop.f32.mrf.mxu0
  %v2542 = vadd.f32 %v2397, %v2541
  %v2543 = vpop.f32.mrf.mxu0
  %2544 = vmatprep.mubr.bf16.mxu0 0
  %2545 = vmatmul.mubr.bf16.gmra.mxu0 %v2171
  %v2546 = vpop.f32.mrf.mxu0
  %v2547 = vadd.f32 %v2402, %v2546
  %v2548 = vpop.f32.mrf.mxu0
  %v2549 = vpop.f32.mrf.mxu0
  %v2550 = vadd.f32 %v2405, %v2549
  %v2551 = vpop.f32.mrf.mxu0
  %2552 = vmatprep.mubr.bf16.mxu0 0
  %2553 = vmatmul.mubr.bf16.gmra.mxu0 %v2172
  %v2554 = vpop.f32.mrf.mxu0
  %v2555 = vadd.f32 %v2410, %v2554
  %v2556 = vpop.f32.mrf.mxu0
  %v2557 = vpop.f32.mrf.mxu0
  %v2558 = vadd.f32 %v2413, %v2557
  %v2559 = vpop.f32.mrf.mxu0
  %2560 = vdwg.mxu0
  %s2561 = scalar_lea.vmem %s8, 1
  %v2562 = vld [vmem:[%s2561] sm:$0x1]
  %v2564 = vlaneseq
  %v2565 = vshrl.u32 %v2564, 7
  %v2566 = vsub.s32 0, %v2565
  %v2567 = vrot.slane %v2562, %v2566
  %v2569 = vadd.f32 %v2499, %v2567
  %v2570 = vadd.f32 %v2502, %v2567
  %v2571 = vadd.f32 %v2507, %v2567
  %v2572 = vadd.f32 %v2510, %v2567
  %v2573 = vadd.f32 %v2515, %v2567
  %v2574 = vadd.f32 %v2518, %v2567
  %v2575 = vadd.f32 %v2523, %v2567
  %v2576 = vadd.f32 %v2526, %v2567
  %v2577 = vadd.f32 %v2531, %v2567
  %v2578 = vadd.f32 %v2534, %v2567
  %v2579 = vadd.f32 %v2539, %v2567
  %v2580 = vadd.f32 %v2542, %v2567
  %v2581 = vadd.f32 %v2547, %v2567
  %v2582 = vadd.f32 %v2550, %v2567
  %v2583 = vadd.f32 %v2555, %v2567
  %v2584 = vadd.f32 %v2558, %v2567
  %v2585 = vpack.c.bf16 %v2570, %v2569
  %v2586 = vpack.c.bf16 %v2572, %v2571
  %v2587 = vpack.c.bf16 %v2574, %v2573
  %v2588 = vpack.c.bf16 %v2576, %v2575
  %v2589 = vpack.c.bf16 %v2578, %v2577
  %v2590 = vpack.c.bf16 %v2580, %v2579
  %v2591 = vpack.c.bf16 %v2582, %v2581
  %v2592 = vpack.c.bf16 %v2584, %v2583
  %v2601 = vunpack.c.l.b16 %v2585
  %v2602 = vunpack.c.h.b16 %v2585
  %v2603 = vunpack.c.l.b16 %v2586
  %v2604 = vunpack.c.h.b16 %v2586
  %v2605 = vunpack.c.l.b16 %v2587
  %v2606 = vunpack.c.h.b16 %v2587
  %v2607 = vunpack.c.l.b16 %v2588
  %v2608 = vunpack.c.h.b16 %v2588
  %v2609 = vunpack.c.l.b16 %v2589
  %v2610 = vunpack.c.h.b16 %v2589
  %v2611 = vunpack.c.l.b16 %v2590
  %v2612 = vunpack.c.h.b16 %v2590
  %v2613 = vunpack.c.l.b16 %v2591
  %v2614 = vunpack.c.h.b16 %v2591
  %v2615 = vunpack.c.l.b16 %v2592
  %v2616 = vunpack.c.h.b16 %v2592
  %v2617 = vpack.c.b16 %v2601, %v2601
  %v2618 = vpack.c.b16 %v2602, %v2602
  %v2619 = vpack.c.b16 %v2603, %v2603
  %v2620 = vpack.c.b16 %v2604, %v2604
  %v2621 = vpack.c.b16 %v2605, %v2605
  %v2622 = vpack.c.b16 %v2606, %v2606
  %v2623 = vpack.c.b16 %v2607, %v2607
  %v2624 = vpack.c.b16 %v2608, %v2608
  %v2625 = vpack.c.b16 %v2609, %v2609
  %v2626 = vpack.c.b16 %v2610, %v2610
  %v2627 = vpack.c.b16 %v2611, %v2611
  %v2628 = vpack.c.b16 %v2612, %v2612
  %v2629 = vpack.c.b16 %v2613, %v2613
  %v2630 = vpack.c.b16 %v2614, %v2614
  %v2631 = vpack.c.b16 %v2615, %v2615
  %v2632 = vpack.c.b16 %v2616, %v2616
  %2649 = vst [vmem:[%s9 + $0x4] sm:$0xf] %v2617
  %2650 = vst [vmem:[%s9 + $0x10] sm:$0xf] %v2618
  %2651 = vst [vmem:[%s9 + $0x1c] sm:$0xf] %v2619
  %2652 = vst [vmem:[%s9 + $0x28] sm:$0xf] %v2620
  %2653 = vst [vmem:[%s9 + $0x34] sm:$0xf] %v2621
  %2654 = vst [vmem:[%s9 + $0x40] sm:$0xf] %v2622
  %2655 = vst [vmem:[%s9 + $0x4c] sm:$0xf] %v2623
  %2656 = vst [vmem:[%s9 + $0x58] sm:$0xf] %v2624
  %2657 = vst [vmem:[%s9 + $0x64] sm:$0xf] %v2625
  %2658 = vst [vmem:[%s9 + $0x70] sm:$0xf] %v2626
  %2659 = vst [vmem:[%s9 + $0x7c] sm:$0xf] %v2627
  %2660 = vst [vmem:[%s9 + $0x88] sm:$0xf] %v2628
  %2661 = vst [vmem:[%s9 + $0x94] sm:$0xf] %v2629
  %2662 = vst [vmem:[%s9 + $0xa0] sm:$0xf] %v2630
  %2663 = vst [vmem:[%s9 + $0xac] sm:$0xf] %v2631
  %2664 = vst [vmem:[%s9 + $0xb8] sm:$0xf] %v2632
  %vm2665 = vcmp.lt.s32.totalorder %v68, 24
  %v2666 = vsel %vm2665, %v2569, -1e+30
  %v2667 = vsel %vm2665, %v2570, -1e+30
  %v2668 = vsel %vm2665, %v2571, -1e+30
  %v2669 = vsel %vm2665, %v2572, -1e+30
  %v2670 = vsel %vm2665, %v2573, -1e+30
  %v2671 = vsel %vm2665, %v2574, -1e+30
  %v2672 = vsel %vm2665, %v2575, -1e+30
  %v2673 = vsel %vm2665, %v2576, -1e+30
  %v2674 = vsel %vm2665, %v2577, -1e+30
  %v2675 = vsel %vm2665, %v2578, -1e+30
  %v2676 = vsel %vm2665, %v2579, -1e+30
  %v2677 = vsel %vm2665, %v2580, -1e+30
  %v2678 = vsel %vm2665, %v2581, -1e+30
  %v2679 = vsel %vm2665, %v2582, -1e+30
  %v2680 = vsel %vm2665, %v2583, -1e+30
  %v2681 = vsel %vm2665, %v2584, -1e+30
  %2682 = vmax.xlane.f32.xlu0 %v2666
  %v2683 = vpop.xlane.xlu0 %2682
  %2684 = vmax.xlane.f32.xlu0 %v2667
  %v2685 = vpop.xlane.xlu0 %2684
  %2686 = vmax.xlane.f32.xlu0 %v2668
  %v2687 = vpop.xlane.xlu0 %2686
  %2688 = vmax.xlane.f32.xlu0 %v2669
  %v2689 = vpop.xlane.xlu0 %2688
  %2690 = vmax.xlane.f32.xlu0 %v2670
  %v2691 = vpop.xlane.xlu0 %2690
  %2692 = vmax.xlane.f32.xlu0 %v2671
  %v2693 = vpop.xlane.xlu0 %2692
  %2694 = vmax.xlane.f32.xlu0 %v2672
  %v2695 = vpop.xlane.xlu0 %2694
  %2696 = vmax.xlane.f32.xlu0 %v2673
  %v2697 = vpop.xlane.xlu0 %2696
  %2698 = vmax.xlane.f32.xlu0 %v2674
  %v2699 = vpop.xlane.xlu0 %2698
  %2700 = vmax.xlane.f32.xlu0 %v2675
  %v2701 = vpop.xlane.xlu0 %2700
  %2702 = vmax.xlane.f32.xlu0 %v2676
  %v2703 = vpop.xlane.xlu0 %2702
  %2704 = vmax.xlane.f32.xlu0 %v2677
  %v2705 = vpop.xlane.xlu0 %2704
  %2706 = vmax.xlane.f32.xlu0 %v2678
  %v2707 = vpop.xlane.xlu0 %2706
  %2708 = vmax.xlane.f32.xlu0 %v2679
  %v2709 = vpop.xlane.xlu0 %2708
  %2710 = vmax.xlane.f32.xlu0 %v2680
  %v2711 = vpop.xlane.xlu0 %2710
  %2712 = vmax.xlane.f32.xlu0 %v2681
  %v2713 = vpop.xlane.xlu0 %2712
  %v2714 = vsub.f32 %v2666, %v2683
  %v2715 = vsub.f32 %v2667, %v2685
  %v2716 = vsub.f32 %v2668, %v2687
  %v2717 = vsub.f32 %v2669, %v2689
  %v2718 = vsub.f32 %v2670, %v2691
  %v2719 = vsub.f32 %v2671, %v2693
  %v2720 = vsub.f32 %v2672, %v2695
  %v2721 = vsub.f32 %v2673, %v2697
  %v2722 = vsub.f32 %v2674, %v2699
  %v2723 = vsub.f32 %v2675, %v2701
  %v2724 = vsub.f32 %v2676, %v2703
  %v2725 = vsub.f32 %v2677, %v2705
  %v2726 = vsub.f32 %v2678, %v2707
  %v2727 = vsub.f32 %v2679, %v2709
  %v2728 = vsub.f32 %v2680, %v2711
  %v2729 = vsub.f32 %v2681, %v2713
  %v2730 = vmul.f32 %v2714, 1.442695
  %v2731 = vpow.pop %v2730
  %v2732 = vmul.f32 %v2715, 1.442695
  %v2733 = vpow.pop %v2732
  %v2734 = vmul.f32 %v2716, 1.442695
  %v2735 = vpow.pop %v2734
  %v2736 = vmul.f32 %v2717, 1.442695
  %v2737 = vpow.pop %v2736
  %v2738 = vmul.f32 %v2718, 1.442695
  %v2739 = vpow.pop %v2738
  %v2740 = vmul.f32 %v2719, 1.442695
  %v2741 = vpow.pop %v2740
  %v2742 = vmul.f32 %v2720, 1.442695
  %v2743 = vpow.pop %v2742
  %v2744 = vmul.f32 %v2721, 1.442695
  %v2745 = vpow.pop %v2744
  %v2746 = vmul.f32 %v2722, 1.442695
  %v2747 = vpow.pop %v2746
  %v2748 = vmul.f32 %v2723, 1.442695
  %v2749 = vpow.pop %v2748
  %v2750 = vmul.f32 %v2724, 1.442695
  %v2751 = vpow.pop %v2750
  %v2752 = vmul.f32 %v2725, 1.442695
  %v2753 = vpow.pop %v2752
  %v2754 = vmul.f32 %v2726, 1.442695
  %v2755 = vpow.pop %v2754
  %v2756 = vmul.f32 %v2727, 1.442695
  %v2757 = vpow.pop %v2756
  %v2758 = vmul.f32 %v2728, 1.442695
  %v2759 = vpow.pop %v2758
  %v2760 = vmul.f32 %v2729, 1.442695
  %v2761 = vpow.pop %v2760
  %2762 = vadd.xlane.f32.xlu0 %v2731
  %v2763 = vpop.xlane.xlu0 %2762
  %2764 = vadd.xlane.f32.xlu0 %v2733
  %v2765 = vpop.xlane.xlu0 %2764
  %2766 = vadd.xlane.f32.xlu0 %v2735
  %v2767 = vpop.xlane.xlu0 %2766
  %2768 = vadd.xlane.f32.xlu0 %v2737
  %v2769 = vpop.xlane.xlu0 %2768
  %2770 = vadd.xlane.f32.xlu0 %v2739
  %v2771 = vpop.xlane.xlu0 %2770
  %2772 = vadd.xlane.f32.xlu0 %v2741
  %v2773 = vpop.xlane.xlu0 %2772
  %2774 = vadd.xlane.f32.xlu0 %v2743
  %v2775 = vpop.xlane.xlu0 %2774
  %2776 = vadd.xlane.f32.xlu0 %v2745
  %v2777 = vpop.xlane.xlu0 %2776
  %2778 = vadd.xlane.f32.xlu0 %v2747
  %v2779 = vpop.xlane.xlu0 %2778
  %2780 = vadd.xlane.f32.xlu0 %v2749
  %v2781 = vpop.xlane.xlu0 %2780
  %2782 = vadd.xlane.f32.xlu0 %v2751
  %v2783 = vpop.xlane.xlu0 %2782
  %2784 = vadd.xlane.f32.xlu0 %v2753
  %v2785 = vpop.xlane.xlu0 %2784
  %2786 = vadd.xlane.f32.xlu0 %v2755
  %v2787 = vpop.xlane.xlu0 %2786
  %2788 = vadd.xlane.f32.xlu0 %v2757
  %v2789 = vpop.xlane.xlu0 %2788
  %2790 = vadd.xlane.f32.xlu0 %v2759
  %v2791 = vpop.xlane.xlu0 %2790
  %2792 = vadd.xlane.f32.xlu0 %v2761
  %v2793 = vpop.xlane.xlu0 %2792
  %v2794 = vlog2.pop %v2763
  %v2795 = vmul.f32 %v2794, 0.6931472
  %v2796 = vlog2.pop %v2765
  %v2797 = vmul.f32 %v2796, 0.6931472
  %v2798 = vlog2.pop %v2767
  %v2799 = vmul.f32 %v2798, 0.6931472
  %v2800 = vlog2.pop %v2769
  %v2801 = vmul.f32 %v2800, 0.6931472
  %v2802 = vlog2.pop %v2771
  %v2803 = vmul.f32 %v2802, 0.6931472
  %v2804 = vlog2.pop %v2773
  %v2805 = vmul.f32 %v2804, 0.6931472
  %v2806 = vlog2.pop %v2775
  %v2807 = vmul.f32 %v2806, 0.6931472
  %v2808 = vlog2.pop %v2777
  %v2809 = vmul.f32 %v2808, 0.6931472
  %v2810 = vlog2.pop %v2779
  %v2811 = vmul.f32 %v2810, 0.6931472
  %v2812 = vlog2.pop %v2781
  %v2813 = vmul.f32 %v2812, 0.6931472
  %v2814 = vlog2.pop %v2783
  %v2815 = vmul.f32 %v2814, 0.6931472
  %v2816 = vlog2.pop %v2785
  %v2817 = vmul.f32 %v2816, 0.6931472
  %v2818 = vlog2.pop %v2787
  %v2819 = vmul.f32 %v2818, 0.6931472
  %v2820 = vlog2.pop %v2789
  %v2821 = vmul.f32 %v2820, 0.6931472
  %v2822 = vlog2.pop %v2791
  %v2823 = vmul.f32 %v2822, 0.6931472
  %v2824 = vlog2.pop %v2793
  %v2825 = vmul.f32 %v2824, 0.6931472
  %v2826 = vadd.f32 %v2683, %v2795
  %v2827 = vadd.f32 %v2685, %v2797
  %v2828 = vadd.f32 %v2687, %v2799
  %v2829 = vadd.f32 %v2689, %v2801
  %v2830 = vadd.f32 %v2691, %v2803
  %v2831 = vadd.f32 %v2693, %v2805
  %v2832 = vadd.f32 %v2695, %v2807
  %v2833 = vadd.f32 %v2697, %v2809
  %v2834 = vadd.f32 %v2699, %v2811
  %v2835 = vadd.f32 %v2701, %v2813
  %v2836 = vadd.f32 %v2703, %v2815
  %v2837 = vadd.f32 %v2705, %v2817
  %v2838 = vadd.f32 %v2707, %v2819
  %v2839 = vadd.f32 %v2709, %v2821
  %v2840 = vadd.f32 %v2711, %v2823
  %v2841 = vadd.f32 %v2713, %v2825
  %v2842 = vsub.f32 %v2569, %v2826
  %v2843 = vsub.f32 %v2570, %v2827
  %v2844 = vsub.f32 %v2571, %v2828
  %v2845 = vsub.f32 %v2572, %v2829
  %v2846 = vsub.f32 %v2573, %v2830
  %v2847 = vsub.f32 %v2574, %v2831
  %v2848 = vsub.f32 %v2575, %v2832
  %v2849 = vsub.f32 %v2576, %v2833
  %v2850 = vsub.f32 %v2577, %v2834
  %v2851 = vsub.f32 %v2578, %v2835
  %v2852 = vsub.f32 %v2579, %v2836
  %v2853 = vsub.f32 %v2580, %v2837
  %v2854 = vsub.f32 %v2581, %v2838
  %v2855 = vsub.f32 %v2582, %v2839
  %v2856 = vsub.f32 %v2583, %v2840
  %v2857 = vsub.f32 %v2584, %v2841
  %2858 = vset.pattern.permute.xlu0 1
  %2859 = vperm.xlu0 %2858, %v51
  %v2860 = vpop.permute.xlu0 %2859
  %2861 = vset.pattern.permute.xlu0 1
  %2862 = vperm.xlu0 %2861, %v52
  %v2863 = vpop.permute.xlu0 %2862
  %2864 = vset.pattern.permute.xlu0 1
  %2865 = vperm.xlu0 %2864, %v53
  %v2866 = vpop.permute.xlu0 %2865
  %2867 = vset.pattern.permute.xlu0 1
  %2868 = vperm.xlu0 %2867, %v54
  %v2869 = vpop.permute.xlu0 %2868
  %2870 = vset.pattern.permute.xlu0 1
  %2871 = vperm.xlu0 %2870, %v55
  %v2872 = vpop.permute.xlu0 %2871
  %2873 = vset.pattern.permute.xlu0 1
  %2874 = vperm.xlu0 %2873, %v56
  %v2875 = vpop.permute.xlu0 %2874
  %2876 = vset.pattern.permute.xlu0 1
  %2877 = vperm.xlu0 %2876, %v57
  %v2878 = vpop.permute.xlu0 %2877
  %2879 = vset.pattern.permute.xlu0 1
  %2880 = vperm.xlu0 %2879, %v58
  %v2881 = vpop.permute.xlu0 %2880
  %2882 = vset.pattern.permute.xlu0 1
  %2883 = vperm.xlu0 %2882, %v59
  %v2884 = vpop.permute.xlu0 %2883
  %2885 = vset.pattern.permute.xlu0 1
  %2886 = vperm.xlu0 %2885, %v60
  %v2887 = vpop.permute.xlu0 %2886
  %2888 = vset.pattern.permute.xlu0 1
  %2889 = vperm.xlu0 %2888, %v61
  %v2890 = vpop.permute.xlu0 %2889
  %2891 = vset.pattern.permute.xlu0 1
  %2892 = vperm.xlu0 %2891, %v62
  %v2893 = vpop.permute.xlu0 %2892
  %2894 = vset.pattern.permute.xlu0 1
  %2895 = vperm.xlu0 %2894, %v63
  %v2896 = vpop.permute.xlu0 %2895
  %2897 = vset.pattern.permute.xlu0 1
  %2898 = vperm.xlu0 %2897, %v64
  %v2899 = vpop.permute.xlu0 %2898
  %2900 = vset.pattern.permute.xlu0 1
  %2901 = vperm.xlu0 %2900, %v65
  %v2902 = vpop.permute.xlu0 %2901
  %2903 = vset.pattern.permute.xlu0 1
  %2904 = vperm.xlu0 %2903, %v66
  %v2905 = vpop.permute.xlu0 %2904
  %vm2906 = vcmp.eq.s32.totalorder %v68, %v2860
  %vm2907 = vcmp.eq.s32.totalorder %v68, %v2863
  %vm2908 = vcmp.eq.s32.totalorder %v68, %v2866
  %vm2909 = vcmp.eq.s32.totalorder %v68, %v2869
  %vm2910 = vcmp.eq.s32.totalorder %v68, %v2872
  %vm2911 = vcmp.eq.s32.totalorder %v68, %v2875
  %vm2912 = vcmp.eq.s32.totalorder %v68, %v2878
  %vm2913 = vcmp.eq.s32.totalorder %v68, %v2881
  %vm2914 = vcmp.eq.s32.totalorder %v68, %v2884
  %vm2915 = vcmp.eq.s32.totalorder %v68, %v2887
  %vm2916 = vcmp.eq.s32.totalorder %v68, %v2890
  %vm2917 = vcmp.eq.s32.totalorder %v68, %v2893
  %vm2918 = vcmp.eq.s32.totalorder %v68, %v2896
  %vm2919 = vcmp.eq.s32.totalorder %v68, %v2899
  %vm2920 = vcmp.eq.s32.totalorder %v68, %v2902
  %vm2921 = vcmp.eq.s32.totalorder %v68, %v2905
  %v2922 = vsel %vm2906, %v2842, 0.0
  %v2923 = vsel %vm2907, %v2843, 0.0
  %v2924 = vsel %vm2908, %v2844, 0.0
  %v2925 = vsel %vm2909, %v2845, 0.0
  %v2926 = vsel %vm2910, %v2846, 0.0
  %v2927 = vsel %vm2911, %v2847, 0.0
  %v2928 = vsel %vm2912, %v2848, 0.0
  %v2929 = vsel %vm2913, %v2849, 0.0
  %v2930 = vsel %vm2914, %v2850, 0.0
  %v2931 = vsel %vm2915, %v2851, 0.0
  %v2932 = vsel %vm2916, %v2852, 0.0
  %v2933 = vsel %vm2917, %v2853, 0.0
  %v2934 = vsel %vm2918, %v2854, 0.0
  %v2935 = vsel %vm2919, %v2855, 0.0
  %v2936 = vsel %vm2920, %v2856, 0.0
  %v2937 = vsel %vm2921, %v2857, 0.0
  %2938 = vadd.xlane.f32.xlu0 %v2922
  %v2939 = vpop.xlane.xlu0 %2938
  %2940 = vadd.xlane.f32.xlu0 %v2923
  %v2941 = vpop.xlane.xlu0 %2940
  %2942 = vadd.xlane.f32.xlu0 %v2924
  %v2943 = vpop.xlane.xlu0 %2942
  %2944 = vadd.xlane.f32.xlu0 %v2925
  %v2945 = vpop.xlane.xlu0 %2944
  %2946 = vadd.xlane.f32.xlu0 %v2926
  %v2947 = vpop.xlane.xlu0 %2946
  %2948 = vadd.xlane.f32.xlu0 %v2927
  %v2949 = vpop.xlane.xlu0 %2948
  %2950 = vadd.xlane.f32.xlu0 %v2928
  %v2951 = vpop.xlane.xlu0 %2950
  %2952 = vadd.xlane.f32.xlu0 %v2929
  %v2953 = vpop.xlane.xlu0 %2952
  %2954 = vadd.xlane.f32.xlu0 %v2930
  %v2955 = vpop.xlane.xlu0 %2954
  %2956 = vadd.xlane.f32.xlu0 %v2931
  %v2957 = vpop.xlane.xlu0 %2956
  %2958 = vadd.xlane.f32.xlu0 %v2932
  %v2959 = vpop.xlane.xlu0 %2958
  %2960 = vadd.xlane.f32.xlu0 %v2933
  %v2961 = vpop.xlane.xlu0 %2960
  %2962 = vadd.xlane.f32.xlu0 %v2934
  %v2963 = vpop.xlane.xlu0 %2962
  %2964 = vadd.xlane.f32.xlu0 %v2935
  %v2965 = vpop.xlane.xlu0 %2964
  %2966 = vadd.xlane.f32.xlu0 %v2936
  %v2967 = vpop.xlane.xlu0 %2966
  %2968 = vadd.xlane.f32.xlu0 %v2937
  %v2969 = vpop.xlane.xlu0 %2968
  %v2970 = vsel %vm2665, %v2842, 0.0
  %v2971 = vsel %vm2665, %v2843, 0.0
  %v2972 = vsel %vm2665, %v2844, 0.0
  %v2973 = vsel %vm2665, %v2845, 0.0
  %v2974 = vsel %vm2665, %v2846, 0.0
  %v2975 = vsel %vm2665, %v2847, 0.0
  %v2976 = vsel %vm2665, %v2848, 0.0
  %v2977 = vsel %vm2665, %v2849, 0.0
  %v2978 = vsel %vm2665, %v2850, 0.0
  %v2979 = vsel %vm2665, %v2851, 0.0
  %v2980 = vsel %vm2665, %v2852, 0.0
  %v2981 = vsel %vm2665, %v2853, 0.0
  %v2982 = vsel %vm2665, %v2854, 0.0
  %v2983 = vsel %vm2665, %v2855, 0.0
  %v2984 = vsel %vm2665, %v2856, 0.0
  %v2985 = vsel %vm2665, %v2857, 0.0
  %2986 = vadd.xlane.f32.xlu0 %v2970
  %v2987 = vpop.xlane.xlu0 %2986
  %2988 = vadd.xlane.f32.xlu0 %v2971
  %v2989 = vpop.xlane.xlu0 %2988
  %2990 = vadd.xlane.f32.xlu0 %v2972
  %v2991 = vpop.xlane.xlu0 %2990
  %2992 = vadd.xlane.f32.xlu0 %v2973
  %v2993 = vpop.xlane.xlu0 %2992
  %2994 = vadd.xlane.f32.xlu0 %v2974
  %v2995 = vpop.xlane.xlu0 %2994
  %2996 = vadd.xlane.f32.xlu0 %v2975
  %v2997 = vpop.xlane.xlu0 %2996
  %2998 = vadd.xlane.f32.xlu0 %v2976
  %v2999 = vpop.xlane.xlu0 %2998
  %3000 = vadd.xlane.f32.xlu0 %v2977
  %v3001 = vpop.xlane.xlu0 %3000
  %3002 = vadd.xlane.f32.xlu0 %v2978
  %v3003 = vpop.xlane.xlu0 %3002
  %3004 = vadd.xlane.f32.xlu0 %v2979
  %v3005 = vpop.xlane.xlu0 %3004
  %3006 = vadd.xlane.f32.xlu0 %v2980
  %v3007 = vpop.xlane.xlu0 %3006
  %3008 = vadd.xlane.f32.xlu0 %v2981
  %v3009 = vpop.xlane.xlu0 %3008
  %3010 = vadd.xlane.f32.xlu0 %v2982
  %v3011 = vpop.xlane.xlu0 %3010
  %3012 = vadd.xlane.f32.xlu0 %v2983
  %v3013 = vpop.xlane.xlu0 %3012
  %3014 = vadd.xlane.f32.xlu0 %v2984
  %v3015 = vpop.xlane.xlu0 %3014
  %3016 = vadd.xlane.f32.xlu0 %v2985
  %v3017 = vpop.xlane.xlu0 %3016
  %v3018 = vmul.f32 %v2939, 0.9
  %v3019 = vmul.f32 %v2941, 0.9
  %v3020 = vmul.f32 %v2943, 0.9
  %v3021 = vmul.f32 %v2945, 0.9
  %v3022 = vmul.f32 %v2947, 0.9
  %v3023 = vmul.f32 %v2949, 0.9
  %v3024 = vmul.f32 %v2951, 0.9
  %v3025 = vmul.f32 %v2953, 0.9
  %v3026 = vmul.f32 %v2955, 0.9
  %v3027 = vmul.f32 %v2957, 0.9
  %v3028 = vmul.f32 %v2959, 0.9
  %v3029 = vmul.f32 %v2961, 0.9
  %v3030 = vmul.f32 %v2963, 0.9
  %v3031 = vmul.f32 %v2965, 0.9
  %v3032 = vmul.f32 %v2967, 0.9
  %v3033 = vmul.f32 %v2969, 0.9
  %v3034 = vmul.f32 %v2987, 0.004166667
  %v3035 = vmul.f32 %v2989, 0.004166667
  %v3036 = vmul.f32 %v2991, 0.004166667
  %v3037 = vmul.f32 %v2993, 0.004166667
  %v3038 = vmul.f32 %v2995, 0.004166667
  %v3039 = vmul.f32 %v2997, 0.004166667
  %v3040 = vmul.f32 %v2999, 0.004166667
  %v3041 = vmul.f32 %v3001, 0.004166667
  %v3042 = vmul.f32 %v3003, 0.004166667
  %v3043 = vmul.f32 %v3005, 0.004166667
  %v3044 = vmul.f32 %v3007, 0.004166667
  %v3045 = vmul.f32 %v3009, 0.004166667
  %v3046 = vmul.f32 %v3011, 0.004166667
  %v3047 = vmul.f32 %v3013, 0.004166667
  %v3048 = vmul.f32 %v3015, 0.004166667
  %v3049 = vmul.f32 %v3017, 0.004166667
  %v3050 = vadd.f32 %v3018, %v3034
  %v3051 = vadd.f32 %v3019, %v3035
  %v3052 = vadd.f32 %v3020, %v3036
  %v3053 = vadd.f32 %v3021, %v3037
  %v3054 = vadd.f32 %v3022, %v3038
  %v3055 = vadd.f32 %v3023, %v3039
  %v3056 = vadd.f32 %v3024, %v3040
  %v3057 = vadd.f32 %v3025, %v3041
  %v3058 = vadd.f32 %v3026, %v3042
  %v3059 = vadd.f32 %v3027, %v3043
  %v3060 = vadd.f32 %v3028, %v3044
  %v3061 = vadd.f32 %v3029, %v3045
  %v3062 = vadd.f32 %v3030, %v3046
  %v3063 = vadd.f32 %v3031, %v3047
  %v3064 = vadd.f32 %v3032, %v3048
  %v3065 = vadd.f32 %v3033, %v3049
  %v3066 = vsub.f32 0.0, %v3050
  %v3067 = vsub.f32 0.0, %v3051
  %v3068 = vsub.f32 0.0, %v3052
  %v3069 = vsub.f32 0.0, %v3053
  %v3070 = vsub.f32 0.0, %v3054
  %v3071 = vsub.f32 0.0, %v3055
  %v3072 = vsub.f32 0.0, %v3056
  %v3073 = vsub.f32 0.0, %v3057
  %v3074 = vsub.f32 0.0, %v3058
  %v3075 = vsub.f32 0.0, %v3059
  %v3076 = vsub.f32 0.0, %v3060
  %v3077 = vsub.f32 0.0, %v3061
  %v3078 = vsub.f32 0.0, %v3062
  %v3079 = vsub.f32 0.0, %v3063
  %v3080 = vsub.f32 0.0, %v3064
  %v3081 = vsub.f32 0.0, %v3065
  %v3082 = vmul.f32 %v3066, %v136
  %v3083 = vmul.f32 %v3067, %v137
  %v3084 = vmul.f32 %v3068, %v138
  %v3085 = vmul.f32 %v3069, %v139
  %v3086 = vmul.f32 %v3070, %v140
  %v3087 = vmul.f32 %v3071, %v141
  %v3088 = vmul.f32 %v3072, %v142
  %v3089 = vmul.f32 %v3073, %v143
  %v3090 = vmul.f32 %v3074, %v144
  %v3091 = vmul.f32 %v3075, %v145
  %v3092 = vmul.f32 %v3076, %v146
  %v3093 = vmul.f32 %v3077, %v147
  %v3094 = vmul.f32 %v3078, %v148
  %v3095 = vmul.f32 %v3079, %v149
  %v3096 = vmul.f32 %v3080, %v150
  %v3097 = vmul.f32 %v3081, %v151
  %v3098 = vsel %vm152, %v3082, 0.0
  %v3099 = vsel %vm152, %v3083, 0.0
  %v3100 = vadd.f32 %v3098, %v3099
  %v3101 = vsel %vm152, %v3084, 0.0
  %v3102 = vadd.f32 %v3100, %v3101
  %v3103 = vsel %vm152, %v3085, 0.0
  %v3104 = vadd.f32 %v3102, %v3103
  %v3105 = vsel %vm152, %v3086, 0.0
  %v3106 = vadd.f32 %v3104, %v3105
  %v3107 = vsel %vm152, %v3087, 0.0
  %v3108 = vadd.f32 %v3106, %v3107
  %v3109 = vsel %vm152, %v3088, 0.0
  %v3110 = vadd.f32 %v3108, %v3109
  %v3111 = vsel %vm152, %v3089, 0.0
  %v3112 = vadd.f32 %v3110, %v3111
  %v3113 = vsel %vm152, %v3090, 0.0
  %v3114 = vadd.f32 %v3112, %v3113
  %v3115 = vsel %vm152, %v3091, 0.0
  %v3116 = vadd.f32 %v3114, %v3115
  %v3117 = vsel %vm152, %v3092, 0.0
  %v3118 = vadd.f32 %v3116, %v3117
  %v3119 = vsel %vm152, %v3093, 0.0
  %v3120 = vadd.f32 %v3118, %v3119
  %v3121 = vsel %vm152, %v3094, 0.0
  %v3122 = vadd.f32 %v3120, %v3121
  %v3123 = vsel %vm152, %v3095, 0.0
  %v3124 = vadd.f32 %v3122, %v3123
  %v3125 = vsel %vm152, %v3096, 0.0
  %v3126 = vadd.f32 %v3124, %v3125
  %v3127 = vsel %vm152, %v3097, 0.0
  %v3128 = vadd.f32 %v3126, %v3127
  %3129 = vadd.xlane.f32.xlu0 %v3128
  %v3130 = vpop.xlane.xlu0 %3129
  %v3131 = vrot.slane %v3130, 4
  %v3132 = vadd.f32 %v3130, %v3131
  %v3133 = vrot.slane %v3132, 2
  %v3134 = vadd.f32 %v3132, %v3133
  %v3135 = vrot.slane %v3134, 1
  %v3136 = vadd.f32 %v3134, %v3135
  %s3137 = vtos %v3136
  %vm3138 = vcmp.eq.s32.totalorder %v68, 1
  %vm3139 = vmand %vm1699, %vm3138
  %v3140 = vstv %s3137
  %v3141 = vsel %vm3139, %v3140, 0.0
  %v3142 = vadd.f32 %v1704, %v3141
  %s3143 = scalar_lea.vmem %s2, 256
  %v3144 = vld [vmem:[%s3143] sm:$0xf]
  %v3145 = vld [vmem:[%s3143 + $0x4] sm:$0xf]
  %v3146 = vld [vmem:[%s3143 + $0x8] sm:$0xf]
  %v3147 = vld [vmem:[%s3143 + $0xc] sm:$0xf]
  %v3148 = vld [vmem:[%s3143 + $0x10] sm:$0xf]
  %v3149 = vld [vmem:[%s3143 + $0x14] sm:$0xf]
  %v3150 = vld [vmem:[%s3143 + $0x18] sm:$0xf]
  %v3151 = vld [vmem:[%s3143 + $0x1c] sm:$0xf]
  %v3152 = vld [vmem:[%s3143 + $0x20] sm:$0xf]
  %v3153 = vld [vmem:[%s3143 + $0x24] sm:$0xf]
  %v3154 = vld [vmem:[%s3143 + $0x28] sm:$0xf]
  %v3155 = vld [vmem:[%s3143 + $0x2c] sm:$0xf]
  %v3156 = vld [vmem:[%s3143 + $0x30] sm:$0xf]
  %v3157 = vld [vmem:[%s3143 + $0x34] sm:$0xf]
  %v3158 = vld [vmem:[%s3143 + $0x38] sm:$0xf]
  %v3159 = vld [vmem:[%s3143 + $0x3c] sm:$0xf]
  %v3160 = vld [vmem:[%s3143 + $0x40] sm:$0xf]
  %v3161 = vld [vmem:[%s3143 + $0x44] sm:$0xf]
  %v3162 = vld [vmem:[%s3143 + $0x48] sm:$0xf]
  %v3163 = vld [vmem:[%s3143 + $0x4c] sm:$0xf]
  %v3164 = vld [vmem:[%s3143 + $0x50] sm:$0xf]
  %v3165 = vld [vmem:[%s3143 + $0x54] sm:$0xf]
  %v3166 = vld [vmem:[%s3143 + $0x58] sm:$0xf]
  %v3167 = vld [vmem:[%s3143 + $0x5c] sm:$0xf]
  %v3168 = vld [vmem:[%s3143 + $0x60] sm:$0xf]
  %v3169 = vld [vmem:[%s3143 + $0x64] sm:$0xf]
  %v3170 = vld [vmem:[%s3143 + $0x68] sm:$0xf]
  %v3171 = vld [vmem:[%s3143 + $0x6c] sm:$0xf]
  %v3172 = vld [vmem:[%s3143 + $0x70] sm:$0xf]
  %v3173 = vld [vmem:[%s3143 + $0x74] sm:$0xf]
  %v3174 = vld [vmem:[%s3143 + $0x78] sm:$0xf]
  %v3175 = vld [vmem:[%s3143 + $0x7c] sm:$0xf]
  %s3176 = scalar_lea.vmem %s3, 2
  %v3177 = vld [vmem:[%s3176] sm:$0x1]
  %v3179 = vlaneseq
  %v3180 = vshrl.u32 %v3179, 7
  %v3181 = vsub.s32 0, %v3180
  %v3182 = vrot.slane %v3177, %v3181
  %v3216 = vunpack.c.l.b16 %v3144
  %v3217 = vunpack.c.l.b16 %v3145
  %v3218 = vunpack.c.l.b16 %v3146
  %v3219 = vunpack.c.l.b16 %v3147
  %v3220 = vunpack.c.l.b16 %v3148
  %v3221 = vunpack.c.l.b16 %v3149
  %v3222 = vunpack.c.l.b16 %v3150
  %v3223 = vunpack.c.l.b16 %v3151
  %v3224 = vunpack.c.l.b16 %v3152
  %v3225 = vunpack.c.l.b16 %v3153
  %v3226 = vunpack.c.l.b16 %v3154
  %v3227 = vunpack.c.l.b16 %v3155
  %v3228 = vunpack.c.l.b16 %v3156
  %v3229 = vunpack.c.l.b16 %v3157
  %v3230 = vunpack.c.l.b16 %v3158
  %v3231 = vunpack.c.l.b16 %v3159
  %v3232 = vunpack.c.l.b16 %v3160
  %v3233 = vunpack.c.l.b16 %v3161
  %v3234 = vunpack.c.l.b16 %v3162
  %v3235 = vunpack.c.l.b16 %v3163
  %v3236 = vunpack.c.l.b16 %v3164
  %v3237 = vunpack.c.l.b16 %v3165
  %v3238 = vunpack.c.l.b16 %v3166
  %v3239 = vunpack.c.l.b16 %v3167
  %v3240 = vunpack.c.l.b16 %v3168
  %v3241 = vunpack.c.l.b16 %v3169
  %v3242 = vunpack.c.l.b16 %v3170
  %v3243 = vunpack.c.l.b16 %v3171
  %v3244 = vunpack.c.l.b16 %v3172
  %v3245 = vunpack.c.l.b16 %v3173
  %v3246 = vunpack.c.l.b16 %v3174
  %v3247 = vunpack.c.l.b16 %v3175
  %v3248 = vpack.c.b16 %v3217, %v3216
  %v3249 = vpack.c.b16 %v3219, %v3218
  %v3250 = vpack.c.b16 %v3221, %v3220
  %v3251 = vpack.c.b16 %v3223, %v3222
  %v3252 = vpack.c.b16 %v3225, %v3224
  %v3253 = vpack.c.b16 %v3227, %v3226
  %v3254 = vpack.c.b16 %v3229, %v3228
  %v3255 = vpack.c.b16 %v3231, %v3230
  %v3256 = vpack.c.b16 %v3233, %v3232
  %v3257 = vpack.c.b16 %v3235, %v3234
  %v3258 = vpack.c.b16 %v3237, %v3236
  %v3259 = vpack.c.b16 %v3239, %v3238
  %v3260 = vpack.c.b16 %v3241, %v3240
  %v3261 = vpack.c.b16 %v3243, %v3242
  %v3262 = vpack.c.b16 %v3245, %v3244
  %v3263 = vpack.c.b16 %v3247, %v3246
  %3280 = vmatprep.subr.bf16.mxu0 0
  %3281 = vmatpush1.bf16.msra.mxu0 %v3255
  %3282 = vmatprep.subr.bf16.mxu0 0
  %3283 = vmatpush1.bf16.msra.mxu0 %v3254
  %3284 = vmatprep.subr.bf16.mxu0 0
  %3285 = vmatpush1.bf16.msra.mxu0 %v3253
  %3286 = vmatprep.subr.bf16.mxu0 0
  %3287 = vmatpush1.bf16.msra.mxu0 %v3252
  %3288 = vmatprep.subr.bf16.mxu0 0
  %3289 = vmatpush1.bf16.msra.mxu0 %v3251
  %3290 = vmatprep.subr.bf16.mxu0 0
  %3291 = vmatpush1.bf16.msra.mxu0 %v3250
  %3292 = vmatprep.subr.bf16.mxu0 0
  %3293 = vmatpush1.bf16.msra.mxu0 %v3249
  %3294 = vmatprep.subr.bf16.mxu0 0
  %3295 = vmatpush1.bf16.msra.mxu0 %v3248
  %3296 = vmatprep.subr.bf16.mxu0 0
  %3297 = vmatpush2.bf16.msra.mxu0 %v3263
  %3298 = vmatprep.subr.bf16.mxu0 0
  %3299 = vmatpush2.bf16.msra.mxu0 %v3262
  %3300 = vmatprep.subr.bf16.mxu0 0
  %3301 = vmatpush2.bf16.msra.mxu0 %v3261
  %3302 = vmatprep.subr.bf16.mxu0 0
  %3303 = vmatpush2.bf16.msra.mxu0 %v3260
  %3304 = vmatprep.subr.bf16.mxu0 0
  %3305 = vmatpush2.bf16.msra.mxu0 %v3259
  %3306 = vmatprep.subr.bf16.mxu0 0
  %3307 = vmatpush2.bf16.msra.mxu0 %v3258
  %3308 = vmatprep.subr.bf16.mxu0 0
  %3309 = vmatpush2.bf16.msra.mxu0 %v3257
  %3310 = vmatprep.subr.bf16.mxu0 0
  %3311 = vmatpush2.bf16.msra.mxu0 %v3256
  %3312 = vmatprep.mubr.bf16.mxu0 %v281
  %3313 = vmatmul.mubr.bf16.gmra.mxu0 %v280
  %v3314 = vpop.f32.mrf.mxu0
  %v3315 = vadd.f32 %v3182, %v3314
  %v3316 = vpop.f32.mrf.mxu0
  %v3317 = vpop.f32.mrf.mxu0
  %v3318 = vadd.f32 %v3182, %v3317
  %v3319 = vpop.f32.mrf.mxu0
  %3320 = vmatprep.mubr.bf16.mxu0 %v283
  %3321 = vmatmul.mubr.bf16.gmra.mxu0 %v282
  %v3322 = vpop.f32.mrf.mxu0
  %v3323 = vadd.f32 %v3182, %v3322
  %v3324 = vpop.f32.mrf.mxu0
  %v3325 = vpop.f32.mrf.mxu0
  %v3326 = vadd.f32 %v3182, %v3325
  %v3327 = vpop.f32.mrf.mxu0
  %3328 = vmatprep.mubr.bf16.mxu0 %v285
  %3329 = vmatmul.mubr.bf16.gmra.mxu0 %v284
  %v3330 = vpop.f32.mrf.mxu0
  %v3331 = vadd.f32 %v3182, %v3330
  %v3332 = vpop.f32.mrf.mxu0
  %v3333 = vpop.f32.mrf.mxu0
  %v3334 = vadd.f32 %v3182, %v3333
  %v3335 = vpop.f32.mrf.mxu0
  %3336 = vmatprep.mubr.bf16.mxu0 %v287
  %3337 = vmatmul.mubr.bf16.gmra.mxu0 %v286
  %v3338 = vpop.f32.mrf.mxu0
  %v3339 = vadd.f32 %v3182, %v3338
  %v3340 = vpop.f32.mrf.mxu0
  %v3341 = vpop.f32.mrf.mxu0
  %v3342 = vadd.f32 %v3182, %v3341
  %v3343 = vpop.f32.mrf.mxu0
  %3344 = vmatprep.mubr.bf16.mxu0 %v289
  %3345 = vmatmul.mubr.bf16.gmra.mxu0 %v288
  %v3346 = vpop.f32.mrf.mxu0
  %v3347 = vadd.f32 %v3182, %v3346
  %v3348 = vpop.f32.mrf.mxu0
  %v3349 = vpop.f32.mrf.mxu0
  %v3350 = vadd.f32 %v3182, %v3349
  %v3351 = vpop.f32.mrf.mxu0
  %3352 = vmatprep.mubr.bf16.mxu0 %v291
  %3353 = vmatmul.mubr.bf16.gmra.mxu0 %v290
  %v3354 = vpop.f32.mrf.mxu0
  %v3355 = vadd.f32 %v3182, %v3354
  %v3356 = vpop.f32.mrf.mxu0
  %v3357 = vpop.f32.mrf.mxu0
  %v3358 = vadd.f32 %v3182, %v3357
  %v3359 = vpop.f32.mrf.mxu0
  %3360 = vmatprep.mubr.bf16.mxu0 %v293
  %3361 = vmatmul.mubr.bf16.gmra.mxu0 %v292
  %v3362 = vpop.f32.mrf.mxu0
  %v3363 = vadd.f32 %v3182, %v3362
  %v3364 = vpop.f32.mrf.mxu0
  %v3365 = vpop.f32.mrf.mxu0
  %v3366 = vadd.f32 %v3182, %v3365
  %v3367 = vpop.f32.mrf.mxu0
  %3368 = vmatprep.mubr.bf16.mxu0 %v295
  %3369 = vmatmul.mubr.bf16.gmra.mxu0 %v294
  %v3370 = vpop.f32.mrf.mxu0
  %v3371 = vadd.f32 %v3182, %v3370
  %v3372 = vpop.f32.mrf.mxu0
  %v3373 = vpop.f32.mrf.mxu0
  %v3374 = vadd.f32 %v3182, %v3373
  %v3375 = vpop.f32.mrf.mxu0
  %3376 = vdwg.mxu0
  %vm3377 = vcmp.gt.f32.partialorder %v3315, 0.0
  %vm3378 = vcmp.gt.f32.partialorder %v3318, 0.0
  %vm3379 = vcmp.gt.f32.partialorder %v3323, 0.0
  %vm3380 = vcmp.gt.f32.partialorder %v3326, 0.0
  %vm3381 = vcmp.gt.f32.partialorder %v3331, 0.0
  %vm3382 = vcmp.gt.f32.partialorder %v3334, 0.0
  %vm3383 = vcmp.gt.f32.partialorder %v3339, 0.0
  %vm3384 = vcmp.gt.f32.partialorder %v3342, 0.0
  %vm3385 = vcmp.gt.f32.partialorder %v3347, 0.0
  %vm3386 = vcmp.gt.f32.partialorder %v3350, 0.0
  %vm3387 = vcmp.gt.f32.partialorder %v3355, 0.0
  %vm3388 = vcmp.gt.f32.partialorder %v3358, 0.0
  %vm3389 = vcmp.gt.f32.partialorder %v3363, 0.0
  %vm3390 = vcmp.gt.f32.partialorder %v3366, 0.0
  %vm3391 = vcmp.gt.f32.partialorder %v3371, 0.0
  %vm3392 = vcmp.gt.f32.partialorder %v3374, 0.0
  %v3393 = vmul.f32 %v3315, 0.01
  %v3394 = vmul.f32 %v3318, 0.01
  %v3395 = vmul.f32 %v3323, 0.01
  %v3396 = vmul.f32 %v3326, 0.01
  %v3397 = vmul.f32 %v3331, 0.01
  %v3398 = vmul.f32 %v3334, 0.01
  %v3399 = vmul.f32 %v3339, 0.01
  %v3400 = vmul.f32 %v3342, 0.01
  %v3401 = vmul.f32 %v3347, 0.01
  %v3402 = vmul.f32 %v3350, 0.01
  %v3403 = vmul.f32 %v3355, 0.01
  %v3404 = vmul.f32 %v3358, 0.01
  %v3405 = vmul.f32 %v3363, 0.01
  %v3406 = vmul.f32 %v3366, 0.01
  %v3407 = vmul.f32 %v3371, 0.01
  %v3408 = vmul.f32 %v3374, 0.01
  %v3409 = vsel %vm3377, %v3315, %v3393
  %v3410 = vsel %vm3378, %v3318, %v3394
  %v3411 = vsel %vm3379, %v3323, %v3395
  %v3412 = vsel %vm3380, %v3326, %v3396
  %v3413 = vsel %vm3381, %v3331, %v3397
  %v3414 = vsel %vm3382, %v3334, %v3398
  %v3415 = vsel %vm3383, %v3339, %v3399
  %v3416 = vsel %vm3384, %v3342, %v3400
  %v3417 = vsel %vm3385, %v3347, %v3401
  %v3418 = vsel %vm3386, %v3350, %v3402
  %v3419 = vsel %vm3387, %v3355, %v3403
  %v3420 = vsel %vm3388, %v3358, %v3404
  %v3421 = vsel %vm3389, %v3363, %v3405
  %v3422 = vsel %vm3390, %v3366, %v3406
  %v3423 = vsel %vm3391, %v3371, %v3407
  %v3424 = vsel %vm3392, %v3374, %v3408
  %v3425 = vpack.c.bf16 %v3410, %v3409
  %v3426 = vpack.c.bf16 %v3412, %v3411
  %v3427 = vpack.c.bf16 %v3414, %v3413
  %v3428 = vpack.c.bf16 %v3416, %v3415
  %v3429 = vpack.c.bf16 %v3418, %v3417
  %v3430 = vpack.c.bf16 %v3420, %v3419
  %v3431 = vpack.c.bf16 %v3422, %v3421
  %v3432 = vpack.c.bf16 %v3424, %v3423
  %s3433 = scalar_lea.vmem %s4, 128
  %v3434 = vld [vmem:[%s3433] sm:$0xf]
  %v3435 = vld [vmem:[%s3433 + $0x4] sm:$0xf]
  %v3436 = vld [vmem:[%s3433 + $0x8] sm:$0xf]
  %v3437 = vld [vmem:[%s3433 + $0xc] sm:$0xf]
  %v3438 = vld [vmem:[%s3433 + $0x10] sm:$0xf]
  %v3439 = vld [vmem:[%s3433 + $0x14] sm:$0xf]
  %v3440 = vld [vmem:[%s3433 + $0x18] sm:$0xf]
  %v3441 = vld [vmem:[%s3433 + $0x1c] sm:$0xf]
  %v3442 = vld [vmem:[%s3433 + $0x20] sm:$0xf]
  %v3443 = vld [vmem:[%s3433 + $0x24] sm:$0xf]
  %v3444 = vld [vmem:[%s3433 + $0x28] sm:$0xf]
  %v3445 = vld [vmem:[%s3433 + $0x2c] sm:$0xf]
  %v3446 = vld [vmem:[%s3433 + $0x30] sm:$0xf]
  %v3447 = vld [vmem:[%s3433 + $0x34] sm:$0xf]
  %v3448 = vld [vmem:[%s3433 + $0x38] sm:$0xf]
  %v3449 = vld [vmem:[%s3433 + $0x3c] sm:$0xf]
  %s3450 = scalar_lea.vmem %s5, 2
  %v3451 = vld [vmem:[%s3450] sm:$0x1]
  %v3453 = vlaneseq
  %v3454 = vshrl.u32 %v3453, 7
  %v3455 = vsub.s32 0, %v3454
  %v3456 = vrot.slane %v3451, %v3455
  %v3474 = vunpack.c.l.b16 %v3434
  %v3475 = vunpack.c.l.b16 %v3435
  %v3476 = vunpack.c.l.b16 %v3436
  %v3477 = vunpack.c.l.b16 %v3437
  %v3478 = vunpack.c.l.b16 %v3438
  %v3479 = vunpack.c.l.b16 %v3439
  %v3480 = vunpack.c.l.b16 %v3440
  %v3481 = vunpack.c.l.b16 %v3441
  %v3482 = vunpack.c.l.b16 %v3442
  %v3483 = vunpack.c.l.b16 %v3443
  %v3484 = vunpack.c.l.b16 %v3444
  %v3485 = vunpack.c.l.b16 %v3445
  %v3486 = vunpack.c.l.b16 %v3446
  %v3487 = vunpack.c.l.b16 %v3447
  %v3488 = vunpack.c.l.b16 %v3448
  %v3489 = vunpack.c.l.b16 %v3449
  %v3490 = vpack.c.b16 %v3475, %v3474
  %v3491 = vpack.c.b16 %v3477, %v3476
  %v3492 = vpack.c.b16 %v3479, %v3478
  %v3493 = vpack.c.b16 %v3481, %v3480
  %v3494 = vpack.c.b16 %v3483, %v3482
  %v3495 = vpack.c.b16 %v3485, %v3484
  %v3496 = vpack.c.b16 %v3487, %v3486
  %v3497 = vpack.c.b16 %v3489, %v3488
  %3506 = vmatprep.subr.bf16.mxu0 0
  %3507 = vmatpush1.bf16.msra.mxu0 %v3497
  %3508 = vmatprep.subr.bf16.mxu0 0
  %3509 = vmatpush1.bf16.msra.mxu0 %v3496
  %3510 = vmatprep.subr.bf16.mxu0 0
  %3511 = vmatpush1.bf16.msra.mxu0 %v3495
  %3512 = vmatprep.subr.bf16.mxu0 0
  %3513 = vmatpush1.bf16.msra.mxu0 %v3494
  %3514 = vmatprep.subr.bf16.mxu0 0
  %3515 = vmatpush1.bf16.msra.mxu0 %v3493
  %3516 = vmatprep.subr.bf16.mxu0 0
  %3517 = vmatpush1.bf16.msra.mxu0 %v3492
  %3518 = vmatprep.subr.bf16.mxu0 0
  %3519 = vmatpush1.bf16.msra.mxu0 %v3491
  %3520 = vmatprep.subr.bf16.mxu0 0
  %3521 = vmatpush1.bf16.msra.mxu0 %v3490
  %3522 = vmatprep.subr.bf16.mxu0 0
  %3523 = vmatpush2.bf16.msra.mxu0 0
  %3524 = vmatprep.subr.bf16.mxu0 0
  %3525 = vmatpush2.bf16.msra.mxu0 0
  %3526 = vmatprep.subr.bf16.mxu0 0
  %3527 = vmatpush2.bf16.msra.mxu0 0
  %3528 = vmatprep.subr.bf16.mxu0 0
  %3529 = vmatpush2.bf16.msra.mxu0 0
  %3530 = vmatprep.subr.bf16.mxu0 0
  %3531 = vmatpush2.bf16.msra.mxu0 0
  %3532 = vmatprep.subr.bf16.mxu0 0
  %3533 = vmatpush2.bf16.msra.mxu0 0
  %3534 = vmatprep.subr.bf16.mxu0 0
  %3535 = vmatpush2.bf16.msra.mxu0 0
  %3536 = vmatprep.subr.bf16.mxu0 0
  %3537 = vmatpush2.bf16.msra.mxu0 0
  %3538 = vmatprep.mubr.bf16.mxu0 0
  %3539 = vmatmul.mubr.bf16.gmra.mxu0 %v3425
  %v3540 = vpop.f32.mrf.mxu0
  %v3541 = vadd.f32 %v3456, %v3540
  %v3542 = vpop.f32.mrf.mxu0
  %v3543 = vpop.f32.mrf.mxu0
  %v3544 = vadd.f32 %v3456, %v3543
  %v3545 = vpop.f32.mrf.mxu0
  %3546 = vmatprep.mubr.bf16.mxu0 0
  %3547 = vmatmul.mubr.bf16.gmra.mxu0 %v3426
  %v3548 = vpop.f32.mrf.mxu0
  %v3549 = vadd.f32 %v3456, %v3548
  %v3550 = vpop.f32.mrf.mxu0
  %v3551 = vpop.f32.mrf.mxu0
  %v3552 = vadd.f32 %v3456, %v3551
  %v3553 = vpop.f32.mrf.mxu0
  %3554 = vmatprep.mubr.bf16.mxu0 0
  %3555 = vmatmul.mubr.bf16.gmra.mxu0 %v3427
  %v3556 = vpop.f32.mrf.mxu0
  %v3557 = vadd.f32 %v3456, %v3556
  %v3558 = vpop.f32.mrf.mxu0
  %v3559 = vpop.f32.mrf.mxu0
  %v3560 = vadd.f32 %v3456, %v3559
  %v3561 = vpop.f32.mrf.mxu0
  %3562 = vmatprep.mubr.bf16.mxu0 0
  %3563 = vmatmul.mubr.bf16.gmra.mxu0 %v3428
  %v3564 = vpop.f32.mrf.mxu0
  %v3565 = vadd.f32 %v3456, %v3564
  %v3566 = vpop.f32.mrf.mxu0
  %v3567 = vpop.f32.mrf.mxu0
  %v3568 = vadd.f32 %v3456, %v3567
  %v3569 = vpop.f32.mrf.mxu0
  %3570 = vmatprep.mubr.bf16.mxu0 0
  %3571 = vmatmul.mubr.bf16.gmra.mxu0 %v3429
  %v3572 = vpop.f32.mrf.mxu0
  %v3573 = vadd.f32 %v3456, %v3572
  %v3574 = vpop.f32.mrf.mxu0
  %v3575 = vpop.f32.mrf.mxu0
  %v3576 = vadd.f32 %v3456, %v3575
  %v3577 = vpop.f32.mrf.mxu0
  %3578 = vmatprep.mubr.bf16.mxu0 0
  %3579 = vmatmul.mubr.bf16.gmra.mxu0 %v3430
  %v3580 = vpop.f32.mrf.mxu0
  %v3581 = vadd.f32 %v3456, %v3580
  %v3582 = vpop.f32.mrf.mxu0
  %v3583 = vpop.f32.mrf.mxu0
  %v3584 = vadd.f32 %v3456, %v3583
  %v3585 = vpop.f32.mrf.mxu0
  %3586 = vmatprep.mubr.bf16.mxu0 0
  %3587 = vmatmul.mubr.bf16.gmra.mxu0 %v3431
  %v3588 = vpop.f32.mrf.mxu0
  %v3589 = vadd.f32 %v3456, %v3588
  %v3590 = vpop.f32.mrf.mxu0
  %v3591 = vpop.f32.mrf.mxu0
  %v3592 = vadd.f32 %v3456, %v3591
  %v3593 = vpop.f32.mrf.mxu0
  %3594 = vmatprep.mubr.bf16.mxu0 0
  %3595 = vmatmul.mubr.bf16.gmra.mxu0 %v3432
  %v3596 = vpop.f32.mrf.mxu0
  %v3597 = vadd.f32 %v3456, %v3596
  %v3598 = vpop.f32.mrf.mxu0
  %v3599 = vpop.f32.mrf.mxu0
  %v3600 = vadd.f32 %v3456, %v3599
  %v3601 = vpop.f32.mrf.mxu0
  %3602 = vdwg.mxu0
  %v3603 = vpack.c.bf16 %v3544, %v3541
  %v3604 = vpack.c.bf16 %v3552, %v3549
  %v3605 = vpack.c.bf16 %v3560, %v3557
  %v3606 = vpack.c.bf16 %v3568, %v3565
  %v3607 = vpack.c.bf16 %v3576, %v3573
  %v3608 = vpack.c.bf16 %v3584, %v3581
  %v3609 = vpack.c.bf16 %v3592, %v3589
  %v3610 = vpack.c.bf16 %v3600, %v3597
  %s3611 = scalar_lea.vmem %s6, 128
  %v3612 = vld [vmem:[%s3611] sm:$0xf]
  %v3613 = vld [vmem:[%s3611 + $0x4] sm:$0xf]
  %v3614 = vld [vmem:[%s3611 + $0x8] sm:$0xf]
  %v3615 = vld [vmem:[%s3611 + $0xc] sm:$0xf]
  %v3616 = vld [vmem:[%s3611 + $0x10] sm:$0xf]
  %v3617 = vld [vmem:[%s3611 + $0x14] sm:$0xf]
  %v3618 = vld [vmem:[%s3611 + $0x18] sm:$0xf]
  %v3619 = vld [vmem:[%s3611 + $0x1c] sm:$0xf]
  %v3620 = vld [vmem:[%s3611 + $0x20] sm:$0xf]
  %v3621 = vld [vmem:[%s3611 + $0x24] sm:$0xf]
  %v3622 = vld [vmem:[%s3611 + $0x28] sm:$0xf]
  %v3623 = vld [vmem:[%s3611 + $0x2c] sm:$0xf]
  %v3624 = vld [vmem:[%s3611 + $0x30] sm:$0xf]
  %v3625 = vld [vmem:[%s3611 + $0x34] sm:$0xf]
  %v3626 = vld [vmem:[%s3611 + $0x38] sm:$0xf]
  %v3627 = vld [vmem:[%s3611 + $0x3c] sm:$0xf]
  %s3628 = scalar_lea.vmem %s7, 256
  %v3629 = vld [vmem:[%s3628] sm:$0xf]
  %v3630 = vld [vmem:[%s3628 + $0x4] sm:$0xf]
  %v3631 = vld [vmem:[%s3628 + $0x8] sm:$0xf]
  %v3632 = vld [vmem:[%s3628 + $0xc] sm:$0xf]
  %v3633 = vld [vmem:[%s3628 + $0x10] sm:$0xf]
  %v3634 = vld [vmem:[%s3628 + $0x14] sm:$0xf]
  %v3635 = vld [vmem:[%s3628 + $0x18] sm:$0xf]
  %v3636 = vld [vmem:[%s3628 + $0x1c] sm:$0xf]
  %v3637 = vld [vmem:[%s3628 + $0x20] sm:$0xf]
  %v3638 = vld [vmem:[%s3628 + $0x24] sm:$0xf]
  %v3639 = vld [vmem:[%s3628 + $0x28] sm:$0xf]
  %v3640 = vld [vmem:[%s3628 + $0x2c] sm:$0xf]
  %v3641 = vld [vmem:[%s3628 + $0x30] sm:$0xf]
  %v3642 = vld [vmem:[%s3628 + $0x34] sm:$0xf]
  %v3643 = vld [vmem:[%s3628 + $0x38] sm:$0xf]
  %v3644 = vld [vmem:[%s3628 + $0x3c] sm:$0xf]
  %v3645 = vld [vmem:[%s3628 + $0x40] sm:$0xf]
  %v3646 = vld [vmem:[%s3628 + $0x44] sm:$0xf]
  %v3647 = vld [vmem:[%s3628 + $0x48] sm:$0xf]
  %v3648 = vld [vmem:[%s3628 + $0x4c] sm:$0xf]
  %v3649 = vld [vmem:[%s3628 + $0x50] sm:$0xf]
  %v3650 = vld [vmem:[%s3628 + $0x54] sm:$0xf]
  %v3651 = vld [vmem:[%s3628 + $0x58] sm:$0xf]
  %v3652 = vld [vmem:[%s3628 + $0x5c] sm:$0xf]
  %v3653 = vld [vmem:[%s3628 + $0x60] sm:$0xf]
  %v3654 = vld [vmem:[%s3628 + $0x64] sm:$0xf]
  %v3655 = vld [vmem:[%s3628 + $0x68] sm:$0xf]
  %v3656 = vld [vmem:[%s3628 + $0x6c] sm:$0xf]
  %v3657 = vld [vmem:[%s3628 + $0x70] sm:$0xf]
  %v3658 = vld [vmem:[%s3628 + $0x74] sm:$0xf]
  %v3659 = vld [vmem:[%s3628 + $0x78] sm:$0xf]
  %v3660 = vld [vmem:[%s3628 + $0x7c] sm:$0xf]
  %v3693 = vunpack.c.l.b16 %v3629
  %v3694 = vunpack.c.l.b16 %v3630
  %v3695 = vunpack.c.l.b16 %v3631
  %v3696 = vunpack.c.l.b16 %v3632
  %v3697 = vunpack.c.l.b16 %v3633
  %v3698 = vunpack.c.l.b16 %v3634
  %v3699 = vunpack.c.l.b16 %v3635
  %v3700 = vunpack.c.l.b16 %v3636
  %v3701 = vunpack.c.l.b16 %v3637
  %v3702 = vunpack.c.l.b16 %v3638
  %v3703 = vunpack.c.l.b16 %v3639
  %v3704 = vunpack.c.l.b16 %v3640
  %v3705 = vunpack.c.l.b16 %v3641
  %v3706 = vunpack.c.l.b16 %v3642
  %v3707 = vunpack.c.l.b16 %v3643
  %v3708 = vunpack.c.l.b16 %v3644
  %v3709 = vunpack.c.l.b16 %v3645
  %v3710 = vunpack.c.l.b16 %v3646
  %v3711 = vunpack.c.l.b16 %v3647
  %v3712 = vunpack.c.l.b16 %v3648
  %v3713 = vunpack.c.l.b16 %v3649
  %v3714 = vunpack.c.l.b16 %v3650
  %v3715 = vunpack.c.l.b16 %v3651
  %v3716 = vunpack.c.l.b16 %v3652
  %v3717 = vunpack.c.l.b16 %v3653
  %v3718 = vunpack.c.l.b16 %v3654
  %v3719 = vunpack.c.l.b16 %v3655
  %v3720 = vunpack.c.l.b16 %v3656
  %v3721 = vunpack.c.l.b16 %v3657
  %v3722 = vunpack.c.l.b16 %v3658
  %v3723 = vunpack.c.l.b16 %v3659
  %v3724 = vunpack.c.l.b16 %v3660
  %v3725 = vpack.c.b16 %v3694, %v3693
  %v3726 = vpack.c.b16 %v3696, %v3695
  %v3727 = vpack.c.b16 %v3698, %v3697
  %v3728 = vpack.c.b16 %v3700, %v3699
  %v3729 = vpack.c.b16 %v3702, %v3701
  %v3730 = vpack.c.b16 %v3704, %v3703
  %v3731 = vpack.c.b16 %v3706, %v3705
  %v3732 = vpack.c.b16 %v3708, %v3707
  %v3733 = vpack.c.b16 %v3710, %v3709
  %v3734 = vpack.c.b16 %v3712, %v3711
  %v3735 = vpack.c.b16 %v3714, %v3713
  %v3736 = vpack.c.b16 %v3716, %v3715
  %v3737 = vpack.c.b16 %v3718, %v3717
  %v3738 = vpack.c.b16 %v3720, %v3719
  %v3739 = vpack.c.b16 %v3722, %v3721
  %v3740 = vpack.c.b16 %v3724, %v3723
  %3757 = vmatprep.subr.bf16.mxu0 0
  %3758 = vmatpush1.bf16.msra.mxu0 %v3732
  %3759 = vmatprep.subr.bf16.mxu0 0
  %3760 = vmatpush1.bf16.msra.mxu0 %v3731
  %3761 = vmatprep.subr.bf16.mxu0 0
  %3762 = vmatpush1.bf16.msra.mxu0 %v3730
  %3763 = vmatprep.subr.bf16.mxu0 0
  %3764 = vmatpush1.bf16.msra.mxu0 %v3729
  %3765 = vmatprep.subr.bf16.mxu0 0
  %3766 = vmatpush1.bf16.msra.mxu0 %v3728
  %3767 = vmatprep.subr.bf16.mxu0 0
  %3768 = vmatpush1.bf16.msra.mxu0 %v3727
  %3769 = vmatprep.subr.bf16.mxu0 0
  %3770 = vmatpush1.bf16.msra.mxu0 %v3726
  %3771 = vmatprep.subr.bf16.mxu0 0
  %3772 = vmatpush1.bf16.msra.mxu0 %v3725
  %3773 = vmatprep.subr.bf16.mxu0 0
  %3774 = vmatpush2.bf16.msra.mxu0 %v3740
  %3775 = vmatprep.subr.bf16.mxu0 0
  %3776 = vmatpush2.bf16.msra.mxu0 %v3739
  %3777 = vmatprep.subr.bf16.mxu0 0
  %3778 = vmatpush2.bf16.msra.mxu0 %v3738
  %3779 = vmatprep.subr.bf16.mxu0 0
  %3780 = vmatpush2.bf16.msra.mxu0 %v3737
  %3781 = vmatprep.subr.bf16.mxu0 0
  %3782 = vmatpush2.bf16.msra.mxu0 %v3736
  %3783 = vmatprep.subr.bf16.mxu0 0
  %3784 = vmatpush2.bf16.msra.mxu0 %v3735
  %3785 = vmatprep.subr.bf16.mxu0 0
  %3786 = vmatpush2.bf16.msra.mxu0 %v3734
  %3787 = vmatprep.subr.bf16.mxu0 0
  %3788 = vmatpush2.bf16.msra.mxu0 %v3733
  %3789 = vmatprep.mubr.bf16.mxu0 %v281
  %3790 = vmatmul.mubr.bf16.gmra.mxu0 %v280
  %v3791 = vpop.f32.mrf.mxu0
  %v3792 = vadd.f32 0.0, %v3791
  %v3793 = vpop.f32.mrf.mxu0
  %v3794 = vpop.f32.mrf.mxu0
  %v3795 = vadd.f32 0.0, %v3794
  %v3796 = vpop.f32.mrf.mxu0
  %3797 = vmatprep.mubr.bf16.mxu0 %v283
  %3798 = vmatmul.mubr.bf16.gmra.mxu0 %v282
  %v3799 = vpop.f32.mrf.mxu0
  %v3800 = vadd.f32 0.0, %v3799
  %v3801 = vpop.f32.mrf.mxu0
  %v3802 = vpop.f32.mrf.mxu0
  %v3803 = vadd.f32 0.0, %v3802
  %v3804 = vpop.f32.mrf.mxu0
  %3805 = vmatprep.mubr.bf16.mxu0 %v285
  %3806 = vmatmul.mubr.bf16.gmra.mxu0 %v284
  %v3807 = vpop.f32.mrf.mxu0
  %v3808 = vadd.f32 0.0, %v3807
  %v3809 = vpop.f32.mrf.mxu0
  %v3810 = vpop.f32.mrf.mxu0
  %v3811 = vadd.f32 0.0, %v3810
  %v3812 = vpop.f32.mrf.mxu0
  %3813 = vmatprep.mubr.bf16.mxu0 %v287
  %3814 = vmatmul.mubr.bf16.gmra.mxu0 %v286
  %v3815 = vpop.f32.mrf.mxu0
  %v3816 = vadd.f32 0.0, %v3815
  %v3817 = vpop.f32.mrf.mxu0
  %v3818 = vpop.f32.mrf.mxu0
  %v3819 = vadd.f32 0.0, %v3818
  %v3820 = vpop.f32.mrf.mxu0
  %3821 = vmatprep.mubr.bf16.mxu0 %v289
  %3822 = vmatmul.mubr.bf16.gmra.mxu0 %v288
  %v3823 = vpop.f32.mrf.mxu0
  %v3824 = vadd.f32 0.0, %v3823
  %v3825 = vpop.f32.mrf.mxu0
  %v3826 = vpop.f32.mrf.mxu0
  %v3827 = vadd.f32 0.0, %v3826
  %v3828 = vpop.f32.mrf.mxu0
  %3829 = vmatprep.mubr.bf16.mxu0 %v291
  %3830 = vmatmul.mubr.bf16.gmra.mxu0 %v290
  %v3831 = vpop.f32.mrf.mxu0
  %v3832 = vadd.f32 0.0, %v3831
  %v3833 = vpop.f32.mrf.mxu0
  %v3834 = vpop.f32.mrf.mxu0
  %v3835 = vadd.f32 0.0, %v3834
  %v3836 = vpop.f32.mrf.mxu0
  %3837 = vmatprep.mubr.bf16.mxu0 %v293
  %3838 = vmatmul.mubr.bf16.gmra.mxu0 %v292
  %v3839 = vpop.f32.mrf.mxu0
  %v3840 = vadd.f32 0.0, %v3839
  %v3841 = vpop.f32.mrf.mxu0
  %v3842 = vpop.f32.mrf.mxu0
  %v3843 = vadd.f32 0.0, %v3842
  %v3844 = vpop.f32.mrf.mxu0
  %3845 = vmatprep.mubr.bf16.mxu0 %v295
  %3846 = vmatmul.mubr.bf16.gmra.mxu0 %v294
  %v3847 = vpop.f32.mrf.mxu0
  %v3848 = vadd.f32 0.0, %v3847
  %v3849 = vpop.f32.mrf.mxu0
  %v3850 = vpop.f32.mrf.mxu0
  %v3851 = vadd.f32 0.0, %v3850
  %v3852 = vpop.f32.mrf.mxu0
  %3853 = vdwg.mxu0
  %v3870 = vunpack.c.l.b16 %v3612
  %v3871 = vunpack.c.l.b16 %v3613
  %v3872 = vunpack.c.l.b16 %v3614
  %v3873 = vunpack.c.l.b16 %v3615
  %v3874 = vunpack.c.l.b16 %v3616
  %v3875 = vunpack.c.l.b16 %v3617
  %v3876 = vunpack.c.l.b16 %v3618
  %v3877 = vunpack.c.l.b16 %v3619
  %v3878 = vunpack.c.l.b16 %v3620
  %v3879 = vunpack.c.l.b16 %v3621
  %v3880 = vunpack.c.l.b16 %v3622
  %v3881 = vunpack.c.l.b16 %v3623
  %v3882 = vunpack.c.l.b16 %v3624
  %v3883 = vunpack.c.l.b16 %v3625
  %v3884 = vunpack.c.l.b16 %v3626
  %v3885 = vunpack.c.l.b16 %v3627
  %v3886 = vpack.c.b16 %v3871, %v3870
  %v3887 = vpack.c.b16 %v3873, %v3872
  %v3888 = vpack.c.b16 %v3875, %v3874
  %v3889 = vpack.c.b16 %v3877, %v3876
  %v3890 = vpack.c.b16 %v3879, %v3878
  %v3891 = vpack.c.b16 %v3881, %v3880
  %v3892 = vpack.c.b16 %v3883, %v3882
  %v3893 = vpack.c.b16 %v3885, %v3884
  %3902 = vmatprep.subr.bf16.mxu0 0
  %3903 = vmatpush1.bf16.msra.mxu0 %v3893
  %3904 = vmatprep.subr.bf16.mxu0 0
  %3905 = vmatpush1.bf16.msra.mxu0 %v3892
  %3906 = vmatprep.subr.bf16.mxu0 0
  %3907 = vmatpush1.bf16.msra.mxu0 %v3891
  %3908 = vmatprep.subr.bf16.mxu0 0
  %3909 = vmatpush1.bf16.msra.mxu0 %v3890
  %3910 = vmatprep.subr.bf16.mxu0 0
  %3911 = vmatpush1.bf16.msra.mxu0 %v3889
  %3912 = vmatprep.subr.bf16.mxu0 0
  %3913 = vmatpush1.bf16.msra.mxu0 %v3888
  %3914 = vmatprep.subr.bf16.mxu0 0
  %3915 = vmatpush1.bf16.msra.mxu0 %v3887
  %3916 = vmatprep.subr.bf16.mxu0 0
  %3917 = vmatpush1.bf16.msra.mxu0 %v3886
  %3918 = vmatprep.subr.bf16.mxu0 0
  %3919 = vmatpush2.bf16.msra.mxu0 0
  %3920 = vmatprep.subr.bf16.mxu0 0
  %3921 = vmatpush2.bf16.msra.mxu0 0
  %3922 = vmatprep.subr.bf16.mxu0 0
  %3923 = vmatpush2.bf16.msra.mxu0 0
  %3924 = vmatprep.subr.bf16.mxu0 0
  %3925 = vmatpush2.bf16.msra.mxu0 0
  %3926 = vmatprep.subr.bf16.mxu0 0
  %3927 = vmatpush2.bf16.msra.mxu0 0
  %3928 = vmatprep.subr.bf16.mxu0 0
  %3929 = vmatpush2.bf16.msra.mxu0 0
  %3930 = vmatprep.subr.bf16.mxu0 0
  %3931 = vmatpush2.bf16.msra.mxu0 0
  %3932 = vmatprep.subr.bf16.mxu0 0
  %3933 = vmatpush2.bf16.msra.mxu0 0
  %3934 = vmatprep.mubr.bf16.mxu0 0
  %3935 = vmatmul.mubr.bf16.gmra.mxu0 %v3603
  %v3936 = vpop.f32.mrf.mxu0
  %v3937 = vadd.f32 %v3792, %v3936
  %v3938 = vpop.f32.mrf.mxu0
  %v3939 = vpop.f32.mrf.mxu0
  %v3940 = vadd.f32 %v3795, %v3939
  %v3941 = vpop.f32.mrf.mxu0
  %3942 = vmatprep.mubr.bf16.mxu0 0
  %3943 = vmatmul.mubr.bf16.gmra.mxu0 %v3604
  %v3944 = vpop.f32.mrf.mxu0
  %v3945 = vadd.f32 %v3800, %v3944
  %v3946 = vpop.f32.mrf.mxu0
  %v3947 = vpop.f32.mrf.mxu0
  %v3948 = vadd.f32 %v3803, %v3947
  %v3949 = vpop.f32.mrf.mxu0
  %3950 = vmatprep.mubr.bf16.mxu0 0
  %3951 = vmatmul.mubr.bf16.gmra.mxu0 %v3605
  %v3952 = vpop.f32.mrf.mxu0
  %v3953 = vadd.f32 %v3808, %v3952
  %v3954 = vpop.f32.mrf.mxu0
  %v3955 = vpop.f32.mrf.mxu0
  %v3956 = vadd.f32 %v3811, %v3955
  %v3957 = vpop.f32.mrf.mxu0
  %3958 = vmatprep.mubr.bf16.mxu0 0
  %3959 = vmatmul.mubr.bf16.gmra.mxu0 %v3606
  %v3960 = vpop.f32.mrf.mxu0
  %v3961 = vadd.f32 %v3816, %v3960
  %v3962 = vpop.f32.mrf.mxu0
  %v3963 = vpop.f32.mrf.mxu0
  %v3964 = vadd.f32 %v3819, %v3963
  %v3965 = vpop.f32.mrf.mxu0
  %3966 = vmatprep.mubr.bf16.mxu0 0
  %3967 = vmatmul.mubr.bf16.gmra.mxu0 %v3607
  %v3968 = vpop.f32.mrf.mxu0
  %v3969 = vadd.f32 %v3824, %v3968
  %v3970 = vpop.f32.mrf.mxu0
  %v3971 = vpop.f32.mrf.mxu0
  %v3972 = vadd.f32 %v3827, %v3971
  %v3973 = vpop.f32.mrf.mxu0
  %3974 = vmatprep.mubr.bf16.mxu0 0
  %3975 = vmatmul.mubr.bf16.gmra.mxu0 %v3608
  %v3976 = vpop.f32.mrf.mxu0
  %v3977 = vadd.f32 %v3832, %v3976
  %v3978 = vpop.f32.mrf.mxu0
  %v3979 = vpop.f32.mrf.mxu0
  %v3980 = vadd.f32 %v3835, %v3979
  %v3981 = vpop.f32.mrf.mxu0
  %3982 = vmatprep.mubr.bf16.mxu0 0
  %3983 = vmatmul.mubr.bf16.gmra.mxu0 %v3609
  %v3984 = vpop.f32.mrf.mxu0
  %v3985 = vadd.f32 %v3840, %v3984
  %v3986 = vpop.f32.mrf.mxu0
  %v3987 = vpop.f32.mrf.mxu0
  %v3988 = vadd.f32 %v3843, %v3987
  %v3989 = vpop.f32.mrf.mxu0
  %3990 = vmatprep.mubr.bf16.mxu0 0
  %3991 = vmatmul.mubr.bf16.gmra.mxu0 %v3610
  %v3992 = vpop.f32.mrf.mxu0
  %v3993 = vadd.f32 %v3848, %v3992
  %v3994 = vpop.f32.mrf.mxu0
  %v3995 = vpop.f32.mrf.mxu0
  %v3996 = vadd.f32 %v3851, %v3995
  %v3997 = vpop.f32.mrf.mxu0
  %3998 = vdwg.mxu0
  %s3999 = scalar_lea.vmem %s8, 2
  %v4000 = vld [vmem:[%s3999] sm:$0x1]
  %v4002 = vlaneseq
  %v4003 = vshrl.u32 %v4002, 7
  %v4004 = vsub.s32 0, %v4003
  %v4005 = vrot.slane %v4000, %v4004
  %v4007 = vadd.f32 %v3937, %v4005
  %v4008 = vadd.f32 %v3940, %v4005
  %v4009 = vadd.f32 %v3945, %v4005
  %v4010 = vadd.f32 %v3948, %v4005
  %v4011 = vadd.f32 %v3953, %v4005
  %v4012 = vadd.f32 %v3956, %v4005
  %v4013 = vadd.f32 %v3961, %v4005
  %v4014 = vadd.f32 %v3964, %v4005
  %v4015 = vadd.f32 %v3969, %v4005
  %v4016 = vadd.f32 %v3972, %v4005
  %v4017 = vadd.f32 %v3977, %v4005
  %v4018 = vadd.f32 %v3980, %v4005
  %v4019 = vadd.f32 %v3985, %v4005
  %v4020 = vadd.f32 %v3988, %v4005
  %v4021 = vadd.f32 %v3993, %v4005
  %v4022 = vadd.f32 %v3996, %v4005
  %v4023 = vpack.c.bf16 %v4008, %v4007
  %v4024 = vpack.c.bf16 %v4010, %v4009
  %v4025 = vpack.c.bf16 %v4012, %v4011
  %v4026 = vpack.c.bf16 %v4014, %v4013
  %v4027 = vpack.c.bf16 %v4016, %v4015
  %v4028 = vpack.c.bf16 %v4018, %v4017
  %v4029 = vpack.c.bf16 %v4020, %v4019
  %v4030 = vpack.c.bf16 %v4022, %v4021
  %v4039 = vunpack.c.l.b16 %v4023
  %v4040 = vunpack.c.h.b16 %v4023
  %v4041 = vunpack.c.l.b16 %v4024
  %v4042 = vunpack.c.h.b16 %v4024
  %v4043 = vunpack.c.l.b16 %v4025
  %v4044 = vunpack.c.h.b16 %v4025
  %v4045 = vunpack.c.l.b16 %v4026
  %v4046 = vunpack.c.h.b16 %v4026
  %v4047 = vunpack.c.l.b16 %v4027
  %v4048 = vunpack.c.h.b16 %v4027
  %v4049 = vunpack.c.l.b16 %v4028
  %v4050 = vunpack.c.h.b16 %v4028
  %v4051 = vunpack.c.l.b16 %v4029
  %v4052 = vunpack.c.h.b16 %v4029
  %v4053 = vunpack.c.l.b16 %v4030
  %v4054 = vunpack.c.h.b16 %v4030
  %v4055 = vpack.c.b16 %v4039, %v4039
  %v4056 = vpack.c.b16 %v4040, %v4040
  %v4057 = vpack.c.b16 %v4041, %v4041
  %v4058 = vpack.c.b16 %v4042, %v4042
  %v4059 = vpack.c.b16 %v4043, %v4043
  %v4060 = vpack.c.b16 %v4044, %v4044
  %v4061 = vpack.c.b16 %v4045, %v4045
  %v4062 = vpack.c.b16 %v4046, %v4046
  %v4063 = vpack.c.b16 %v4047, %v4047
  %v4064 = vpack.c.b16 %v4048, %v4048
  %v4065 = vpack.c.b16 %v4049, %v4049
  %v4066 = vpack.c.b16 %v4050, %v4050
  %v4067 = vpack.c.b16 %v4051, %v4051
  %v4068 = vpack.c.b16 %v4052, %v4052
  %v4069 = vpack.c.b16 %v4053, %v4053
  %v4070 = vpack.c.b16 %v4054, %v4054
  %4087 = vst [vmem:[%s9 + $0x8] sm:$0xf] %v4055
  %4088 = vst [vmem:[%s9 + $0x14] sm:$0xf] %v4056
  %4089 = vst [vmem:[%s9 + $0x20] sm:$0xf] %v4057
  %4090 = vst [vmem:[%s9 + $0x2c] sm:$0xf] %v4058
  %4091 = vst [vmem:[%s9 + $0x38] sm:$0xf] %v4059
  %4092 = vst [vmem:[%s9 + $0x44] sm:$0xf] %v4060
  %4093 = vst [vmem:[%s9 + $0x50] sm:$0xf] %v4061
  %4094 = vst [vmem:[%s9 + $0x5c] sm:$0xf] %v4062
  %4095 = vst [vmem:[%s9 + $0x68] sm:$0xf] %v4063
  %4096 = vst [vmem:[%s9 + $0x74] sm:$0xf] %v4064
  %4097 = vst [vmem:[%s9 + $0x80] sm:$0xf] %v4065
  %4098 = vst [vmem:[%s9 + $0x8c] sm:$0xf] %v4066
  %4099 = vst [vmem:[%s9 + $0x98] sm:$0xf] %v4067
  %4100 = vst [vmem:[%s9 + $0xa4] sm:$0xf] %v4068
  %4101 = vst [vmem:[%s9 + $0xb0] sm:$0xf] %v4069
  %4102 = vst [vmem:[%s9 + $0xbc] sm:$0xf] %v4070
  %vm4103 = vcmp.lt.s32.totalorder %v68, 32
  %v4104 = vsel %vm4103, %v4007, -1e+30
  %v4105 = vsel %vm4103, %v4008, -1e+30
  %v4106 = vsel %vm4103, %v4009, -1e+30
  %v4107 = vsel %vm4103, %v4010, -1e+30
  %v4108 = vsel %vm4103, %v4011, -1e+30
  %v4109 = vsel %vm4103, %v4012, -1e+30
  %v4110 = vsel %vm4103, %v4013, -1e+30
  %v4111 = vsel %vm4103, %v4014, -1e+30
  %v4112 = vsel %vm4103, %v4015, -1e+30
  %v4113 = vsel %vm4103, %v4016, -1e+30
  %v4114 = vsel %vm4103, %v4017, -1e+30
  %v4115 = vsel %vm4103, %v4018, -1e+30
  %v4116 = vsel %vm4103, %v4019, -1e+30
  %v4117 = vsel %vm4103, %v4020, -1e+30
  %v4118 = vsel %vm4103, %v4021, -1e+30
  %v4119 = vsel %vm4103, %v4022, -1e+30
  %4120 = vmax.xlane.f32.xlu0 %v4104
  %v4121 = vpop.xlane.xlu0 %4120
  %4122 = vmax.xlane.f32.xlu0 %v4105
  %v4123 = vpop.xlane.xlu0 %4122
  %4124 = vmax.xlane.f32.xlu0 %v4106
  %v4125 = vpop.xlane.xlu0 %4124
  %4126 = vmax.xlane.f32.xlu0 %v4107
  %v4127 = vpop.xlane.xlu0 %4126
  %4128 = vmax.xlane.f32.xlu0 %v4108
  %v4129 = vpop.xlane.xlu0 %4128
  %4130 = vmax.xlane.f32.xlu0 %v4109
  %v4131 = vpop.xlane.xlu0 %4130
  %4132 = vmax.xlane.f32.xlu0 %v4110
  %v4133 = vpop.xlane.xlu0 %4132
  %4134 = vmax.xlane.f32.xlu0 %v4111
  %v4135 = vpop.xlane.xlu0 %4134
  %4136 = vmax.xlane.f32.xlu0 %v4112
  %v4137 = vpop.xlane.xlu0 %4136
  %4138 = vmax.xlane.f32.xlu0 %v4113
  %v4139 = vpop.xlane.xlu0 %4138
  %4140 = vmax.xlane.f32.xlu0 %v4114
  %v4141 = vpop.xlane.xlu0 %4140
  %4142 = vmax.xlane.f32.xlu0 %v4115
  %v4143 = vpop.xlane.xlu0 %4142
  %4144 = vmax.xlane.f32.xlu0 %v4116
  %v4145 = vpop.xlane.xlu0 %4144
  %4146 = vmax.xlane.f32.xlu0 %v4117
  %v4147 = vpop.xlane.xlu0 %4146
  %4148 = vmax.xlane.f32.xlu0 %v4118
  %v4149 = vpop.xlane.xlu0 %4148
  %4150 = vmax.xlane.f32.xlu0 %v4119
  %v4151 = vpop.xlane.xlu0 %4150
  %v4152 = vsub.f32 %v4104, %v4121
  %v4153 = vsub.f32 %v4105, %v4123
  %v4154 = vsub.f32 %v4106, %v4125
  %v4155 = vsub.f32 %v4107, %v4127
  %v4156 = vsub.f32 %v4108, %v4129
  %v4157 = vsub.f32 %v4109, %v4131
  %v4158 = vsub.f32 %v4110, %v4133
  %v4159 = vsub.f32 %v4111, %v4135
  %v4160 = vsub.f32 %v4112, %v4137
  %v4161 = vsub.f32 %v4113, %v4139
  %v4162 = vsub.f32 %v4114, %v4141
  %v4163 = vsub.f32 %v4115, %v4143
  %v4164 = vsub.f32 %v4116, %v4145
  %v4165 = vsub.f32 %v4117, %v4147
  %v4166 = vsub.f32 %v4118, %v4149
  %v4167 = vsub.f32 %v4119, %v4151
  %v4168 = vmul.f32 %v4152, 1.442695
  %v4169 = vpow.pop %v4168
  %v4170 = vmul.f32 %v4153, 1.442695
  %v4171 = vpow.pop %v4170
  %v4172 = vmul.f32 %v4154, 1.442695
  %v4173 = vpow.pop %v4172
  %v4174 = vmul.f32 %v4155, 1.442695
  %v4175 = vpow.pop %v4174
  %v4176 = vmul.f32 %v4156, 1.442695
  %v4177 = vpow.pop %v4176
  %v4178 = vmul.f32 %v4157, 1.442695
  %v4179 = vpow.pop %v4178
  %v4180 = vmul.f32 %v4158, 1.442695
  %v4181 = vpow.pop %v4180
  %v4182 = vmul.f32 %v4159, 1.442695
  %v4183 = vpow.pop %v4182
  %v4184 = vmul.f32 %v4160, 1.442695
  %v4185 = vpow.pop %v4184
  %v4186 = vmul.f32 %v4161, 1.442695
  %v4187 = vpow.pop %v4186
  %v4188 = vmul.f32 %v4162, 1.442695
  %v4189 = vpow.pop %v4188
  %v4190 = vmul.f32 %v4163, 1.442695
  %v4191 = vpow.pop %v4190
  %v4192 = vmul.f32 %v4164, 1.442695
  %v4193 = vpow.pop %v4192
  %v4194 = vmul.f32 %v4165, 1.442695
  %v4195 = vpow.pop %v4194
  %v4196 = vmul.f32 %v4166, 1.442695
  %v4197 = vpow.pop %v4196
  %v4198 = vmul.f32 %v4167, 1.442695
  %v4199 = vpow.pop %v4198
  %4200 = vadd.xlane.f32.xlu0 %v4169
  %v4201 = vpop.xlane.xlu0 %4200
  %4202 = vadd.xlane.f32.xlu0 %v4171
  %v4203 = vpop.xlane.xlu0 %4202
  %4204 = vadd.xlane.f32.xlu0 %v4173
  %v4205 = vpop.xlane.xlu0 %4204
  %4206 = vadd.xlane.f32.xlu0 %v4175
  %v4207 = vpop.xlane.xlu0 %4206
  %4208 = vadd.xlane.f32.xlu0 %v4177
  %v4209 = vpop.xlane.xlu0 %4208
  %4210 = vadd.xlane.f32.xlu0 %v4179
  %v4211 = vpop.xlane.xlu0 %4210
  %4212 = vadd.xlane.f32.xlu0 %v4181
  %v4213 = vpop.xlane.xlu0 %4212
  %4214 = vadd.xlane.f32.xlu0 %v4183
  %v4215 = vpop.xlane.xlu0 %4214
  %4216 = vadd.xlane.f32.xlu0 %v4185
  %v4217 = vpop.xlane.xlu0 %4216
  %4218 = vadd.xlane.f32.xlu0 %v4187
  %v4219 = vpop.xlane.xlu0 %4218
  %4220 = vadd.xlane.f32.xlu0 %v4189
  %v4221 = vpop.xlane.xlu0 %4220
  %4222 = vadd.xlane.f32.xlu0 %v4191
  %v4223 = vpop.xlane.xlu0 %4222
  %4224 = vadd.xlane.f32.xlu0 %v4193
  %v4225 = vpop.xlane.xlu0 %4224
  %4226 = vadd.xlane.f32.xlu0 %v4195
  %v4227 = vpop.xlane.xlu0 %4226
  %4228 = vadd.xlane.f32.xlu0 %v4197
  %v4229 = vpop.xlane.xlu0 %4228
  %4230 = vadd.xlane.f32.xlu0 %v4199
  %v4231 = vpop.xlane.xlu0 %4230
  %v4232 = vlog2.pop %v4201
  %v4233 = vmul.f32 %v4232, 0.6931472
  %v4234 = vlog2.pop %v4203
  %v4235 = vmul.f32 %v4234, 0.6931472
  %v4236 = vlog2.pop %v4205
  %v4237 = vmul.f32 %v4236, 0.6931472
  %v4238 = vlog2.pop %v4207
  %v4239 = vmul.f32 %v4238, 0.6931472
  %v4240 = vlog2.pop %v4209
  %v4241 = vmul.f32 %v4240, 0.6931472
  %v4242 = vlog2.pop %v4211
  %v4243 = vmul.f32 %v4242, 0.6931472
  %v4244 = vlog2.pop %v4213
  %v4245 = vmul.f32 %v4244, 0.6931472
  %v4246 = vlog2.pop %v4215
  %v4247 = vmul.f32 %v4246, 0.6931472
  %v4248 = vlog2.pop %v4217
  %v4249 = vmul.f32 %v4248, 0.6931472
  %v4250 = vlog2.pop %v4219
  %v4251 = vmul.f32 %v4250, 0.6931472
  %v4252 = vlog2.pop %v4221
  %v4253 = vmul.f32 %v4252, 0.6931472
  %v4254 = vlog2.pop %v4223
  %v4255 = vmul.f32 %v4254, 0.6931472
  %v4256 = vlog2.pop %v4225
  %v4257 = vmul.f32 %v4256, 0.6931472
  %v4258 = vlog2.pop %v4227
  %v4259 = vmul.f32 %v4258, 0.6931472
  %v4260 = vlog2.pop %v4229
  %v4261 = vmul.f32 %v4260, 0.6931472
  %v4262 = vlog2.pop %v4231
  %v4263 = vmul.f32 %v4262, 0.6931472
  %v4264 = vadd.f32 %v4121, %v4233
  %v4265 = vadd.f32 %v4123, %v4235
  %v4266 = vadd.f32 %v4125, %v4237
  %v4267 = vadd.f32 %v4127, %v4239
  %v4268 = vadd.f32 %v4129, %v4241
  %v4269 = vadd.f32 %v4131, %v4243
  %v4270 = vadd.f32 %v4133, %v4245
  %v4271 = vadd.f32 %v4135, %v4247
  %v4272 = vadd.f32 %v4137, %v4249
  %v4273 = vadd.f32 %v4139, %v4251
  %v4274 = vadd.f32 %v4141, %v4253
  %v4275 = vadd.f32 %v4143, %v4255
  %v4276 = vadd.f32 %v4145, %v4257
  %v4277 = vadd.f32 %v4147, %v4259
  %v4278 = vadd.f32 %v4149, %v4261
  %v4279 = vadd.f32 %v4151, %v4263
  %v4280 = vsub.f32 %v4007, %v4264
  %v4281 = vsub.f32 %v4008, %v4265
  %v4282 = vsub.f32 %v4009, %v4266
  %v4283 = vsub.f32 %v4010, %v4267
  %v4284 = vsub.f32 %v4011, %v4268
  %v4285 = vsub.f32 %v4012, %v4269
  %v4286 = vsub.f32 %v4013, %v4270
  %v4287 = vsub.f32 %v4014, %v4271
  %v4288 = vsub.f32 %v4015, %v4272
  %v4289 = vsub.f32 %v4016, %v4273
  %v4290 = vsub.f32 %v4017, %v4274
  %v4291 = vsub.f32 %v4018, %v4275
  %v4292 = vsub.f32 %v4019, %v4276
  %v4293 = vsub.f32 %v4020, %v4277
  %v4294 = vsub.f32 %v4021, %v4278
  %v4295 = vsub.f32 %v4022, %v4279
  %4296 = vset.pattern.permute.xlu0 2
  %4297 = vperm.xlu0 %4296, %v51
  %v4298 = vpop.permute.xlu0 %4297
  %4299 = vset.pattern.permute.xlu0 2
  %4300 = vperm.xlu0 %4299, %v52
  %v4301 = vpop.permute.xlu0 %4300
  %4302 = vset.pattern.permute.xlu0 2
  %4303 = vperm.xlu0 %4302, %v53
  %v4304 = vpop.permute.xlu0 %4303
  %4305 = vset.pattern.permute.xlu0 2
  %4306 = vperm.xlu0 %4305, %v54
  %v4307 = vpop.permute.xlu0 %4306
  %4308 = vset.pattern.permute.xlu0 2
  %4309 = vperm.xlu0 %4308, %v55
  %v4310 = vpop.permute.xlu0 %4309
  %4311 = vset.pattern.permute.xlu0 2
  %4312 = vperm.xlu0 %4311, %v56
  %v4313 = vpop.permute.xlu0 %4312
  %4314 = vset.pattern.permute.xlu0 2
  %4315 = vperm.xlu0 %4314, %v57
  %v4316 = vpop.permute.xlu0 %4315
  %4317 = vset.pattern.permute.xlu0 2
  %4318 = vperm.xlu0 %4317, %v58
  %v4319 = vpop.permute.xlu0 %4318
  %4320 = vset.pattern.permute.xlu0 2
  %4321 = vperm.xlu0 %4320, %v59
  %v4322 = vpop.permute.xlu0 %4321
  %4323 = vset.pattern.permute.xlu0 2
  %4324 = vperm.xlu0 %4323, %v60
  %v4325 = vpop.permute.xlu0 %4324
  %4326 = vset.pattern.permute.xlu0 2
  %4327 = vperm.xlu0 %4326, %v61
  %v4328 = vpop.permute.xlu0 %4327
  %4329 = vset.pattern.permute.xlu0 2
  %4330 = vperm.xlu0 %4329, %v62
  %v4331 = vpop.permute.xlu0 %4330
  %4332 = vset.pattern.permute.xlu0 2
  %4333 = vperm.xlu0 %4332, %v63
  %v4334 = vpop.permute.xlu0 %4333
  %4335 = vset.pattern.permute.xlu0 2
  %4336 = vperm.xlu0 %4335, %v64
  %v4337 = vpop.permute.xlu0 %4336
  %4338 = vset.pattern.permute.xlu0 2
  %4339 = vperm.xlu0 %4338, %v65
  %v4340 = vpop.permute.xlu0 %4339
  %4341 = vset.pattern.permute.xlu0 2
  %4342 = vperm.xlu0 %4341, %v66
  %v4343 = vpop.permute.xlu0 %4342
  %vm4344 = vcmp.eq.s32.totalorder %v68, %v4298
  %vm4345 = vcmp.eq.s32.totalorder %v68, %v4301
  %vm4346 = vcmp.eq.s32.totalorder %v68, %v4304
  %vm4347 = vcmp.eq.s32.totalorder %v68, %v4307
  %vm4348 = vcmp.eq.s32.totalorder %v68, %v4310
  %vm4349 = vcmp.eq.s32.totalorder %v68, %v4313
  %vm4350 = vcmp.eq.s32.totalorder %v68, %v4316
  %vm4351 = vcmp.eq.s32.totalorder %v68, %v4319
  %vm4352 = vcmp.eq.s32.totalorder %v68, %v4322
  %vm4353 = vcmp.eq.s32.totalorder %v68, %v4325
  %vm4354 = vcmp.eq.s32.totalorder %v68, %v4328
  %vm4355 = vcmp.eq.s32.totalorder %v68, %v4331
  %vm4356 = vcmp.eq.s32.totalorder %v68, %v4334
  %vm4357 = vcmp.eq.s32.totalorder %v68, %v4337
  %vm4358 = vcmp.eq.s32.totalorder %v68, %v4340
  %vm4359 = vcmp.eq.s32.totalorder %v68, %v4343
  %v4360 = vsel %vm4344, %v4280, 0.0
  %v4361 = vsel %vm4345, %v4281, 0.0
  %v4362 = vsel %vm4346, %v4282, 0.0
  %v4363 = vsel %vm4347, %v4283, 0.0
  %v4364 = vsel %vm4348, %v4284, 0.0
  %v4365 = vsel %vm4349, %v4285, 0.0
  %v4366 = vsel %vm4350, %v4286, 0.0
  %v4367 = vsel %vm4351, %v4287, 0.0
  %v4368 = vsel %vm4352, %v4288, 0.0
  %v4369 = vsel %vm4353, %v4289, 0.0
  %v4370 = vsel %vm4354, %v4290, 0.0
  %v4371 = vsel %vm4355, %v4291, 0.0
  %v4372 = vsel %vm4356, %v4292, 0.0
  %v4373 = vsel %vm4357, %v4293, 0.0
  %v4374 = vsel %vm4358, %v4294, 0.0
  %v4375 = vsel %vm4359, %v4295, 0.0
  %4376 = vadd.xlane.f32.xlu0 %v4360
  %v4377 = vpop.xlane.xlu0 %4376
  %4378 = vadd.xlane.f32.xlu0 %v4361
  %v4379 = vpop.xlane.xlu0 %4378
  %4380 = vadd.xlane.f32.xlu0 %v4362
  %v4381 = vpop.xlane.xlu0 %4380
  %4382 = vadd.xlane.f32.xlu0 %v4363
  %v4383 = vpop.xlane.xlu0 %4382
  %4384 = vadd.xlane.f32.xlu0 %v4364
  %v4385 = vpop.xlane.xlu0 %4384
  %4386 = vadd.xlane.f32.xlu0 %v4365
  %v4387 = vpop.xlane.xlu0 %4386
  %4388 = vadd.xlane.f32.xlu0 %v4366
  %v4389 = vpop.xlane.xlu0 %4388
  %4390 = vadd.xlane.f32.xlu0 %v4367
  %v4391 = vpop.xlane.xlu0 %4390
  %4392 = vadd.xlane.f32.xlu0 %v4368
  %v4393 = vpop.xlane.xlu0 %4392
  %4394 = vadd.xlane.f32.xlu0 %v4369
  %v4395 = vpop.xlane.xlu0 %4394
  %4396 = vadd.xlane.f32.xlu0 %v4370
  %v4397 = vpop.xlane.xlu0 %4396
  %4398 = vadd.xlane.f32.xlu0 %v4371
  %v4399 = vpop.xlane.xlu0 %4398
  %4400 = vadd.xlane.f32.xlu0 %v4372
  %v4401 = vpop.xlane.xlu0 %4400
  %4402 = vadd.xlane.f32.xlu0 %v4373
  %v4403 = vpop.xlane.xlu0 %4402
  %4404 = vadd.xlane.f32.xlu0 %v4374
  %v4405 = vpop.xlane.xlu0 %4404
  %4406 = vadd.xlane.f32.xlu0 %v4375
  %v4407 = vpop.xlane.xlu0 %4406
  %v4408 = vsel %vm4103, %v4280, 0.0
  %v4409 = vsel %vm4103, %v4281, 0.0
  %v4410 = vsel %vm4103, %v4282, 0.0
  %v4411 = vsel %vm4103, %v4283, 0.0
  %v4412 = vsel %vm4103, %v4284, 0.0
  %v4413 = vsel %vm4103, %v4285, 0.0
  %v4414 = vsel %vm4103, %v4286, 0.0
  %v4415 = vsel %vm4103, %v4287, 0.0
  %v4416 = vsel %vm4103, %v4288, 0.0
  %v4417 = vsel %vm4103, %v4289, 0.0
  %v4418 = vsel %vm4103, %v4290, 0.0
  %v4419 = vsel %vm4103, %v4291, 0.0
  %v4420 = vsel %vm4103, %v4292, 0.0
  %v4421 = vsel %vm4103, %v4293, 0.0
  %v4422 = vsel %vm4103, %v4294, 0.0
  %v4423 = vsel %vm4103, %v4295, 0.0
  %4424 = vadd.xlane.f32.xlu0 %v4408
  %v4425 = vpop.xlane.xlu0 %4424
  %4426 = vadd.xlane.f32.xlu0 %v4409
  %v4427 = vpop.xlane.xlu0 %4426
  %4428 = vadd.xlane.f32.xlu0 %v4410
  %v4429 = vpop.xlane.xlu0 %4428
  %4430 = vadd.xlane.f32.xlu0 %v4411
  %v4431 = vpop.xlane.xlu0 %4430
  %4432 = vadd.xlane.f32.xlu0 %v4412
  %v4433 = vpop.xlane.xlu0 %4432
  %4434 = vadd.xlane.f32.xlu0 %v4413
  %v4435 = vpop.xlane.xlu0 %4434
  %4436 = vadd.xlane.f32.xlu0 %v4414
  %v4437 = vpop.xlane.xlu0 %4436
  %4438 = vadd.xlane.f32.xlu0 %v4415
  %v4439 = vpop.xlane.xlu0 %4438
  %4440 = vadd.xlane.f32.xlu0 %v4416
  %v4441 = vpop.xlane.xlu0 %4440
  %4442 = vadd.xlane.f32.xlu0 %v4417
  %v4443 = vpop.xlane.xlu0 %4442
  %4444 = vadd.xlane.f32.xlu0 %v4418
  %v4445 = vpop.xlane.xlu0 %4444
  %4446 = vadd.xlane.f32.xlu0 %v4419
  %v4447 = vpop.xlane.xlu0 %4446
  %4448 = vadd.xlane.f32.xlu0 %v4420
  %v4449 = vpop.xlane.xlu0 %4448
  %4450 = vadd.xlane.f32.xlu0 %v4421
  %v4451 = vpop.xlane.xlu0 %4450
  %4452 = vadd.xlane.f32.xlu0 %v4422
  %v4453 = vpop.xlane.xlu0 %4452
  %4454 = vadd.xlane.f32.xlu0 %v4423
  %v4455 = vpop.xlane.xlu0 %4454
  %v4456 = vmul.f32 %v4377, 0.9
  %v4457 = vmul.f32 %v4379, 0.9
  %v4458 = vmul.f32 %v4381, 0.9
  %v4459 = vmul.f32 %v4383, 0.9
  %v4460 = vmul.f32 %v4385, 0.9
  %v4461 = vmul.f32 %v4387, 0.9
  %v4462 = vmul.f32 %v4389, 0.9
  %v4463 = vmul.f32 %v4391, 0.9
  %v4464 = vmul.f32 %v4393, 0.9
  %v4465 = vmul.f32 %v4395, 0.9
  %v4466 = vmul.f32 %v4397, 0.9
  %v4467 = vmul.f32 %v4399, 0.9
  %v4468 = vmul.f32 %v4401, 0.9
  %v4469 = vmul.f32 %v4403, 0.9
  %v4470 = vmul.f32 %v4405, 0.9
  %v4471 = vmul.f32 %v4407, 0.9
  %v4472 = vmul.f32 %v4425, 0.003125
  %v4473 = vmul.f32 %v4427, 0.003125
  %v4474 = vmul.f32 %v4429, 0.003125
  %v4475 = vmul.f32 %v4431, 0.003125
  %v4476 = vmul.f32 %v4433, 0.003125
  %v4477 = vmul.f32 %v4435, 0.003125
  %v4478 = vmul.f32 %v4437, 0.003125
  %v4479 = vmul.f32 %v4439, 0.003125
  %v4480 = vmul.f32 %v4441, 0.003125
  %v4481 = vmul.f32 %v4443, 0.003125
  %v4482 = vmul.f32 %v4445, 0.003125
  %v4483 = vmul.f32 %v4447, 0.003125
  %v4484 = vmul.f32 %v4449, 0.003125
  %v4485 = vmul.f32 %v4451, 0.003125
  %v4486 = vmul.f32 %v4453, 0.003125
  %v4487 = vmul.f32 %v4455, 0.003125
  %v4488 = vadd.f32 %v4456, %v4472
  %v4489 = vadd.f32 %v4457, %v4473
  %v4490 = vadd.f32 %v4458, %v4474
  %v4491 = vadd.f32 %v4459, %v4475
  %v4492 = vadd.f32 %v4460, %v4476
  %v4493 = vadd.f32 %v4461, %v4477
  %v4494 = vadd.f32 %v4462, %v4478
  %v4495 = vadd.f32 %v4463, %v4479
  %v4496 = vadd.f32 %v4464, %v4480
  %v4497 = vadd.f32 %v4465, %v4481
  %v4498 = vadd.f32 %v4466, %v4482
  %v4499 = vadd.f32 %v4467, %v4483
  %v4500 = vadd.f32 %v4468, %v4484
  %v4501 = vadd.f32 %v4469, %v4485
  %v4502 = vadd.f32 %v4470, %v4486
  %v4503 = vadd.f32 %v4471, %v4487
  %v4504 = vsub.f32 0.0, %v4488
  %v4505 = vsub.f32 0.0, %v4489
  %v4506 = vsub.f32 0.0, %v4490
  %v4507 = vsub.f32 0.0, %v4491
  %v4508 = vsub.f32 0.0, %v4492
  %v4509 = vsub.f32 0.0, %v4493
  %v4510 = vsub.f32 0.0, %v4494
  %v4511 = vsub.f32 0.0, %v4495
  %v4512 = vsub.f32 0.0, %v4496
  %v4513 = vsub.f32 0.0, %v4497
  %v4514 = vsub.f32 0.0, %v4498
  %v4515 = vsub.f32 0.0, %v4499
  %v4516 = vsub.f32 0.0, %v4500
  %v4517 = vsub.f32 0.0, %v4501
  %v4518 = vsub.f32 0.0, %v4502
  %v4519 = vsub.f32 0.0, %v4503
  %v4520 = vmul.f32 %v4504, %v136
  %v4521 = vmul.f32 %v4505, %v137
  %v4522 = vmul.f32 %v4506, %v138
  %v4523 = vmul.f32 %v4507, %v139
  %v4524 = vmul.f32 %v4508, %v140
  %v4525 = vmul.f32 %v4509, %v141
  %v4526 = vmul.f32 %v4510, %v142
  %v4527 = vmul.f32 %v4511, %v143
  %v4528 = vmul.f32 %v4512, %v144
  %v4529 = vmul.f32 %v4513, %v145
  %v4530 = vmul.f32 %v4514, %v146
  %v4531 = vmul.f32 %v4515, %v147
  %v4532 = vmul.f32 %v4516, %v148
  %v4533 = vmul.f32 %v4517, %v149
  %v4534 = vmul.f32 %v4518, %v150
  %v4535 = vmul.f32 %v4519, %v151
  %v4536 = vsel %vm152, %v4520, 0.0
  %v4537 = vsel %vm152, %v4521, 0.0
  %v4538 = vadd.f32 %v4536, %v4537
  %v4539 = vsel %vm152, %v4522, 0.0
  %v4540 = vadd.f32 %v4538, %v4539
  %v4541 = vsel %vm152, %v4523, 0.0
  %v4542 = vadd.f32 %v4540, %v4541
  %v4543 = vsel %vm152, %v4524, 0.0
  %v4544 = vadd.f32 %v4542, %v4543
  %v4545 = vsel %vm152, %v4525, 0.0
  %v4546 = vadd.f32 %v4544, %v4545
  %v4547 = vsel %vm152, %v4526, 0.0
  %v4548 = vadd.f32 %v4546, %v4547
  %v4549 = vsel %vm152, %v4527, 0.0
  %v4550 = vadd.f32 %v4548, %v4549
  %v4551 = vsel %vm152, %v4528, 0.0
  %v4552 = vadd.f32 %v4550, %v4551
  %v4553 = vsel %vm152, %v4529, 0.0
  %v4554 = vadd.f32 %v4552, %v4553
  %v4555 = vsel %vm152, %v4530, 0.0
  %v4556 = vadd.f32 %v4554, %v4555
  %v4557 = vsel %vm152, %v4531, 0.0
  %v4558 = vadd.f32 %v4556, %v4557
  %v4559 = vsel %vm152, %v4532, 0.0
  %v4560 = vadd.f32 %v4558, %v4559
  %v4561 = vsel %vm152, %v4533, 0.0
  %v4562 = vadd.f32 %v4560, %v4561
  %v4563 = vsel %vm152, %v4534, 0.0
  %v4564 = vadd.f32 %v4562, %v4563
  %v4565 = vsel %vm152, %v4535, 0.0
  %v4566 = vadd.f32 %v4564, %v4565
  %4567 = vadd.xlane.f32.xlu0 %v4566
  %v4568 = vpop.xlane.xlu0 %4567
  %v4569 = vrot.slane %v4568, 4
  %v4570 = vadd.f32 %v4568, %v4569
  %v4571 = vrot.slane %v4570, 2
  %v4572 = vadd.f32 %v4570, %v4571
  %v4573 = vrot.slane %v4572, 1
  %v4574 = vadd.f32 %v4572, %v4573
  %s4575 = vtos %v4574
  %vm4576 = vcmp.eq.s32.totalorder %v68, 2
  %vm4577 = vmand %vm1699, %vm4576
  %v4578 = vstv %s4575
  %v4579 = vsel %vm4577, %v4578, 0.0
  %v4580 = vadd.f32 %v3142, %v4579
  %vm4581 = vcmp.eq.s32.totalorder %v70, 1
  %vm4582 = vcmp.lt.s32.totalorder %v68, 3
  %vm4583 = vmand %vm4581, %vm4582
  %v4584 = vstv %s192
  %v4585 = vsel %vm4583, %v4584, 0.0
  %v4586 = vadd.f32 %v4580, %v4585
  %4587 = vst [vmem:[%s10] sm:$0xff] %v4586
  // Predicated region
  $region38: #{forward.7} parent=0 // pred_check
    _
  $region39: #{forward.7} parent=0 // pred_check_branch
    %4589 = sbr.rel (0) target = $region41
  $region40: #{forward.7} parent=0 // pred_region
    _
  $region41: #{forward.7} parent=0 // pred_fallthru
    _
  // Predicated region
  $region42: #{forward.7} parent=0 // pred_check
    _
  $region43: #{forward.7} parent=0 // pred_check_branch
    %4591 = sbr.rel (0) target = $region45
  $region44: #{forward.7} parent=0 // pred_region
    _
  $region45: #{forward.7} parent=0 // pred_fallthru
    _
  // Predicated region
  $region46: #{forward.7} parent=0 // pred_check
    _
  $region47: #{forward.7} parent=0 // pred_check_branch
    %4593 = sbr.rel (0) target = $region49
  $region48: #{forward.7} parent=0 // pred_region
    _
  $region49: #{forward.7} parent=0 // pred_fallthru
    _
  // Predicated region
  $region50: #{forward.7} parent=0 // pred_check
    _
  $region51: #{forward.7} parent=0 // pred_check_branch
    %4595 = sbr.rel (0) target = $region53
  $region52: #{forward.7} parent=0 // pred_region
    _
  $region53: #{forward.7} parent=0 // pred_fallthru
    _

</llo_original>
